<compile_context>
chip_gen: v6e
topology: v6e:2x2x1
jax: 0.10.0
libtpu: 0.0.40
codegen_flags: <defaults>
</compile_context>

<pallas_src>
import numpy as np

import jax
import jax.numpy as jnp
from jax import lax
from jax.experimental import pallas as pl
from jax.experimental.pallas import tpu as pltpu

_BN_EPS = 1e-5


# --------------------------------------------------------------------------------------
# One-time host-side weight preprocessing (numpy)
# --------------------------------------------------------------------------------------
def _fold_bn(p):
    """Fold eval-mode BatchNorm into the conv weight / bias."""
    w = np.asarray(p["w"], np.float32)                      # (Cout, Cin, kh, kw)
    scale = np.asarray(p["gamma"], np.float32) / np.sqrt(
        np.asarray(p["var"], np.float32) + _BN_EPS)
    bias = np.asarray(p["beta"], np.float32) - np.asarray(p["mean"], np.float32) * scale
    return w * scale[:, None, None, None], bias


def _conv_stage_arrays(wf, bias, n, hi, wi, stride, pad):
    """Conv on a 2-D (N*H, W*C) activation slab:  out = sum_dy S_dy @ (slab @ BigW_dy) + b.

    S_dy  : (N*Ho, N*Hi) exact 0/1 row selection (stride + zero-padding in H, per image).
    BigW_dy: (Wi*Cin, Wo*Cout) banded block-Toeplitz (stride + zero-padding in W, and the
             contraction over (kw, Cin)).  Tap rows that never touch real input are pruned.
    """
    cout, cin, kh, kw = wf.shape
    ho = (hi + 2 * pad - kh) // stride + 1
    wo = (wi + 2 * pad - kw) // stride + 1
    s_list, w_list = [], []
    for dy in range(kh):
        s_mat = np.zeros((n * ho, n * hi), np.float32)
        valid = False
        for y in range(ho):
            h = stride * y + dy - pad
            if 0 <= h < hi:
                valid = True
                for b in range(n):
                    s_mat[b * ho + y, b * hi + h] = 1.0
        if not valid:
            continue
        big_w = np.zeros((wi * cin, wo * cout), np.float32)
        for x in range(wo):
            for dx in range(kw):
                w = stride * x + dx - pad
                if 0 <= w < wi:
                    big_w[w * cin:(w + 1) * cin, x * cout:(x + 1) * cout] = wf[:, :, dy, dx].T
        s_list.append(s_mat)
        w_list.append(big_w)
    bias_row = np.tile(bias, wo)[None, :]                   # (1, Wo*Cout), order (x, cout)
    return np.stack(s_list), np.stack(w_list), bias_row, ho, wo, cout


def _maxpool_stage_arrays(n, hi, wi, c):
    """3x3 / stride 2 / pad 1 max pool = 9 exact 0/1 selections + elementwise max.
    Zero padding (instead of -inf) is exact because the pooled input is post-ReLU."""
    ho = (hi + 2 - 3) // 2 + 1
    wo = (wi + 2 - 3) // 2 + 1
    eye = np.eye(c, dtype=np.float32)
    r_list, c_list = [], []
    for d in range(3):
        r_mat = np.zeros((n * ho, n * hi), np.float32)
        for y in range(ho):
            h = 2 * y + d - 1
            if 0 <= h < hi:
                for b in range(n):
                    r_mat[b * ho + y, b * hi + h] = 1.0
        r_list.append(r_mat)
        c_mat = np.zeros((wi * c, wo * c), np.float32)
        for x in range(wo):
            w = 2 * x + d - 1
            if 0 <= w < wi:
                c_mat[w * c:(w + 1) * c, x * c:(x + 1) * c] = eye
        c_list.append(c_mat)
    return np.stack(r_list), np.stack(c_list), ho, wo


def _head_stage_arrays(params, n, h4, w4, c4, num_classes):
    """Global-avg-pool selections + the algebraically fused coarse/refine head weights."""
    wc = np.asarray(params["coarse"]["w"], np.float32)      # (nc, feat)
    bc = np.asarray(params["coarse"]["b"], np.float32)
    wr = np.asarray(params["refine"]["w"], np.float32)      # (nc, feat + nc)
    br = np.asarray(params["refine"]["b"], np.float32)
    feat = wc.shape[1]
    assert feat == c4 and wr.shape[1] == feat + num_classes
    wr_feat, wr_cond = wr[:, :feat], wr[:, feat:]
    # refine = pooled @ (Wr_feat^T + Wc^T Wr_cond^T) + (bc Wr_cond^T + br)   (identity cond.)
    w_heads = np.concatenate([wc.T, wr_feat.T + wc.T @ wr_cond.T], axis=1)   # (feat, 2*nc)
    b_heads = np.concatenate([bc, bc @ wr_cond.T + br])[None, :]             # (1, 2*nc)

    sp = np.zeros((n, n * h4), np.float32)                  # row-average per image
    for b in range(n):
        sp[b, b * h4:(b + 1) * h4] = 1.0 / h4
    cp = np.zeros((w4 * c4, c4), np.float32)                # column-average over x
    blk = np.eye(c4, dtype=np.float32) / w4
    for x in range(w4):
        cp[x * c4:(x + 1) * c4, :] = blk
    return sp, cp, w_heads, b_heads


# --------------------------------------------------------------------------------------
# Fused forward construction
# --------------------------------------------------------------------------------------
def build_fused_forward(params, *, batch, in_hw, in_ch=3, num_classes=10,
                        layer_strides=(1, 2, 2, 2), condition_activation=None,
                        stop_gradient=True, train_mode=False):
    n = batch
    hi, wi = in_hw
    c = in_ch

    consts = []   # flat list of jnp arrays fed to the kernel (after the input slab)
    plan = []     # static per-stage description consumed while tracing the kernel

    def push_conv(p, stride, pad, hi_, wi_, cin, *, relu, src, dst, add_ident):
        wf, bias = _fold_bn(p)
        assert wf.shape[1] == cin
        s, w, b, ho, wo, cout = _conv_stage_arrays(wf, bias, n, hi_, wi_, stride, pad)
        consts.extend([jnp.asarray(s, jnp.bfloat16),
                       jnp.asarray(w, jnp.bfloat16),
                       jnp.asarray(b, jnp.float32)])
        plan.append(dict(kind="conv", taps=s.shape[0], relu=relu, src=src, dst=dst,
                         add_ident=add_ident))
        return ho, wo, cout

    # stem: 7x7 / s2 / p3 conv + BN + ReLU
    hi, wi, c = push_conv(params["feature"]["stem"], 2, 3, hi, wi, c,
                          relu=True, src="act", dst="act", add_ident=False)
    # 3x3 / s2 / p1 max pool
    r, cm, hi, wi = _maxpool_stage_arrays(n, hi, wi, c)
    consts.extend([jnp.asarray(r, jnp.bfloat16), jnp.asarray(cm, jnp.bfloat16)])
    plan.append(dict(kind="pool", taps=r.shape[0]))
    # BasicBlock stack
    for li, layer in enumerate(params["feature"]["layers"]):
        for bi, bp in enumerate(layer):
            stride = layer_strides[li] if bi == 0 else 1
            cin, bhi, bwi = c, hi, wi
            plan.append(dict(kind="save"))                        # identity <- block input
            hi, wi, c = push_conv(bp["conv1"], stride, 1, hi, wi, cin,
                                  relu=True, src="act", dst="act", add_ident=False)
            if "down" in bp:                                      # 1x1 downsample on block input
                push_conv(bp["down"], stride, 0, bhi, bwi, cin,
                          relu=False, src="ident", dst="ident", add_ident=False)
            hi, wi, c = push_conv(bp["conv2"], 1, 1, hi, wi, c,
                                  relu=True, src="act", dst="act", add_ident=True)
    # global avg pool + fused coarse/refine heads
    sp, cp, w_heads, b_heads = _head_stage_arrays(params, n, hi, wi, c, num_classes)
    consts.extend([jnp.asarray(sp, jnp.bfloat16), jnp.asarray(cp, jnp.bfloat16),
                   jnp.asarray(w_heads, jnp.bfloat16), jnp.asarray(b_heads, jnp.float32)])
    plan.append(dict(kind="heads"))

    feat_dim, nc, n_consts = c, num_classes, len(consts)

    # ------------------------------- the fused kernel --------------------------------
    def kernel(*refs):
        in_refs = refs[:1 + n_consts]
        out_heads_ref, out_feat_ref = refs[1 + n_consts], refs[2 + n_consts]
        act = in_refs[0][...]                    # (N*H, W*C) bf16 input slab
        ident = None
        idx = 1
        for st in plan:
            kind = st["kind"]
            if kind == "save":
                ident = act
            elif kind == "conv":
                s_ref, w_ref, b_ref = in_refs[idx], in_refs[idx + 1], in_refs[idx + 2]
                idx += 3
                src = act if st["src"] == "act" else ident
                acc = None
                for t in range(st["taps"]):
                    # bf16 MXU operands, f32 accumulation; S is an exact 0/1 selection.
                    part = jnp.dot(src, w_ref[t], preferred_element_type=jnp.float32)
                    part = jnp.dot(s_ref[t], part.astype(jnp.bfloat16),
                                   preferred_element_type=jnp.float32)
                    acc = part if acc is None else acc + part
                acc = acc + b_ref[...]
                if st["add_ident"]:
                    acc = acc + ident.astype(jnp.float32)
                if st["relu"]:
                    acc = jnp.maximum(acc, 0.0)
                if st["dst"] == "act":
                    act = acc.astype(jnp.bfloat16)
                else:
                    ident = acc.astype(jnp.bfloat16)
            elif kind == "pool":
                r_ref, c_ref = in_refs[idx], in_refs[idx + 1]
                idx += 2
                best = None
                for dx in range(st["taps"]):
                    shifted = jnp.dot(act, c_ref[dx],
                                      preferred_element_type=jnp.float32).astype(jnp.bfloat16)
                    for dy in range(st["taps"]):
                        cand = jnp.dot(r_ref[dy], shifted,
                                       preferred_element_type=jnp.float32)
                        best = cand if best is None else jnp.maximum(best, cand)
                act = best.astype(jnp.bfloat16)
            else:  # "heads"
                sp_ref, cp_ref, wh_ref, bh_ref = (in_refs[idx], in_refs[idx + 1],
                                                  in_refs[idx + 2], in_refs[idx + 3])
                idx += 4
                pooled = jnp.dot(act, cp_ref[...], preferred_element_type=jnp.float32)
                pooled = jnp.dot(sp_ref[...], pooled.astype(jnp.bfloat16),
                                 preferred_element_type=jnp.float32)
                out_feat_ref[...] = pooled
                logits = jnp.dot(pooled.astype(jnp.bfloat16), wh_ref[...],
                                 preferred_element_type=jnp.float32) + bh_ref[...]
                out_heads_ref[...] = logits

    fused_call = pl.pallas_call(
        kernel,
        out_shape=(jax.ShapeDtypeStruct((n, 2 * nc), jnp.float32),     # [coarse | refine]
                   jax.ShapeDtypeStruct((n, feat_dim), jnp.float32)),  # pooled feature
        # No grid: single invocation, every (tiny) operand lives whole-array in VMEM.
        # Single TensorCore by design (latency-bound at batch=2; accepted per review).
        compiler_params=pltpu.CompilerParams(vmem_limit_bytes=32 * 1024 * 1024),
    )

    # tiny XLA epilogue weights, only needed when condition_activation is relu/softmax
    wr_np = np.asarray(params["refine"]["w"], np.float32)
    wr_feat_t = jnp.asarray(wr_np[:, :feat_dim].T)
    wr_cond_t = jnp.asarray(wr_np[:, feat_dim:].T)
    br_vec = jnp.asarray(np.asarray(params["refine"]["b"], np.float32))

    def forward(kernel_consts, x, processed_x):
        # OnlySaliencySharedAblation: BOTH branches consume processed_x through the SAME
        # shared eval-mode extractor, so the backbone runs exactly once; x is unused here.
        del x
        bb, cc, hh, ww = processed_x.shape
        assert (bb, cc, (hh, ww)) == (n, in_ch, tuple(in_hw))
        slab = jnp.transpose(processed_x, (0, 2, 3, 1)).reshape(bb * hh, ww * cc)
        heads, pooled = fused_call(slab.astype(jnp.bfloat16), *kernel_consts)
        coarse = heads[:, :nc]
        if condition_activation is None:
            refine = heads[:, nc:]           # exact algebraic fusion of both heads
        else:
            # TODO(synk): relu/softmax condition activations keep a tiny (N, nc) XLA
            # epilogue outside the fused kernel (coarse -> activation -> refine matmul).
            cond = lax.stop_gradient(coarse) if stop_gradient else coarse
            if condition_activation == "relu":
                cond = jnp.maximum(cond, 0.0)
            elif condition_activation == "softmax":
                cond = jax.nn.softmax(cond, axis=1)
            else:
                raise ValueError(condition_activation)
            refine = pooled @ wr_feat_t + cond @ wr_cond_t + br_vec
        return (refine, coarse) if train_mode else refine

    return jax.jit(forward), tuple(consts)


# --------------------------------------------------------------------------------------
# Pure-JAX f32 reference (independent of the kernel's folded weights) for validation
# --------------------------------------------------------------------------------------
def _reference_forward(params, processed_x, *, layer_strides=(1, 2, 2, 2)):
    def conv_bn(x, p, stride, pad):
        w = jnp.transpose(p["w"], (2, 3, 1, 0))             # HWIO
        y = lax.conv_general_dilated(x, w, (stride, stride), [(pad, pad), (pad, pad)],
                                     dimension_numbers=("NHWC", "HWIO", "NHWC"))
        scale = p["gamma"] / jnp.sqrt(p["var"] + _BN_EPS)
        return y * scale + (p["beta"] - p["mean"] * scale)

    x = jnp.transpose(processed_x, (0, 2, 3, 1))
    x = jax.nn.relu(conv_bn(x, params["feature"]["stem"], 2, 3))
    x = lax.reduce_window(x, -jnp.inf, lax.max, (1, 3, 3, 1), (1, 2, 2, 1),
                          ((0, 0), (1, 1), (1, 1), (0, 0)))
    for li, layer in enumerate(params["feature"]["layers"]):
        for bi, bp in enumerate(layer):
            stride = layer_strides[li] if bi == 0 else 1
            out = jax.nn.relu(conv_bn(x, bp["conv1"], stride, 1))
            out = conv_bn(out, bp["conv2"], 1, 1)
            identity = conv_bn(x, bp["down"], stride, 0) if "down" in bp else x
            x = jax.nn.relu(out + identity)
    pooled = jnp.mean(x, axis=(1, 2))
    coarse = pooled @ params["coarse"]["w"].T + params["coarse"]["b"]
    cond = coarse  # identity activation; stop_gradient is a forward no-op
    refine = (jnp.concatenate([pooled, cond], axis=1) @ params["refine"]["w"].T
              + params["refine"]["b"])
    return refine


# --------------------------------------------------------------------------------------
# Deterministic parameter init (scaled-down synthetic BasicBlock ResNet)
# --------------------------------------------------------------------------------------
def _init_conv_bn(key, cin, cout, k):
    k1, k2, k3, k4, k5 = jax.random.split(key, 5)
    fan_in = cin * k * k
    return dict(
        w=jax.random.normal(k1, (cout, cin, k, k), jnp.float32) * jnp.sqrt(2.0 / fan_in),
        gamma=1.0 + 0.1 * jax.random.normal(k2, (cout,), jnp.float32),
        beta=0.1 * jax.random.normal(k3, (cout,), jnp.float32),
        mean=0.1 * jax.random.normal(k4, (cout,), jnp.float32),
        var=jnp.abs(1.0 + 0.1 * jax.random.normal(k5, (cout,), jnp.float32)),
    )


def _init_basic_block(key, cin, cout, stride):
    ks = jax.random.split(key, 3)
    p = dict(conv1=_init_conv_bn(ks[0], cin, cout, 3),
             conv2=_init_conv_bn(ks[1], cout, cout, 3))
    if stride != 1 or cin != cout:
        p["down"] = _init_conv_bn(ks[2], cin, cout, 1)
    return p


def _init_linear(key, din, dout):
    k1, k2 = jax.random.split(key)
    bound = 1.0 / jnp.sqrt(din)
    return dict(w=jax.random.uniform(k1, (dout, din), jnp.float32, -bound, bound),
                b=jax.random.uniform(k2, (dout,), jnp.float32, -bound, bound))


def init_params(key, layers=(1, 1, 1, 1), base_width=16, num_classes=10, in_ch=3):
    widths = [base_width, base_width * 2, base_width * 4, base_width * 8]
    layer_strides = (1, 2, 2, 2)
    kf, kc, kr, kstem = jax.random.split(key, 4)
    feature = {"stem": _init_conv_bn(kstem, in_ch, widths[0], 7), "layers": []}
    cin = widths[0]
    for li, (nblocks, cout) in enumerate(zip(layers, widths)):
        layer = []
        for b in range(nblocks):
            kb = jax.random.fold_in(kf, li * 100 + b)
            stride = layer_strides[li] if b == 0 else 1
            layer.append(_init_basic_block(kb, cin, cout, stride))
            cin = cout
        feature["layers"].append(layer)
    feat_dim = widths[-1]  # BasicBlock expansion = 1
    return dict(feature=feature,
                coarse=_init_linear(kc, feat_dim, num_classes),
                refine=_init_linear(kr, feat_dim + num_classes, num_classes))


# --------------------------------------------------------------------------------------
if __name__ == "__main__":
    num_classes = 10
    batch, in_ch, in_size = 2, 3, 32

    params = init_params(jax.random.PRNGKey(42), layers=(1, 1, 1, 1), base_width=16,
                         num_classes=num_classes, in_ch=in_ch)

    kx, kp = jax.random.split(jax.random.PRNGKey(0))
    x = jax.random.normal(kx, (batch, in_ch, in_size, in_size), jnp.float32)            # unused
    processed_x = jax.random.normal(kp, (batch, in_ch, in_size, in_size), jnp.float32)

    forward, kernel_consts = build_fused_forward(
        params, batch=batch, in_hw=(in_size, in_size), in_ch=in_ch,
        num_classes=num_classes, condition_activation=None, stop_gradient=True,
        train_mode=False)

    refine = jax.block_until_ready(forward(kernel_consts, x, processed_x))
    assert refine.shape == (batch, num_classes)
    assert bool(jnp.all(jnp.isfinite(refine)))

    # numerical sanity vs. an independent pure-JAX f32 reference (bf16 MXU drift expected)
    ref = _reference_forward(params, processed_x)
    err = float(jnp.max(jnp.abs(refine - ref)))
    scale = float(jnp.max(jnp.abs(ref))) + 1e-6
    assert err <= 0.1 * scale + 0.1, f"kernel/reference mismatch: err={err}, scale={scale}"

    print("KERNEL_OK")
</pallas_src>

<mosaic_0001>
module attributes {stable_mosaic.version = 11 : i64} {
  func.func @kernel(%arg0: memref<64x96xbf16, #tpu.memory_space<vmem>>, %arg1: memref<7x32x64xbf16, #tpu.memory_space<vmem>>, %arg2: memref<7x96x256xbf16, #tpu.memory_space<vmem>>, %arg3: memref<1x256xf32, #tpu.memory_space<vmem>>, %arg4: memref<3x16x32xbf16, #tpu.memory_space<vmem>>, %arg5: memref<3x256x128xbf16, #tpu.memory_space<vmem>>, %arg6: memref<3x16x16xbf16, #tpu.memory_space<vmem>>, %arg7: memref<3x128x128xbf16, #tpu.memory_space<vmem>>, %arg8: memref<1x128xf32, #tpu.memory_space<vmem>>, %arg9: memref<3x16x16xbf16, #tpu.memory_space<vmem>>, %arg10: memref<3x128x128xbf16, #tpu.memory_space<vmem>>, %arg11: memref<1x128xf32, #tpu.memory_space<vmem>>, %arg12: memref<3x8x16xbf16, #tpu.memory_space<vmem>>, %arg13: memref<3x128x128xbf16, #tpu.memory_space<vmem>>, %arg14: memref<1x128xf32, #tpu.memory_space<vmem>>, %arg15: memref<1x8x16xbf16, #tpu.memory_space<vmem>>, %arg16: memref<1x128x128xbf16, #tpu.memory_space<vmem>>, %arg17: memref<1x128xf32, #tpu.memory_space<vmem>>, %arg18: memref<3x8x8xbf16, #tpu.memory_space<vmem>>, %arg19: memref<3x128x128xbf16, #tpu.memory_space<vmem>>, %arg20: memref<1x128xf32, #tpu.memory_space<vmem>>, %arg21: memref<3x4x8xbf16, #tpu.memory_space<vmem>>, %arg22: memref<3x128x128xbf16, #tpu.memory_space<vmem>>, %arg23: memref<1x128xf32, #tpu.memory_space<vmem>>, %arg24: memref<1x4x8xbf16, #tpu.memory_space<vmem>>, %arg25: memref<1x128x128xbf16, #tpu.memory_space<vmem>>, %arg26: memref<1x128xf32, #tpu.memory_space<vmem>>, %arg27: memref<3x4x4xbf16, #tpu.memory_space<vmem>>, %arg28: memref<3x128x128xbf16, #tpu.memory_space<vmem>>, %arg29: memref<1x128xf32, #tpu.memory_space<vmem>>, %arg30: memref<2x2x4xbf16, #tpu.memory_space<vmem>>, %arg31: memref<2x128x128xbf16, #tpu.memory_space<vmem>>, %arg32: memref<1x128xf32, #tpu.memory_space<vmem>>, %arg33: memref<1x2x4xbf16, #tpu.memory_space<vmem>>, %arg34: memref<1x128x128xbf16, #tpu.memory_space<vmem>>, %arg35: memref<1x128xf32, #tpu.memory_space<vmem>>, %arg36: memref<1x2x2xbf16, #tpu.memory_space<vmem>>, %arg37: memref<1x128x128xbf16, #tpu.memory_space<vmem>>, %arg38: memref<1x128xf32, #tpu.memory_space<vmem>>, %arg39: memref<2x2xbf16, #tpu.memory_space<vmem>>, %arg40: memref<128x128xbf16, #tpu.memory_space<vmem>>, %arg41: memref<128x20xbf16, #tpu.memory_space<vmem>>, %arg42: memref<1x20xf32, #tpu.memory_space<vmem>>, %arg43: memref<2x20xf32, #tpu.memory_space<vmem>>, %arg44: memref<2x128xf32, #tpu.memory_space<vmem>>) attributes {dimension_semantics = [], scalar_prefetch = 0 : i64, scratch_operands = 0 : i64, tpu.core_type = #tpu.core_type<tc>} {
    %c0 = arith.constant 0 : index
    %c0_0 = arith.constant 0 : index
    %0 = vector.load %arg0[%c0, %c0_0] : memref<64x96xbf16, #tpu.memory_space<vmem>>, vector<64x96xbf16>
    %c0_1 = arith.constant 0 : index
    %c0_2 = arith.constant 0 : index
    %c0_3 = arith.constant 0 : index
    %1 = vector.load %arg2[%c0_1, %c0_2, %c0_3] : memref<7x96x256xbf16, #tpu.memory_space<vmem>>, vector<1x96x256xbf16>
    %2 = vector.shape_cast %1 : vector<1x96x256xbf16> to vector<96x256xbf16>
    %cst = arith.constant dense<0.000000e+00> : vector<64x256xf32>
    %3 = tpu.matmul %0, %2, %cst {dimension_numbers = #tpu.dot_dimension_numbers<[1], [0], [0], [1], [0, 0, 1, 1], [], []>} : vector<64x96xbf16>, vector<96x256xbf16>, vector<64x256xf32> -> vector<64x256xf32>
    %c0_4 = arith.constant 0 : index
    %c0_5 = arith.constant 0 : index
    %c0_6 = arith.constant 0 : index
    %4 = vector.load %arg1[%c0_4, %c0_5, %c0_6] : memref<7x32x64xbf16, #tpu.memory_space<vmem>>, vector<1x32x64xbf16>
    %5 = vector.shape_cast %4 : vector<1x32x64xbf16> to vector<32x64xbf16>
    %6 = arith.truncf %3 : vector<64x256xf32> to vector<64x256xbf16>
    %cst_7 = arith.constant dense<0.000000e+00> : vector<32x256xf32>
    %7 = tpu.matmul %5, %6, %cst_7 {dimension_numbers = #tpu.dot_dimension_numbers<[1], [0], [0], [1], [0, 0, 1, 1], [], []>} : vector<32x64xbf16>, vector<64x256xbf16>, vector<32x256xf32> -> vector<32x256xf32>
    %c1 = arith.constant 1 : index
    %c0_8 = arith.constant 0 : index
    %c0_9 = arith.constant 0 : index
    %8 = vector.load %arg2[%c1, %c0_8, %c0_9] : memref<7x96x256xbf16, #tpu.memory_space<vmem>>, vector<1x96x256xbf16>
    %9 = vector.shape_cast %8 : vector<1x96x256xbf16> to vector<96x256xbf16>
    %cst_10 = arith.constant dense<0.000000e+00> : vector<64x256xf32>
    %10 = tpu.matmul %0, %9, %cst_10 {dimension_numbers = #tpu.dot_dimension_numbers<[1], [0], [0], [1], [0, 0, 1, 1], [], []>} : vector<64x96xbf16>, vector<96x256xbf16>, vector<64x256xf32> -> vector<64x256xf32>
    %c1_11 = arith.constant 1 : index
    %c0_12 = arith.constant 0 : index
    %c0_13 = arith.constant 0 : index
    %11 = vector.load %arg1[%c1_11, %c0_12, %c0_13] : memref<7x32x64xbf16, #tpu.memory_space<vmem>>, vector<1x32x64xbf16>
    %12 = vector.shape_cast %11 : vector<1x32x64xbf16> to vector<32x64xbf16>
    %13 = arith.truncf %10 : vector<64x256xf32> to vector<64x256xbf16>
    %cst_14 = arith.constant dense<0.000000e+00> : vector<32x256xf32>
    %14 = tpu.matmul %12, %13, %cst_14 {dimension_numbers = #tpu.dot_dimension_numbers<[1], [0], [0], [1], [0, 0, 1, 1], [], []>} : vector<32x64xbf16>, vector<64x256xbf16>, vector<32x256xf32> -> vector<32x256xf32>
    %15 = arith.addf %7, %14 : vector<32x256xf32>
    %c2 = arith.constant 2 : index
    %c0_15 = arith.constant 0 : index
    %c0_16 = arith.constant 0 : index
    %16 = vector.load %arg2[%c2, %c0_15, %c0_16] : memref<7x96x256xbf16, #tpu.memory_space<vmem>>, vector<1x96x256xbf16>
    %17 = vector.shape_cast %16 : vector<1x96x256xbf16> to vector<96x256xbf16>
    %cst_17 = arith.constant dense<0.000000e+00> : vector<64x256xf32>
    %18 = tpu.matmul %0, %17, %cst_17 {dimension_numbers = #tpu.dot_dimension_numbers<[1], [0], [0], [1], [0, 0, 1, 1], [], []>} : vector<64x96xbf16>, vector<96x256xbf16>, vector<64x256xf32> -> vector<64x256xf32>
    %c2_18 = arith.constant 2 : index
    %c0_19 = arith.constant 0 : index
    %c0_20 = arith.constant 0 : index
    %19 = vector.load %arg1[%c2_18, %c0_19, %c0_20] : memref<7x32x64xbf16, #tpu.memory_space<vmem>>, vector<1x32x64xbf16>
    %20 = vector.shape_cast %19 : vector<1x32x64xbf16> to vector<32x64xbf16>
    %21 = arith.truncf %18 : vector<64x256xf32> to vector<64x256xbf16>
    %cst_21 = arith.constant dense<0.000000e+00> : vector<32x256xf32>
    %22 = tpu.matmul %20, %21, %cst_21 {dimension_numbers = #tpu.dot_dimension_numbers<[1], [0], [0], [1], [0, 0, 1, 1], [], []>} : vector<32x64xbf16>, vector<64x256xbf16>, vector<32x256xf32> -> vector<32x256xf32>
    %23 = arith.addf %15, %22 : vector<32x256xf32>
    %c3 = arith.constant 3 : index
    %c0_22 = arith.constant 0 : index
    %c0_23 = arith.constant 0 : index
    %24 = vector.load %arg2[%c3, %c0_22, %c0_23] : memref<7x96x256xbf16, #tpu.memory_space<vmem>>, vector<1x96x256xbf16>
    %25 = vector.shape_cast %24 : vector<1x96x256xbf16> to vector<96x256xbf16>
    %cst_24 = arith.constant dense<0.000000e+00> : vector<64x256xf32>
    %26 = tpu.matmul %0, %25, %cst_24 {dimension_numbers = #tpu.dot_dimension_numbers<[1], [0], [0], [1], [0, 0, 1, 1], [], []>} : vector<64x96xbf16>, vector<96x256xbf16>, vector<64x256xf32> -> vector<64x256xf32>
    %c3_25 = arith.constant 3 : index
    %c0_26 = arith.constant 0 : index
    %c0_27 = arith.constant 0 : index
    %27 = vector.load %arg1[%c3_25, %c0_26, %c0_27] : memref<7x32x64xbf16, #tpu.memory_space<vmem>>, vector<1x32x64xbf16>
    %28 = vector.shape_cast %27 : vector<1x32x64xbf16> to vector<32x64xbf16>
    %29 = arith.truncf %26 : vector<64x256xf32> to vector<64x256xbf16>
    %cst_28 = arith.constant dense<0.000000e+00> : vector<32x256xf32>
    %30 = tpu.matmul %28, %29, %cst_28 {dimension_numbers = #tpu.dot_dimension_numbers<[1], [0], [0], [1], [0, 0, 1, 1], [], []>} : vector<32x64xbf16>, vector<64x256xbf16>, vector<32x256xf32> -> vector<32x256xf32>
    %31 = arith.addf %23, %30 : vector<32x256xf32>
    %c4 = arith.constant 4 : index
    %c0_29 = arith.constant 0 : index
    %c0_30 = arith.constant 0 : index
    %32 = vector.load %arg2[%c4, %c0_29, %c0_30] : memref<7x96x256xbf16, #tpu.memory_space<vmem>>, vector<1x96x256xbf16>
    %33 = vector.shape_cast %32 : vector<1x96x256xbf16> to vector<96x256xbf16>
    %cst_31 = arith.constant dense<0.000000e+00> : vector<64x256xf32>
    %34 = tpu.matmul %0, %33, %cst_31 {dimension_numbers = #tpu.dot_dimension_numbers<[1], [0], [0], [1], [0, 0, 1, 1], [], []>} : vector<64x96xbf16>, vector<96x256xbf16>, vector<64x256xf32> -> vector<64x256xf32>
    %c4_32 = arith.constant 4 : index
    %c0_33 = arith.constant 0 : index
    %c0_34 = arith.constant 0 : index
    %35 = vector.load %arg1[%c4_32, %c0_33, %c0_34] : memref<7x32x64xbf16, #tpu.memory_space<vmem>>, vector<1x32x64xbf16>
    %36 = vector.shape_cast %35 : vector<1x32x64xbf16> to vector<32x64xbf16>
    %37 = arith.truncf %34 : vector<64x256xf32> to vector<64x256xbf16>
    %cst_35 = arith.constant dense<0.000000e+00> : vector<32x256xf32>
    %38 = tpu.matmul %36, %37, %cst_35 {dimension_numbers = #tpu.dot_dimension_numbers<[1], [0], [0], [1], [0, 0, 1, 1], [], []>} : vector<32x64xbf16>, vector<64x256xbf16>, vector<32x256xf32> -> vector<32x256xf32>
    %39 = arith.addf %31, %38 : vector<32x256xf32>
    %c5 = arith.constant 5 : index
    %c0_36 = arith.constant 0 : index
    %c0_37 = arith.constant 0 : index
    %40 = vector.load %arg2[%c5, %c0_36, %c0_37] : memref<7x96x256xbf16, #tpu.memory_space<vmem>>, vector<1x96x256xbf16>
    %41 = vector.shape_cast %40 : vector<1x96x256xbf16> to vector<96x256xbf16>
    %cst_38 = arith.constant dense<0.000000e+00> : vector<64x256xf32>
    %42 = tpu.matmul %0, %41, %cst_38 {dimension_numbers = #tpu.dot_dimension_numbers<[1], [0], [0], [1], [0, 0, 1, 1], [], []>} : vector<64x96xbf16>, vector<96x256xbf16>, vector<64x256xf32> -> vector<64x256xf32>
    %c5_39 = arith.constant 5 : index
    %c0_40 = arith.constant 0 : index
    %c0_41 = arith.constant 0 : index
    %43 = vector.load %arg1[%c5_39, %c0_40, %c0_41] : memref<7x32x64xbf16, #tpu.memory_space<vmem>>, vector<1x32x64xbf16>
    %44 = vector.shape_cast %43 : vector<1x32x64xbf16> to vector<32x64xbf16>
    %45 = arith.truncf %42 : vector<64x256xf32> to vector<64x256xbf16>
    %cst_42 = arith.constant dense<0.000000e+00> : vector<32x256xf32>
    %46 = tpu.matmul %44, %45, %cst_42 {dimension_numbers = #tpu.dot_dimension_numbers<[1], [0], [0], [1], [0, 0, 1, 1], [], []>} : vector<32x64xbf16>, vector<64x256xbf16>, vector<32x256xf32> -> vector<32x256xf32>
    %47 = arith.addf %39, %46 : vector<32x256xf32>
    %c6 = arith.constant 6 : index
    %c0_43 = arith.constant 0 : index
    %c0_44 = arith.constant 0 : index
    %48 = vector.load %arg2[%c6, %c0_43, %c0_44] : memref<7x96x256xbf16, #tpu.memory_space<vmem>>, vector<1x96x256xbf16>
    %49 = vector.shape_cast %48 : vector<1x96x256xbf16> to vector<96x256xbf16>
    %cst_45 = arith.constant dense<0.000000e+00> : vector<64x256xf32>
    %50 = tpu.matmul %0, %49, %cst_45 {dimension_numbers = #tpu.dot_dimension_numbers<[1], [0], [0], [1], [0, 0, 1, 1], [], []>} : vector<64x96xbf16>, vector<96x256xbf16>, vector<64x256xf32> -> vector<64x256xf32>
    %c6_46 = arith.constant 6 : index
    %c0_47 = arith.constant 0 : index
    %c0_48 = arith.constant 0 : index
    %51 = vector.load %arg1[%c6_46, %c0_47, %c0_48] : memref<7x32x64xbf16, #tpu.memory_space<vmem>>, vector<1x32x64xbf16>
    %52 = vector.shape_cast %51 : vector<1x32x64xbf16> to vector<32x64xbf16>
    %53 = arith.truncf %50 : vector<64x256xf32> to vector<64x256xbf16>
    %cst_49 = arith.constant dense<0.000000e+00> : vector<32x256xf32>
    %54 = tpu.matmul %52, %53, %cst_49 {dimension_numbers = #tpu.dot_dimension_numbers<[1], [0], [0], [1], [0, 0, 1, 1], [], []>} : vector<32x64xbf16>, vector<64x256xbf16>, vector<32x256xf32> -> vector<32x256xf32>
    %55 = arith.addf %47, %54 : vector<32x256xf32>
    %c0_50 = arith.constant 0 : index
    %c0_51 = arith.constant 0 : index
    %56 = vector.load %arg3[%c0_50, %c0_51] : memref<1x256xf32, #tpu.memory_space<vmem>>, vector<1x256xf32>
    %57 = vector.broadcast %56 : vector<1x256xf32> to vector<32x256xf32>
    %58 = arith.addf %55, %57 : vector<32x256xf32>
    %cst_52 = arith.constant 0.000000e+00 : f32
    %59 = vector.broadcast %cst_52 : f32 to vector<32x256xf32>
    %60 = arith.maximumf %58, %59 : vector<32x256xf32>
    %61 = arith.truncf %60 : vector<32x256xf32> to vector<32x256xbf16>
    %c0_53 = arith.constant 0 : index
    %c0_54 = arith.constant 0 : index
    %c0_55 = arith.constant 0 : index
    %62 = vector.load %arg5[%c0_53, %c0_54, %c0_55] : memref<3x256x128xbf16, #tpu.memory_space<vmem>>, vector<1x256x128xbf16>
    %63 = vector.shape_cast %62 : vector<1x256x128xbf16> to vector<256x128xbf16>
    %cst_56 = arith.constant dense<0.000000e+00> : vector<32x128xf32>
    %64 = tpu.matmul %61, %63, %cst_56 {dimension_numbers = #tpu.dot_dimension_numbers<[1], [0], [0], [1], [0, 0, 1, 1], [], []>} : vector<32x256xbf16>, vector<256x128xbf16>, vector<32x128xf32> -> vector<32x128xf32>
    %65 = arith.truncf %64 : vector<32x128xf32> to vector<32x128xbf16>
    %c0_57 = arith.constant 0 : index
    %c0_58 = arith.constant 0 : index
    %c0_59 = arith.constant 0 : index
    %66 = vector.load %arg4[%c0_57, %c0_58, %c0_59] : memref<3x16x32xbf16, #tpu.memory_space<vmem>>, vector<1x16x32xbf16>
    %67 = vector.shape_cast %66 : vector<1x16x32xbf16> to vector<16x32xbf16>
    %cst_60 = arith.constant dense<0.000000e+00> : vector<16x128xf32>
    %68 = tpu.matmul %67, %65, %cst_60 {dimension_numbers = #tpu.dot_dimension_numbers<[1], [0], [0], [1], [0, 0, 1, 1], [], []>} : vector<16x32xbf16>, vector<32x128xbf16>, vector<16x128xf32> -> vector<16x128xf32>
    %c1_61 = arith.constant 1 : index
    %c0_62 = arith.constant 0 : index
    %c0_63 = arith.constant 0 : index
    %69 = vector.load %arg4[%c1_61, %c0_62, %c0_63] : memref<3x16x32xbf16, #tpu.memory_space<vmem>>, vector<1x16x32xbf16>
    %70 = vector.shape_cast %69 : vector<1x16x32xbf16> to vector<16x32xbf16>
    %cst_64 = arith.constant dense<0.000000e+00> : vector<16x128xf32>
    %71 = tpu.matmul %70, %65, %cst_64 {dimension_numbers = #tpu.dot_dimension_numbers<[1], [0], [0], [1], [0, 0, 1, 1], [], []>} : vector<16x32xbf16>, vector<32x128xbf16>, vector<16x128xf32> -> vector<16x128xf32>
    %72 = arith.maximumf %68, %71 : vector<16x128xf32>
    %c2_65 = arith.constant 2 : index
    %c0_66 = arith.constant 0 : index
    %c0_67 = arith.constant 0 : index
    %73 = vector.load %arg4[%c2_65, %c0_66, %c0_67] : memref<3x16x32xbf16, #tpu.memory_space<vmem>>, vector<1x16x32xbf16>
    %74 = vector.shape_cast %73 : vector<1x16x32xbf16> to vector<16x32xbf16>
    %cst_68 = arith.constant dense<0.000000e+00> : vector<16x128xf32>
    %75 = tpu.matmul %74, %65, %cst_68 {dimension_numbers = #tpu.dot_dimension_numbers<[1], [0], [0], [1], [0, 0, 1, 1], [], []>} : vector<16x32xbf16>, vector<32x128xbf16>, vector<16x128xf32> -> vector<16x128xf32>
    %76 = arith.maximumf %72, %75 : vector<16x128xf32>
    %c1_69 = arith.constant 1 : index
    %c0_70 = arith.constant 0 : index
    %c0_71 = arith.constant 0 : index
    %77 = vector.load %arg5[%c1_69, %c0_70, %c0_71] : memref<3x256x128xbf16, #tpu.memory_space<vmem>>, vector<1x256x128xbf16>
    %78 = vector.shape_cast %77 : vector<1x256x128xbf16> to vector<256x128xbf16>
    %cst_72 = arith.constant dense<0.000000e+00> : vector<32x128xf32>
    %79 = tpu.matmul %61, %78, %cst_72 {dimension_numbers = #tpu.dot_dimension_numbers<[1], [0], [0], [1], [0, 0, 1, 1], [], []>} : vector<32x256xbf16>, vector<256x128xbf16>, vector<32x128xf32> -> vector<32x128xf32>
    %80 = arith.truncf %79 : vector<32x128xf32> to vector<32x128xbf16>
    %c0_73 = arith.constant 0 : index
    %c0_74 = arith.constant 0 : index
    %c0_75 = arith.constant 0 : index
    %81 = vector.load %arg4[%c0_73, %c0_74, %c0_75] : memref<3x16x32xbf16, #tpu.memory_space<vmem>>, vector<1x16x32xbf16>
    %82 = vector.shape_cast %81 : vector<1x16x32xbf16> to vector<16x32xbf16>
    %cst_76 = arith.constant dense<0.000000e+00> : vector<16x128xf32>
    %83 = tpu.matmul %82, %80, %cst_76 {dimension_numbers = #tpu.dot_dimension_numbers<[1], [0], [0], [1], [0, 0, 1, 1], [], []>} : vector<16x32xbf16>, vector<32x128xbf16>, vector<16x128xf32> -> vector<16x128xf32>
    %84 = arith.maximumf %76, %83 : vector<16x128xf32>
    %c1_77 = arith.constant 1 : index
    %c0_78 = arith.constant 0 : index
    %c0_79 = arith.constant 0 : index
    %85 = vector.load %arg4[%c1_77, %c0_78, %c0_79] : memref<3x16x32xbf16, #tpu.memory_space<vmem>>, vector<1x16x32xbf16>
    %86 = vector.shape_cast %85 : vector<1x16x32xbf16> to vector<16x32xbf16>
    %cst_80 = arith.constant dense<0.000000e+00> : vector<16x128xf32>
    %87 = tpu.matmul %86, %80, %cst_80 {dimension_numbers = #tpu.dot_dimension_numbers<[1], [0], [0], [1], [0, 0, 1, 1], [], []>} : vector<16x32xbf16>, vector<32x128xbf16>, vector<16x128xf32> -> vector<16x128xf32>
    %88 = arith.maximumf %84, %87 : vector<16x128xf32>
    %c2_81 = arith.constant 2 : index
    %c0_82 = arith.constant 0 : index
    %c0_83 = arith.constant 0 : index
    %89 = vector.load %arg4[%c2_81, %c0_82, %c0_83] : memref<3x16x32xbf16, #tpu.memory_space<vmem>>, vector<1x16x32xbf16>
    %90 = vector.shape_cast %89 : vector<1x16x32xbf16> to vector<16x32xbf16>
    %cst_84 = arith.constant dense<0.000000e+00> : vector<16x128xf32>
    %91 = tpu.matmul %90, %80, %cst_84 {dimension_numbers = #tpu.dot_dimension_numbers<[1], [0], [0], [1], [0, 0, 1, 1], [], []>} : vector<16x32xbf16>, vector<32x128xbf16>, vector<16x128xf32> -> vector<16x128xf32>
    %92 = arith.maximumf %88, %91 : vector<16x128xf32>
    %c2_85 = arith.constant 2 : index
    %c0_86 = arith.constant 0 : index
    %c0_87 = arith.constant 0 : index
    %93 = vector.load %arg5[%c2_85, %c0_86, %c0_87] : memref<3x256x128xbf16, #tpu.memory_space<vmem>>, vector<1x256x128xbf16>
    %94 = vector.shape_cast %93 : vector<1x256x128xbf16> to vector<256x128xbf16>
    %cst_88 = arith.constant dense<0.000000e+00> : vector<32x128xf32>
    %95 = tpu.matmul %61, %94, %cst_88 {dimension_numbers = #tpu.dot_dimension_numbers<[1], [0], [0], [1], [0, 0, 1, 1], [], []>} : vector<32x256xbf16>, vector<256x128xbf16>, vector<32x128xf32> -> vector<32x128xf32>
    %96 = arith.truncf %95 : vector<32x128xf32> to vector<32x128xbf16>
    %c0_89 = arith.constant 0 : index
    %c0_90 = arith.constant 0 : index
    %c0_91 = arith.constant 0 : index
    %97 = vector.load %arg4[%c0_89, %c0_90, %c0_91] : memref<3x16x32xbf16, #tpu.memory_space<vmem>>, vector<1x16x32xbf16>
    %98 = vector.shape_cast %97 : vector<1x16x32xbf16> to vector<16x32xbf16>
    %cst_92 = arith.constant dense<0.000000e+00> : vector<16x128xf32>
    %99 = tpu.matmul %98, %96, %cst_92 {dimension_numbers = #tpu.dot_dimension_numbers<[1], [0], [0], [1], [0, 0, 1, 1], [], []>} : vector<16x32xbf16>, vector<32x128xbf16>, vector<16x128xf32> -> vector<16x128xf32>
    %100 = arith.maximumf %92, %99 : vector<16x128xf32>
    %c1_93 = arith.constant 1 : index
    %c0_94 = arith.constant 0 : index
    %c0_95 = arith.constant 0 : index
    %101 = vector.load %arg4[%c1_93, %c0_94, %c0_95] : memref<3x16x32xbf16, #tpu.memory_space<vmem>>, vector<1x16x32xbf16>
    %102 = vector.shape_cast %101 : vector<1x16x32xbf16> to vector<16x32xbf16>
    %cst_96 = arith.constant dense<0.000000e+00> : vector<16x128xf32>
    %103 = tpu.matmul %102, %96, %cst_96 {dimension_numbers = #tpu.dot_dimension_numbers<[1], [0], [0], [1], [0, 0, 1, 1], [], []>} : vector<16x32xbf16>, vector<32x128xbf16>, vector<16x128xf32> -> vector<16x128xf32>
    %104 = arith.maximumf %100, %103 : vector<16x128xf32>
    %c2_97 = arith.constant 2 : index
    %c0_98 = arith.constant 0 : index
    %c0_99 = arith.constant 0 : index
    %105 = vector.load %arg4[%c2_97, %c0_98, %c0_99] : memref<3x16x32xbf16, #tpu.memory_space<vmem>>, vector<1x16x32xbf16>
    %106 = vector.shape_cast %105 : vector<1x16x32xbf16> to vector<16x32xbf16>
    %cst_100 = arith.constant dense<0.000000e+00> : vector<16x128xf32>
    %107 = tpu.matmul %106, %96, %cst_100 {dimension_numbers = #tpu.dot_dimension_numbers<[1], [0], [0], [1], [0, 0, 1, 1], [], []>} : vector<16x32xbf16>, vector<32x128xbf16>, vector<16x128xf32> -> vector<16x128xf32>
    %108 = arith.maximumf %104, %107 : vector<16x128xf32>
    %109 = arith.truncf %108 : vector<16x128xf32> to vector<16x128xbf16>
    %c0_101 = arith.constant 0 : index
    %c0_102 = arith.constant 0 : index
    %c0_103 = arith.constant 0 : index
    %110 = vector.load %arg7[%c0_101, %c0_102, %c0_103] : memref<3x128x128xbf16, #tpu.memory_space<vmem>>, vector<1x128x128xbf16>
    %111 = vector.shape_cast %110 : vector<1x128x128xbf16> to vector<128x128xbf16>
    %cst_104 = arith.constant dense<0.000000e+00> : vector<16x128xf32>
    %112 = tpu.matmul %109, %111, %cst_104 {dimension_numbers = #tpu.dot_dimension_numbers<[1], [0], [0], [1], [0, 0, 1, 1], [], []>} : vector<16x128xbf16>, vector<128x128xbf16>, vector<16x128xf32> -> vector<16x128xf32>
    %c0_105 = arith.constant 0 : index
    %c0_106 = arith.constant 0 : index
    %c0_107 = arith.constant 0 : index
    %113 = vector.load %arg6[%c0_105, %c0_106, %c0_107] : memref<3x16x16xbf16, #tpu.memory_space<vmem>>, vector<1x16x16xbf16>
    %114 = vector.shape_cast %113 : vector<1x16x16xbf16> to vector<16x16xbf16>
    %115 = arith.truncf %112 : vector<16x128xf32> to vector<16x128xbf16>
    %cst_108 = arith.constant dense<0.000000e+00> : vector<16x128xf32>
    %116 = tpu.matmul %114, %115, %cst_108 {dimension_numbers = #tpu.dot_dimension_numbers<[1], [0], [0], [1], [0, 0, 1, 1], [], []>} : vector<16x16xbf16>, vector<16x128xbf16>, vector<16x128xf32> -> vector<16x128xf32>
    %c1_109 = arith.constant 1 : index
    %c0_110 = arith.constant 0 : index
    %c0_111 = arith.constant 0 : index
    %117 = vector.load %arg7[%c1_109, %c0_110, %c0_111] : memref<3x128x128xbf16, #tpu.memory_space<vmem>>, vector<1x128x128xbf16>
    %118 = vector.shape_cast %117 : vector<1x128x128xbf16> to vector<128x128xbf16>
    %cst_112 = arith.constant dense<0.000000e+00> : vector<16x128xf32>
    %119 = tpu.matmul %109, %118, %cst_112 {dimension_numbers = #tpu.dot_dimension_numbers<[1], [0], [0], [1], [0, 0, 1, 1], [], []>} : vector<16x128xbf16>, vector<128x128xbf16>, vector<16x128xf32> -> vector<16x128xf32>
    %c1_113 = arith.constant 1 : index
    %c0_114 = arith.constant 0 : index
    %c0_115 = arith.constant 0 : index
    %120 = vector.load %arg6[%c1_113, %c0_114, %c0_115] : memref<3x16x16xbf16, #tpu.memory_space<vmem>>, vector<1x16x16xbf16>
    %121 = vector.shape_cast %120 : vector<1x16x16xbf16> to vector<16x16xbf16>
    %122 = arith.truncf %119 : vector<16x128xf32> to vector<16x128xbf16>
    %cst_116 = arith.constant dense<0.000000e+00> : vector<16x128xf32>
    %123 = tpu.matmul %121, %122, %cst_116 {dimension_numbers = #tpu.dot_dimension_numbers<[1], [0], [0], [1], [0, 0, 1, 1], [], []>} : vector<16x16xbf16>, vector<16x128xbf16>, vector<16x128xf32> -> vector<16x128xf32>
    %124 = arith.addf %116, %123 : vector<16x128xf32>
    %c2_117 = arith.constant 2 : index
    %c0_118 = arith.constant 0 : index
    %c0_119 = arith.constant 0 : index
    %125 = vector.load %arg7[%c2_117, %c0_118, %c0_119] : memref<3x128x128xbf16, #tpu.memory_space<vmem>>, vector<1x128x128xbf16>
    %126 = vector.shape_cast %125 : vector<1x128x128xbf16> to vector<128x128xbf16>
    %cst_120 = arith.constant dense<0.000000e+00> : vector<16x128xf32>
    %127 = tpu.matmul %109, %126, %cst_120 {dimension_numbers = #tpu.dot_dimension_numbers<[1], [0], [0], [1], [0, 0, 1, 1], [], []>} : vector<16x128xbf16>, vector<128x128xbf16>, vector<16x128xf32> -> vector<16x128xf32>
    %c2_121 = arith.constant 2 : index
    %c0_122 = arith.constant 0 : index
    %c0_123 = arith.constant 0 : index
    %128 = vector.load %arg6[%c2_121, %c0_122, %c0_123] : memref<3x16x16xbf16, #tpu.memory_space<vmem>>, vector<1x16x16xbf16>
    %129 = vector.shape_cast %128 : vector<1x16x16xbf16> to vector<16x16xbf16>
    %130 = arith.truncf %127 : vector<16x128xf32> to vector<16x128xbf16>
    %cst_124 = arith.constant dense<0.000000e+00> : vector<16x128xf32>
    %131 = tpu.matmul %129, %130, %cst_124 {dimension_numbers = #tpu.dot_dimension_numbers<[1], [0], [0], [1], [0, 0, 1, 1], [], []>} : vector<16x16xbf16>, vector<16x128xbf16>, vector<16x128xf32> -> vector<16x128xf32>
    %132 = arith.addf %124, %131 : vector<16x128xf32>
    %c0_125 = arith.constant 0 : index
    %c0_126 = arith.constant 0 : index
    %133 = vector.load %arg8[%c0_125, %c0_126] : memref<1x128xf32, #tpu.memory_space<vmem>>, vector<1x128xf32>
    %134 = vector.broadcast %133 : vector<1x128xf32> to vector<16x128xf32>
    %135 = arith.addf %132, %134 : vector<16x128xf32>
    %cst_127 = arith.constant 0.000000e+00 : f32
    %136 = vector.broadcast %cst_127 : f32 to vector<16x128xf32>
    %137 = arith.maximumf %135, %136 : vector<16x128xf32>
    %138 = arith.truncf %137 : vector<16x128xf32> to vector<16x128xbf16>
    %c0_128 = arith.constant 0 : index
    %c0_129 = arith.constant 0 : index
    %c0_130 = arith.constant 0 : index
    %139 = vector.load %arg10[%c0_128, %c0_129, %c0_130] : memref<3x128x128xbf16, #tpu.memory_space<vmem>>, vector<1x128x128xbf16>
    %140 = vector.shape_cast %139 : vector<1x128x128xbf16> to vector<128x128xbf16>
    %cst_131 = arith.constant dense<0.000000e+00> : vector<16x128xf32>
    %141 = tpu.matmul %138, %140, %cst_131 {dimension_numbers = #tpu.dot_dimension_numbers<[1], [0], [0], [1], [0, 0, 1, 1], [], []>} : vector<16x128xbf16>, vector<128x128xbf16>, vector<16x128xf32> -> vector<16x128xf32>
    %c0_132 = arith.constant 0 : index
    %c0_133 = arith.constant 0 : index
    %c0_134 = arith.constant 0 : index
    %142 = vector.load %arg9[%c0_132, %c0_133, %c0_134] : memref<3x16x16xbf16, #tpu.memory_space<vmem>>, vector<1x16x16xbf16>
    %143 = vector.shape_cast %142 : vector<1x16x16xbf16> to vector<16x16xbf16>
    %144 = arith.truncf %141 : vector<16x128xf32> to vector<16x128xbf16>
    %cst_135 = arith.constant dense<0.000000e+00> : vector<16x128xf32>
    %145 = tpu.matmul %143, %144, %cst_135 {dimension_numbers = #tpu.dot_dimension_numbers<[1], [0], [0], [1], [0, 0, 1, 1], [], []>} : vector<16x16xbf16>, vector<16x128xbf16>, vector<16x128xf32> -> vector<16x128xf32>
    %c1_136 = arith.constant 1 : index
    %c0_137 = arith.constant 0 : index
    %c0_138 = arith.constant 0 : index
    %146 = vector.load %arg10[%c1_136, %c0_137, %c0_138] : memref<3x128x128xbf16, #tpu.memory_space<vmem>>, vector<1x128x128xbf16>
    %147 = vector.shape_cast %146 : vector<1x128x128xbf16> to vector<128x128xbf16>
    %cst_139 = arith.constant dense<0.000000e+00> : vector<16x128xf32>
    %148 = tpu.matmul %138, %147, %cst_139 {dimension_numbers = #tpu.dot_dimension_numbers<[1], [0], [0], [1], [0, 0, 1, 1], [], []>} : vector<16x128xbf16>, vector<128x128xbf16>, vector<16x128xf32> -> vector<16x128xf32>
    %c1_140 = arith.constant 1 : index
    %c0_141 = arith.constant 0 : index
    %c0_142 = arith.constant 0 : index
    %149 = vector.load %arg9[%c1_140, %c0_141, %c0_142] : memref<3x16x16xbf16, #tpu.memory_space<vmem>>, vector<1x16x16xbf16>
    %150 = vector.shape_cast %149 : vector<1x16x16xbf16> to vector<16x16xbf16>
    %151 = arith.truncf %148 : vector<16x128xf32> to vector<16x128xbf16>
    %cst_143 = arith.constant dense<0.000000e+00> : vector<16x128xf32>
    %152 = tpu.matmul %150, %151, %cst_143 {dimension_numbers = #tpu.dot_dimension_numbers<[1], [0], [0], [1], [0, 0, 1, 1], [], []>} : vector<16x16xbf16>, vector<16x128xbf16>, vector<16x128xf32> -> vector<16x128xf32>
    %153 = arith.addf %145, %152 : vector<16x128xf32>
    %c2_144 = arith.constant 2 : index
    %c0_145 = arith.constant 0 : index
    %c0_146 = arith.constant 0 : index
    %154 = vector.load %arg10[%c2_144, %c0_145, %c0_146] : memref<3x128x128xbf16, #tpu.memory_space<vmem>>, vector<1x128x128xbf16>
    %155 = vector.shape_cast %154 : vector<1x128x128xbf16> to vector<128x128xbf16>
    %cst_147 = arith.constant dense<0.000000e+00> : vector<16x128xf32>
    %156 = tpu.matmul %138, %155, %cst_147 {dimension_numbers = #tpu.dot_dimension_numbers<[1], [0], [0], [1], [0, 0, 1, 1], [], []>} : vector<16x128xbf16>, vector<128x128xbf16>, vector<16x128xf32> -> vector<16x128xf32>
    %c2_148 = arith.constant 2 : index
    %c0_149 = arith.constant 0 : index
    %c0_150 = arith.constant 0 : index
    %157 = vector.load %arg9[%c2_148, %c0_149, %c0_150] : memref<3x16x16xbf16, #tpu.memory_space<vmem>>, vector<1x16x16xbf16>
    %158 = vector.shape_cast %157 : vector<1x16x16xbf16> to vector<16x16xbf16>
    %159 = arith.truncf %156 : vector<16x128xf32> to vector<16x128xbf16>
    %cst_151 = arith.constant dense<0.000000e+00> : vector<16x128xf32>
    %160 = tpu.matmul %158, %159, %cst_151 {dimension_numbers = #tpu.dot_dimension_numbers<[1], [0], [0], [1], [0, 0, 1, 1], [], []>} : vector<16x16xbf16>, vector<16x128xbf16>, vector<16x128xf32> -> vector<16x128xf32>
    %161 = arith.addf %153, %160 : vector<16x128xf32>
    %c0_152 = arith.constant 0 : index
    %c0_153 = arith.constant 0 : index
    %162 = vector.load %arg11[%c0_152, %c0_153] : memref<1x128xf32, #tpu.memory_space<vmem>>, vector<1x128xf32>
    %163 = vector.broadcast %162 : vector<1x128xf32> to vector<16x128xf32>
    %164 = arith.addf %161, %163 : vector<16x128xf32>
    %165 = arith.extf %109 : vector<16x128xbf16> to vector<16x128xf32>
    %166 = arith.addf %164, %165 : vector<16x128xf32>
    %cst_154 = arith.constant 0.000000e+00 : f32
    %167 = vector.broadcast %cst_154 : f32 to vector<16x128xf32>
    %168 = arith.maximumf %166, %167 : vector<16x128xf32>
    %169 = arith.truncf %168 : vector<16x128xf32> to vector<16x128xbf16>
    %c0_155 = arith.constant 0 : index
    %c0_156 = arith.constant 0 : index
    %c0_157 = arith.constant 0 : index
    %170 = vector.load %arg13[%c0_155, %c0_156, %c0_157] : memref<3x128x128xbf16, #tpu.memory_space<vmem>>, vector<1x128x128xbf16>
    %171 = vector.shape_cast %170 : vector<1x128x128xbf16> to vector<128x128xbf16>
    %cst_158 = arith.constant dense<0.000000e+00> : vector<16x128xf32>
    %172 = tpu.matmul %169, %171, %cst_158 {dimension_numbers = #tpu.dot_dimension_numbers<[1], [0], [0], [1], [0, 0, 1, 1], [], []>} : vector<16x128xbf16>, vector<128x128xbf16>, vector<16x128xf32> -> vector<16x128xf32>
    %c0_159 = arith.constant 0 : index
    %c0_160 = arith.constant 0 : index
    %c0_161 = arith.constant 0 : index
    %173 = vector.load %arg12[%c0_159, %c0_160, %c0_161] : memref<3x8x16xbf16, #tpu.memory_space<vmem>>, vector<1x8x16xbf16>
    %174 = vector.shape_cast %173 : vector<1x8x16xbf16> to vector<8x16xbf16>
    %175 = arith.truncf %172 : vector<16x128xf32> to vector<16x128xbf16>
    %cst_162 = arith.constant dense<0.000000e+00> : vector<8x128xf32>
    %176 = tpu.matmul %174, %175, %cst_162 {dimension_numbers = #tpu.dot_dimension_numbers<[1], [0], [0], [1], [0, 0, 1, 1], [], []>} : vector<8x16xbf16>, vector<16x128xbf16>, vector<8x128xf32> -> vector<8x128xf32>
    %c1_163 = arith.constant 1 : index
    %c0_164 = arith.constant 0 : index
    %c0_165 = arith.constant 0 : index
    %177 = vector.load %arg13[%c1_163, %c0_164, %c0_165] : memref<3x128x128xbf16, #tpu.memory_space<vmem>>, vector<1x128x128xbf16>
    %178 = vector.shape_cast %177 : vector<1x128x128xbf16> to vector<128x128xbf16>
    %cst_166 = arith.constant dense<0.000000e+00> : vector<16x128xf32>
    %179 = tpu.matmul %169, %178, %cst_166 {dimension_numbers = #tpu.dot_dimension_numbers<[1], [0], [0], [1], [0, 0, 1, 1], [], []>} : vector<16x128xbf16>, vector<128x128xbf16>, vector<16x128xf32> -> vector<16x128xf32>
    %c1_167 = arith.constant 1 : index
    %c0_168 = arith.constant 0 : index
    %c0_169 = arith.constant 0 : index
    %180 = vector.load %arg12[%c1_167, %c0_168, %c0_169] : memref<3x8x16xbf16, #tpu.memory_space<vmem>>, vector<1x8x16xbf16>
    %181 = vector.shape_cast %180 : vector<1x8x16xbf16> to vector<8x16xbf16>
    %182 = arith.truncf %179 : vector<16x128xf32> to vector<16x128xbf16>
    %cst_170 = arith.constant dense<0.000000e+00> : vector<8x128xf32>
    %183 = tpu.matmul %181, %182, %cst_170 {dimension_numbers = #tpu.dot_dimension_numbers<[1], [0], [0], [1], [0, 0, 1, 1], [], []>} : vector<8x16xbf16>, vector<16x128xbf16>, vector<8x128xf32> -> vector<8x128xf32>
    %184 = arith.addf %176, %183 : vector<8x128xf32>
    %c2_171 = arith.constant 2 : index
    %c0_172 = arith.constant 0 : index
    %c0_173 = arith.constant 0 : index
    %185 = vector.load %arg13[%c2_171, %c0_172, %c0_173] : memref<3x128x128xbf16, #tpu.memory_space<vmem>>, vector<1x128x128xbf16>
    %186 = vector.shape_cast %185 : vector<1x128x128xbf16> to vector<128x128xbf16>
    %cst_174 = arith.constant dense<0.000000e+00> : vector<16x128xf32>
    %187 = tpu.matmul %169, %186, %cst_174 {dimension_numbers = #tpu.dot_dimension_numbers<[1], [0], [0], [1], [0, 0, 1, 1], [], []>} : vector<16x128xbf16>, vector<128x128xbf16>, vector<16x128xf32> -> vector<16x128xf32>
    %c2_175 = arith.constant 2 : index
    %c0_176 = arith.constant 0 : index
    %c0_177 = arith.constant 0 : index
    %188 = vector.load %arg12[%c2_175, %c0_176, %c0_177] : memref<3x8x16xbf16, #tpu.memory_space<vmem>>, vector<1x8x16xbf16>
    %189 = vector.shape_cast %188 : vector<1x8x16xbf16> to vector<8x16xbf16>
    %190 = arith.truncf %187 : vector<16x128xf32> to vector<16x128xbf16>
    %cst_178 = arith.constant dense<0.000000e+00> : vector<8x128xf32>
    %191 = tpu.matmul %189, %190, %cst_178 {dimension_numbers = #tpu.dot_dimension_numbers<[1], [0], [0], [1], [0, 0, 1, 1], [], []>} : vector<8x16xbf16>, vector<16x128xbf16>, vector<8x128xf32> -> vector<8x128xf32>
    %192 = arith.addf %184, %191 : vector<8x128xf32>
    %c0_179 = arith.constant 0 : index
    %c0_180 = arith.constant 0 : index
    %193 = vector.load %arg14[%c0_179, %c0_180] : memref<1x128xf32, #tpu.memory_space<vmem>>, vector<1x128xf32>
    %194 = vector.broadcast %193 : vector<1x128xf32> to vector<8x128xf32>
    %195 = arith.addf %192, %194 : vector<8x128xf32>
    %cst_181 = arith.constant 0.000000e+00 : f32
    %196 = vector.broadcast %cst_181 : f32 to vector<8x128xf32>
    %197 = arith.maximumf %195, %196 : vector<8x128xf32>
    %198 = arith.truncf %197 : vector<8x128xf32> to vector<8x128xbf16>
    %c0_182 = arith.constant 0 : index
    %c0_183 = arith.constant 0 : index
    %c0_184 = arith.constant 0 : index
    %199 = vector.load %arg16[%c0_182, %c0_183, %c0_184] : memref<1x128x128xbf16, #tpu.memory_space<vmem>>, vector<1x128x128xbf16>
    %200 = vector.shape_cast %199 : vector<1x128x128xbf16> to vector<128x128xbf16>
    %cst_185 = arith.constant dense<0.000000e+00> : vector<16x128xf32>
    %201 = tpu.matmul %169, %200, %cst_185 {dimension_numbers = #tpu.dot_dimension_numbers<[1], [0], [0], [1], [0, 0, 1, 1], [], []>} : vector<16x128xbf16>, vector<128x128xbf16>, vector<16x128xf32> -> vector<16x128xf32>
    %c0_186 = arith.constant 0 : index
    %c0_187 = arith.constant 0 : index
    %c0_188 = arith.constant 0 : index
    %202 = vector.load %arg15[%c0_186, %c0_187, %c0_188] : memref<1x8x16xbf16, #tpu.memory_space<vmem>>, vector<1x8x16xbf16>
    %203 = vector.shape_cast %202 : vector<1x8x16xbf16> to vector<8x16xbf16>
    %204 = arith.truncf %201 : vector<16x128xf32> to vector<16x128xbf16>
    %cst_189 = arith.constant dense<0.000000e+00> : vector<8x128xf32>
    %205 = tpu.matmul %203, %204, %cst_189 {dimension_numbers = #tpu.dot_dimension_numbers<[1], [0], [0], [1], [0, 0, 1, 1], [], []>} : vector<8x16xbf16>, vector<16x128xbf16>, vector<8x128xf32> -> vector<8x128xf32>
    %c0_190 = arith.constant 0 : index
    %c0_191 = arith.constant 0 : index
    %206 = vector.load %arg17[%c0_190, %c0_191] : memref<1x128xf32, #tpu.memory_space<vmem>>, vector<1x128xf32>
    %207 = vector.broadcast %206 : vector<1x128xf32> to vector<8x128xf32>
    %208 = arith.addf %205, %207 : vector<8x128xf32>
    %209 = arith.truncf %208 : vector<8x128xf32> to vector<8x128xbf16>
    %c0_192 = arith.constant 0 : index
    %c0_193 = arith.constant 0 : index
    %c0_194 = arith.constant 0 : index
    %210 = vector.load %arg19[%c0_192, %c0_193, %c0_194] : memref<3x128x128xbf16, #tpu.memory_space<vmem>>, vector<1x128x128xbf16>
    %211 = vector.shape_cast %210 : vector<1x128x128xbf16> to vector<128x128xbf16>
    %cst_195 = arith.constant dense<0.000000e+00> : vector<8x128xf32>
    %212 = tpu.matmul %198, %211, %cst_195 {dimension_numbers = #tpu.dot_dimension_numbers<[1], [0], [0], [1], [0, 0, 1, 1], [], []>} : vector<8x128xbf16>, vector<128x128xbf16>, vector<8x128xf32> -> vector<8x128xf32>
    %c0_196 = arith.constant 0 : index
    %c0_197 = arith.constant 0 : index
    %c0_198 = arith.constant 0 : index
    %213 = vector.load %arg18[%c0_196, %c0_197, %c0_198] : memref<3x8x8xbf16, #tpu.memory_space<vmem>>, vector<1x8x8xbf16>
    %214 = vector.shape_cast %213 : vector<1x8x8xbf16> to vector<8x8xbf16>
    %215 = arith.truncf %212 : vector<8x128xf32> to vector<8x128xbf16>
    %cst_199 = arith.constant dense<0.000000e+00> : vector<8x128xf32>
    %216 = tpu.matmul %214, %215, %cst_199 {dimension_numbers = #tpu.dot_dimension_numbers<[1], [0], [0], [1], [0, 0, 1, 1], [], []>} : vector<8x8xbf16>, vector<8x128xbf16>, vector<8x128xf32> -> vector<8x128xf32>
    %c1_200 = arith.constant 1 : index
    %c0_201 = arith.constant 0 : index
    %c0_202 = arith.constant 0 : index
    %217 = vector.load %arg19[%c1_200, %c0_201, %c0_202] : memref<3x128x128xbf16, #tpu.memory_space<vmem>>, vector<1x128x128xbf16>
    %218 = vector.shape_cast %217 : vector<1x128x128xbf16> to vector<128x128xbf16>
    %cst_203 = arith.constant dense<0.000000e+00> : vector<8x128xf32>
    %219 = tpu.matmul %198, %218, %cst_203 {dimension_numbers = #tpu.dot_dimension_numbers<[1], [0], [0], [1], [0, 0, 1, 1], [], []>} : vector<8x128xbf16>, vector<128x128xbf16>, vector<8x128xf32> -> vector<8x128xf32>
    %c1_204 = arith.constant 1 : index
    %c0_205 = arith.constant 0 : index
    %c0_206 = arith.constant 0 : index
    %220 = vector.load %arg18[%c1_204, %c0_205, %c0_206] : memref<3x8x8xbf16, #tpu.memory_space<vmem>>, vector<1x8x8xbf16>
    %221 = vector.shape_cast %220 : vector<1x8x8xbf16> to vector<8x8xbf16>
    %222 = arith.truncf %219 : vector<8x128xf32> to vector<8x128xbf16>
    %cst_207 = arith.constant dense<0.000000e+00> : vector<8x128xf32>
    %223 = tpu.matmul %221, %222, %cst_207 {dimension_numbers = #tpu.dot_dimension_numbers<[1], [0], [0], [1], [0, 0, 1, 1], [], []>} : vector<8x8xbf16>, vector<8x128xbf16>, vector<8x128xf32> -> vector<8x128xf32>
    %224 = arith.addf %216, %223 : vector<8x128xf32>
    %c2_208 = arith.constant 2 : index
    %c0_209 = arith.constant 0 : index
    %c0_210 = arith.constant 0 : index
    %225 = vector.load %arg19[%c2_208, %c0_209, %c0_210] : memref<3x128x128xbf16, #tpu.memory_space<vmem>>, vector<1x128x128xbf16>
    %226 = vector.shape_cast %225 : vector<1x128x128xbf16> to vector<128x128xbf16>
    %cst_211 = arith.constant dense<0.000000e+00> : vector<8x128xf32>
    %227 = tpu.matmul %198, %226, %cst_211 {dimension_numbers = #tpu.dot_dimension_numbers<[1], [0], [0], [1], [0, 0, 1, 1], [], []>} : vector<8x128xbf16>, vector<128x128xbf16>, vector<8x128xf32> -> vector<8x128xf32>
    %c2_212 = arith.constant 2 : index
    %c0_213 = arith.constant 0 : index
    %c0_214 = arith.constant 0 : index
    %228 = vector.load %arg18[%c2_212, %c0_213, %c0_214] : memref<3x8x8xbf16, #tpu.memory_space<vmem>>, vector<1x8x8xbf16>
    %229 = vector.shape_cast %228 : vector<1x8x8xbf16> to vector<8x8xbf16>
    %230 = arith.truncf %227 : vector<8x128xf32> to vector<8x128xbf16>
    %cst_215 = arith.constant dense<0.000000e+00> : vector<8x128xf32>
    %231 = tpu.matmul %229, %230, %cst_215 {dimension_numbers = #tpu.dot_dimension_numbers<[1], [0], [0], [1], [0, 0, 1, 1], [], []>} : vector<8x8xbf16>, vector<8x128xbf16>, vector<8x128xf32> -> vector<8x128xf32>
    %232 = arith.addf %224, %231 : vector<8x128xf32>
    %c0_216 = arith.constant 0 : index
    %c0_217 = arith.constant 0 : index
    %233 = vector.load %arg20[%c0_216, %c0_217] : memref<1x128xf32, #tpu.memory_space<vmem>>, vector<1x128xf32>
    %234 = vector.broadcast %233 : vector<1x128xf32> to vector<8x128xf32>
    %235 = arith.addf %232, %234 : vector<8x128xf32>
    %236 = arith.extf %209 : vector<8x128xbf16> to vector<8x128xf32>
    %237 = arith.addf %235, %236 : vector<8x128xf32>
    %cst_218 = arith.constant 0.000000e+00 : f32
    %238 = vector.broadcast %cst_218 : f32 to vector<8x128xf32>
    %239 = arith.maximumf %237, %238 : vector<8x128xf32>
    %240 = arith.truncf %239 : vector<8x128xf32> to vector<8x128xbf16>
    %c0_219 = arith.constant 0 : index
    %c0_220 = arith.constant 0 : index
    %c0_221 = arith.constant 0 : index
    %241 = vector.load %arg22[%c0_219, %c0_220, %c0_221] : memref<3x128x128xbf16, #tpu.memory_space<vmem>>, vector<1x128x128xbf16>
    %242 = vector.shape_cast %241 : vector<1x128x128xbf16> to vector<128x128xbf16>
    %cst_222 = arith.constant dense<0.000000e+00> : vector<8x128xf32>
    %243 = tpu.matmul %240, %242, %cst_222 {dimension_numbers = #tpu.dot_dimension_numbers<[1], [0], [0], [1], [0, 0, 1, 1], [], []>} : vector<8x128xbf16>, vector<128x128xbf16>, vector<8x128xf32> -> vector<8x128xf32>
    %c0_223 = arith.constant 0 : index
    %c0_224 = arith.constant 0 : index
    %c0_225 = arith.constant 0 : index
    %244 = vector.load %arg21[%c0_223, %c0_224, %c0_225] : memref<3x4x8xbf16, #tpu.memory_space<vmem>>, vector<1x4x8xbf16>
    %245 = vector.shape_cast %244 : vector<1x4x8xbf16> to vector<4x8xbf16>
    %246 = arith.truncf %243 : vector<8x128xf32> to vector<8x128xbf16>
    %cst_226 = arith.constant dense<0.000000e+00> : vector<4x128xf32>
    %247 = tpu.matmul %245, %246, %cst_226 {dimension_numbers = #tpu.dot_dimension_numbers<[1], [0], [0], [1], [0, 0, 1, 1], [], []>} : vector<4x8xbf16>, vector<8x128xbf16>, vector<4x128xf32> -> vector<4x128xf32>
    %c1_227 = arith.constant 1 : index
    %c0_228 = arith.constant 0 : index
    %c0_229 = arith.constant 0 : index
    %248 = vector.load %arg22[%c1_227, %c0_228, %c0_229] : memref<3x128x128xbf16, #tpu.memory_space<vmem>>, vector<1x128x128xbf16>
    %249 = vector.shape_cast %248 : vector<1x128x128xbf16> to vector<128x128xbf16>
    %cst_230 = arith.constant dense<0.000000e+00> : vector<8x128xf32>
    %250 = tpu.matmul %240, %249, %cst_230 {dimension_numbers = #tpu.dot_dimension_numbers<[1], [0], [0], [1], [0, 0, 1, 1], [], []>} : vector<8x128xbf16>, vector<128x128xbf16>, vector<8x128xf32> -> vector<8x128xf32>
    %c1_231 = arith.constant 1 : index
    %c0_232 = arith.constant 0 : index
    %c0_233 = arith.constant 0 : index
    %251 = vector.load %arg21[%c1_231, %c0_232, %c0_233] : memref<3x4x8xbf16, #tpu.memory_space<vmem>>, vector<1x4x8xbf16>
    %252 = vector.shape_cast %251 : vector<1x4x8xbf16> to vector<4x8xbf16>
    %253 = arith.truncf %250 : vector<8x128xf32> to vector<8x128xbf16>
    %cst_234 = arith.constant dense<0.000000e+00> : vector<4x128xf32>
    %254 = tpu.matmul %252, %253, %cst_234 {dimension_numbers = #tpu.dot_dimension_numbers<[1], [0], [0], [1], [0, 0, 1, 1], [], []>} : vector<4x8xbf16>, vector<8x128xbf16>, vector<4x128xf32> -> vector<4x128xf32>
    %255 = arith.addf %247, %254 : vector<4x128xf32>
    %c2_235 = arith.constant 2 : index
    %c0_236 = arith.constant 0 : index
    %c0_237 = arith.constant 0 : index
    %256 = vector.load %arg22[%c2_235, %c0_236, %c0_237] : memref<3x128x128xbf16, #tpu.memory_space<vmem>>, vector<1x128x128xbf16>
    %257 = vector.shape_cast %256 : vector<1x128x128xbf16> to vector<128x128xbf16>
    %cst_238 = arith.constant dense<0.000000e+00> : vector<8x128xf32>
    %258 = tpu.matmul %240, %257, %cst_238 {dimension_numbers = #tpu.dot_dimension_numbers<[1], [0], [0], [1], [0, 0, 1, 1], [], []>} : vector<8x128xbf16>, vector<128x128xbf16>, vector<8x128xf32> -> vector<8x128xf32>
    %c2_239 = arith.constant 2 : index
    %c0_240 = arith.constant 0 : index
    %c0_241 = arith.constant 0 : index
    %259 = vector.load %arg21[%c2_239, %c0_240, %c0_241] : memref<3x4x8xbf16, #tpu.memory_space<vmem>>, vector<1x4x8xbf16>
    %260 = vector.shape_cast %259 : vector<1x4x8xbf16> to vector<4x8xbf16>
    %261 = arith.truncf %258 : vector<8x128xf32> to vector<8x128xbf16>
    %cst_242 = arith.constant dense<0.000000e+00> : vector<4x128xf32>
    %262 = tpu.matmul %260, %261, %cst_242 {dimension_numbers = #tpu.dot_dimension_numbers<[1], [0], [0], [1], [0, 0, 1, 1], [], []>} : vector<4x8xbf16>, vector<8x128xbf16>, vector<4x128xf32> -> vector<4x128xf32>
    %263 = arith.addf %255, %262 : vector<4x128xf32>
    %c0_243 = arith.constant 0 : index
    %c0_244 = arith.constant 0 : index
    %264 = vector.load %arg23[%c0_243, %c0_244] : memref<1x128xf32, #tpu.memory_space<vmem>>, vector<1x128xf32>
    %265 = vector.broadcast %264 : vector<1x128xf32> to vector<4x128xf32>
    %266 = arith.addf %263, %265 : vector<4x128xf32>
    %cst_245 = arith.constant 0.000000e+00 : f32
    %267 = vector.broadcast %cst_245 : f32 to vector<4x128xf32>
    %268 = arith.maximumf %266, %267 : vector<4x128xf32>
    %269 = arith.truncf %268 : vector<4x128xf32> to vector<4x128xbf16>
    %c0_246 = arith.constant 0 : index
    %c0_247 = arith.constant 0 : index
    %c0_248 = arith.constant 0 : index
    %270 = vector.load %arg25[%c0_246, %c0_247, %c0_248] : memref<1x128x128xbf16, #tpu.memory_space<vmem>>, vector<1x128x128xbf16>
    %271 = vector.shape_cast %270 : vector<1x128x128xbf16> to vector<128x128xbf16>
    %cst_249 = arith.constant dense<0.000000e+00> : vector<8x128xf32>
    %272 = tpu.matmul %240, %271, %cst_249 {dimension_numbers = #tpu.dot_dimension_numbers<[1], [0], [0], [1], [0, 0, 1, 1], [], []>} : vector<8x128xbf16>, vector<128x128xbf16>, vector<8x128xf32> -> vector<8x128xf32>
    %c0_250 = arith.constant 0 : index
    %c0_251 = arith.constant 0 : index
    %c0_252 = arith.constant 0 : index
    %273 = vector.load %arg24[%c0_250, %c0_251, %c0_252] : memref<1x4x8xbf16, #tpu.memory_space<vmem>>, vector<1x4x8xbf16>
    %274 = vector.shape_cast %273 : vector<1x4x8xbf16> to vector<4x8xbf16>
    %275 = arith.truncf %272 : vector<8x128xf32> to vector<8x128xbf16>
    %cst_253 = arith.constant dense<0.000000e+00> : vector<4x128xf32>
    %276 = tpu.matmul %274, %275, %cst_253 {dimension_numbers = #tpu.dot_dimension_numbers<[1], [0], [0], [1], [0, 0, 1, 1], [], []>} : vector<4x8xbf16>, vector<8x128xbf16>, vector<4x128xf32> -> vector<4x128xf32>
    %c0_254 = arith.constant 0 : index
    %c0_255 = arith.constant 0 : index
    %277 = vector.load %arg26[%c0_254, %c0_255] : memref<1x128xf32, #tpu.memory_space<vmem>>, vector<1x128xf32>
    %278 = vector.broadcast %277 : vector<1x128xf32> to vector<4x128xf32>
    %279 = arith.addf %276, %278 : vector<4x128xf32>
    %280 = arith.truncf %279 : vector<4x128xf32> to vector<4x128xbf16>
    %c0_256 = arith.constant 0 : index
    %c0_257 = arith.constant 0 : index
    %c0_258 = arith.constant 0 : index
    %281 = vector.load %arg28[%c0_256, %c0_257, %c0_258] : memref<3x128x128xbf16, #tpu.memory_space<vmem>>, vector<1x128x128xbf16>
    %282 = vector.shape_cast %281 : vector<1x128x128xbf16> to vector<128x128xbf16>
    %cst_259 = arith.constant dense<0.000000e+00> : vector<4x128xf32>
    %283 = tpu.matmul %269, %282, %cst_259 {dimension_numbers = #tpu.dot_dimension_numbers<[1], [0], [0], [1], [0, 0, 1, 1], [], []>} : vector<4x128xbf16>, vector<128x128xbf16>, vector<4x128xf32> -> vector<4x128xf32>
    %c0_260 = arith.constant 0 : index
    %c0_261 = arith.constant 0 : index
    %c0_262 = arith.constant 0 : index
    %284 = vector.load %arg27[%c0_260, %c0_261, %c0_262] : memref<3x4x4xbf16, #tpu.memory_space<vmem>>, vector<1x4x4xbf16>
    %285 = vector.shape_cast %284 : vector<1x4x4xbf16> to vector<4x4xbf16>
    %286 = arith.truncf %283 : vector<4x128xf32> to vector<4x128xbf16>
    %cst_263 = arith.constant dense<0.000000e+00> : vector<4x128xf32>
    %287 = tpu.matmul %285, %286, %cst_263 {dimension_numbers = #tpu.dot_dimension_numbers<[1], [0], [0], [1], [0, 0, 1, 1], [], []>} : vector<4x4xbf16>, vector<4x128xbf16>, vector<4x128xf32> -> vector<4x128xf32>
    %c1_264 = arith.constant 1 : index
    %c0_265 = arith.constant 0 : index
    %c0_266 = arith.constant 0 : index
    %288 = vector.load %arg28[%c1_264, %c0_265, %c0_266] : memref<3x128x128xbf16, #tpu.memory_space<vmem>>, vector<1x128x128xbf16>
    %289 = vector.shape_cast %288 : vector<1x128x128xbf16> to vector<128x128xbf16>
    %cst_267 = arith.constant dense<0.000000e+00> : vector<4x128xf32>
    %290 = tpu.matmul %269, %289, %cst_267 {dimension_numbers = #tpu.dot_dimension_numbers<[1], [0], [0], [1], [0, 0, 1, 1], [], []>} : vector<4x128xbf16>, vector<128x128xbf16>, vector<4x128xf32> -> vector<4x128xf32>
    %c1_268 = arith.constant 1 : index
    %c0_269 = arith.constant 0 : index
    %c0_270 = arith.constant 0 : index
    %291 = vector.load %arg27[%c1_268, %c0_269, %c0_270] : memref<3x4x4xbf16, #tpu.memory_space<vmem>>, vector<1x4x4xbf16>
    %292 = vector.shape_cast %291 : vector<1x4x4xbf16> to vector<4x4xbf16>
    %293 = arith.truncf %290 : vector<4x128xf32> to vector<4x128xbf16>
    %cst_271 = arith.constant dense<0.000000e+00> : vector<4x128xf32>
    %294 = tpu.matmul %292, %293, %cst_271 {dimension_numbers = #tpu.dot_dimension_numbers<[1], [0], [0], [1], [0, 0, 1, 1], [], []>} : vector<4x4xbf16>, vector<4x128xbf16>, vector<4x128xf32> -> vector<4x128xf32>
    %295 = arith.addf %287, %294 : vector<4x128xf32>
    %c2_272 = arith.constant 2 : index
    %c0_273 = arith.constant 0 : index
    %c0_274 = arith.constant 0 : index
    %296 = vector.load %arg28[%c2_272, %c0_273, %c0_274] : memref<3x128x128xbf16, #tpu.memory_space<vmem>>, vector<1x128x128xbf16>
    %297 = vector.shape_cast %296 : vector<1x128x128xbf16> to vector<128x128xbf16>
    %cst_275 = arith.constant dense<0.000000e+00> : vector<4x128xf32>
    %298 = tpu.matmul %269, %297, %cst_275 {dimension_numbers = #tpu.dot_dimension_numbers<[1], [0], [0], [1], [0, 0, 1, 1], [], []>} : vector<4x128xbf16>, vector<128x128xbf16>, vector<4x128xf32> -> vector<4x128xf32>
    %c2_276 = arith.constant 2 : index
    %c0_277 = arith.constant 0 : index
    %c0_278 = arith.constant 0 : index
    %299 = vector.load %arg27[%c2_276, %c0_277, %c0_278] : memref<3x4x4xbf16, #tpu.memory_space<vmem>>, vector<1x4x4xbf16>
    %300 = vector.shape_cast %299 : vector<1x4x4xbf16> to vector<4x4xbf16>
    %301 = arith.truncf %298 : vector<4x128xf32> to vector<4x128xbf16>
    %cst_279 = arith.constant dense<0.000000e+00> : vector<4x128xf32>
    %302 = tpu.matmul %300, %301, %cst_279 {dimension_numbers = #tpu.dot_dimension_numbers<[1], [0], [0], [1], [0, 0, 1, 1], [], []>} : vector<4x4xbf16>, vector<4x128xbf16>, vector<4x128xf32> -> vector<4x128xf32>
    %303 = arith.addf %295, %302 : vector<4x128xf32>
    %c0_280 = arith.constant 0 : index
    %c0_281 = arith.constant 0 : index
    %304 = vector.load %arg29[%c0_280, %c0_281] : memref<1x128xf32, #tpu.memory_space<vmem>>, vector<1x128xf32>
    %305 = vector.broadcast %304 : vector<1x128xf32> to vector<4x128xf32>
    %306 = arith.addf %303, %305 : vector<4x128xf32>
    %307 = arith.extf %280 : vector<4x128xbf16> to vector<4x128xf32>
    %308 = arith.addf %306, %307 : vector<4x128xf32>
    %cst_282 = arith.constant 0.000000e+00 : f32
    %309 = vector.broadcast %cst_282 : f32 to vector<4x128xf32>
    %310 = arith.maximumf %308, %309 : vector<4x128xf32>
    %311 = arith.truncf %310 : vector<4x128xf32> to vector<4x128xbf16>
    %c0_283 = arith.constant 0 : index
    %c0_284 = arith.constant 0 : index
    %c0_285 = arith.constant 0 : index
    %312 = vector.load %arg31[%c0_283, %c0_284, %c0_285] : memref<2x128x128xbf16, #tpu.memory_space<vmem>>, vector<1x128x128xbf16>
    %313 = vector.shape_cast %312 : vector<1x128x128xbf16> to vector<128x128xbf16>
    %cst_286 = arith.constant dense<0.000000e+00> : vector<4x128xf32>
    %314 = tpu.matmul %311, %313, %cst_286 {dimension_numbers = #tpu.dot_dimension_numbers<[1], [0], [0], [1], [0, 0, 1, 1], [], []>} : vector<4x128xbf16>, vector<128x128xbf16>, vector<4x128xf32> -> vector<4x128xf32>
    %c0_287 = arith.constant 0 : index
    %c0_288 = arith.constant 0 : index
    %c0_289 = arith.constant 0 : index
    %315 = vector.load %arg30[%c0_287, %c0_288, %c0_289] : memref<2x2x4xbf16, #tpu.memory_space<vmem>>, vector<1x2x4xbf16>
    %316 = vector.shape_cast %315 : vector<1x2x4xbf16> to vector<2x4xbf16>
    %317 = arith.truncf %314 : vector<4x128xf32> to vector<4x128xbf16>
    %cst_290 = arith.constant dense<0.000000e+00> : vector<2x128xf32>
    %318 = tpu.matmul %316, %317, %cst_290 {dimension_numbers = #tpu.dot_dimension_numbers<[1], [0], [0], [1], [0, 0, 1, 1], [], []>} : vector<2x4xbf16>, vector<4x128xbf16>, vector<2x128xf32> -> vector<2x128xf32>
    %c1_291 = arith.constant 1 : index
    %c0_292 = arith.constant 0 : index
    %c0_293 = arith.constant 0 : index
    %319 = vector.load %arg31[%c1_291, %c0_292, %c0_293] : memref<2x128x128xbf16, #tpu.memory_space<vmem>>, vector<1x128x128xbf16>
    %320 = vector.shape_cast %319 : vector<1x128x128xbf16> to vector<128x128xbf16>
    %cst_294 = arith.constant dense<0.000000e+00> : vector<4x128xf32>
    %321 = tpu.matmul %311, %320, %cst_294 {dimension_numbers = #tpu.dot_dimension_numbers<[1], [0], [0], [1], [0, 0, 1, 1], [], []>} : vector<4x128xbf16>, vector<128x128xbf16>, vector<4x128xf32> -> vector<4x128xf32>
    %c1_295 = arith.constant 1 : index
    %c0_296 = arith.constant 0 : index
    %c0_297 = arith.constant 0 : index
    %322 = vector.load %arg30[%c1_295, %c0_296, %c0_297] : memref<2x2x4xbf16, #tpu.memory_space<vmem>>, vector<1x2x4xbf16>
    %323 = vector.shape_cast %322 : vector<1x2x4xbf16> to vector<2x4xbf16>
    %324 = arith.truncf %321 : vector<4x128xf32> to vector<4x128xbf16>
    %cst_298 = arith.constant dense<0.000000e+00> : vector<2x128xf32>
    %325 = tpu.matmul %323, %324, %cst_298 {dimension_numbers = #tpu.dot_dimension_numbers<[1], [0], [0], [1], [0, 0, 1, 1], [], []>} : vector<2x4xbf16>, vector<4x128xbf16>, vector<2x128xf32> -> vector<2x128xf32>
    %326 = arith.addf %318, %325 : vector<2x128xf32>
    %c0_299 = arith.constant 0 : index
    %c0_300 = arith.constant 0 : index
    %327 = vector.load %arg32[%c0_299, %c0_300] : memref<1x128xf32, #tpu.memory_space<vmem>>, vector<1x128xf32>
    %328 = vector.broadcast %327 : vector<1x128xf32> to vector<2x128xf32>
    %329 = arith.addf %326, %328 : vector<2x128xf32>
    %cst_301 = arith.constant 0.000000e+00 : f32
    %330 = vector.broadcast %cst_301 : f32 to vector<2x128xf32>
    %331 = arith.maximumf %329, %330 : vector<2x128xf32>
    %332 = arith.truncf %331 : vector<2x128xf32> to vector<2x128xbf16>
    %c0_302 = arith.constant 0 : index
    %c0_303 = arith.constant 0 : index
    %c0_304 = arith.constant 0 : index
    %333 = vector.load %arg34[%c0_302, %c0_303, %c0_304] : memref<1x128x128xbf16, #tpu.memory_space<vmem>>, vector<1x128x128xbf16>
    %334 = vector.shape_cast %333 : vector<1x128x128xbf16> to vector<128x128xbf16>
    %cst_305 = arith.constant dense<0.000000e+00> : vector<4x128xf32>
    %335 = tpu.matmul %311, %334, %cst_305 {dimension_numbers = #tpu.dot_dimension_numbers<[1], [0], [0], [1], [0, 0, 1, 1], [], []>} : vector<4x128xbf16>, vector<128x128xbf16>, vector<4x128xf32> -> vector<4x128xf32>
    %c0_306 = arith.constant 0 : index
    %c0_307 = arith.constant 0 : index
    %c0_308 = arith.constant 0 : index
    %336 = vector.load %arg33[%c0_306, %c0_307, %c0_308] : memref<1x2x4xbf16, #tpu.memory_space<vmem>>, vector<1x2x4xbf16>
    %337 = vector.shape_cast %336 : vector<1x2x4xbf16> to vector<2x4xbf16>
    %338 = arith.truncf %335 : vector<4x128xf32> to vector<4x128xbf16>
    %cst_309 = arith.constant dense<0.000000e+00> : vector<2x128xf32>
    %339 = tpu.matmul %337, %338, %cst_309 {dimension_numbers = #tpu.dot_dimension_numbers<[1], [0], [0], [1], [0, 0, 1, 1], [], []>} : vector<2x4xbf16>, vector<4x128xbf16>, vector<2x128xf32> -> vector<2x128xf32>
    %c0_310 = arith.constant 0 : index
    %c0_311 = arith.constant 0 : index
    %340 = vector.load %arg35[%c0_310, %c0_311] : memref<1x128xf32, #tpu.memory_space<vmem>>, vector<1x128xf32>
    %341 = vector.broadcast %340 : vector<1x128xf32> to vector<2x128xf32>
    %342 = arith.addf %339, %341 : vector<2x128xf32>
    %343 = arith.truncf %342 : vector<2x128xf32> to vector<2x128xbf16>
    %c0_312 = arith.constant 0 : index
    %c0_313 = arith.constant 0 : index
    %c0_314 = arith.constant 0 : index
    %344 = vector.load %arg37[%c0_312, %c0_313, %c0_314] : memref<1x128x128xbf16, #tpu.memory_space<vmem>>, vector<1x128x128xbf16>
    %345 = vector.shape_cast %344 : vector<1x128x128xbf16> to vector<128x128xbf16>
    %cst_315 = arith.constant dense<0.000000e+00> : vector<2x128xf32>
    %346 = tpu.matmul %332, %345, %cst_315 {dimension_numbers = #tpu.dot_dimension_numbers<[1], [0], [0], [1], [0, 0, 1, 1], [], []>} : vector<2x128xbf16>, vector<128x128xbf16>, vector<2x128xf32> -> vector<2x128xf32>
    %c0_316 = arith.constant 0 : index
    %c0_317 = arith.constant 0 : index
    %c0_318 = arith.constant 0 : index
    %347 = vector.load %arg36[%c0_316, %c0_317, %c0_318] : memref<1x2x2xbf16, #tpu.memory_space<vmem>>, vector<1x2x2xbf16>
    %348 = vector.shape_cast %347 : vector<1x2x2xbf16> to vector<2x2xbf16>
    %349 = arith.truncf %346 : vector<2x128xf32> to vector<2x128xbf16>
    %cst_319 = arith.constant dense<0.000000e+00> : vector<2x128xf32>
    %350 = tpu.matmul %348, %349, %cst_319 {dimension_numbers = #tpu.dot_dimension_numbers<[1], [0], [0], [1], [0, 0, 1, 1], [], []>} : vector<2x2xbf16>, vector<2x128xbf16>, vector<2x128xf32> -> vector<2x128xf32>
    %c0_320 = arith.constant 0 : index
    %c0_321 = arith.constant 0 : index
    %351 = vector.load %arg38[%c0_320, %c0_321] : memref<1x128xf32, #tpu.memory_space<vmem>>, vector<1x128xf32>
    %352 = vector.broadcast %351 : vector<1x128xf32> to vector<2x128xf32>
    %353 = arith.addf %350, %352 : vector<2x128xf32>
    %354 = arith.extf %343 : vector<2x128xbf16> to vector<2x128xf32>
    %355 = arith.addf %353, %354 : vector<2x128xf32>
    %cst_322 = arith.constant 0.000000e+00 : f32
    %356 = vector.broadcast %cst_322 : f32 to vector<2x128xf32>
    %357 = arith.maximumf %355, %356 : vector<2x128xf32>
    %358 = arith.truncf %357 : vector<2x128xf32> to vector<2x128xbf16>
    %c0_323 = arith.constant 0 : index
    %c0_324 = arith.constant 0 : index
    %359 = vector.load %arg40[%c0_323, %c0_324] : memref<128x128xbf16, #tpu.memory_space<vmem>>, vector<128x128xbf16>
    %cst_325 = arith.constant dense<0.000000e+00> : vector<2x128xf32>
    %360 = tpu.matmul %358, %359, %cst_325 {dimension_numbers = #tpu.dot_dimension_numbers<[1], [0], [0], [1], [0, 0, 1, 1], [], []>} : vector<2x128xbf16>, vector<128x128xbf16>, vector<2x128xf32> -> vector<2x128xf32>
    %c0_326 = arith.constant 0 : index
    %c0_327 = arith.constant 0 : index
    %361 = vector.load %arg39[%c0_326, %c0_327] : memref<2x2xbf16, #tpu.memory_space<vmem>>, vector<2x2xbf16>
    %362 = arith.truncf %360 : vector<2x128xf32> to vector<2x128xbf16>
    %cst_328 = arith.constant dense<0.000000e+00> : vector<2x128xf32>
    %363 = tpu.matmul %361, %362, %cst_328 {dimension_numbers = #tpu.dot_dimension_numbers<[1], [0], [0], [1], [0, 0, 1, 1], [], []>} : vector<2x2xbf16>, vector<2x128xbf16>, vector<2x128xf32> -> vector<2x128xf32>
    %c0_329 = arith.constant 0 : index
    %c0_330 = arith.constant 0 : index
    %364 = vector.load %arg44[%c0_329, %c0_330] : memref<2x128xf32, #tpu.memory_space<vmem>>, vector<2x128xf32>
    tpu.vector_store %arg44[%c0_329, %c0_330], %363 {strides = array<i32>} : memref<2x128xf32, #tpu.memory_space<vmem>>, vector<2x128xf32>,
    %365 = arith.truncf %363 : vector<2x128xf32> to vector<2x128xbf16>
    %c0_331 = arith.constant 0 : index
    %c0_332 = arith.constant 0 : index
    %366 = vector.load %arg41[%c0_331, %c0_332] : memref<128x20xbf16, #tpu.memory_space<vmem>>, vector<128x20xbf16>
    %cst_333 = arith.constant dense<0.000000e+00> : vector<2x20xf32>
    %367 = tpu.matmul %365, %366, %cst_333 {dimension_numbers = #tpu.dot_dimension_numbers<[1], [0], [0], [1], [0, 0, 1, 1], [], []>} : vector<2x128xbf16>, vector<128x20xbf16>, vector<2x20xf32> -> vector<2x20xf32>
    %c0_334 = arith.constant 0 : index
    %c0_335 = arith.constant 0 : index
    %368 = vector.load %arg42[%c0_334, %c0_335] : memref<1x20xf32, #tpu.memory_space<vmem>>, vector<1x20xf32>
    %369 = vector.broadcast %368 : vector<1x20xf32> to vector<2x20xf32>
    %370 = arith.addf %367, %369 : vector<2x20xf32>
    %c0_336 = arith.constant 0 : index
    %c0_337 = arith.constant 0 : index
    %371 = vector.load %arg43[%c0_336, %c0_337] : memref<2x20xf32, #tpu.memory_space<vmem>>, vector<2x20xf32>
    tpu.vector_store %arg43[%c0_336, %c0_337], %370 {strides = array<i32>} : memref<2x20xf32, #tpu.memory_space<vmem>>, vector<2x20xf32>,
    return
  }
}

</mosaic_0001>

<llo_original>
// kernel: forward.1
$region0: #{forward.1}
  #allocation0 [shape = 'u32[]', space=smem, size = 0x4, offset = 0x4, fixed_abs, tag = 'smem constant byte address 0x4 - core index']
  #allocation1 [shape = 'u32[144,128]{1,0:T(1,128)}', space=vmem, size = 0x12000, scoped, tag = 'internal scratch']
  %s0 = inlined_call_operand.smem [shape: u32[45], index: -1, kind: input, shape index: {}]
  %s1 = sld [smem:[%s0]]
  %s2 = scalar_lea.smem %s0, 1
  %s3 = sld [smem:[%s2]]
  %s4 = scalar_lea.smem %s0, 2
  %s5 = sld [smem:[%s4]]
  %s6 = scalar_lea.smem %s0, 3
  %s7 = sld [smem:[%s6]]
  %s8 = scalar_lea.smem %s0, 4
  %s9 = sld [smem:[%s8]]
  %s10 = scalar_lea.smem %s0, 5
  %s11 = sld [smem:[%s10]]
  %s12 = scalar_lea.smem %s0, 6
  %s13 = sld [smem:[%s12]]
  %s14 = scalar_lea.smem %s0, 7
  %s15 = sld [smem:[%s14]]
  %s16 = scalar_lea.smem %s0, 8
  %s17 = sld [smem:[%s16]]
  %s18 = scalar_lea.smem %s0, 9
  %s19 = sld [smem:[%s18]]
  %s20 = scalar_lea.smem %s0, 10
  %s21 = sld [smem:[%s20]]
  %s22 = scalar_lea.smem %s0, 11
  %s23 = sld [smem:[%s22]]
  %s24 = scalar_lea.smem %s0, 12
  %s25 = sld [smem:[%s24]]
  %s26 = scalar_lea.smem %s0, 13
  %s27 = sld [smem:[%s26]]
  %s28 = scalar_lea.smem %s0, 14
  %s29 = sld [smem:[%s28]]
  %s30 = scalar_lea.smem %s0, 15
  %s31 = sld [smem:[%s30]]
  %s32 = scalar_lea.smem %s0, 16
  %s33 = sld [smem:[%s32]]
  %s34 = scalar_lea.smem %s0, 17
  %s35 = sld [smem:[%s34]]
  %s36 = scalar_lea.smem %s0, 18
  %s37 = sld [smem:[%s36]]
  %s38 = scalar_lea.smem %s0, 19
  %s39 = sld [smem:[%s38]]
  %s40 = scalar_lea.smem %s0, 20
  %s41 = sld [smem:[%s40]]
  %s42 = scalar_lea.smem %s0, 21
  %s43 = sld [smem:[%s42]]
  %s44 = scalar_lea.smem %s0, 22
  %s45 = sld [smem:[%s44]]
  %s46 = scalar_lea.smem %s0, 23
  %s47 = sld [smem:[%s46]]
  %s48 = scalar_lea.smem %s0, 24
  %s49 = sld [smem:[%s48]]
  %s50 = scalar_lea.smem %s0, 25
  %s51 = sld [smem:[%s50]]
  %s52 = scalar_lea.smem %s0, 26
  %s53 = sld [smem:[%s52]]
  %s54 = scalar_lea.smem %s0, 27
  %s55 = sld [smem:[%s54]]
  %s56 = scalar_lea.smem %s0, 28
  %s57 = sld [smem:[%s56]]
  %s58 = scalar_lea.smem %s0, 29
  %s59 = sld [smem:[%s58]]
  %s60 = scalar_lea.smem %s0, 30
  %s61 = sld [smem:[%s60]]
  %s62 = scalar_lea.smem %s0, 31
  %s63 = sld [smem:[%s62]]
  %s64 = scalar_lea.smem %s0, 32
  %s65 = sld [smem:[%s64]]
  %s66 = scalar_lea.smem %s0, 33
  %s67 = sld [smem:[%s66]]
  %s68 = scalar_lea.smem %s0, 34
  %s69 = sld [smem:[%s68]]
  %s70 = scalar_lea.smem %s0, 35
  %s71 = sld [smem:[%s70]]
  %s72 = scalar_lea.smem %s0, 36
  %s73 = sld [smem:[%s72]]
  %s74 = scalar_lea.smem %s0, 37
  %s75 = sld [smem:[%s74]]
  %s76 = scalar_lea.smem %s0, 38
  %s77 = sld [smem:[%s76]]
  %s78 = scalar_lea.smem %s0, 39
  %s79 = sld [smem:[%s78]]
  %s80 = scalar_lea.smem %s0, 40
  %s81 = sld [smem:[%s80]]
  %s82 = scalar_lea.smem %s0, 41
  %s83 = sld [smem:[%s82]]
  %s84 = scalar_lea.smem %s0, 42
  %s85 = sld [smem:[%s84]]
  %s86 = scalar_lea.smem %s0, 43
  %s87 = sld [smem:[%s86]]
  %s88 = scalar_lea.smem %s0, 44
  %s89 = sld [smem:[%s88]]
  %90 = xla_tuple %s87, %s89
  %s91 = sld [smem:[#allocation0]]
  $region330: #{forward.1} parent=0
    _
  %s93 = ssub.s32 1, %s91
  %s94 = scalar_select 0, %s93, %s91
  $region1: #{forward.1} parent=0
    #allocation2 [shape = 'u8[57344]{0}', space=vmem, size = 0xe000, scoped, tag = 'input window, operand 1, single buffered']
    #allocation3 [shape = 's32[1]{0}', space=sflag, size = 0x4, scoped, tag = 'scoped memory for forward.1']
    #allocation4 [shape = 's32[1]{0}', space=sflag, size = 0x4, scoped, tag = 'scoped memory for forward.1']
    #allocation5 [shape = 'u8[1024]{0}', space=vmem, size = 0x400, scoped, tag = 'input window, operand 3, single buffered']
    #allocation6 [shape = 's32[1]{0}', space=sflag, size = 0x4, scoped, tag = 'scoped memory for forward.1']
    #allocation7 [shape = 'u8[196608]{0}', space=vmem, size = 0x30000, scoped, tag = 'input window, operand 5, single buffered']
    #allocation8 [shape = 'u8[12288]{0}', space=vmem, size = 0x3000, scoped, tag = 'input window, operand 6, single buffered']
    #allocation9 [shape = 's32[1]{0}', space=sflag, size = 0x4, scoped, tag = 'scoped memory for forward.1']
    #allocation10 [shape = 'u8[98304]{0}', space=vmem, size = 0x18000, scoped, tag = 'input window, operand 7, single buffered']
    #allocation11 [shape = 'u8[12288]{0}', space=vmem, size = 0x3000, scoped, tag = 'input window, operand 9, single buffered']
    #allocation12 [shape = 's32[1]{0}', space=sflag, size = 0x4, scoped, tag = 'scoped memory for forward.1']
    #allocation13 [shape = 'u8[98304]{0}', space=vmem, size = 0x18000, scoped, tag = 'input window, operand 10, single buffered']
    #allocation14 [shape = 'u8[512]{0}', space=vmem, size = 0x400, scoped, tag = 'input window, operand 11, single buffered']
    #allocation15 [shape = 's32[1]{0}', space=sflag, size = 0x4, scoped, tag = 'scoped memory for forward.1']
    #allocation16 [shape = 'u8[98304]{0}', space=vmem, size = 0x18000, scoped, tag = 'input window, operand 13, single buffered']
    #allocation17 [shape = 'u8[512]{0}', space=vmem, size = 0x400, scoped, tag = 'input window, operand 14, single buffered']
    #allocation18 [shape = 's32[1]{0}', space=sflag, size = 0x4, scoped, tag = 'scoped memory for forward.1']
    #allocation19 [shape = 'u8[32768]{0}', space=vmem, size = 0x8000, scoped, tag = 'input window, operand 16, single buffered']
    #allocation20 [shape = 'u8[512]{0}', space=vmem, size = 0x400, scoped, tag = 'input window, operand 17, single buffered']
    #allocation21 [shape = 's32[1]{0}', space=sflag, size = 0x4, scoped, tag = 'scoped memory for forward.1']
    #allocation22 [shape = 'u8[6144]{0}', space=vmem, size = 0x1800, scoped, tag = 'input window, operand 18, single buffered']
    #allocation23 [shape = 'u8[98304]{0}', space=vmem, size = 0x18000, scoped, tag = 'input window, operand 19, single buffered']
    #allocation24 [shape = 's32[1]{0}', space=sflag, size = 0x4, scoped, tag = 'scoped memory for forward.1']
    #allocation25 [shape = 'u8[512]{0}', space=vmem, size = 0x400, scoped, tag = 'input window, operand 20, single buffered']
    #allocation26 [shape = 'u8[3072]{0}', space=vmem, size = 0xc00, scoped, tag = 'input window, operand 21, single buffered']
    #allocation27 [shape = 's32[1]{0}', space=sflag, size = 0x4, scoped, tag = 'scoped memory for forward.1']
    #allocation28 [shape = 'u8[98304]{0}', space=vmem, size = 0x18000, scoped, tag = 'input window, operand 22, single buffered']
    #allocation29 [shape = 'u8[512]{0}', space=vmem, size = 0x400, scoped, tag = 'input window, operand 23, single buffered']
    #allocation30 [shape = 's32[1]{0}', space=sflag, size = 0x4, scoped, tag = 'scoped memory for forward.1']
    #allocation31 [shape = 'u8[1024]{0}', space=vmem, size = 0x400, scoped, tag = 'input window, operand 24, single buffered']
    #allocation32 [shape = 'u8[32768]{0}', space=vmem, size = 0x8000, scoped, tag = 'input window, operand 25, single buffered']
    #allocation33 [shape = 's32[1]{0}', space=sflag, size = 0x4, scoped, tag = 'scoped memory for forward.1']
    #allocation34 [shape = 'u8[512]{0}', space=vmem, size = 0x400, scoped, tag = 'input window, operand 26, single buffered']
    #allocation35 [shape = 'u8[3072]{0}', space=vmem, size = 0xc00, scoped, tag = 'input window, operand 27, single buffered']
    #allocation36 [shape = 's32[1]{0}', space=sflag, size = 0x4, scoped, tag = 'scoped memory for forward.1']
    #allocation37 [shape = 'u8[98304]{0}', space=vmem, size = 0x18000, scoped, tag = 'input window, operand 28, single buffered']
    #allocation38 [shape = 'u8[512]{0}', space=vmem, size = 0x400, scoped, tag = 'input window, operand 29, single buffered']
    #allocation39 [shape = 's32[1]{0}', space=sflag, size = 0x4, scoped, tag = 'scoped memory for forward.1']
    #allocation40 [shape = 'u8[1024]{0}', space=vmem, size = 0x400, scoped, tag = 'input window, operand 30, single buffered']
    #allocation41 [shape = 'u8[512]{0}', space=vmem, size = 0x400, scoped, tag = 'input window, operand 32, single buffered']
    #allocation42 [shape = 's32[1]{0}', space=sflag, size = 0x4, scoped, tag = 'scoped memory for forward.1']
    #allocation43 [shape = 'u8[512]{0}', space=vmem, size = 0x400, scoped, tag = 'input window, operand 33, single buffered']
    #allocation44 [shape = 'u8[32768]{0}', space=vmem, size = 0x8000, scoped, tag = 'input window, operand 34, single buffered']
    #allocation45 [shape = 's32[1]{0}', space=sflag, size = 0x4, scoped, tag = 'scoped memory for forward.1']
    #allocation46 [shape = 'u8[512]{0}', space=vmem, size = 0x400, scoped, tag = 'input window, operand 35, single buffered']
    #allocation47 [shape = 'u8[512]{0}', space=vmem, size = 0x400, scoped, tag = 'input window, operand 36, single buffered']
    #allocation48 [shape = 's32[1]{0}', space=sflag, size = 0x4, scoped, tag = 'scoped memory for forward.1']
    #allocation49 [shape = 'u8[32768]{0}', space=vmem, size = 0x8000, scoped, tag = 'input window, operand 37, single buffered']
    #allocation50 [shape = 'u8[512]{0}', space=vmem, size = 0x400, scoped, tag = 'input window, operand 38, single buffered']
    #allocation51 [shape = 's32[1]{0}', space=sflag, size = 0x4, scoped, tag = 'scoped memory for forward.1']
    #allocation52 [shape = 'u8[512]{0}', space=vmem, size = 0x400, scoped, tag = 'input window, operand 39, single buffered']
    #allocation53 [shape = 'u8[32768]{0}', space=vmem, size = 0x8000, scoped, tag = 'input window, operand 40, single buffered']
    #allocation54 [shape = 's32[1]{0}', space=sflag, size = 0x4, scoped, tag = 'scoped memory for forward.1']
    #allocation55 [shape = 'u8[512]{0}', space=vmem, size = 0x400, scoped, tag = 'input window, operand 42, single buffered']
    #allocation56 [shape = 'u8[1024]{0}', space=vmem, size = 0x400, scoped, tag = 'output window, operand 1, single buffered']
    %95 = vsyncpa [#allocation3], 0
    %96 = vsyncpa [#allocation6], 0
    %97 = vsyncpa [#allocation9], 0
    %98 = vsyncpa [#allocation12], 0
    %99 = vsyncpa [#allocation15], 0
    %100 = vsyncpa [#allocation18], 0
    %101 = vsyncpa [#allocation21], 0
    %102 = vsyncpa [#allocation24], 0
    %103 = vsyncpa [#allocation27], 0
    %104 = vsyncpa [#allocation30], 0
    %105 = vsyncpa [#allocation33], 0
    %106 = vsyncpa [#allocation36], 0
    %107 = vsyncpa [#allocation39], 0
    %108 = vsyncpa [#allocation42], 0
    %109 = vsyncpa [#allocation45], 0
    %110 = vsyncpa [#allocation48], 0
    %111 = vsyncpa [#allocation51], 0
    %112 = vsyncpa [#allocation54], 0
    %113 = vsyncpa [#allocation4], 0
    // Predicated region
    $region2: #{forward.1} parent=1 // pred_check
      _
    $region3: #{forward.1} parent=1 // pred_check_branch
      %115 = sbr.rel (0) target = $region5
    $region4: #{forward.1} parent=1 // pred_region
      _
    $region5: #{forward.1} parent=1 // pred_fallthru
      _
    // Predicated region
    $region6: #{forward.1} parent=1 // pred_check
      _
    $region7: #{forward.1} parent=1 // pred_check_branch
      %117 = sbr.rel (0) target = $region9
    $region8: #{forward.1} parent=1 // pred_region
      %s119 = ssub.s32 1792, 1792
      %120 = vsyncadd [#allocation3], %s119
      %s121 = sshll.u32 [#allocation2], 4
      %s122 = int_to_ptr.vmem [resolvable:$true] %s121
      %127 = dma.hbm_to_vmem [thread:$0]  %s3, 1792, %s122, [#allocation3], 64, 64, 4
    $region9: #{forward.1} parent=1 // pred_fallthru
      _
    // Predicated region
    $region10: #{forward.1} parent=1 // pred_check
      _
    $region11: #{forward.1} parent=1 // pred_check_branch
      %129 = sbr.rel (0) target = $region13
    $region12: #{forward.1} parent=1 // pred_region
      _
    $region13: #{forward.1} parent=1 // pred_fallthru
      _
    // Predicated region
    $region14: #{forward.1} parent=1 // pred_check
      _
    $region15: #{forward.1} parent=1 // pred_check_branch
      %131 = sbr.rel (0) target = $region17
    $region16: #{forward.1} parent=1 // pred_region
      %s133 = ssub.s32 32, 32
      %134 = vsyncadd [#allocation6], %s133
      %s136 = sshll.u32 [#allocation5], 4
      %s137 = int_to_ptr.vmem [resolvable:$true] %s136
      %139 = dma.hbm_to_vmem [thread:$0]  %s7, 32, %s137, [#allocation6]
    $region17: #{forward.1} parent=1 // pred_fallthru
      _
    // Predicated region
    $region18: #{forward.1} parent=1 // pred_check
      _
    $region19: #{forward.1} parent=1 // pred_check_branch
      %141 = sbr.rel (0) target = $region21
    $region20: #{forward.1} parent=1 // pred_region
      _
    $region21: #{forward.1} parent=1 // pred_fallthru
      _
    // Predicated region
    $region22: #{forward.1} parent=1 // pred_check
      _
    $region23: #{forward.1} parent=1 // pred_check_branch
      %143 = sbr.rel (0) target = $region25
    $region24: #{forward.1} parent=1 // pred_region
      %s145 = ssub.s32 6144, 6144
      %146 = vsyncadd [#allocation6], %s145
      %s147 = sshll.u32 [#allocation7], 4
      %s148 = int_to_ptr.vmem [resolvable:$true] %s147
      %153 = dma.hbm_to_vmem [thread:$0]  %s11, 6144, %s148, [#allocation6], 64, 64, 4
    $region25: #{forward.1} parent=1 // pred_fallthru
      _
    // Predicated region
    $region26: #{forward.1} parent=1 // pred_check
      _
    $region27: #{forward.1} parent=1 // pred_check_branch
      %155 = sbr.rel (0) target = $region29
    $region28: #{forward.1} parent=1 // pred_region
      %s157 = ssub.s32 384, 384
      %158 = vsyncadd [#allocation9], %s157
      %s159 = sshll.u32 [#allocation8], 4
      %s160 = int_to_ptr.vmem [resolvable:$true] %s159
      %165 = dma.hbm_to_vmem [thread:$0]  %s13, 384, %s160, [#allocation9], 64, 64, 4
    $region29: #{forward.1} parent=1 // pred_fallthru
      _
    // Predicated region
    $region30: #{forward.1} parent=1 // pred_check
      _
    $region31: #{forward.1} parent=1 // pred_check_branch
      %167 = sbr.rel (0) target = $region33
    $region32: #{forward.1} parent=1 // pred_region
      %s169 = ssub.s32 3072, 3072
      %170 = vsyncadd [#allocation9], %s169
      %s171 = sshll.u32 [#allocation10], 4
      %s172 = int_to_ptr.vmem [resolvable:$true] %s171
      %177 = dma.hbm_to_vmem [thread:$0]  %s15, 3072, %s172, [#allocation9], 64, 64, 4
    $region33: #{forward.1} parent=1 // pred_fallthru
      _
    // Predicated region
    $region34: #{forward.1} parent=1 // pred_check
      _
    $region35: #{forward.1} parent=1 // pred_check_branch
      %179 = sbr.rel (0) target = $region37
    $region36: #{forward.1} parent=1 // pred_region
      _
    $region37: #{forward.1} parent=1 // pred_fallthru
      _
    // Predicated region
    $region38: #{forward.1} parent=1 // pred_check
      _
    $region39: #{forward.1} parent=1 // pred_check_branch
      %181 = sbr.rel (0) target = $region41
    $region40: #{forward.1} parent=1 // pred_region
      %s183 = ssub.s32 384, 384
      %184 = vsyncadd [#allocation12], %s183
      %s185 = sshll.u32 [#allocation11], 4
      %s186 = int_to_ptr.vmem [resolvable:$true] %s185
      %191 = dma.hbm_to_vmem [thread:$0]  %s19, 384, %s186, [#allocation12], 64, 64, 4
    $region41: #{forward.1} parent=1 // pred_fallthru
      _
    // Predicated region
    $region42: #{forward.1} parent=1 // pred_check
      _
    $region43: #{forward.1} parent=1 // pred_check_branch
      %193 = sbr.rel (0) target = $region45
    $region44: #{forward.1} parent=1 // pred_region
      %s195 = ssub.s32 3072, 3072
      %196 = vsyncadd [#allocation12], %s195
      %s197 = sshll.u32 [#allocation13], 4
      %s198 = int_to_ptr.vmem [resolvable:$true] %s197
      %203 = dma.hbm_to_vmem [thread:$0]  %s21, 3072, %s198, [#allocation12], 64, 64, 4
    $region45: #{forward.1} parent=1 // pred_fallthru
      _
    // Predicated region
    $region46: #{forward.1} parent=1 // pred_check
      _
    $region47: #{forward.1} parent=1 // pred_check_branch
      %205 = sbr.rel (0) target = $region49
    $region48: #{forward.1} parent=1 // pred_region
      %s207 = ssub.s32 16, 16
      %208 = vsyncadd [#allocation15], %s207
      %s210 = sshll.u32 [#allocation14], 4
      %s211 = int_to_ptr.vmem [resolvable:$true] %s210
      %213 = dma.hbm_to_vmem [thread:$0]  %s23, 16, %s211, [#allocation15]
    $region49: #{forward.1} parent=1 // pred_fallthru
      _
    // Predicated region
    $region50: #{forward.1} parent=1 // pred_check
      _
    $region51: #{forward.1} parent=1 // pred_check_branch
      %215 = sbr.rel (0) target = $region53
    $region52: #{forward.1} parent=1 // pred_region
      _
    $region53: #{forward.1} parent=1 // pred_fallthru
      _
    // Predicated region
    $region54: #{forward.1} parent=1 // pred_check
      _
    $region55: #{forward.1} parent=1 // pred_check_branch
      %217 = sbr.rel (0) target = $region57
    $region56: #{forward.1} parent=1 // pred_region
      %s219 = ssub.s32 3072, 3072
      %220 = vsyncadd [#allocation15], %s219
      %s221 = sshll.u32 [#allocation16], 4
      %s222 = int_to_ptr.vmem [resolvable:$true] %s221
      %227 = dma.hbm_to_vmem [thread:$0]  %s27, 3072, %s222, [#allocation15], 64, 64, 4
    $region57: #{forward.1} parent=1 // pred_fallthru
      _
    // Predicated region
    $region58: #{forward.1} parent=1 // pred_check
      _
    $region59: #{forward.1} parent=1 // pred_check_branch
      %229 = sbr.rel (0) target = $region61
    $region60: #{forward.1} parent=1 // pred_region
      %s231 = ssub.s32 16, 16
      %232 = vsyncadd [#allocation18], %s231
      %s234 = sshll.u32 [#allocation17], 4
      %s235 = int_to_ptr.vmem [resolvable:$true] %s234
      %237 = dma.hbm_to_vmem [thread:$0]  %s29, 16, %s235, [#allocation18]
    $region61: #{forward.1} parent=1 // pred_fallthru
      _
    // Predicated region
    $region62: #{forward.1} parent=1 // pred_check
      _
    $region63: #{forward.1} parent=1 // pred_check_branch
      %239 = sbr.rel (0) target = $region65
    $region64: #{forward.1} parent=1 // pred_region
      _
    $region65: #{forward.1} parent=1 // pred_fallthru
      _
    // Predicated region
    $region66: #{forward.1} parent=1 // pred_check
      _
    $region67: #{forward.1} parent=1 // pred_check_branch
      %241 = sbr.rel (0) target = $region69
    $region68: #{forward.1} parent=1 // pred_region
      %s243 = ssub.s32 1024, 1024
      %244 = vsyncadd [#allocation18], %s243
      %s245 = sshll.u32 [#allocation19], 4
      %s246 = int_to_ptr.vmem [resolvable:$true] %s245
      %251 = dma.hbm_to_vmem [thread:$0]  %s33, 1024, %s246, [#allocation18], 64, 64, 4
    $region69: #{forward.1} parent=1 // pred_fallthru
      _
    // Predicated region
    $region70: #{forward.1} parent=1 // pred_check
      _
    $region71: #{forward.1} parent=1 // pred_check_branch
      %253 = sbr.rel (0) target = $region73
    $region72: #{forward.1} parent=1 // pred_region
      %s255 = ssub.s32 16, 16
      %256 = vsyncadd [#allocation21], %s255
      %s258 = sshll.u32 [#allocation20], 4
      %s259 = int_to_ptr.vmem [resolvable:$true] %s258
      %261 = dma.hbm_to_vmem [thread:$0]  %s35, 16, %s259, [#allocation21]
    $region73: #{forward.1} parent=1 // pred_fallthru
      _
    // Predicated region
    $region74: #{forward.1} parent=1 // pred_check
      _
    $region75: #{forward.1} parent=1 // pred_check_branch
      %263 = sbr.rel (0) target = $region77
    $region76: #{forward.1} parent=1 // pred_region
      %s265 = ssub.s32 192, 192
      %266 = vsyncadd [#allocation21], %s265
      %s267 = sshll.u32 [#allocation22], 4
      %s268 = int_to_ptr.vmem [resolvable:$true] %s267
      %273 = dma.hbm_to_vmem [thread:$0]  %s37, 192, %s268, [#allocation21], 64, 64, 4
    $region77: #{forward.1} parent=1 // pred_fallthru
      _
    // Predicated region
    $region78: #{forward.1} parent=1 // pred_check
      _
    $region79: #{forward.1} parent=1 // pred_check_branch
      %275 = sbr.rel (0) target = $region81
    $region80: #{forward.1} parent=1 // pred_region
      %s277 = ssub.s32 3072, 3072
      %278 = vsyncadd [#allocation24], %s277
      %s279 = sshll.u32 [#allocation23], 4
      %s280 = int_to_ptr.vmem [resolvable:$true] %s279
      %285 = dma.hbm_to_vmem [thread:$0]  %s39, 3072, %s280, [#allocation24], 64, 64, 4
    $region81: #{forward.1} parent=1 // pred_fallthru
      _
    // Predicated region
    $region82: #{forward.1} parent=1 // pred_check
      _
    $region83: #{forward.1} parent=1 // pred_check_branch
      %287 = sbr.rel (0) target = $region85
    $region84: #{forward.1} parent=1 // pred_region
      %s289 = ssub.s32 16, 16
      %290 = vsyncadd [#allocation24], %s289
      %s292 = sshll.u32 [#allocation25], 4
      %s293 = int_to_ptr.vmem [resolvable:$true] %s292
      %295 = dma.hbm_to_vmem [thread:$0]  %s41, 16, %s293, [#allocation24]
    $region85: #{forward.1} parent=1 // pred_fallthru
      _
    // Predicated region
    $region86: #{forward.1} parent=1 // pred_check
      _
    $region87: #{forward.1} parent=1 // pred_check_branch
      %297 = sbr.rel (0) target = $region89
    $region88: #{forward.1} parent=1 // pred_region
      %s299 = ssub.s32 96, 96
      %300 = vsyncadd [#allocation27], %s299
      %s301 = sshll.u32 [#allocation26], 4
      %s302 = int_to_ptr.vmem [resolvable:$true] %s301
      %307 = dma.hbm_to_vmem [thread:$0]  %s43, 96, %s302, [#allocation27], 32, 32, 2
    $region89: #{forward.1} parent=1 // pred_fallthru
      _
    // Predicated region
    $region90: #{forward.1} parent=1 // pred_check
      _
    $region91: #{forward.1} parent=1 // pred_check_branch
      %309 = sbr.rel (0) target = $region93
    $region92: #{forward.1} parent=1 // pred_region
      %s311 = ssub.s32 3072, 3072
      %312 = vsyncadd [#allocation27], %s311
      %s313 = sshll.u32 [#allocation28], 4
      %s314 = int_to_ptr.vmem [resolvable:$true] %s313
      %319 = dma.hbm_to_vmem [thread:$0]  %s45, 3072, %s314, [#allocation27], 64, 64, 4
    $region93: #{forward.1} parent=1 // pred_fallthru
      _
    // Predicated region
    $region94: #{forward.1} parent=1 // pred_check
      _
    $region95: #{forward.1} parent=1 // pred_check_branch
      %321 = sbr.rel (0) target = $region97
    $region96: #{forward.1} parent=1 // pred_region
      %s323 = ssub.s32 16, 16
      %324 = vsyncadd [#allocation30], %s323
      %s326 = sshll.u32 [#allocation29], 4
      %s327 = int_to_ptr.vmem [resolvable:$true] %s326
      %329 = dma.hbm_to_vmem [thread:$0]  %s47, 16, %s327, [#allocation30]
    $region97: #{forward.1} parent=1 // pred_fallthru
      _
    // Predicated region
    $region98: #{forward.1} parent=1 // pred_check
      _
    $region99: #{forward.1} parent=1 // pred_check_branch
      %331 = sbr.rel (0) target = $region101
    $region100: #{forward.1} parent=1 // pred_region
      %s333 = ssub.s32 32, 32
      %334 = vsyncadd [#allocation30], %s333
      %s336 = sshll.u32 [#allocation31], 4
      %s337 = int_to_ptr.vmem [resolvable:$true] %s336
      %339 = dma.hbm_to_vmem [thread:$0]  %s49, 32, %s337, [#allocation30]
    $region101: #{forward.1} parent=1 // pred_fallthru
      _
    // Predicated region
    $region102: #{forward.1} parent=1 // pred_check
      _
    $region103: #{forward.1} parent=1 // pred_check_branch
      %341 = sbr.rel (0) target = $region105
    $region104: #{forward.1} parent=1 // pred_region
      %s343 = ssub.s32 1024, 1024
      %344 = vsyncadd [#allocation33], %s343
      %s345 = sshll.u32 [#allocation32], 4
      %s346 = int_to_ptr.vmem [resolvable:$true] %s345
      %351 = dma.hbm_to_vmem [thread:$0]  %s51, 1024, %s346, [#allocation33], 64, 64, 4
    $region105: #{forward.1} parent=1 // pred_fallthru
      _
    // Predicated region
    $region106: #{forward.1} parent=1 // pred_check
      _
    $region107: #{forward.1} parent=1 // pred_check_branch
      %353 = sbr.rel (0) target = $region109
    $region108: #{forward.1} parent=1 // pred_region
      %s355 = ssub.s32 16, 16
      %356 = vsyncadd [#allocation33], %s355
      %s358 = sshll.u32 [#allocation34], 4
      %s359 = int_to_ptr.vmem [resolvable:$true] %s358
      %361 = dma.hbm_to_vmem [thread:$0]  %s53, 16, %s359, [#allocation33]
    $region109: #{forward.1} parent=1 // pred_fallthru
      _
    // Predicated region
    $region110: #{forward.1} parent=1 // pred_check
      _
    $region111: #{forward.1} parent=1 // pred_check_branch
      %363 = sbr.rel (0) target = $region113
    $region112: #{forward.1} parent=1 // pred_region
      %s365 = ssub.s32 96, 96
      %366 = vsyncadd [#allocation36], %s365
      %s367 = sshll.u32 [#allocation35], 4
      %s368 = int_to_ptr.vmem [resolvable:$true] %s367
      %373 = dma.hbm_to_vmem [thread:$0]  %s55, 96, %s368, [#allocation36], 32, 32, 2
    $region113: #{forward.1} parent=1 // pred_fallthru
      _
    // Predicated region
    $region114: #{forward.1} parent=1 // pred_check
      _
    $region115: #{forward.1} parent=1 // pred_check_branch
      %375 = sbr.rel (0) target = $region117
    $region116: #{forward.1} parent=1 // pred_region
      %s377 = ssub.s32 3072, 3072
      %378 = vsyncadd [#allocation36], %s377
      %s379 = sshll.u32 [#allocation37], 4
      %s380 = int_to_ptr.vmem [resolvable:$true] %s379
      %385 = dma.hbm_to_vmem [thread:$0]  %s57, 3072, %s380, [#allocation36], 64, 64, 4
    $region117: #{forward.1} parent=1 // pred_fallthru
      _
    // Predicated region
    $region118: #{forward.1} parent=1 // pred_check
      _
    $region119: #{forward.1} parent=1 // pred_check_branch
      %387 = sbr.rel (0) target = $region121
    $region120: #{forward.1} parent=1 // pred_region
      %s389 = ssub.s32 16, 16
      %390 = vsyncadd [#allocation39], %s389
      %s392 = sshll.u32 [#allocation38], 4
      %s393 = int_to_ptr.vmem [resolvable:$true] %s392
      %395 = dma.hbm_to_vmem [thread:$0]  %s59, 16, %s393, [#allocation39]
    $region121: #{forward.1} parent=1 // pred_fallthru
      _
    // Predicated region
    $region122: #{forward.1} parent=1 // pred_check
      _
    $region123: #{forward.1} parent=1 // pred_check_branch
      %397 = sbr.rel (0) target = $region125
    $region124: #{forward.1} parent=1 // pred_region
      %s399 = ssub.s32 32, 32
      %400 = vsyncadd [#allocation39], %s399
      %s401 = sshll.u32 [#allocation40], 4
      %s402 = int_to_ptr.vmem [resolvable:$true] %s401
      %407 = dma.hbm_to_vmem [thread:$0]  %s61, 32, %s402, [#allocation39], 16, 16, 1
    $region125: #{forward.1} parent=1 // pred_fallthru
      _
    // Predicated region
    $region126: #{forward.1} parent=1 // pred_check
      _
    $region127: #{forward.1} parent=1 // pred_check_branch
      %409 = sbr.rel (0) target = $region129
    $region128: #{forward.1} parent=1 // pred_region
      _
    $region129: #{forward.1} parent=1 // pred_fallthru
      _
    // Predicated region
    $region130: #{forward.1} parent=1 // pred_check
      _
    $region131: #{forward.1} parent=1 // pred_check_branch
      %411 = sbr.rel (0) target = $region133
    $region132: #{forward.1} parent=1 // pred_region
      %s413 = ssub.s32 16, 16
      %414 = vsyncadd [#allocation42], %s413
      %s416 = sshll.u32 [#allocation41], 4
      %s417 = int_to_ptr.vmem [resolvable:$true] %s416
      %419 = dma.hbm_to_vmem [thread:$0]  %s65, 16, %s417, [#allocation42]
    $region133: #{forward.1} parent=1 // pred_fallthru
      _
    // Predicated region
    $region134: #{forward.1} parent=1 // pred_check
      _
    $region135: #{forward.1} parent=1 // pred_check_branch
      %421 = sbr.rel (0) target = $region137
    $region136: #{forward.1} parent=1 // pred_region
      %s423 = ssub.s32 16, 16
      %424 = vsyncadd [#allocation42], %s423
      %s426 = sshll.u32 [#allocation43], 4
      %s427 = int_to_ptr.vmem [resolvable:$true] %s426
      %429 = dma.hbm_to_vmem [thread:$0]  %s67, 16, %s427, [#allocation42]
    $region137: #{forward.1} parent=1 // pred_fallthru
      _
    // Predicated region
    $region138: #{forward.1} parent=1 // pred_check
      _
    $region139: #{forward.1} parent=1 // pred_check_branch
      %431 = sbr.rel (0) target = $region141
    $region140: #{forward.1} parent=1 // pred_region
      %s433 = ssub.s32 1024, 1024
      %434 = vsyncadd [#allocation45], %s433
      %s435 = sshll.u32 [#allocation44], 4
      %s436 = int_to_ptr.vmem [resolvable:$true] %s435
      %441 = dma.hbm_to_vmem [thread:$0]  %s69, 1024, %s436, [#allocation45], 64, 64, 4
    $region141: #{forward.1} parent=1 // pred_fallthru
      _
    // Predicated region
    $region142: #{forward.1} parent=1 // pred_check
      _
    $region143: #{forward.1} parent=1 // pred_check_branch
      %443 = sbr.rel (0) target = $region145
    $region144: #{forward.1} parent=1 // pred_region
      %s445 = ssub.s32 16, 16
      %446 = vsyncadd [#allocation45], %s445
      %s448 = sshll.u32 [#allocation46], 4
      %s449 = int_to_ptr.vmem [resolvable:$true] %s448
      %451 = dma.hbm_to_vmem [thread:$0]  %s71, 16, %s449, [#allocation45]
    $region145: #{forward.1} parent=1 // pred_fallthru
      _
    // Predicated region
    $region146: #{forward.1} parent=1 // pred_check
      _
    $region147: #{forward.1} parent=1 // pred_check_branch
      %453 = sbr.rel (0) target = $region149
    $region148: #{forward.1} parent=1 // pred_region
      %s455 = ssub.s32 16, 16
      %456 = vsyncadd [#allocation48], %s455
      %s458 = sshll.u32 [#allocation47], 4
      %s459 = int_to_ptr.vmem [resolvable:$true] %s458
      %461 = dma.hbm_to_vmem [thread:$0]  %s73, 16, %s459, [#allocation48]
    $region149: #{forward.1} parent=1 // pred_fallthru
      _
    // Predicated region
    $region150: #{forward.1} parent=1 // pred_check
      _
    $region151: #{forward.1} parent=1 // pred_check_branch
      %463 = sbr.rel (0) target = $region153
    $region152: #{forward.1} parent=1 // pred_region
      %s465 = ssub.s32 1024, 1024
      %466 = vsyncadd [#allocation48], %s465
      %s467 = sshll.u32 [#allocation49], 4
      %s468 = int_to_ptr.vmem [resolvable:$true] %s467
      %473 = dma.hbm_to_vmem [thread:$0]  %s75, 1024, %s468, [#allocation48], 64, 64, 4
    $region153: #{forward.1} parent=1 // pred_fallthru
      _
    // Predicated region
    $region154: #{forward.1} parent=1 // pred_check
      _
    $region155: #{forward.1} parent=1 // pred_check_branch
      %475 = sbr.rel (0) target = $region157
    $region156: #{forward.1} parent=1 // pred_region
      %s477 = ssub.s32 16, 16
      %478 = vsyncadd [#allocation51], %s477
      %s480 = sshll.u32 [#allocation50], 4
      %s481 = int_to_ptr.vmem [resolvable:$true] %s480
      %483 = dma.hbm_to_vmem [thread:$0]  %s77, 16, %s481, [#allocation51]
    $region157: #{forward.1} parent=1 // pred_fallthru
      _
    // Predicated region
    $region158: #{forward.1} parent=1 // pred_check
      _
    $region159: #{forward.1} parent=1 // pred_check_branch
      %485 = sbr.rel (0) target = $region161
    $region160: #{forward.1} parent=1 // pred_region
      %s487 = ssub.s32 16, 16
      %488 = vsyncadd [#allocation51], %s487
      %s490 = sshll.u32 [#allocation52], 4
      %s491 = int_to_ptr.vmem [resolvable:$true] %s490
      %493 = dma.hbm_to_vmem [thread:$0]  %s79, 16, %s491, [#allocation51]
    $region161: #{forward.1} parent=1 // pred_fallthru
      _
    // Predicated region
    $region162: #{forward.1} parent=1 // pred_check
      _
    $region163: #{forward.1} parent=1 // pred_check_branch
      %495 = sbr.rel (0) target = $region165
    $region164: #{forward.1} parent=1 // pred_region
      %s497 = ssub.s32 1024, 1024
      %498 = vsyncadd [#allocation54], %s497
      %s499 = sshll.u32 [#allocation53], 4
      %s500 = int_to_ptr.vmem [resolvable:$true] %s499
      %505 = dma.hbm_to_vmem [thread:$0]  %s81, 1024, %s500, [#allocation54], 64, 64, 4
    $region165: #{forward.1} parent=1 // pred_fallthru
      _
    // Predicated region
    $region166: #{forward.1} parent=1 // pred_check
      _
    $region167: #{forward.1} parent=1 // pred_check_branch
      %507 = sbr.rel (0) target = $region169
    $region168: #{forward.1} parent=1 // pred_region
      _
    $region169: #{forward.1} parent=1 // pred_fallthru
      _
    // Predicated region
    $region170: #{forward.1} parent=1 // pred_check
      _
    $region171: #{forward.1} parent=1 // pred_check_branch
      %509 = sbr.rel (0) target = $region173
    $region172: #{forward.1} parent=1 // pred_region
      %s511 = ssub.s32 16, 16
      %512 = vsyncadd [#allocation54], %s511
      %s514 = sshll.u32 [#allocation55], 4
      %s515 = int_to_ptr.vmem [resolvable:$true] %s514
      %517 = dma.hbm_to_vmem [thread:$0]  %s85, 16, %s515, [#allocation54]
    $region173: #{forward.1} parent=1 // pred_fallthru
      _
    // Predicated region
    $region174: #{forward.1} parent=1 // pred_check
      _
    $region175: #{forward.1} parent=1 // pred_check_branch
      %519 = sbr.rel (0) target = $region177
    $region176: #{forward.1} parent=1 // pred_region
      %520 = dma.done [#allocation3], 1792
    $region177: #{forward.1} parent=1 // pred_fallthru
      _
    // Predicated region
    $region178: #{forward.1} parent=1 // pred_check
      _
    $region179: #{forward.1} parent=1 // pred_check_branch
      %522 = sbr.rel (0) target = $region181
    $region180: #{forward.1} parent=1 // pred_region
      %523 = dma.done [#allocation6], 32
    $region181: #{forward.1} parent=1 // pred_fallthru
      _
    // Predicated region
    $region182: #{forward.1} parent=1 // pred_check
      _
    $region183: #{forward.1} parent=1 // pred_check_branch
      %525 = sbr.rel (0) target = $region185
    $region184: #{forward.1} parent=1 // pred_region
      %526 = dma.done [#allocation6], 6144
    $region185: #{forward.1} parent=1 // pred_fallthru
      _
    // Predicated region
    $region186: #{forward.1} parent=1 // pred_check
      _
    $region187: #{forward.1} parent=1 // pred_check_branch
      %528 = sbr.rel (0) target = $region189
    $region188: #{forward.1} parent=1 // pred_region
      %529 = dma.done [#allocation9], 384
    $region189: #{forward.1} parent=1 // pred_fallthru
      _
    // Predicated region
    $region190: #{forward.1} parent=1 // pred_check
      _
    $region191: #{forward.1} parent=1 // pred_check_branch
      %531 = sbr.rel (0) target = $region193
    $region192: #{forward.1} parent=1 // pred_region
      %532 = dma.done [#allocation9], 3072
    $region193: #{forward.1} parent=1 // pred_fallthru
      _
    // Predicated region
    $region194: #{forward.1} parent=1 // pred_check
      _
    $region195: #{forward.1} parent=1 // pred_check_branch
      %534 = sbr.rel (0) target = $region197
    $region196: #{forward.1} parent=1 // pred_region
      %535 = dma.done [#allocation12], 384
    $region197: #{forward.1} parent=1 // pred_fallthru
      _
    // Predicated region
    $region198: #{forward.1} parent=1 // pred_check
      _
    $region199: #{forward.1} parent=1 // pred_check_branch
      %537 = sbr.rel (0) target = $region201
    $region200: #{forward.1} parent=1 // pred_region
      %538 = dma.done [#allocation12], 3072
    $region201: #{forward.1} parent=1 // pred_fallthru
      _
    // Predicated region
    $region202: #{forward.1} parent=1 // pred_check
      _
    $region203: #{forward.1} parent=1 // pred_check_branch
      %540 = sbr.rel (0) target = $region205
    $region204: #{forward.1} parent=1 // pred_region
      %541 = dma.done [#allocation15], 16
    $region205: #{forward.1} parent=1 // pred_fallthru
      _
    // Predicated region
    $region206: #{forward.1} parent=1 // pred_check
      _
    $region207: #{forward.1} parent=1 // pred_check_branch
      %543 = sbr.rel (0) target = $region209
    $region208: #{forward.1} parent=1 // pred_region
      %544 = dma.done [#allocation15], 3072
    $region209: #{forward.1} parent=1 // pred_fallthru
      _
    // Predicated region
    $region210: #{forward.1} parent=1 // pred_check
      _
    $region211: #{forward.1} parent=1 // pred_check_branch
      %546 = sbr.rel (0) target = $region213
    $region212: #{forward.1} parent=1 // pred_region
      %547 = dma.done [#allocation18], 16
    $region213: #{forward.1} parent=1 // pred_fallthru
      _
    // Predicated region
    $region214: #{forward.1} parent=1 // pred_check
      _
    $region215: #{forward.1} parent=1 // pred_check_branch
      %549 = sbr.rel (0) target = $region217
    $region216: #{forward.1} parent=1 // pred_region
      %550 = dma.done [#allocation18], 1024
    $region217: #{forward.1} parent=1 // pred_fallthru
      _
    // Predicated region
    $region218: #{forward.1} parent=1 // pred_check
      _
    $region219: #{forward.1} parent=1 // pred_check_branch
      %552 = sbr.rel (0) target = $region221
    $region220: #{forward.1} parent=1 // pred_region
      %553 = dma.done [#allocation21], 16
    $region221: #{forward.1} parent=1 // pred_fallthru
      _
    // Predicated region
    $region222: #{forward.1} parent=1 // pred_check
      _
    $region223: #{forward.1} parent=1 // pred_check_branch
      %555 = sbr.rel (0) target = $region225
    $region224: #{forward.1} parent=1 // pred_region
      %556 = dma.done [#allocation21], 192
    $region225: #{forward.1} parent=1 // pred_fallthru
      _
    // Predicated region
    $region226: #{forward.1} parent=1 // pred_check
      _
    $region227: #{forward.1} parent=1 // pred_check_branch
      %558 = sbr.rel (0) target = $region229
    $region228: #{forward.1} parent=1 // pred_region
      %559 = dma.done [#allocation24], 3072
    $region229: #{forward.1} parent=1 // pred_fallthru
      _
    // Predicated region
    $region230: #{forward.1} parent=1 // pred_check
      _
    $region231: #{forward.1} parent=1 // pred_check_branch
      %561 = sbr.rel (0) target = $region233
    $region232: #{forward.1} parent=1 // pred_region
      %562 = dma.done [#allocation24], 16
    $region233: #{forward.1} parent=1 // pred_fallthru
      _
    // Predicated region
    $region234: #{forward.1} parent=1 // pred_check
      _
    $region235: #{forward.1} parent=1 // pred_check_branch
      %564 = sbr.rel (0) target = $region237
    $region236: #{forward.1} parent=1 // pred_region
      %565 = dma.done [#allocation27], 96
    $region237: #{forward.1} parent=1 // pred_fallthru
      _
    // Predicated region
    $region238: #{forward.1} parent=1 // pred_check
      _
    $region239: #{forward.1} parent=1 // pred_check_branch
      %567 = sbr.rel (0) target = $region241
    $region240: #{forward.1} parent=1 // pred_region
      %568 = dma.done [#allocation27], 3072
    $region241: #{forward.1} parent=1 // pred_fallthru
      _
    // Predicated region
    $region242: #{forward.1} parent=1 // pred_check
      _
    $region243: #{forward.1} parent=1 // pred_check_branch
      %570 = sbr.rel (0) target = $region245
    $region244: #{forward.1} parent=1 // pred_region
      %571 = dma.done [#allocation30], 16
    $region245: #{forward.1} parent=1 // pred_fallthru
      _
    // Predicated region
    $region246: #{forward.1} parent=1 // pred_check
      _
    $region247: #{forward.1} parent=1 // pred_check_branch
      %573 = sbr.rel (0) target = $region249
    $region248: #{forward.1} parent=1 // pred_region
      %574 = dma.done [#allocation30], 32
    $region249: #{forward.1} parent=1 // pred_fallthru
      _
    // Predicated region
    $region250: #{forward.1} parent=1 // pred_check
      _
    $region251: #{forward.1} parent=1 // pred_check_branch
      %576 = sbr.rel (0) target = $region253
    $region252: #{forward.1} parent=1 // pred_region
      %577 = dma.done [#allocation33], 1024
    $region253: #{forward.1} parent=1 // pred_fallthru
      _
    // Predicated region
    $region254: #{forward.1} parent=1 // pred_check
      _
    $region255: #{forward.1} parent=1 // pred_check_branch
      %579 = sbr.rel (0) target = $region257
    $region256: #{forward.1} parent=1 // pred_region
      %580 = dma.done [#allocation33], 16
    $region257: #{forward.1} parent=1 // pred_fallthru
      _
    // Predicated region
    $region258: #{forward.1} parent=1 // pred_check
      _
    $region259: #{forward.1} parent=1 // pred_check_branch
      %582 = sbr.rel (0) target = $region261
    $region260: #{forward.1} parent=1 // pred_region
      %583 = dma.done [#allocation36], 96
    $region261: #{forward.1} parent=1 // pred_fallthru
      _
    // Predicated region
    $region262: #{forward.1} parent=1 // pred_check
      _
    $region263: #{forward.1} parent=1 // pred_check_branch
      %585 = sbr.rel (0) target = $region265
    $region264: #{forward.1} parent=1 // pred_region
      %586 = dma.done [#allocation36], 3072
    $region265: #{forward.1} parent=1 // pred_fallthru
      _
    // Predicated region
    $region266: #{forward.1} parent=1 // pred_check
      _
    $region267: #{forward.1} parent=1 // pred_check_branch
      %588 = sbr.rel (0) target = $region269
    $region268: #{forward.1} parent=1 // pred_region
      %589 = dma.done [#allocation39], 16
    $region269: #{forward.1} parent=1 // pred_fallthru
      _
    // Predicated region
    $region270: #{forward.1} parent=1 // pred_check
      _
    $region271: #{forward.1} parent=1 // pred_check_branch
      %591 = sbr.rel (0) target = $region273
    $region272: #{forward.1} parent=1 // pred_region
      %592 = dma.done [#allocation39], 32
    $region273: #{forward.1} parent=1 // pred_fallthru
      _
    // Predicated region
    $region274: #{forward.1} parent=1 // pred_check
      _
    $region275: #{forward.1} parent=1 // pred_check_branch
      %594 = sbr.rel (0) target = $region277
    $region276: #{forward.1} parent=1 // pred_region
      %595 = dma.done [#allocation42], 16
    $region277: #{forward.1} parent=1 // pred_fallthru
      _
    // Predicated region
    $region278: #{forward.1} parent=1 // pred_check
      _
    $region279: #{forward.1} parent=1 // pred_check_branch
      %597 = sbr.rel (0) target = $region281
    $region280: #{forward.1} parent=1 // pred_region
      %598 = dma.done [#allocation42], 16
    $region281: #{forward.1} parent=1 // pred_fallthru
      _
    // Predicated region
    $region282: #{forward.1} parent=1 // pred_check
      _
    $region283: #{forward.1} parent=1 // pred_check_branch
      %600 = sbr.rel (0) target = $region285
    $region284: #{forward.1} parent=1 // pred_region
      %601 = dma.done [#allocation45], 1024
    $region285: #{forward.1} parent=1 // pred_fallthru
      _
    // Predicated region
    $region286: #{forward.1} parent=1 // pred_check
      _
    $region287: #{forward.1} parent=1 // pred_check_branch
      %603 = sbr.rel (0) target = $region289
    $region288: #{forward.1} parent=1 // pred_region
      %604 = dma.done [#allocation45], 16
    $region289: #{forward.1} parent=1 // pred_fallthru
      _
    // Predicated region
    $region290: #{forward.1} parent=1 // pred_check
      _
    $region291: #{forward.1} parent=1 // pred_check_branch
      %606 = sbr.rel (0) target = $region293
    $region292: #{forward.1} parent=1 // pred_region
      %607 = dma.done [#allocation48], 16
    $region293: #{forward.1} parent=1 // pred_fallthru
      _
    // Predicated region
    $region294: #{forward.1} parent=1 // pred_check
      _
    $region295: #{forward.1} parent=1 // pred_check_branch
      %609 = sbr.rel (0) target = $region297
    $region296: #{forward.1} parent=1 // pred_region
      %610 = dma.done [#allocation48], 1024
    $region297: #{forward.1} parent=1 // pred_fallthru
      _
    // Predicated region
    $region298: #{forward.1} parent=1 // pred_check
      _
    $region299: #{forward.1} parent=1 // pred_check_branch
      %612 = sbr.rel (0) target = $region301
    $region300: #{forward.1} parent=1 // pred_region
      %613 = dma.done [#allocation51], 16
    $region301: #{forward.1} parent=1 // pred_fallthru
      _
    // Predicated region
    $region302: #{forward.1} parent=1 // pred_check
      _
    $region303: #{forward.1} parent=1 // pred_check_branch
      %615 = sbr.rel (0) target = $region305
    $region304: #{forward.1} parent=1 // pred_region
      %616 = dma.done [#allocation51], 16
    $region305: #{forward.1} parent=1 // pred_fallthru
      _
    // Predicated region
    $region306: #{forward.1} parent=1 // pred_check
      _
    $region307: #{forward.1} parent=1 // pred_check_branch
      %618 = sbr.rel (0) target = $region309
    $region308: #{forward.1} parent=1 // pred_region
      %619 = dma.done [#allocation54], 1024
    $region309: #{forward.1} parent=1 // pred_fallthru
      _
    // Predicated region
    $region310: #{forward.1} parent=1 // pred_check
      _
    $region311: #{forward.1} parent=1 // pred_check_branch
      %621 = sbr.rel (0) target = $region313
    $region312: #{forward.1} parent=1 // pred_region
      %622 = dma.done [#allocation54], 16
    $region313: #{forward.1} parent=1 // pred_fallthru
      _
    %v624 = vld [vmem:[%s1] sm:$0xf]
    %v625 = vld [vmem:[%s1 + $0x4] sm:$0xf]
    %v626 = vld [vmem:[%s1 + $0x8] sm:$0xf]
    %v627 = vld [vmem:[%s1 + $0xc] sm:$0xf]
    %v628 = vld [vmem:[%s1 + $0x10] sm:$0xf]
    %v629 = vld [vmem:[%s1 + $0x14] sm:$0xf]
    %v630 = vld [vmem:[%s1 + $0x18] sm:$0xf]
    %v631 = vld [vmem:[%s1 + $0x1c] sm:$0xf]
    %v632 = vld [vmem:[%s5] sm:$0xff]
    %v633 = vld [vmem:[%s5 + $0x8] sm:$0xff]
    %v634 = vld [vmem:[%s5 + $0x10] sm:$0xff]
    %v635 = vld [vmem:[%s5 + $0x18] sm:$0xff]
    %v636 = vld [vmem:[%s5 + $0x20] sm:$0xff]
    %v637 = vld [vmem:[%s5 + $0x28] sm:$0xff]
    %v638 = vld [vmem:[%s5 + $0x30] sm:$0xff]
    %v639 = vld [vmem:[%s5 + $0x38] sm:$0xff]
    %v640 = vld [vmem:[%s5 + $0x40] sm:$0xff]
    %v641 = vld [vmem:[%s5 + $0x48] sm:$0xff]
    %v642 = vld [vmem:[%s5 + $0x50] sm:$0xff]
    %v643 = vld [vmem:[%s5 + $0x58] sm:$0xff]
    %v652 = vunpack.c.l.b16 %v624
    %v653 = vunpack.c.l.b16 %v625
    %v654 = vunpack.c.l.b16 %v626
    %v655 = vunpack.c.l.b16 %v627
    %v656 = vunpack.c.l.b16 %v628
    %v657 = vunpack.c.l.b16 %v629
    %v658 = vunpack.c.l.b16 %v630
    %v659 = vunpack.c.l.b16 %v631
    %v660 = vpack.c.b16 %v653, %v652
    %v661 = vpack.c.b16 %v655, %v654
    %v662 = vpack.c.b16 %v657, %v656
    %v663 = vpack.c.b16 %v659, %v658
    %v676 = vunpack.c.l.b16 %v632
    %v677 = vunpack.c.h.b16 %v632
    %v678 = vunpack.c.l.b16 %v633
    %v679 = vunpack.c.h.b16 %v633
    %v680 = vunpack.c.l.b16 %v634
    %v681 = vunpack.c.h.b16 %v634
    %v682 = vunpack.c.l.b16 %v635
    %v683 = vunpack.c.h.b16 %v635
    %v684 = vunpack.c.l.b16 %v636
    %v685 = vunpack.c.h.b16 %v636
    %v686 = vunpack.c.l.b16 %v637
    %v687 = vunpack.c.h.b16 %v637
    %v688 = vunpack.c.l.b16 %v638
    %v689 = vunpack.c.h.b16 %v638
    %v690 = vunpack.c.l.b16 %v639
    %v691 = vunpack.c.h.b16 %v639
    %v692 = vunpack.c.l.b16 %v640
    %v693 = vunpack.c.h.b16 %v640
    %v694 = vunpack.c.l.b16 %v641
    %v695 = vunpack.c.h.b16 %v641
    %v696 = vunpack.c.l.b16 %v642
    %v697 = vunpack.c.h.b16 %v642
    %v698 = vunpack.c.l.b16 %v643
    %v699 = vunpack.c.h.b16 %v643
    %v700 = vpack.c.b16 %v678, %v676
    %v701 = vpack.c.b16 %v679, %v677
    %v702 = vpack.c.b16 %v682, %v680
    %v703 = vpack.c.b16 %v683, %v681
    %v704 = vpack.c.b16 %v686, %v684
    %v705 = vpack.c.b16 %v687, %v685
    %v706 = vpack.c.b16 %v690, %v688
    %v707 = vpack.c.b16 %v691, %v689
    %v708 = vpack.c.b16 %v694, %v692
    %v709 = vpack.c.b16 %v695, %v693
    %v710 = vpack.c.b16 %v698, %v696
    %v711 = vpack.c.b16 %v699, %v697
    %vm724 = vcmask 785408
    %v726 = vsel %vm724, %v660, 0
    %v729 = vsel %vm724, %v661, 0
    %v732 = vsel %vm724, %v662, 0
    %v735 = vsel %vm724, %v663, 0
    %737 = vmatprep.subr.bf16.mxu0 0
    %738 = vmatpush1.bf16.msra.mxu0 0
    %739 = vmatprep.subr.bf16.mxu0 0
    %740 = vmatpush1.bf16.msra.mxu0 0
    %741 = vmatprep.subr.bf16.mxu0 %v711
    %742 = vmatpush1.bf16.msra.mxu0 %v710
    %743 = vmatprep.subr.bf16.mxu0 %v709
    %744 = vmatpush1.bf16.msra.mxu0 %v708
    %745 = vmatprep.subr.bf16.mxu0 %v707
    %746 = vmatpush1.bf16.msra.mxu0 %v706
    %747 = vmatprep.subr.bf16.mxu0 %v705
    %748 = vmatpush1.bf16.msra.mxu0 %v704
    %749 = vmatprep.subr.bf16.mxu0 %v703
    %750 = vmatpush1.bf16.msra.mxu0 %v702
    %751 = vmatprep.subr.bf16.mxu0 %v701
    %752 = vmatpush1.bf16.msra.mxu0 %v700
    %753 = vmatprep.subr.bf16.mxu0 0
    %754 = vmatpush2.bf16.msra.mxu0 0
    %755 = vmatprep.subr.bf16.mxu0 0
    %756 = vmatpush2.bf16.msra.mxu0 0
    %757 = vmatprep.subr.bf16.mxu0 0
    %758 = vmatpush2.bf16.msra.mxu0 0
    %759 = vmatprep.subr.bf16.mxu0 0
    %760 = vmatpush2.bf16.msra.mxu0 0
    %761 = vmatprep.subr.bf16.mxu0 0
    %762 = vmatpush2.bf16.msra.mxu0 0
    %763 = vmatprep.subr.bf16.mxu0 0
    %764 = vmatpush2.bf16.msra.mxu0 0
    %765 = vmatprep.subr.bf16.mxu0 0
    %766 = vmatpush2.bf16.msra.mxu0 0
    %767 = vmatprep.subr.bf16.mxu0 0
    %768 = vmatpush2.bf16.msra.mxu0 0
    %769 = vmatprep.mubr.bf16.mxu0 0
    %770 = vmatmul.mubr.bf16.gmra.mxu0 %v726
    %v771 = vpop.f32.mrf.mxu0
    %v772 = vadd.f32 0.0, %v771
    %v773 = vpop.f32.mrf.mxu0
    %v774 = vadd.f32 0.0, %v773
    %v775 = vpop.f32.mrf.mxu0
    %v776 = vadd.f32 0.0, %v775
    %v777 = vpop.f32.mrf.mxu0
    %v778 = vadd.f32 0.0, %v777
    %779 = vmatprep.mubr.bf16.mxu0 0
    %780 = vmatmul.mubr.bf16.gmra.mxu0 %v729
    %v781 = vpop.f32.mrf.mxu0
    %v782 = vadd.f32 0.0, %v781
    %v783 = vpop.f32.mrf.mxu0
    %v784 = vadd.f32 0.0, %v783
    %v785 = vpop.f32.mrf.mxu0
    %v786 = vadd.f32 0.0, %v785
    %v787 = vpop.f32.mrf.mxu0
    %v788 = vadd.f32 0.0, %v787
    %789 = vmatprep.mubr.bf16.mxu0 0
    %790 = vmatmul.mubr.bf16.gmra.mxu0 %v732
    %v791 = vpop.f32.mrf.mxu0
    %v792 = vadd.f32 0.0, %v791
    %v793 = vpop.f32.mrf.mxu0
    %v794 = vadd.f32 0.0, %v793
    %v795 = vpop.f32.mrf.mxu0
    %v796 = vadd.f32 0.0, %v795
    %v797 = vpop.f32.mrf.mxu0
    %v798 = vadd.f32 0.0, %v797
    %799 = vmatprep.mubr.bf16.mxu0 0
    %800 = vmatmul.mubr.bf16.gmra.mxu0 %v735
    %v801 = vpop.f32.mrf.mxu0
    %v802 = vadd.f32 0.0, %v801
    %v803 = vpop.f32.mrf.mxu0
    %v804 = vadd.f32 0.0, %v803
    %v805 = vpop.f32.mrf.mxu0
    %v806 = vadd.f32 0.0, %v805
    %v807 = vpop.f32.mrf.mxu0
    %v808 = vadd.f32 0.0, %v807
    %809 = vdwg.mxu0
    %v810 = vld [vmem:[#allocation2] sm:$0xf]
    %v811 = vld [vmem:[#allocation2 + $0x4] sm:$0xf]
    %v812 = vld [vmem:[#allocation2 + $0x8] sm:$0xf]
    %v813 = vld [vmem:[#allocation2 + $0xc] sm:$0xf]
    %v814 = vpack.c.bf16 %v776, %v772
    %v815 = vpack.c.bf16 %v778, %v774
    %v816 = vpack.c.bf16 %v786, %v782
    %v817 = vpack.c.bf16 %v788, %v784
    %v818 = vpack.c.bf16 %v796, %v792
    %v819 = vpack.c.bf16 %v798, %v794
    %v820 = vpack.c.bf16 %v806, %v802
    %v821 = vpack.c.bf16 %v808, %v804
    %s822 = scalar_lea.vmem %s5, 96
    %v823 = vld [vmem:[%s822] sm:$0xff]
    %v824 = vld [vmem:[%s822 + $0x8] sm:$0xff]
    %v825 = vld [vmem:[%s822 + $0x10] sm:$0xff]
    %v826 = vld [vmem:[%s822 + $0x18] sm:$0xff]
    %v827 = vld [vmem:[%s822 + $0x20] sm:$0xff]
    %v828 = vld [vmem:[%s822 + $0x28] sm:$0xff]
    %v829 = vld [vmem:[%s822 + $0x30] sm:$0xff]
    %v830 = vld [vmem:[%s822 + $0x38] sm:$0xff]
    %v831 = vld [vmem:[%s822 + $0x40] sm:$0xff]
    %v832 = vld [vmem:[%s822 + $0x48] sm:$0xff]
    %v833 = vld [vmem:[%s822 + $0x50] sm:$0xff]
    %v834 = vld [vmem:[%s822 + $0x58] sm:$0xff]
    %v847 = vunpack.c.l.b16 %v823
    %v848 = vunpack.c.h.b16 %v823
    %v849 = vunpack.c.l.b16 %v824
    %v850 = vunpack.c.h.b16 %v824
    %v851 = vunpack.c.l.b16 %v825
    %v852 = vunpack.c.h.b16 %v825
    %v853 = vunpack.c.l.b16 %v826
    %v854 = vunpack.c.h.b16 %v826
    %v855 = vunpack.c.l.b16 %v827
    %v856 = vunpack.c.h.b16 %v827
    %v857 = vunpack.c.l.b16 %v828
    %v858 = vunpack.c.h.b16 %v828
    %v859 = vunpack.c.l.b16 %v829
    %v860 = vunpack.c.h.b16 %v829
    %v861 = vunpack.c.l.b16 %v830
    %v862 = vunpack.c.h.b16 %v830
    %v863 = vunpack.c.l.b16 %v831
    %v864 = vunpack.c.h.b16 %v831
    %v865 = vunpack.c.l.b16 %v832
    %v866 = vunpack.c.h.b16 %v832
    %v867 = vunpack.c.l.b16 %v833
    %v868 = vunpack.c.h.b16 %v833
    %v869 = vunpack.c.l.b16 %v834
    %v870 = vunpack.c.h.b16 %v834
    %v871 = vpack.c.b16 %v849, %v847
    %v872 = vpack.c.b16 %v850, %v848
    %v873 = vpack.c.b16 %v853, %v851
    %v874 = vpack.c.b16 %v854, %v852
    %v875 = vpack.c.b16 %v857, %v855
    %v876 = vpack.c.b16 %v858, %v856
    %v877 = vpack.c.b16 %v861, %v859
    %v878 = vpack.c.b16 %v862, %v860
    %v879 = vpack.c.b16 %v865, %v863
    %v880 = vpack.c.b16 %v866, %v864
    %v881 = vpack.c.b16 %v869, %v867
    %v882 = vpack.c.b16 %v870, %v868
    %895 = vmatprep.subr.bf16.mxu0 0
    %896 = vmatpush1.bf16.msra.mxu0 0
    %897 = vmatprep.subr.bf16.mxu0 0
    %898 = vmatpush1.bf16.msra.mxu0 0
    %899 = vmatprep.subr.bf16.mxu0 %v882
    %900 = vmatpush1.bf16.msra.mxu0 %v881
    %901 = vmatprep.subr.bf16.mxu0 %v880
    %902 = vmatpush1.bf16.msra.mxu0 %v879
    %903 = vmatprep.subr.bf16.mxu0 %v878
    %904 = vmatpush1.bf16.msra.mxu0 %v877
    %905 = vmatprep.subr.bf16.mxu0 %v876
    %906 = vmatpush1.bf16.msra.mxu0 %v875
    %907 = vmatprep.subr.bf16.mxu0 %v874
    %908 = vmatpush1.bf16.msra.mxu0 %v873
    %909 = vmatprep.subr.bf16.mxu0 %v872
    %910 = vmatpush1.bf16.msra.mxu0 %v871
    %911 = vmatprep.subr.bf16.mxu0 0
    %912 = vmatpush2.bf16.msra.mxu0 0
    %913 = vmatprep.subr.bf16.mxu0 0
    %914 = vmatpush2.bf16.msra.mxu0 0
    %915 = vmatprep.subr.bf16.mxu0 0
    %916 = vmatpush2.bf16.msra.mxu0 0
    %917 = vmatprep.subr.bf16.mxu0 0
    %918 = vmatpush2.bf16.msra.mxu0 0
    %919 = vmatprep.subr.bf16.mxu0 0
    %920 = vmatpush2.bf16.msra.mxu0 0
    %921 = vmatprep.subr.bf16.mxu0 0
    %922 = vmatpush2.bf16.msra.mxu0 0
    %923 = vmatprep.subr.bf16.mxu0 0
    %924 = vmatpush2.bf16.msra.mxu0 0
    %925 = vmatprep.subr.bf16.mxu0 0
    %926 = vmatpush2.bf16.msra.mxu0 0
    %927 = vmatprep.mubr.bf16.mxu0 0
    %928 = vmatmul.mubr.bf16.gmra.mxu0 %v726
    %v929 = vpop.f32.mrf.mxu0
    %v930 = vadd.f32 0.0, %v929
    %v931 = vpop.f32.mrf.mxu0
    %v932 = vadd.f32 0.0, %v931
    %v933 = vpop.f32.mrf.mxu0
    %v934 = vadd.f32 0.0, %v933
    %v935 = vpop.f32.mrf.mxu0
    %v936 = vadd.f32 0.0, %v935
    %937 = vmatprep.mubr.bf16.mxu0 0
    %938 = vmatmul.mubr.bf16.gmra.mxu0 %v729
    %v939 = vpop.f32.mrf.mxu0
    %v940 = vadd.f32 0.0, %v939
    %v941 = vpop.f32.mrf.mxu0
    %v942 = vadd.f32 0.0, %v941
    %v943 = vpop.f32.mrf.mxu0
    %v944 = vadd.f32 0.0, %v943
    %v945 = vpop.f32.mrf.mxu0
    %v946 = vadd.f32 0.0, %v945
    %947 = vmatprep.mubr.bf16.mxu0 0
    %948 = vmatmul.mubr.bf16.gmra.mxu0 %v732
    %v949 = vpop.f32.mrf.mxu0
    %v950 = vadd.f32 0.0, %v949
    %v951 = vpop.f32.mrf.mxu0
    %v952 = vadd.f32 0.0, %v951
    %v953 = vpop.f32.mrf.mxu0
    %v954 = vadd.f32 0.0, %v953
    %v955 = vpop.f32.mrf.mxu0
    %v956 = vadd.f32 0.0, %v955
    %957 = vmatprep.mubr.bf16.mxu0 0
    %958 = vmatmul.mubr.bf16.gmra.mxu0 %v735
    %v959 = vpop.f32.mrf.mxu0
    %v960 = vadd.f32 0.0, %v959
    %v961 = vpop.f32.mrf.mxu0
    %v962 = vadd.f32 0.0, %v961
    %v963 = vpop.f32.mrf.mxu0
    %v964 = vadd.f32 0.0, %v963
    %v965 = vpop.f32.mrf.mxu0
    %v966 = vadd.f32 0.0, %v965
    %967 = vdwg.mxu0
    %s968 = scalar_lea.vmem [#allocation2], 16
    %v969 = vld [vmem:[%s968] sm:$0xf]
    %v970 = vld [vmem:[%s968 + $0x4] sm:$0xf]
    %v971 = vld [vmem:[%s968 + $0x8] sm:$0xf]
    %v972 = vld [vmem:[%s968 + $0xc] sm:$0xf]
    %v973 = vpack.c.bf16 %v934, %v930
    %v974 = vpack.c.bf16 %v936, %v932
    %v975 = vpack.c.bf16 %v944, %v940
    %v976 = vpack.c.bf16 %v946, %v942
    %v977 = vpack.c.bf16 %v954, %v950
    %v978 = vpack.c.bf16 %v956, %v952
    %v979 = vpack.c.bf16 %v964, %v960
    %v980 = vpack.c.bf16 %v966, %v962
    %v985 = vunpack.c.l.b16 %v969
    %v986 = vunpack.c.l.b16 %v970
    %v987 = vunpack.c.l.b16 %v971
    %v988 = vunpack.c.l.b16 %v972
    %v989 = vpack.c.b16 %v986, %v985
    %v990 = vpack.c.b16 %v988, %v987
    %vm991 = vcmask 523264
    %v993 = vsel %vm991, %v989, 0
    %v996 = vsel %vm991, %v990, 0
    %998 = vmatprep.subr.bf16.mxu0 0
    %999 = vmatpush1.bf16.msra.mxu0 0
    %1000 = vmatprep.subr.bf16.mxu0 0
    %1001 = vmatpush1.bf16.msra.mxu0 0
    %1002 = vmatprep.subr.bf16.mxu0 0
    %1003 = vmatpush1.bf16.msra.mxu0 0
    %1004 = vmatprep.subr.bf16.mxu0 0
    %1005 = vmatpush1.bf16.msra.mxu0 0
    %1006 = vmatprep.subr.bf16.mxu0 %v980
    %1007 = vmatpush1.bf16.msra.mxu0 %v979
    %1008 = vmatprep.subr.bf16.mxu0 %v978
    %1009 = vmatpush1.bf16.msra.mxu0 %v977
    %1010 = vmatprep.subr.bf16.mxu0 %v976
    %1011 = vmatpush1.bf16.msra.mxu0 %v975
    %1012 = vmatprep.subr.bf16.mxu0 %v974
    %1013 = vmatpush1.bf16.msra.mxu0 %v973
    %1014 = vmatprep.subr.bf16.mxu0 0
    %1015 = vmatpush2.bf16.msra.mxu0 0
    %1016 = vmatprep.subr.bf16.mxu0 0
    %1017 = vmatpush2.bf16.msra.mxu0 0
    %1018 = vmatprep.subr.bf16.mxu0 0
    %1019 = vmatpush2.bf16.msra.mxu0 0
    %1020 = vmatprep.subr.bf16.mxu0 0
    %1021 = vmatpush2.bf16.msra.mxu0 0
    %1022 = vmatprep.subr.bf16.mxu0 0
    %1023 = vmatpush2.bf16.msra.mxu0 0
    %1024 = vmatprep.subr.bf16.mxu0 0
    %1025 = vmatpush2.bf16.msra.mxu0 0
    %1026 = vmatprep.subr.bf16.mxu0 0
    %1027 = vmatpush2.bf16.msra.mxu0 0
    %1028 = vmatprep.subr.bf16.mxu0 0
    %1029 = vmatpush2.bf16.msra.mxu0 0
    %1030 = vmatprep.mubr.bf16.mxu0 0
    %1031 = vmatmul.mubr.bf16.gmra.mxu0 %v993
    %v1032 = vpop.f32.mrf.mxu0
    %v1033 = vadd.f32 0.0, %v1032
    %v1034 = vpop.f32.mrf.mxu0
    %v1035 = vadd.f32 0.0, %v1034
    %v1036 = vpop.f32.mrf.mxu0
    %v1037 = vadd.f32 0.0, %v1036
    %v1038 = vpop.f32.mrf.mxu0
    %v1039 = vadd.f32 0.0, %v1038
    %1040 = vmatprep.mubr.bf16.mxu0 0
    %1041 = vmatmul.mubr.bf16.gmra.mxu0 %v996
    %v1042 = vpop.f32.mrf.mxu0
    %v1043 = vadd.f32 0.0, %v1042
    %v1044 = vpop.f32.mrf.mxu0
    %v1045 = vadd.f32 0.0, %v1044
    %v1046 = vpop.f32.mrf.mxu0
    %v1047 = vadd.f32 0.0, %v1046
    %v1048 = vpop.f32.mrf.mxu0
    %v1049 = vadd.f32 0.0, %v1048
    %1050 = vdwg.mxu0
    %v1055 = vunpack.c.l.b16 %v810
    %v1056 = vunpack.c.l.b16 %v811
    %v1057 = vunpack.c.l.b16 %v812
    %v1058 = vunpack.c.l.b16 %v813
    %v1059 = vpack.c.b16 %v1056, %v1055
    %v1060 = vpack.c.b16 %v1058, %v1057
    %v1062 = vsel %vm991, %v1059, 0
    %v1065 = vsel %vm991, %v1060, 0
    %1067 = vmatprep.subr.bf16.mxu0 0
    %1068 = vmatpush1.bf16.msra.mxu0 0
    %1069 = vmatprep.subr.bf16.mxu0 0
    %1070 = vmatpush1.bf16.msra.mxu0 0
    %1071 = vmatprep.subr.bf16.mxu0 0
    %1072 = vmatpush1.bf16.msra.mxu0 0
    %1073 = vmatprep.subr.bf16.mxu0 0
    %1074 = vmatpush1.bf16.msra.mxu0 0
    %1075 = vmatprep.subr.bf16.mxu0 %v821
    %1076 = vmatpush1.bf16.msra.mxu0 %v820
    %1077 = vmatprep.subr.bf16.mxu0 %v819
    %1078 = vmatpush1.bf16.msra.mxu0 %v818
    %1079 = vmatprep.subr.bf16.mxu0 %v817
    %1080 = vmatpush1.bf16.msra.mxu0 %v816
    %1081 = vmatprep.subr.bf16.mxu0 %v815
    %1082 = vmatpush1.bf16.msra.mxu0 %v814
    %1083 = vmatprep.subr.bf16.mxu0 0
    %1084 = vmatpush2.bf16.msra.mxu0 0
    %1085 = vmatprep.subr.bf16.mxu0 0
    %1086 = vmatpush2.bf16.msra.mxu0 0
    %1087 = vmatprep.subr.bf16.mxu0 0
    %1088 = vmatpush2.bf16.msra.mxu0 0
    %1089 = vmatprep.subr.bf16.mxu0 0
    %1090 = vmatpush2.bf16.msra.mxu0 0
    %1091 = vmatprep.subr.bf16.mxu0 0
    %1092 = vmatpush2.bf16.msra.mxu0 0
    %1093 = vmatprep.subr.bf16.mxu0 0
    %1094 = vmatpush2.bf16.msra.mxu0 0
    %1095 = vmatprep.subr.bf16.mxu0 0
    %1096 = vmatpush2.bf16.msra.mxu0 0
    %1097 = vmatprep.subr.bf16.mxu0 0
    %1098 = vmatpush2.bf16.msra.mxu0 0
    %1099 = vmatprep.mubr.bf16.mxu0 0
    %1100 = vmatmul.mubr.bf16.gmra.mxu0 %v1062
    %v1101 = vpop.f32.mrf.mxu0
    %v1102 = vadd.f32 %v1033, %v1101
    %v1103 = vpop.f32.mrf.mxu0
    %v1104 = vadd.f32 %v1035, %v1103
    %v1105 = vpop.f32.mrf.mxu0
    %v1106 = vadd.f32 %v1037, %v1105
    %v1107 = vpop.f32.mrf.mxu0
    %v1108 = vadd.f32 %v1039, %v1107
    %1109 = vmatprep.mubr.bf16.mxu0 0
    %1110 = vmatmul.mubr.bf16.gmra.mxu0 %v1065
    %v1111 = vpop.f32.mrf.mxu0
    %v1112 = vadd.f32 %v1043, %v1111
    %v1113 = vpop.f32.mrf.mxu0
    %v1114 = vadd.f32 %v1045, %v1113
    %v1115 = vpop.f32.mrf.mxu0
    %v1116 = vadd.f32 %v1047, %v1115
    %v1117 = vpop.f32.mrf.mxu0
    %v1118 = vadd.f32 %v1049, %v1117
    %1119 = vdwg.mxu0
    %s1120 = scalar_lea.vmem %s5, 192
    %v1121 = vld [vmem:[%s1120] sm:$0xff]
    %v1122 = vld [vmem:[%s1120 + $0x8] sm:$0xff]
    %v1123 = vld [vmem:[%s1120 + $0x10] sm:$0xff]
    %v1124 = vld [vmem:[%s1120 + $0x18] sm:$0xff]
    %v1125 = vld [vmem:[%s1120 + $0x20] sm:$0xff]
    %v1126 = vld [vmem:[%s1120 + $0x28] sm:$0xff]
    %v1127 = vld [vmem:[%s1120 + $0x30] sm:$0xff]
    %v1128 = vld [vmem:[%s1120 + $0x38] sm:$0xff]
    %v1129 = vld [vmem:[%s1120 + $0x40] sm:$0xff]
    %v1130 = vld [vmem:[%s1120 + $0x48] sm:$0xff]
    %v1131 = vld [vmem:[%s1120 + $0x50] sm:$0xff]
    %v1132 = vld [vmem:[%s1120 + $0x58] sm:$0xff]
    %v1145 = vunpack.c.l.b16 %v1121
    %v1146 = vunpack.c.h.b16 %v1121
    %v1147 = vunpack.c.l.b16 %v1122
    %v1148 = vunpack.c.h.b16 %v1122
    %v1149 = vunpack.c.l.b16 %v1123
    %v1150 = vunpack.c.h.b16 %v1123
    %v1151 = vunpack.c.l.b16 %v1124
    %v1152 = vunpack.c.h.b16 %v1124
    %v1153 = vunpack.c.l.b16 %v1125
    %v1154 = vunpack.c.h.b16 %v1125
    %v1155 = vunpack.c.l.b16 %v1126
    %v1156 = vunpack.c.h.b16 %v1126
    %v1157 = vunpack.c.l.b16 %v1127
    %v1158 = vunpack.c.h.b16 %v1127
    %v1159 = vunpack.c.l.b16 %v1128
    %v1160 = vunpack.c.h.b16 %v1128
    %v1161 = vunpack.c.l.b16 %v1129
    %v1162 = vunpack.c.h.b16 %v1129
    %v1163 = vunpack.c.l.b16 %v1130
    %v1164 = vunpack.c.h.b16 %v1130
    %v1165 = vunpack.c.l.b16 %v1131
    %v1166 = vunpack.c.h.b16 %v1131
    %v1167 = vunpack.c.l.b16 %v1132
    %v1168 = vunpack.c.h.b16 %v1132
    %v1169 = vpack.c.b16 %v1147, %v1145
    %v1170 = vpack.c.b16 %v1148, %v1146
    %v1171 = vpack.c.b16 %v1151, %v1149
    %v1172 = vpack.c.b16 %v1152, %v1150
    %v1173 = vpack.c.b16 %v1155, %v1153
    %v1174 = vpack.c.b16 %v1156, %v1154
    %v1175 = vpack.c.b16 %v1159, %v1157
    %v1176 = vpack.c.b16 %v1160, %v1158
    %v1177 = vpack.c.b16 %v1163, %v1161
    %v1178 = vpack.c.b16 %v1164, %v1162
    %v1179 = vpack.c.b16 %v1167, %v1165
    %v1180 = vpack.c.b16 %v1168, %v1166
    %1193 = vmatprep.subr.bf16.mxu0 0
    %1194 = vmatpush1.bf16.msra.mxu0 0
    %1195 = vmatprep.subr.bf16.mxu0 0
    %1196 = vmatpush1.bf16.msra.mxu0 0
    %1197 = vmatprep.subr.bf16.mxu0 %v1180
    %1198 = vmatpush1.bf16.msra.mxu0 %v1179
    %1199 = vmatprep.subr.bf16.mxu0 %v1178
    %1200 = vmatpush1.bf16.msra.mxu0 %v1177
    %1201 = vmatprep.subr.bf16.mxu0 %v1176
    %1202 = vmatpush1.bf16.msra.mxu0 %v1175
    %1203 = vmatprep.subr.bf16.mxu0 %v1174
    %1204 = vmatpush1.bf16.msra.mxu0 %v1173
    %1205 = vmatprep.subr.bf16.mxu0 %v1172
    %1206 = vmatpush1.bf16.msra.mxu0 %v1171
    %1207 = vmatprep.subr.bf16.mxu0 %v1170
    %1208 = vmatpush1.bf16.msra.mxu0 %v1169
    %1209 = vmatprep.subr.bf16.mxu0 0
    %1210 = vmatpush2.bf16.msra.mxu0 0
    %1211 = vmatprep.subr.bf16.mxu0 0
    %1212 = vmatpush2.bf16.msra.mxu0 0
    %1213 = vmatprep.subr.bf16.mxu0 0
    %1214 = vmatpush2.bf16.msra.mxu0 0
    %1215 = vmatprep.subr.bf16.mxu0 0
    %1216 = vmatpush2.bf16.msra.mxu0 0
    %1217 = vmatprep.subr.bf16.mxu0 0
    %1218 = vmatpush2.bf16.msra.mxu0 0
    %1219 = vmatprep.subr.bf16.mxu0 0
    %1220 = vmatpush2.bf16.msra.mxu0 0
    %1221 = vmatprep.subr.bf16.mxu0 0
    %1222 = vmatpush2.bf16.msra.mxu0 0
    %1223 = vmatprep.subr.bf16.mxu0 0
    %1224 = vmatpush2.bf16.msra.mxu0 0
    %1225 = vmatprep.mubr.bf16.mxu0 0
    %1226 = vmatmul.mubr.bf16.gmra.mxu0 %v726
    %v1227 = vpop.f32.mrf.mxu0
    %v1228 = vadd.f32 0.0, %v1227
    %v1229 = vpop.f32.mrf.mxu0
    %v1230 = vadd.f32 0.0, %v1229
    %v1231 = vpop.f32.mrf.mxu0
    %v1232 = vadd.f32 0.0, %v1231
    %v1233 = vpop.f32.mrf.mxu0
    %v1234 = vadd.f32 0.0, %v1233
    %1235 = vmatprep.mubr.bf16.mxu0 0
    %1236 = vmatmul.mubr.bf16.gmra.mxu0 %v729
    %v1237 = vpop.f32.mrf.mxu0
    %v1238 = vadd.f32 0.0, %v1237
    %v1239 = vpop.f32.mrf.mxu0
    %v1240 = vadd.f32 0.0, %v1239
    %v1241 = vpop.f32.mrf.mxu0
    %v1242 = vadd.f32 0.0, %v1241
    %v1243 = vpop.f32.mrf.mxu0
    %v1244 = vadd.f32 0.0, %v1243
    %1245 = vmatprep.mubr.bf16.mxu0 0
    %1246 = vmatmul.mubr.bf16.gmra.mxu0 %v732
    %v1247 = vpop.f32.mrf.mxu0
    %v1248 = vadd.f32 0.0, %v1247
    %v1249 = vpop.f32.mrf.mxu0
    %v1250 = vadd.f32 0.0, %v1249
    %v1251 = vpop.f32.mrf.mxu0
    %v1252 = vadd.f32 0.0, %v1251
    %v1253 = vpop.f32.mrf.mxu0
    %v1254 = vadd.f32 0.0, %v1253
    %1255 = vmatprep.mubr.bf16.mxu0 0
    %1256 = vmatmul.mubr.bf16.gmra.mxu0 %v735
    %v1257 = vpop.f32.mrf.mxu0
    %v1258 = vadd.f32 0.0, %v1257
    %v1259 = vpop.f32.mrf.mxu0
    %v1260 = vadd.f32 0.0, %v1259
    %v1261 = vpop.f32.mrf.mxu0
    %v1262 = vadd.f32 0.0, %v1261
    %v1263 = vpop.f32.mrf.mxu0
    %v1264 = vadd.f32 0.0, %v1263
    %1265 = vdwg.mxu0
    %s1266 = scalar_lea.vmem [#allocation2], 32
    %v1267 = vld [vmem:[%s1266] sm:$0xf]
    %v1268 = vld [vmem:[%s1266 + $0x4] sm:$0xf]
    %v1269 = vld [vmem:[%s1266 + $0x8] sm:$0xf]
    %v1270 = vld [vmem:[%s1266 + $0xc] sm:$0xf]
    %v1271 = vpack.c.bf16 %v1232, %v1228
    %v1272 = vpack.c.bf16 %v1234, %v1230
    %v1273 = vpack.c.bf16 %v1242, %v1238
    %v1274 = vpack.c.bf16 %v1244, %v1240
    %v1275 = vpack.c.bf16 %v1252, %v1248
    %v1276 = vpack.c.bf16 %v1254, %v1250
    %v1277 = vpack.c.bf16 %v1262, %v1258
    %v1278 = vpack.c.bf16 %v1264, %v1260
    %v1283 = vunpack.c.l.b16 %v1267
    %v1284 = vunpack.c.l.b16 %v1268
    %v1285 = vunpack.c.l.b16 %v1269
    %v1286 = vunpack.c.l.b16 %v1270
    %v1287 = vpack.c.b16 %v1284, %v1283
    %v1288 = vpack.c.b16 %v1286, %v1285
    %v1290 = vsel %vm991, %v1287, 0
    %v1293 = vsel %vm991, %v1288, 0
    %1295 = vmatprep.subr.bf16.mxu0 0
    %1296 = vmatpush1.bf16.msra.mxu0 0
    %1297 = vmatprep.subr.bf16.mxu0 0
    %1298 = vmatpush1.bf16.msra.mxu0 0
    %1299 = vmatprep.subr.bf16.mxu0 0
    %1300 = vmatpush1.bf16.msra.mxu0 0
    %1301 = vmatprep.subr.bf16.mxu0 0
    %1302 = vmatpush1.bf16.msra.mxu0 0
    %1303 = vmatprep.subr.bf16.mxu0 %v1278
    %1304 = vmatpush1.bf16.msra.mxu0 %v1277
    %1305 = vmatprep.subr.bf16.mxu0 %v1276
    %1306 = vmatpush1.bf16.msra.mxu0 %v1275
    %1307 = vmatprep.subr.bf16.mxu0 %v1274
    %1308 = vmatpush1.bf16.msra.mxu0 %v1273
    %1309 = vmatprep.subr.bf16.mxu0 %v1272
    %1310 = vmatpush1.bf16.msra.mxu0 %v1271
    %1311 = vmatprep.subr.bf16.mxu0 0
    %1312 = vmatpush2.bf16.msra.mxu0 0
    %1313 = vmatprep.subr.bf16.mxu0 0
    %1314 = vmatpush2.bf16.msra.mxu0 0
    %1315 = vmatprep.subr.bf16.mxu0 0
    %1316 = vmatpush2.bf16.msra.mxu0 0
    %1317 = vmatprep.subr.bf16.mxu0 0
    %1318 = vmatpush2.bf16.msra.mxu0 0
    %1319 = vmatprep.subr.bf16.mxu0 0
    %1320 = vmatpush2.bf16.msra.mxu0 0
    %1321 = vmatprep.subr.bf16.mxu0 0
    %1322 = vmatpush2.bf16.msra.mxu0 0
    %1323 = vmatprep.subr.bf16.mxu0 0
    %1324 = vmatpush2.bf16.msra.mxu0 0
    %1325 = vmatprep.subr.bf16.mxu0 0
    %1326 = vmatpush2.bf16.msra.mxu0 0
    %1327 = vmatprep.mubr.bf16.mxu0 0
    %1328 = vmatmul.mubr.bf16.gmra.mxu0 %v1290
    %v1329 = vpop.f32.mrf.mxu0
    %v1330 = vadd.f32 0.0, %v1329
    %v1331 = vpop.f32.mrf.mxu0
    %v1332 = vadd.f32 0.0, %v1331
    %v1333 = vpop.f32.mrf.mxu0
    %v1334 = vadd.f32 0.0, %v1333
    %v1335 = vpop.f32.mrf.mxu0
    %v1336 = vadd.f32 0.0, %v1335
    %1337 = vmatprep.mubr.bf16.mxu0 0
    %1338 = vmatmul.mubr.bf16.gmra.mxu0 %v1293
    %v1339 = vpop.f32.mrf.mxu0
    %v1340 = vadd.f32 0.0, %v1339
    %v1341 = vpop.f32.mrf.mxu0
    %v1342 = vadd.f32 0.0, %v1341
    %v1343 = vpop.f32.mrf.mxu0
    %v1344 = vadd.f32 0.0, %v1343
    %v1345 = vpop.f32.mrf.mxu0
    %v1346 = vadd.f32 0.0, %v1345
    %1347 = vdwg.mxu0
    %v1348 = vadd.f32 %v1102, %v1330
    %v1349 = vadd.f32 %v1104, %v1332
    %v1350 = vadd.f32 %v1106, %v1334
    %v1351 = vadd.f32 %v1108, %v1336
    %v1352 = vadd.f32 %v1112, %v1340
    %v1353 = vadd.f32 %v1114, %v1342
    %v1354 = vadd.f32 %v1116, %v1344
    %v1355 = vadd.f32 %v1118, %v1346
    %s1356 = scalar_lea.vmem %s5, 288
    %v1357 = vld [vmem:[%s1356] sm:$0xff]
    %v1358 = vld [vmem:[%s1356 + $0x8] sm:$0xff]
    %v1359 = vld [vmem:[%s1356 + $0x10] sm:$0xff]
    %v1360 = vld [vmem:[%s1356 + $0x18] sm:$0xff]
    %v1361 = vld [vmem:[%s1356 + $0x20] sm:$0xff]
    %v1362 = vld [vmem:[%s1356 + $0x28] sm:$0xff]
    %v1363 = vld [vmem:[%s1356 + $0x30] sm:$0xff]
    %v1364 = vld [vmem:[%s1356 + $0x38] sm:$0xff]
    %v1365 = vld [vmem:[%s1356 + $0x40] sm:$0xff]
    %v1366 = vld [vmem:[%s1356 + $0x48] sm:$0xff]
    %v1367 = vld [vmem:[%s1356 + $0x50] sm:$0xff]
    %v1368 = vld [vmem:[%s1356 + $0x58] sm:$0xff]
    %v1381 = vunpack.c.l.b16 %v1357
    %v1382 = vunpack.c.h.b16 %v1357
    %v1383 = vunpack.c.l.b16 %v1358
    %v1384 = vunpack.c.h.b16 %v1358
    %v1385 = vunpack.c.l.b16 %v1359
    %v1386 = vunpack.c.h.b16 %v1359
    %v1387 = vunpack.c.l.b16 %v1360
    %v1388 = vunpack.c.h.b16 %v1360
    %v1389 = vunpack.c.l.b16 %v1361
    %v1390 = vunpack.c.h.b16 %v1361
    %v1391 = vunpack.c.l.b16 %v1362
    %v1392 = vunpack.c.h.b16 %v1362
    %v1393 = vunpack.c.l.b16 %v1363
    %v1394 = vunpack.c.h.b16 %v1363
    %v1395 = vunpack.c.l.b16 %v1364
    %v1396 = vunpack.c.h.b16 %v1364
    %v1397 = vunpack.c.l.b16 %v1365
    %v1398 = vunpack.c.h.b16 %v1365
    %v1399 = vunpack.c.l.b16 %v1366
    %v1400 = vunpack.c.h.b16 %v1366
    %v1401 = vunpack.c.l.b16 %v1367
    %v1402 = vunpack.c.h.b16 %v1367
    %v1403 = vunpack.c.l.b16 %v1368
    %v1404 = vunpack.c.h.b16 %v1368
    %v1405 = vpack.c.b16 %v1383, %v1381
    %v1406 = vpack.c.b16 %v1384, %v1382
    %v1407 = vpack.c.b16 %v1387, %v1385
    %v1408 = vpack.c.b16 %v1388, %v1386
    %v1409 = vpack.c.b16 %v1391, %v1389
    %v1410 = vpack.c.b16 %v1392, %v1390
    %v1411 = vpack.c.b16 %v1395, %v1393
    %v1412 = vpack.c.b16 %v1396, %v1394
    %v1413 = vpack.c.b16 %v1399, %v1397
    %v1414 = vpack.c.b16 %v1400, %v1398
    %v1415 = vpack.c.b16 %v1403, %v1401
    %v1416 = vpack.c.b16 %v1404, %v1402
    %1429 = vmatprep.subr.bf16.mxu0 0
    %1430 = vmatpush1.bf16.msra.mxu0 0
    %1431 = vmatprep.subr.bf16.mxu0 0
    %1432 = vmatpush1.bf16.msra.mxu0 0
    %1433 = vmatprep.subr.bf16.mxu0 %v1416
    %1434 = vmatpush1.bf16.msra.mxu0 %v1415
    %1435 = vmatprep.subr.bf16.mxu0 %v1414
    %1436 = vmatpush1.bf16.msra.mxu0 %v1413
    %1437 = vmatprep.subr.bf16.mxu0 %v1412
    %1438 = vmatpush1.bf16.msra.mxu0 %v1411
    %1439 = vmatprep.subr.bf16.mxu0 %v1410
    %1440 = vmatpush1.bf16.msra.mxu0 %v1409
    %1441 = vmatprep.subr.bf16.mxu0 %v1408
    %1442 = vmatpush1.bf16.msra.mxu0 %v1407
    %1443 = vmatprep.subr.bf16.mxu0 %v1406
    %1444 = vmatpush1.bf16.msra.mxu0 %v1405
    %1445 = vmatprep.subr.bf16.mxu0 0
    %1446 = vmatpush2.bf16.msra.mxu0 0
    %1447 = vmatprep.subr.bf16.mxu0 0
    %1448 = vmatpush2.bf16.msra.mxu0 0
    %1449 = vmatprep.subr.bf16.mxu0 0
    %1450 = vmatpush2.bf16.msra.mxu0 0
    %1451 = vmatprep.subr.bf16.mxu0 0
    %1452 = vmatpush2.bf16.msra.mxu0 0
    %1453 = vmatprep.subr.bf16.mxu0 0
    %1454 = vmatpush2.bf16.msra.mxu0 0
    %1455 = vmatprep.subr.bf16.mxu0 0
    %1456 = vmatpush2.bf16.msra.mxu0 0
    %1457 = vmatprep.subr.bf16.mxu0 0
    %1458 = vmatpush2.bf16.msra.mxu0 0
    %1459 = vmatprep.subr.bf16.mxu0 0
    %1460 = vmatpush2.bf16.msra.mxu0 0
    %1461 = vmatprep.mubr.bf16.mxu0 0
    %1462 = vmatmul.mubr.bf16.gmra.mxu0 %v726
    %v1463 = vpop.f32.mrf.mxu0
    %v1464 = vadd.f32 0.0, %v1463
    %v1465 = vpop.f32.mrf.mxu0
    %v1466 = vadd.f32 0.0, %v1465
    %v1467 = vpop.f32.mrf.mxu0
    %v1468 = vadd.f32 0.0, %v1467
    %v1469 = vpop.f32.mrf.mxu0
    %v1470 = vadd.f32 0.0, %v1469
    %1471 = vmatprep.mubr.bf16.mxu0 0
    %1472 = vmatmul.mubr.bf16.gmra.mxu0 %v729
    %v1473 = vpop.f32.mrf.mxu0
    %v1474 = vadd.f32 0.0, %v1473
    %v1475 = vpop.f32.mrf.mxu0
    %v1476 = vadd.f32 0.0, %v1475
    %v1477 = vpop.f32.mrf.mxu0
    %v1478 = vadd.f32 0.0, %v1477
    %v1479 = vpop.f32.mrf.mxu0
    %v1480 = vadd.f32 0.0, %v1479
    %1481 = vmatprep.mubr.bf16.mxu0 0
    %1482 = vmatmul.mubr.bf16.gmra.mxu0 %v732
    %v1483 = vpop.f32.mrf.mxu0
    %v1484 = vadd.f32 0.0, %v1483
    %v1485 = vpop.f32.mrf.mxu0
    %v1486 = vadd.f32 0.0, %v1485
    %v1487 = vpop.f32.mrf.mxu0
    %v1488 = vadd.f32 0.0, %v1487
    %v1489 = vpop.f32.mrf.mxu0
    %v1490 = vadd.f32 0.0, %v1489
    %1491 = vmatprep.mubr.bf16.mxu0 0
    %1492 = vmatmul.mubr.bf16.gmra.mxu0 %v735
    %v1493 = vpop.f32.mrf.mxu0
    %v1494 = vadd.f32 0.0, %v1493
    %v1495 = vpop.f32.mrf.mxu0
    %v1496 = vadd.f32 0.0, %v1495
    %v1497 = vpop.f32.mrf.mxu0
    %v1498 = vadd.f32 0.0, %v1497
    %v1499 = vpop.f32.mrf.mxu0
    %v1500 = vadd.f32 0.0, %v1499
    %1501 = vdwg.mxu0
    %s1502 = scalar_lea.vmem [#allocation2], 48
    %v1503 = vld [vmem:[%s1502] sm:$0xf]
    %v1504 = vld [vmem:[%s1502 + $0x4] sm:$0xf]
    %v1505 = vld [vmem:[%s1502 + $0x8] sm:$0xf]
    %v1506 = vld [vmem:[%s1502 + $0xc] sm:$0xf]
    %v1507 = vpack.c.bf16 %v1468, %v1464
    %v1508 = vpack.c.bf16 %v1470, %v1466
    %v1509 = vpack.c.bf16 %v1478, %v1474
    %v1510 = vpack.c.bf16 %v1480, %v1476
    %v1511 = vpack.c.bf16 %v1488, %v1484
    %v1512 = vpack.c.bf16 %v1490, %v1486
    %v1513 = vpack.c.bf16 %v1498, %v1494
    %v1514 = vpack.c.bf16 %v1500, %v1496
    %v1519 = vunpack.c.l.b16 %v1503
    %v1520 = vunpack.c.l.b16 %v1504
    %v1521 = vunpack.c.l.b16 %v1505
    %v1522 = vunpack.c.l.b16 %v1506
    %v1523 = vpack.c.b16 %v1520, %v1519
    %v1524 = vpack.c.b16 %v1522, %v1521
    %v1526 = vsel %vm991, %v1523, 0
    %v1529 = vsel %vm991, %v1524, 0
    %1531 = vmatprep.subr.bf16.mxu0 0
    %1532 = vmatpush1.bf16.msra.mxu0 0
    %1533 = vmatprep.subr.bf16.mxu0 0
    %1534 = vmatpush1.bf16.msra.mxu0 0
    %1535 = vmatprep.subr.bf16.mxu0 0
    %1536 = vmatpush1.bf16.msra.mxu0 0
    %1537 = vmatprep.subr.bf16.mxu0 0
    %1538 = vmatpush1.bf16.msra.mxu0 0
    %1539 = vmatprep.subr.bf16.mxu0 %v1514
    %1540 = vmatpush1.bf16.msra.mxu0 %v1513
    %1541 = vmatprep.subr.bf16.mxu0 %v1512
    %1542 = vmatpush1.bf16.msra.mxu0 %v1511
    %1543 = vmatprep.subr.bf16.mxu0 %v1510
    %1544 = vmatpush1.bf16.msra.mxu0 %v1509
    %1545 = vmatprep.subr.bf16.mxu0 %v1508
    %1546 = vmatpush1.bf16.msra.mxu0 %v1507
    %1547 = vmatprep.subr.bf16.mxu0 0
    %1548 = vmatpush2.bf16.msra.mxu0 0
    %1549 = vmatprep.subr.bf16.mxu0 0
    %1550 = vmatpush2.bf16.msra.mxu0 0
    %1551 = vmatprep.subr.bf16.mxu0 0
    %1552 = vmatpush2.bf16.msra.mxu0 0
    %1553 = vmatprep.subr.bf16.mxu0 0
    %1554 = vmatpush2.bf16.msra.mxu0 0
    %1555 = vmatprep.subr.bf16.mxu0 0
    %1556 = vmatpush2.bf16.msra.mxu0 0
    %1557 = vmatprep.subr.bf16.mxu0 0
    %1558 = vmatpush2.bf16.msra.mxu0 0
    %1559 = vmatprep.subr.bf16.mxu0 0
    %1560 = vmatpush2.bf16.msra.mxu0 0
    %1561 = vmatprep.subr.bf16.mxu0 0
    %1562 = vmatpush2.bf16.msra.mxu0 0
    %1563 = vmatprep.mubr.bf16.mxu0 0
    %1564 = vmatmul.mubr.bf16.gmra.mxu0 %v1526
    %v1565 = vpop.f32.mrf.mxu0
    %v1566 = vadd.f32 0.0, %v1565
    %v1567 = vpop.f32.mrf.mxu0
    %v1568 = vadd.f32 0.0, %v1567
    %v1569 = vpop.f32.mrf.mxu0
    %v1570 = vadd.f32 0.0, %v1569
    %v1571 = vpop.f32.mrf.mxu0
    %v1572 = vadd.f32 0.0, %v1571
    %1573 = vmatprep.mubr.bf16.mxu0 0
    %1574 = vmatmul.mubr.bf16.gmra.mxu0 %v1529
    %v1575 = vpop.f32.mrf.mxu0
    %v1576 = vadd.f32 0.0, %v1575
    %v1577 = vpop.f32.mrf.mxu0
    %v1578 = vadd.f32 0.0, %v1577
    %v1579 = vpop.f32.mrf.mxu0
    %v1580 = vadd.f32 0.0, %v1579
    %v1581 = vpop.f32.mrf.mxu0
    %v1582 = vadd.f32 0.0, %v1581
    %1583 = vdwg.mxu0
    %v1584 = vadd.f32 %v1348, %v1566
    %v1585 = vadd.f32 %v1349, %v1568
    %v1586 = vadd.f32 %v1350, %v1570
    %v1587 = vadd.f32 %v1351, %v1572
    %v1588 = vadd.f32 %v1352, %v1576
    %v1589 = vadd.f32 %v1353, %v1578
    %v1590 = vadd.f32 %v1354, %v1580
    %v1591 = vadd.f32 %v1355, %v1582
    %s1592 = scalar_lea.vmem %s5, 384
    %v1593 = vld [vmem:[%s1592] sm:$0xff]
    %v1594 = vld [vmem:[%s1592 + $0x8] sm:$0xff]
    %v1595 = vld [vmem:[%s1592 + $0x10] sm:$0xff]
    %v1596 = vld [vmem:[%s1592 + $0x18] sm:$0xff]
    %v1597 = vld [vmem:[%s1592 + $0x20] sm:$0xff]
    %v1598 = vld [vmem:[%s1592 + $0x28] sm:$0xff]
    %v1599 = vld [vmem:[%s1592 + $0x30] sm:$0xff]
    %v1600 = vld [vmem:[%s1592 + $0x38] sm:$0xff]
    %v1601 = vld [vmem:[%s1592 + $0x40] sm:$0xff]
    %v1602 = vld [vmem:[%s1592 + $0x48] sm:$0xff]
    %v1603 = vld [vmem:[%s1592 + $0x50] sm:$0xff]
    %v1604 = vld [vmem:[%s1592 + $0x58] sm:$0xff]
    %v1617 = vunpack.c.l.b16 %v1593
    %v1618 = vunpack.c.h.b16 %v1593
    %v1619 = vunpack.c.l.b16 %v1594
    %v1620 = vunpack.c.h.b16 %v1594
    %v1621 = vunpack.c.l.b16 %v1595
    %v1622 = vunpack.c.h.b16 %v1595
    %v1623 = vunpack.c.l.b16 %v1596
    %v1624 = vunpack.c.h.b16 %v1596
    %v1625 = vunpack.c.l.b16 %v1597
    %v1626 = vunpack.c.h.b16 %v1597
    %v1627 = vunpack.c.l.b16 %v1598
    %v1628 = vunpack.c.h.b16 %v1598
    %v1629 = vunpack.c.l.b16 %v1599
    %v1630 = vunpack.c.h.b16 %v1599
    %v1631 = vunpack.c.l.b16 %v1600
    %v1632 = vunpack.c.h.b16 %v1600
    %v1633 = vunpack.c.l.b16 %v1601
    %v1634 = vunpack.c.h.b16 %v1601
    %v1635 = vunpack.c.l.b16 %v1602
    %v1636 = vunpack.c.h.b16 %v1602
    %v1637 = vunpack.c.l.b16 %v1603
    %v1638 = vunpack.c.h.b16 %v1603
    %v1639 = vunpack.c.l.b16 %v1604
    %v1640 = vunpack.c.h.b16 %v1604
    %v1641 = vpack.c.b16 %v1619, %v1617
    %v1642 = vpack.c.b16 %v1620, %v1618
    %v1643 = vpack.c.b16 %v1623, %v1621
    %v1644 = vpack.c.b16 %v1624, %v1622
    %v1645 = vpack.c.b16 %v1627, %v1625
    %v1646 = vpack.c.b16 %v1628, %v1626
    %v1647 = vpack.c.b16 %v1631, %v1629
    %v1648 = vpack.c.b16 %v1632, %v1630
    %v1649 = vpack.c.b16 %v1635, %v1633
    %v1650 = vpack.c.b16 %v1636, %v1634
    %v1651 = vpack.c.b16 %v1639, %v1637
    %v1652 = vpack.c.b16 %v1640, %v1638
    %1665 = vmatprep.subr.bf16.mxu0 0
    %1666 = vmatpush1.bf16.msra.mxu0 0
    %1667 = vmatprep.subr.bf16.mxu0 0
    %1668 = vmatpush1.bf16.msra.mxu0 0
    %1669 = vmatprep.subr.bf16.mxu0 %v1652
    %1670 = vmatpush1.bf16.msra.mxu0 %v1651
    %1671 = vmatprep.subr.bf16.mxu0 %v1650
    %1672 = vmatpush1.bf16.msra.mxu0 %v1649
    %1673 = vmatprep.subr.bf16.mxu0 %v1648
    %1674 = vmatpush1.bf16.msra.mxu0 %v1647
    %1675 = vmatprep.subr.bf16.mxu0 %v1646
    %1676 = vmatpush1.bf16.msra.mxu0 %v1645
    %1677 = vmatprep.subr.bf16.mxu0 %v1644
    %1678 = vmatpush1.bf16.msra.mxu0 %v1643
    %1679 = vmatprep.subr.bf16.mxu0 %v1642
    %1680 = vmatpush1.bf16.msra.mxu0 %v1641
    %1681 = vmatprep.subr.bf16.mxu0 0
    %1682 = vmatpush2.bf16.msra.mxu0 0
    %1683 = vmatprep.subr.bf16.mxu0 0
    %1684 = vmatpush2.bf16.msra.mxu0 0
    %1685 = vmatprep.subr.bf16.mxu0 0
    %1686 = vmatpush2.bf16.msra.mxu0 0
    %1687 = vmatprep.subr.bf16.mxu0 0
    %1688 = vmatpush2.bf16.msra.mxu0 0
    %1689 = vmatprep.subr.bf16.mxu0 0
    %1690 = vmatpush2.bf16.msra.mxu0 0
    %1691 = vmatprep.subr.bf16.mxu0 0
    %1692 = vmatpush2.bf16.msra.mxu0 0
    %1693 = vmatprep.subr.bf16.mxu0 0
    %1694 = vmatpush2.bf16.msra.mxu0 0
    %1695 = vmatprep.subr.bf16.mxu0 0
    %1696 = vmatpush2.bf16.msra.mxu0 0
    %1697 = vmatprep.mubr.bf16.mxu0 0
    %1698 = vmatmul.mubr.bf16.gmra.mxu0 %v726
    %v1699 = vpop.f32.mrf.mxu0
    %v1700 = vadd.f32 0.0, %v1699
    %v1701 = vpop.f32.mrf.mxu0
    %v1702 = vadd.f32 0.0, %v1701
    %v1703 = vpop.f32.mrf.mxu0
    %v1704 = vadd.f32 0.0, %v1703
    %v1705 = vpop.f32.mrf.mxu0
    %v1706 = vadd.f32 0.0, %v1705
    %1707 = vmatprep.mubr.bf16.mxu0 0
    %1708 = vmatmul.mubr.bf16.gmra.mxu0 %v729
    %v1709 = vpop.f32.mrf.mxu0
    %v1710 = vadd.f32 0.0, %v1709
    %v1711 = vpop.f32.mrf.mxu0
    %v1712 = vadd.f32 0.0, %v1711
    %v1713 = vpop.f32.mrf.mxu0
    %v1714 = vadd.f32 0.0, %v1713
    %v1715 = vpop.f32.mrf.mxu0
    %v1716 = vadd.f32 0.0, %v1715
    %1717 = vmatprep.mubr.bf16.mxu0 0
    %1718 = vmatmul.mubr.bf16.gmra.mxu0 %v732
    %v1719 = vpop.f32.mrf.mxu0
    %v1720 = vadd.f32 0.0, %v1719
    %v1721 = vpop.f32.mrf.mxu0
    %v1722 = vadd.f32 0.0, %v1721
    %v1723 = vpop.f32.mrf.mxu0
    %v1724 = vadd.f32 0.0, %v1723
    %v1725 = vpop.f32.mrf.mxu0
    %v1726 = vadd.f32 0.0, %v1725
    %1727 = vmatprep.mubr.bf16.mxu0 0
    %1728 = vmatmul.mubr.bf16.gmra.mxu0 %v735
    %v1729 = vpop.f32.mrf.mxu0
    %v1730 = vadd.f32 0.0, %v1729
    %v1731 = vpop.f32.mrf.mxu0
    %v1732 = vadd.f32 0.0, %v1731
    %v1733 = vpop.f32.mrf.mxu0
    %v1734 = vadd.f32 0.0, %v1733
    %v1735 = vpop.f32.mrf.mxu0
    %v1736 = vadd.f32 0.0, %v1735
    %1737 = vdwg.mxu0
    %s1738 = scalar_lea.vmem [#allocation2], 64
    %v1739 = vld [vmem:[%s1738] sm:$0xf]
    %v1740 = vld [vmem:[%s1738 + $0x4] sm:$0xf]
    %v1741 = vld [vmem:[%s1738 + $0x8] sm:$0xf]
    %v1742 = vld [vmem:[%s1738 + $0xc] sm:$0xf]
    %v1743 = vpack.c.bf16 %v1704, %v1700
    %v1744 = vpack.c.bf16 %v1706, %v1702
    %v1745 = vpack.c.bf16 %v1714, %v1710
    %v1746 = vpack.c.bf16 %v1716, %v1712
    %v1747 = vpack.c.bf16 %v1724, %v1720
    %v1748 = vpack.c.bf16 %v1726, %v1722
    %v1749 = vpack.c.bf16 %v1734, %v1730
    %v1750 = vpack.c.bf16 %v1736, %v1732
    %v1755 = vunpack.c.l.b16 %v1739
    %v1756 = vunpack.c.l.b16 %v1740
    %v1757 = vunpack.c.l.b16 %v1741
    %v1758 = vunpack.c.l.b16 %v1742
    %v1759 = vpack.c.b16 %v1756, %v1755
    %v1760 = vpack.c.b16 %v1758, %v1757
    %v1762 = vsel %vm991, %v1759, 0
    %v1765 = vsel %vm991, %v1760, 0
    %1767 = vmatprep.subr.bf16.mxu0 0
    %1768 = vmatpush1.bf16.msra.mxu0 0
    %1769 = vmatprep.subr.bf16.mxu0 0
    %1770 = vmatpush1.bf16.msra.mxu0 0
    %1771 = vmatprep.subr.bf16.mxu0 0
    %1772 = vmatpush1.bf16.msra.mxu0 0
    %1773 = vmatprep.subr.bf16.mxu0 0
    %1774 = vmatpush1.bf16.msra.mxu0 0
    %1775 = vmatprep.subr.bf16.mxu0 %v1750
    %1776 = vmatpush1.bf16.msra.mxu0 %v1749
    %1777 = vmatprep.subr.bf16.mxu0 %v1748
    %1778 = vmatpush1.bf16.msra.mxu0 %v1747
    %1779 = vmatprep.subr.bf16.mxu0 %v1746
    %1780 = vmatpush1.bf16.msra.mxu0 %v1745
    %1781 = vmatprep.subr.bf16.mxu0 %v1744
    %1782 = vmatpush1.bf16.msra.mxu0 %v1743
    %1783 = vmatprep.subr.bf16.mxu0 0
    %1784 = vmatpush2.bf16.msra.mxu0 0
    %1785 = vmatprep.subr.bf16.mxu0 0
    %1786 = vmatpush2.bf16.msra.mxu0 0
    %1787 = vmatprep.subr.bf16.mxu0 0
    %1788 = vmatpush2.bf16.msra.mxu0 0
    %1789 = vmatprep.subr.bf16.mxu0 0
    %1790 = vmatpush2.bf16.msra.mxu0 0
    %1791 = vmatprep.subr.bf16.mxu0 0
    %1792 = vmatpush2.bf16.msra.mxu0 0
    %1793 = vmatprep.subr.bf16.mxu0 0
    %1794 = vmatpush2.bf16.msra.mxu0 0
    %1795 = vmatprep.subr.bf16.mxu0 0
    %1796 = vmatpush2.bf16.msra.mxu0 0
    %1797 = vmatprep.subr.bf16.mxu0 0
    %1798 = vmatpush2.bf16.msra.mxu0 0
    %1799 = vmatprep.mubr.bf16.mxu0 0
    %1800 = vmatmul.mubr.bf16.gmra.mxu0 %v1762
    %v1801 = vpop.f32.mrf.mxu0
    %v1802 = vadd.f32 0.0, %v1801
    %v1803 = vpop.f32.mrf.mxu0
    %v1804 = vadd.f32 0.0, %v1803
    %v1805 = vpop.f32.mrf.mxu0
    %v1806 = vadd.f32 0.0, %v1805
    %v1807 = vpop.f32.mrf.mxu0
    %v1808 = vadd.f32 0.0, %v1807
    %1809 = vmatprep.mubr.bf16.mxu0 0
    %1810 = vmatmul.mubr.bf16.gmra.mxu0 %v1765
    %v1811 = vpop.f32.mrf.mxu0
    %v1812 = vadd.f32 0.0, %v1811
    %v1813 = vpop.f32.mrf.mxu0
    %v1814 = vadd.f32 0.0, %v1813
    %v1815 = vpop.f32.mrf.mxu0
    %v1816 = vadd.f32 0.0, %v1815
    %v1817 = vpop.f32.mrf.mxu0
    %v1818 = vadd.f32 0.0, %v1817
    %1819 = vdwg.mxu0
    %v1820 = vadd.f32 %v1584, %v1802
    %v1821 = vadd.f32 %v1585, %v1804
    %v1822 = vadd.f32 %v1586, %v1806
    %v1823 = vadd.f32 %v1587, %v1808
    %v1824 = vadd.f32 %v1588, %v1812
    %v1825 = vadd.f32 %v1589, %v1814
    %v1826 = vadd.f32 %v1590, %v1816
    %v1827 = vadd.f32 %v1591, %v1818
    %s1828 = scalar_lea.vmem %s5, 480
    %v1829 = vld [vmem:[%s1828] sm:$0xff]
    %v1830 = vld [vmem:[%s1828 + $0x8] sm:$0xff]
    %v1831 = vld [vmem:[%s1828 + $0x10] sm:$0xff]
    %v1832 = vld [vmem:[%s1828 + $0x18] sm:$0xff]
    %v1833 = vld [vmem:[%s1828 + $0x20] sm:$0xff]
    %v1834 = vld [vmem:[%s1828 + $0x28] sm:$0xff]
    %v1835 = vld [vmem:[%s1828 + $0x30] sm:$0xff]
    %v1836 = vld [vmem:[%s1828 + $0x38] sm:$0xff]
    %v1837 = vld [vmem:[%s1828 + $0x40] sm:$0xff]
    %v1838 = vld [vmem:[%s1828 + $0x48] sm:$0xff]
    %v1839 = vld [vmem:[%s1828 + $0x50] sm:$0xff]
    %v1840 = vld [vmem:[%s1828 + $0x58] sm:$0xff]
    %v1853 = vunpack.c.l.b16 %v1829
    %v1854 = vunpack.c.h.b16 %v1829
    %v1855 = vunpack.c.l.b16 %v1830
    %v1856 = vunpack.c.h.b16 %v1830
    %v1857 = vunpack.c.l.b16 %v1831
    %v1858 = vunpack.c.h.b16 %v1831
    %v1859 = vunpack.c.l.b16 %v1832
    %v1860 = vunpack.c.h.b16 %v1832
    %v1861 = vunpack.c.l.b16 %v1833
    %v1862 = vunpack.c.h.b16 %v1833
    %v1863 = vunpack.c.l.b16 %v1834
    %v1864 = vunpack.c.h.b16 %v1834
    %v1865 = vunpack.c.l.b16 %v1835
    %v1866 = vunpack.c.h.b16 %v1835
    %v1867 = vunpack.c.l.b16 %v1836
    %v1868 = vunpack.c.h.b16 %v1836
    %v1869 = vunpack.c.l.b16 %v1837
    %v1870 = vunpack.c.h.b16 %v1837
    %v1871 = vunpack.c.l.b16 %v1838
    %v1872 = vunpack.c.h.b16 %v1838
    %v1873 = vunpack.c.l.b16 %v1839
    %v1874 = vunpack.c.h.b16 %v1839
    %v1875 = vunpack.c.l.b16 %v1840
    %v1876 = vunpack.c.h.b16 %v1840
    %v1877 = vpack.c.b16 %v1855, %v1853
    %v1878 = vpack.c.b16 %v1856, %v1854
    %v1879 = vpack.c.b16 %v1859, %v1857
    %v1880 = vpack.c.b16 %v1860, %v1858
    %v1881 = vpack.c.b16 %v1863, %v1861
    %v1882 = vpack.c.b16 %v1864, %v1862
    %v1883 = vpack.c.b16 %v1867, %v1865
    %v1884 = vpack.c.b16 %v1868, %v1866
    %v1885 = vpack.c.b16 %v1871, %v1869
    %v1886 = vpack.c.b16 %v1872, %v1870
    %v1887 = vpack.c.b16 %v1875, %v1873
    %v1888 = vpack.c.b16 %v1876, %v1874
    %1901 = vmatprep.subr.bf16.mxu0 0
    %1902 = vmatpush1.bf16.msra.mxu0 0
    %1903 = vmatprep.subr.bf16.mxu0 0
    %1904 = vmatpush1.bf16.msra.mxu0 0
    %1905 = vmatprep.subr.bf16.mxu0 %v1888
    %1906 = vmatpush1.bf16.msra.mxu0 %v1887
    %1907 = vmatprep.subr.bf16.mxu0 %v1886
    %1908 = vmatpush1.bf16.msra.mxu0 %v1885
    %1909 = vmatprep.subr.bf16.mxu0 %v1884
    %1910 = vmatpush1.bf16.msra.mxu0 %v1883
    %1911 = vmatprep.subr.bf16.mxu0 %v1882
    %1912 = vmatpush1.bf16.msra.mxu0 %v1881
    %1913 = vmatprep.subr.bf16.mxu0 %v1880
    %1914 = vmatpush1.bf16.msra.mxu0 %v1879
    %1915 = vmatprep.subr.bf16.mxu0 %v1878
    %1916 = vmatpush1.bf16.msra.mxu0 %v1877
    %1917 = vmatprep.subr.bf16.mxu0 0
    %1918 = vmatpush2.bf16.msra.mxu0 0
    %1919 = vmatprep.subr.bf16.mxu0 0
    %1920 = vmatpush2.bf16.msra.mxu0 0
    %1921 = vmatprep.subr.bf16.mxu0 0
    %1922 = vmatpush2.bf16.msra.mxu0 0
    %1923 = vmatprep.subr.bf16.mxu0 0
    %1924 = vmatpush2.bf16.msra.mxu0 0
    %1925 = vmatprep.subr.bf16.mxu0 0
    %1926 = vmatpush2.bf16.msra.mxu0 0
    %1927 = vmatprep.subr.bf16.mxu0 0
    %1928 = vmatpush2.bf16.msra.mxu0 0
    %1929 = vmatprep.subr.bf16.mxu0 0
    %1930 = vmatpush2.bf16.msra.mxu0 0
    %1931 = vmatprep.subr.bf16.mxu0 0
    %1932 = vmatpush2.bf16.msra.mxu0 0
    %1933 = vmatprep.mubr.bf16.mxu0 0
    %1934 = vmatmul.mubr.bf16.gmra.mxu0 %v726
    %v1935 = vpop.f32.mrf.mxu0
    %v1936 = vadd.f32 0.0, %v1935
    %v1937 = vpop.f32.mrf.mxu0
    %v1938 = vadd.f32 0.0, %v1937
    %v1939 = vpop.f32.mrf.mxu0
    %v1940 = vadd.f32 0.0, %v1939
    %v1941 = vpop.f32.mrf.mxu0
    %v1942 = vadd.f32 0.0, %v1941
    %1943 = vmatprep.mubr.bf16.mxu0 0
    %1944 = vmatmul.mubr.bf16.gmra.mxu0 %v729
    %v1945 = vpop.f32.mrf.mxu0
    %v1946 = vadd.f32 0.0, %v1945
    %v1947 = vpop.f32.mrf.mxu0
    %v1948 = vadd.f32 0.0, %v1947
    %v1949 = vpop.f32.mrf.mxu0
    %v1950 = vadd.f32 0.0, %v1949
    %v1951 = vpop.f32.mrf.mxu0
    %v1952 = vadd.f32 0.0, %v1951
    %1953 = vmatprep.mubr.bf16.mxu0 0
    %1954 = vmatmul.mubr.bf16.gmra.mxu0 %v732
    %v1955 = vpop.f32.mrf.mxu0
    %v1956 = vadd.f32 0.0, %v1955
    %v1957 = vpop.f32.mrf.mxu0
    %v1958 = vadd.f32 0.0, %v1957
    %v1959 = vpop.f32.mrf.mxu0
    %v1960 = vadd.f32 0.0, %v1959
    %v1961 = vpop.f32.mrf.mxu0
    %v1962 = vadd.f32 0.0, %v1961
    %1963 = vmatprep.mubr.bf16.mxu0 0
    %1964 = vmatmul.mubr.bf16.gmra.mxu0 %v735
    %v1965 = vpop.f32.mrf.mxu0
    %v1966 = vadd.f32 0.0, %v1965
    %v1967 = vpop.f32.mrf.mxu0
    %v1968 = vadd.f32 0.0, %v1967
    %v1969 = vpop.f32.mrf.mxu0
    %v1970 = vadd.f32 0.0, %v1969
    %v1971 = vpop.f32.mrf.mxu0
    %v1972 = vadd.f32 0.0, %v1971
    %1973 = vdwg.mxu0
    %s1974 = scalar_lea.vmem [#allocation2], 80
    %v1975 = vld [vmem:[%s1974] sm:$0xf]
    %v1976 = vld [vmem:[%s1974 + $0x4] sm:$0xf]
    %v1977 = vld [vmem:[%s1974 + $0x8] sm:$0xf]
    %v1978 = vld [vmem:[%s1974 + $0xc] sm:$0xf]
    %v1979 = vpack.c.bf16 %v1940, %v1936
    %v1980 = vpack.c.bf16 %v1942, %v1938
    %v1981 = vpack.c.bf16 %v1950, %v1946
    %v1982 = vpack.c.bf16 %v1952, %v1948
    %v1983 = vpack.c.bf16 %v1960, %v1956
    %v1984 = vpack.c.bf16 %v1962, %v1958
    %v1985 = vpack.c.bf16 %v1970, %v1966
    %v1986 = vpack.c.bf16 %v1972, %v1968
    %v1991 = vunpack.c.l.b16 %v1975
    %v1992 = vunpack.c.l.b16 %v1976
    %v1993 = vunpack.c.l.b16 %v1977
    %v1994 = vunpack.c.l.b16 %v1978
    %v1995 = vpack.c.b16 %v1992, %v1991
    %v1996 = vpack.c.b16 %v1994, %v1993
    %v1998 = vsel %vm991, %v1995, 0
    %v2001 = vsel %vm991, %v1996, 0
    %2003 = vmatprep.subr.bf16.mxu0 0
    %2004 = vmatpush1.bf16.msra.mxu0 0
    %2005 = vmatprep.subr.bf16.mxu0 0
    %2006 = vmatpush1.bf16.msra.mxu0 0
    %2007 = vmatprep.subr.bf16.mxu0 0
    %2008 = vmatpush1.bf16.msra.mxu0 0
    %2009 = vmatprep.subr.bf16.mxu0 0
    %2010 = vmatpush1.bf16.msra.mxu0 0
    %2011 = vmatprep.subr.bf16.mxu0 %v1986
    %2012 = vmatpush1.bf16.msra.mxu0 %v1985
    %2013 = vmatprep.subr.bf16.mxu0 %v1984
    %2014 = vmatpush1.bf16.msra.mxu0 %v1983
    %2015 = vmatprep.subr.bf16.mxu0 %v1982
    %2016 = vmatpush1.bf16.msra.mxu0 %v1981
    %2017 = vmatprep.subr.bf16.mxu0 %v1980
    %2018 = vmatpush1.bf16.msra.mxu0 %v1979
    %2019 = vmatprep.subr.bf16.mxu0 0
    %2020 = vmatpush2.bf16.msra.mxu0 0
    %2021 = vmatprep.subr.bf16.mxu0 0
    %2022 = vmatpush2.bf16.msra.mxu0 0
    %2023 = vmatprep.subr.bf16.mxu0 0
    %2024 = vmatpush2.bf16.msra.mxu0 0
    %2025 = vmatprep.subr.bf16.mxu0 0
    %2026 = vmatpush2.bf16.msra.mxu0 0
    %2027 = vmatprep.subr.bf16.mxu0 0
    %2028 = vmatpush2.bf16.msra.mxu0 0
    %2029 = vmatprep.subr.bf16.mxu0 0
    %2030 = vmatpush2.bf16.msra.mxu0 0
    %2031 = vmatprep.subr.bf16.mxu0 0
    %2032 = vmatpush2.bf16.msra.mxu0 0
    %2033 = vmatprep.subr.bf16.mxu0 0
    %2034 = vmatpush2.bf16.msra.mxu0 0
    %2035 = vmatprep.mubr.bf16.mxu0 0
    %2036 = vmatmul.mubr.bf16.gmra.mxu0 %v1998
    %v2037 = vpop.f32.mrf.mxu0
    %v2038 = vadd.f32 0.0, %v2037
    %v2039 = vpop.f32.mrf.mxu0
    %v2040 = vadd.f32 0.0, %v2039
    %v2041 = vpop.f32.mrf.mxu0
    %v2042 = vadd.f32 0.0, %v2041
    %v2043 = vpop.f32.mrf.mxu0
    %v2044 = vadd.f32 0.0, %v2043
    %2045 = vmatprep.mubr.bf16.mxu0 0
    %2046 = vmatmul.mubr.bf16.gmra.mxu0 %v2001
    %v2047 = vpop.f32.mrf.mxu0
    %v2048 = vadd.f32 0.0, %v2047
    %v2049 = vpop.f32.mrf.mxu0
    %v2050 = vadd.f32 0.0, %v2049
    %v2051 = vpop.f32.mrf.mxu0
    %v2052 = vadd.f32 0.0, %v2051
    %v2053 = vpop.f32.mrf.mxu0
    %v2054 = vadd.f32 0.0, %v2053
    %2055 = vdwg.mxu0
    %v2056 = vadd.f32 %v1820, %v2038
    %v2057 = vadd.f32 %v1821, %v2040
    %v2058 = vadd.f32 %v1822, %v2042
    %v2059 = vadd.f32 %v1823, %v2044
    %v2060 = vadd.f32 %v1824, %v2048
    %v2061 = vadd.f32 %v1825, %v2050
    %v2062 = vadd.f32 %v1826, %v2052
    %v2063 = vadd.f32 %v1827, %v2054
    %s2064 = scalar_lea.vmem %s5, 576
    %v2065 = vld [vmem:[%s2064] sm:$0xff]
    %v2066 = vld [vmem:[%s2064 + $0x8] sm:$0xff]
    %v2067 = vld [vmem:[%s2064 + $0x10] sm:$0xff]
    %v2068 = vld [vmem:[%s2064 + $0x18] sm:$0xff]
    %v2069 = vld [vmem:[%s2064 + $0x20] sm:$0xff]
    %v2070 = vld [vmem:[%s2064 + $0x28] sm:$0xff]
    %v2071 = vld [vmem:[%s2064 + $0x30] sm:$0xff]
    %v2072 = vld [vmem:[%s2064 + $0x38] sm:$0xff]
    %v2073 = vld [vmem:[%s2064 + $0x40] sm:$0xff]
    %v2074 = vld [vmem:[%s2064 + $0x48] sm:$0xff]
    %v2075 = vld [vmem:[%s2064 + $0x50] sm:$0xff]
    %v2076 = vld [vmem:[%s2064 + $0x58] sm:$0xff]
    %v2089 = vunpack.c.l.b16 %v2065
    %v2090 = vunpack.c.h.b16 %v2065
    %v2091 = vunpack.c.l.b16 %v2066
    %v2092 = vunpack.c.h.b16 %v2066
    %v2093 = vunpack.c.l.b16 %v2067
    %v2094 = vunpack.c.h.b16 %v2067
    %v2095 = vunpack.c.l.b16 %v2068
    %v2096 = vunpack.c.h.b16 %v2068
    %v2097 = vunpack.c.l.b16 %v2069
    %v2098 = vunpack.c.h.b16 %v2069
    %v2099 = vunpack.c.l.b16 %v2070
    %v2100 = vunpack.c.h.b16 %v2070
    %v2101 = vunpack.c.l.b16 %v2071
    %v2102 = vunpack.c.h.b16 %v2071
    %v2103 = vunpack.c.l.b16 %v2072
    %v2104 = vunpack.c.h.b16 %v2072
    %v2105 = vunpack.c.l.b16 %v2073
    %v2106 = vunpack.c.h.b16 %v2073
    %v2107 = vunpack.c.l.b16 %v2074
    %v2108 = vunpack.c.h.b16 %v2074
    %v2109 = vunpack.c.l.b16 %v2075
    %v2110 = vunpack.c.h.b16 %v2075
    %v2111 = vunpack.c.l.b16 %v2076
    %v2112 = vunpack.c.h.b16 %v2076
    %v2113 = vpack.c.b16 %v2091, %v2089
    %v2114 = vpack.c.b16 %v2092, %v2090
    %v2115 = vpack.c.b16 %v2095, %v2093
    %v2116 = vpack.c.b16 %v2096, %v2094
    %v2117 = vpack.c.b16 %v2099, %v2097
    %v2118 = vpack.c.b16 %v2100, %v2098
    %v2119 = vpack.c.b16 %v2103, %v2101
    %v2120 = vpack.c.b16 %v2104, %v2102
    %v2121 = vpack.c.b16 %v2107, %v2105
    %v2122 = vpack.c.b16 %v2108, %v2106
    %v2123 = vpack.c.b16 %v2111, %v2109
    %v2124 = vpack.c.b16 %v2112, %v2110
    %2137 = vmatprep.subr.bf16.mxu0 0
    %2138 = vmatpush1.bf16.msra.mxu0 0
    %2139 = vmatprep.subr.bf16.mxu0 0
    %2140 = vmatpush1.bf16.msra.mxu0 0
    %2141 = vmatprep.subr.bf16.mxu0 %v2124
    %2142 = vmatpush1.bf16.msra.mxu0 %v2123
    %2143 = vmatprep.subr.bf16.mxu0 %v2122
    %2144 = vmatpush1.bf16.msra.mxu0 %v2121
    %2145 = vmatprep.subr.bf16.mxu0 %v2120
    %2146 = vmatpush1.bf16.msra.mxu0 %v2119
    %2147 = vmatprep.subr.bf16.mxu0 %v2118
    %2148 = vmatpush1.bf16.msra.mxu0 %v2117
    %2149 = vmatprep.subr.bf16.mxu0 %v2116
    %2150 = vmatpush1.bf16.msra.mxu0 %v2115
    %2151 = vmatprep.subr.bf16.mxu0 %v2114
    %2152 = vmatpush1.bf16.msra.mxu0 %v2113
    %2153 = vmatprep.subr.bf16.mxu0 0
    %2154 = vmatpush2.bf16.msra.mxu0 0
    %2155 = vmatprep.subr.bf16.mxu0 0
    %2156 = vmatpush2.bf16.msra.mxu0 0
    %2157 = vmatprep.subr.bf16.mxu0 0
    %2158 = vmatpush2.bf16.msra.mxu0 0
    %2159 = vmatprep.subr.bf16.mxu0 0
    %2160 = vmatpush2.bf16.msra.mxu0 0
    %2161 = vmatprep.subr.bf16.mxu0 0
    %2162 = vmatpush2.bf16.msra.mxu0 0
    %2163 = vmatprep.subr.bf16.mxu0 0
    %2164 = vmatpush2.bf16.msra.mxu0 0
    %2165 = vmatprep.subr.bf16.mxu0 0
    %2166 = vmatpush2.bf16.msra.mxu0 0
    %2167 = vmatprep.subr.bf16.mxu0 0
    %2168 = vmatpush2.bf16.msra.mxu0 0
    %2169 = vmatprep.mubr.bf16.mxu0 0
    %2170 = vmatmul.mubr.bf16.gmra.mxu0 %v726
    %v2171 = vpop.f32.mrf.mxu0
    %v2172 = vadd.f32 0.0, %v2171
    %v2173 = vpop.f32.mrf.mxu0
    %v2174 = vadd.f32 0.0, %v2173
    %v2175 = vpop.f32.mrf.mxu0
    %v2176 = vadd.f32 0.0, %v2175
    %v2177 = vpop.f32.mrf.mxu0
    %v2178 = vadd.f32 0.0, %v2177
    %2179 = vmatprep.mubr.bf16.mxu0 0
    %2180 = vmatmul.mubr.bf16.gmra.mxu0 %v729
    %v2181 = vpop.f32.mrf.mxu0
    %v2182 = vadd.f32 0.0, %v2181
    %v2183 = vpop.f32.mrf.mxu0
    %v2184 = vadd.f32 0.0, %v2183
    %v2185 = vpop.f32.mrf.mxu0
    %v2186 = vadd.f32 0.0, %v2185
    %v2187 = vpop.f32.mrf.mxu0
    %v2188 = vadd.f32 0.0, %v2187
    %2189 = vmatprep.mubr.bf16.mxu0 0
    %2190 = vmatmul.mubr.bf16.gmra.mxu0 %v732
    %v2191 = vpop.f32.mrf.mxu0
    %v2192 = vadd.f32 0.0, %v2191
    %v2193 = vpop.f32.mrf.mxu0
    %v2194 = vadd.f32 0.0, %v2193
    %v2195 = vpop.f32.mrf.mxu0
    %v2196 = vadd.f32 0.0, %v2195
    %v2197 = vpop.f32.mrf.mxu0
    %v2198 = vadd.f32 0.0, %v2197
    %2199 = vmatprep.mubr.bf16.mxu0 0
    %2200 = vmatmul.mubr.bf16.gmra.mxu0 %v735
    %v2201 = vpop.f32.mrf.mxu0
    %v2202 = vadd.f32 0.0, %v2201
    %v2203 = vpop.f32.mrf.mxu0
    %v2204 = vadd.f32 0.0, %v2203
    %v2205 = vpop.f32.mrf.mxu0
    %v2206 = vadd.f32 0.0, %v2205
    %v2207 = vpop.f32.mrf.mxu0
    %v2208 = vadd.f32 0.0, %v2207
    %2209 = vdwg.mxu0
    %s2210 = scalar_lea.vmem [#allocation2], 96
    %v2211 = vld [vmem:[%s2210] sm:$0xf]
    %v2212 = vld [vmem:[%s2210 + $0x4] sm:$0xf]
    %v2213 = vld [vmem:[%s2210 + $0x8] sm:$0xf]
    %v2214 = vld [vmem:[%s2210 + $0xc] sm:$0xf]
    %v2215 = vpack.c.bf16 %v2176, %v2172
    %v2216 = vpack.c.bf16 %v2178, %v2174
    %v2217 = vpack.c.bf16 %v2186, %v2182
    %v2218 = vpack.c.bf16 %v2188, %v2184
    %v2219 = vpack.c.bf16 %v2196, %v2192
    %v2220 = vpack.c.bf16 %v2198, %v2194
    %v2221 = vpack.c.bf16 %v2206, %v2202
    %v2222 = vpack.c.bf16 %v2208, %v2204
    %v2227 = vunpack.c.l.b16 %v2211
    %v2228 = vunpack.c.l.b16 %v2212
    %v2229 = vunpack.c.l.b16 %v2213
    %v2230 = vunpack.c.l.b16 %v2214
    %v2231 = vpack.c.b16 %v2228, %v2227
    %v2232 = vpack.c.b16 %v2230, %v2229
    %v2234 = vsel %vm991, %v2231, 0
    %v2237 = vsel %vm991, %v2232, 0
    %2239 = vmatprep.subr.bf16.mxu0 0
    %2240 = vmatpush1.bf16.msra.mxu0 0
    %2241 = vmatprep.subr.bf16.mxu0 0
    %2242 = vmatpush1.bf16.msra.mxu0 0
    %2243 = vmatprep.subr.bf16.mxu0 0
    %2244 = vmatpush1.bf16.msra.mxu0 0
    %2245 = vmatprep.subr.bf16.mxu0 0
    %2246 = vmatpush1.bf16.msra.mxu0 0
    %2247 = vmatprep.subr.bf16.mxu0 %v2222
    %2248 = vmatpush1.bf16.msra.mxu0 %v2221
    %2249 = vmatprep.subr.bf16.mxu0 %v2220
    %2250 = vmatpush1.bf16.msra.mxu0 %v2219
    %2251 = vmatprep.subr.bf16.mxu0 %v2218
    %2252 = vmatpush1.bf16.msra.mxu0 %v2217
    %2253 = vmatprep.subr.bf16.mxu0 %v2216
    %2254 = vmatpush1.bf16.msra.mxu0 %v2215
    %2255 = vmatprep.subr.bf16.mxu0 0
    %2256 = vmatpush2.bf16.msra.mxu0 0
    %2257 = vmatprep.subr.bf16.mxu0 0
    %2258 = vmatpush2.bf16.msra.mxu0 0
    %2259 = vmatprep.subr.bf16.mxu0 0
    %2260 = vmatpush2.bf16.msra.mxu0 0
    %2261 = vmatprep.subr.bf16.mxu0 0
    %2262 = vmatpush2.bf16.msra.mxu0 0
    %2263 = vmatprep.subr.bf16.mxu0 0
    %2264 = vmatpush2.bf16.msra.mxu0 0
    %2265 = vmatprep.subr.bf16.mxu0 0
    %2266 = vmatpush2.bf16.msra.mxu0 0
    %2267 = vmatprep.subr.bf16.mxu0 0
    %2268 = vmatpush2.bf16.msra.mxu0 0
    %2269 = vmatprep.subr.bf16.mxu0 0
    %2270 = vmatpush2.bf16.msra.mxu0 0
    %2271 = vmatprep.mubr.bf16.mxu0 0
    %2272 = vmatmul.mubr.bf16.gmra.mxu0 %v2234
    %v2273 = vpop.f32.mrf.mxu0
    %v2274 = vadd.f32 0.0, %v2273
    %v2275 = vpop.f32.mrf.mxu0
    %v2276 = vadd.f32 0.0, %v2275
    %v2277 = vpop.f32.mrf.mxu0
    %v2278 = vadd.f32 0.0, %v2277
    %v2279 = vpop.f32.mrf.mxu0
    %v2280 = vadd.f32 0.0, %v2279
    %2281 = vmatprep.mubr.bf16.mxu0 0
    %2282 = vmatmul.mubr.bf16.gmra.mxu0 %v2237
    %v2283 = vpop.f32.mrf.mxu0
    %v2284 = vadd.f32 0.0, %v2283
    %v2285 = vpop.f32.mrf.mxu0
    %v2286 = vadd.f32 0.0, %v2285
    %v2287 = vpop.f32.mrf.mxu0
    %v2288 = vadd.f32 0.0, %v2287
    %v2289 = vpop.f32.mrf.mxu0
    %v2290 = vadd.f32 0.0, %v2289
    %2291 = vdwg.mxu0
    %v2292 = vadd.f32 %v2056, %v2274
    %v2293 = vadd.f32 %v2057, %v2276
    %v2294 = vadd.f32 %v2058, %v2278
    %v2295 = vadd.f32 %v2059, %v2280
    %v2296 = vadd.f32 %v2060, %v2284
    %v2297 = vadd.f32 %v2061, %v2286
    %v2298 = vadd.f32 %v2062, %v2288
    %v2299 = vadd.f32 %v2063, %v2290
    %v2300 = vld [vmem:[#allocation5] sm:$0x3]
    %v2302 = vlaneseq
    %v2303 = vshrl.u32 %v2302, 7
    %v2304 = vsub.s32 0, %v2303
    %v2305 = vrot.slane %v2300, %v2304
    %v2306 = vlaneseq
    %v2307 = vshrl.u32 %v2306, 7
    %v2308 = vsub.s32 1, %v2307
    %v2309 = vrot.slane %v2300, %v2308
    %v2312 = vadd.f32 %v2292, %v2305
    %v2313 = vadd.f32 %v2293, %v2309
    %v2314 = vadd.f32 %v2294, %v2305
    %v2315 = vadd.f32 %v2295, %v2309
    %v2316 = vadd.f32 %v2296, %v2305
    %v2317 = vadd.f32 %v2297, %v2309
    %v2318 = vadd.f32 %v2298, %v2305
    %v2319 = vadd.f32 %v2299, %v2309
    %v2320 = vmax.f32 %v2312, 0.0
    %v2321 = vmax.f32 %v2313, 0.0
    %v2322 = vmax.f32 %v2314, 0.0
    %v2323 = vmax.f32 %v2315, 0.0
    %v2324 = vmax.f32 %v2316, 0.0
    %v2325 = vmax.f32 %v2317, 0.0
    %v2326 = vmax.f32 %v2318, 0.0
    %v2327 = vmax.f32 %v2319, 0.0
    %v2328 = vpack.c.bf16 %v2322, %v2320
    %v2329 = vpack.c.bf16 %v2323, %v2321
    %v2330 = vpack.c.bf16 %v2326, %v2324
    %v2331 = vpack.c.bf16 %v2327, %v2325
    %v2332 = vld [vmem:[#allocation7] sm:$0xf]
    %v2333 = vld [vmem:[#allocation7 + $0x4] sm:$0xf]
    %v2334 = vld [vmem:[#allocation7 + $0x8] sm:$0xf]
    %v2335 = vld [vmem:[#allocation7 + $0xc] sm:$0xf]
    %v2336 = vld [vmem:[#allocation7 + $0x10] sm:$0xf]
    %v2337 = vld [vmem:[#allocation7 + $0x14] sm:$0xf]
    %v2338 = vld [vmem:[#allocation7 + $0x18] sm:$0xf]
    %v2339 = vld [vmem:[#allocation7 + $0x1c] sm:$0xf]
    %v2340 = vld [vmem:[#allocation7 + $0x20] sm:$0xf]
    %v2341 = vld [vmem:[#allocation7 + $0x24] sm:$0xf]
    %v2342 = vld [vmem:[#allocation7 + $0x28] sm:$0xf]
    %v2343 = vld [vmem:[#allocation7 + $0x2c] sm:$0xf]
    %v2344 = vld [vmem:[#allocation7 + $0x30] sm:$0xf]
    %v2345 = vld [vmem:[#allocation7 + $0x34] sm:$0xf]
    %v2346 = vld [vmem:[#allocation7 + $0x38] sm:$0xf]
    %v2347 = vld [vmem:[#allocation7 + $0x3c] sm:$0xf]
    %v2348 = vld [vmem:[#allocation7 + $0x40] sm:$0xf]
    %v2349 = vld [vmem:[#allocation7 + $0x44] sm:$0xf]
    %v2350 = vld [vmem:[#allocation7 + $0x48] sm:$0xf]
    %v2351 = vld [vmem:[#allocation7 + $0x4c] sm:$0xf]
    %v2352 = vld [vmem:[#allocation7 + $0x50] sm:$0xf]
    %v2353 = vld [vmem:[#allocation7 + $0x54] sm:$0xf]
    %v2354 = vld [vmem:[#allocation7 + $0x58] sm:$0xf]
    %v2355 = vld [vmem:[#allocation7 + $0x5c] sm:$0xf]
    %v2356 = vld [vmem:[#allocation7 + $0x60] sm:$0xf]
    %v2357 = vld [vmem:[#allocation7 + $0x64] sm:$0xf]
    %v2358 = vld [vmem:[#allocation7 + $0x68] sm:$0xf]
    %v2359 = vld [vmem:[#allocation7 + $0x6c] sm:$0xf]
    %v2360 = vld [vmem:[#allocation7 + $0x70] sm:$0xf]
    %v2361 = vld [vmem:[#allocation7 + $0x74] sm:$0xf]
    %v2362 = vld [vmem:[#allocation7 + $0x78] sm:$0xf]
    %v2363 = vld [vmem:[#allocation7 + $0x7c] sm:$0xf]
    %v2396 = vunpack.c.l.b16 %v2332
    %v2397 = vunpack.c.l.b16 %v2333
    %v2398 = vunpack.c.l.b16 %v2334
    %v2399 = vunpack.c.l.b16 %v2335
    %v2400 = vunpack.c.l.b16 %v2336
    %v2401 = vunpack.c.l.b16 %v2337
    %v2402 = vunpack.c.l.b16 %v2338
    %v2403 = vunpack.c.l.b16 %v2339
    %v2404 = vunpack.c.l.b16 %v2340
    %v2405 = vunpack.c.l.b16 %v2341
    %v2406 = vunpack.c.l.b16 %v2342
    %v2407 = vunpack.c.l.b16 %v2343
    %v2408 = vunpack.c.l.b16 %v2344
    %v2409 = vunpack.c.l.b16 %v2345
    %v2410 = vunpack.c.l.b16 %v2346
    %v2411 = vunpack.c.l.b16 %v2347
    %v2412 = vunpack.c.l.b16 %v2348
    %v2413 = vunpack.c.l.b16 %v2349
    %v2414 = vunpack.c.l.b16 %v2350
    %v2415 = vunpack.c.l.b16 %v2351
    %v2416 = vunpack.c.l.b16 %v2352
    %v2417 = vunpack.c.l.b16 %v2353
    %v2418 = vunpack.c.l.b16 %v2354
    %v2419 = vunpack.c.l.b16 %v2355
    %v2420 = vunpack.c.l.b16 %v2356
    %v2421 = vunpack.c.l.b16 %v2357
    %v2422 = vunpack.c.l.b16 %v2358
    %v2423 = vunpack.c.l.b16 %v2359
    %v2424 = vunpack.c.l.b16 %v2360
    %v2425 = vunpack.c.l.b16 %v2361
    %v2426 = vunpack.c.l.b16 %v2362
    %v2427 = vunpack.c.l.b16 %v2363
    %v2428 = vpack.c.b16 %v2397, %v2396
    %v2429 = vpack.c.b16 %v2399, %v2398
    %v2430 = vpack.c.b16 %v2401, %v2400
    %v2431 = vpack.c.b16 %v2403, %v2402
    %v2432 = vpack.c.b16 %v2405, %v2404
    %v2433 = vpack.c.b16 %v2407, %v2406
    %v2434 = vpack.c.b16 %v2409, %v2408
    %v2435 = vpack.c.b16 %v2411, %v2410
    %v2436 = vpack.c.b16 %v2413, %v2412
    %v2437 = vpack.c.b16 %v2415, %v2414
    %v2438 = vpack.c.b16 %v2417, %v2416
    %v2439 = vpack.c.b16 %v2419, %v2418
    %v2440 = vpack.c.b16 %v2421, %v2420
    %v2441 = vpack.c.b16 %v2423, %v2422
    %v2442 = vpack.c.b16 %v2425, %v2424
    %v2443 = vpack.c.b16 %v2427, %v2426
    %2460 = vmatprep.subr.bf16.mxu0 0
    %2461 = vmatpush1.bf16.msra.mxu0 %v2435
    %2462 = vmatprep.subr.bf16.mxu0 0
    %2463 = vmatpush1.bf16.msra.mxu0 %v2434
    %2464 = vmatprep.subr.bf16.mxu0 0
    %2465 = vmatpush1.bf16.msra.mxu0 %v2433
    %2466 = vmatprep.subr.bf16.mxu0 0
    %2467 = vmatpush1.bf16.msra.mxu0 %v2432
    %2468 = vmatprep.subr.bf16.mxu0 0
    %2469 = vmatpush1.bf16.msra.mxu0 %v2431
    %2470 = vmatprep.subr.bf16.mxu0 0
    %2471 = vmatpush1.bf16.msra.mxu0 %v2430
    %2472 = vmatprep.subr.bf16.mxu0 0
    %2473 = vmatpush1.bf16.msra.mxu0 %v2429
    %2474 = vmatprep.subr.bf16.mxu0 0
    %2475 = vmatpush1.bf16.msra.mxu0 %v2428
    %2476 = vmatprep.subr.bf16.mxu0 0
    %2477 = vmatpush2.bf16.msra.mxu0 %v2443
    %2478 = vmatprep.subr.bf16.mxu0 0
    %2479 = vmatpush2.bf16.msra.mxu0 %v2442
    %2480 = vmatprep.subr.bf16.mxu0 0
    %2481 = vmatpush2.bf16.msra.mxu0 %v2441
    %2482 = vmatprep.subr.bf16.mxu0 0
    %2483 = vmatpush2.bf16.msra.mxu0 %v2440
    %2484 = vmatprep.subr.bf16.mxu0 0
    %2485 = vmatpush2.bf16.msra.mxu0 %v2439
    %2486 = vmatprep.subr.bf16.mxu0 0
    %2487 = vmatpush2.bf16.msra.mxu0 %v2438
    %2488 = vmatprep.subr.bf16.mxu0 0
    %2489 = vmatpush2.bf16.msra.mxu0 %v2437
    %2490 = vmatprep.subr.bf16.mxu0 0
    %2491 = vmatpush2.bf16.msra.mxu0 %v2436
    %2492 = vmatprep.mubr.bf16.mxu0 %v2329
    %2493 = vmatmul.mubr.bf16.gmra.mxu0 %v2328
    %v2494 = vpop.f32.mrf.mxu0
    %v2495 = vadd.f32 0.0, %v2494
    %v2496 = vpop.f32.mrf.mxu0
    %v2497 = vpop.f32.mrf.mxu0
    %v2498 = vadd.f32 0.0, %v2497
    %v2499 = vpop.f32.mrf.mxu0
    %2500 = vmatprep.mubr.bf16.mxu0 %v2331
    %2501 = vmatmul.mubr.bf16.gmra.mxu0 %v2330
    %v2502 = vpop.f32.mrf.mxu0
    %v2503 = vadd.f32 0.0, %v2502
    %v2504 = vpop.f32.mrf.mxu0
    %v2505 = vpop.f32.mrf.mxu0
    %v2506 = vadd.f32 0.0, %v2505
    %v2507 = vpop.f32.mrf.mxu0
    %2508 = vdwg.mxu0
    %v2509 = vpack.c.bf16 %v2498, %v2495
    %v2510 = vpack.c.bf16 %v2506, %v2503
    %v2511 = vld [vmem:[%s9] sm:$0xf]
    %v2512 = vld [vmem:[%s9 + $0x4] sm:$0xf]
    %v2515 = vunpack.c.l.b16 %v2511
    %v2516 = vunpack.c.l.b16 %v2512
    %v2517 = vpack.c.b16 %v2516, %v2515
    %vm2518 = vcmask 261120
    %v2520 = vsel %vm2518, %v2517, 0
    %2522 = vmatprep.subr.bf16.mxu0 0
    %2523 = vmatpush1.bf16.msra.mxu0 0
    %2524 = vmatprep.subr.bf16.mxu0 0
    %2525 = vmatpush1.bf16.msra.mxu0 0
    %2526 = vmatprep.subr.bf16.mxu0 0
    %2527 = vmatpush1.bf16.msra.mxu0 0
    %2528 = vmatprep.subr.bf16.mxu0 0
    %2529 = vmatpush1.bf16.msra.mxu0 0
    %2530 = vmatprep.subr.bf16.mxu0 0
    %2531 = vmatpush1.bf16.msra.mxu0 0
    %2532 = vmatprep.subr.bf16.mxu0 0
    %2533 = vmatpush1.bf16.msra.mxu0 0
    %2534 = vmatprep.subr.bf16.mxu0 0
    %2535 = vmatpush1.bf16.msra.mxu0 %v2510
    %2536 = vmatprep.subr.bf16.mxu0 0
    %2537 = vmatpush1.bf16.msra.mxu0 %v2509
    %2538 = vmatprep.subr.bf16.mxu0 0
    %2539 = vmatpush2.bf16.msra.mxu0 0
    %2540 = vmatprep.subr.bf16.mxu0 0
    %2541 = vmatpush2.bf16.msra.mxu0 0
    %2542 = vmatprep.subr.bf16.mxu0 0
    %2543 = vmatpush2.bf16.msra.mxu0 0
    %2544 = vmatprep.subr.bf16.mxu0 0
    %2545 = vmatpush2.bf16.msra.mxu0 0
    %2546 = vmatprep.subr.bf16.mxu0 0
    %2547 = vmatpush2.bf16.msra.mxu0 0
    %2548 = vmatprep.subr.bf16.mxu0 0
    %2549 = vmatpush2.bf16.msra.mxu0 0
    %2550 = vmatprep.subr.bf16.mxu0 0
    %2551 = vmatpush2.bf16.msra.mxu0 0
    %2552 = vmatprep.subr.bf16.mxu0 0
    %2553 = vmatpush2.bf16.msra.mxu0 0
    %2554 = vmatprep.mubr.bf16.mxu0 0
    %2555 = vmatmul.mubr.bf16.gmra.mxu0 %v2520
    %v2556 = vpop.f32.mrf.mxu0
    %v2557 = vadd.f32 0.0, %v2556
    %v2558 = vpop.f32.mrf.mxu0
    %v2559 = vpop.f32.mrf.mxu0
    %v2560 = vadd.f32 0.0, %v2559
    %v2561 = vpop.f32.mrf.mxu0
    %2562 = vdwg.mxu0
    %s2563 = scalar_lea.vmem %s9, 8
    %v2564 = vld [vmem:[%s2563] sm:$0xf]
    %v2565 = vld [vmem:[%s2563 + $0x4] sm:$0xf]
    %v2568 = vunpack.c.l.b16 %v2564
    %v2569 = vunpack.c.l.b16 %v2565
    %v2570 = vpack.c.b16 %v2569, %v2568
    %v2572 = vsel %vm2518, %v2570, 0
    %2574 = vmatprep.subr.bf16.mxu0 0
    %2575 = vmatpush1.bf16.msra.mxu0 0
    %2576 = vmatprep.subr.bf16.mxu0 0
    %2577 = vmatpush1.bf16.msra.mxu0 0
    %2578 = vmatprep.subr.bf16.mxu0 0
    %2579 = vmatpush1.bf16.msra.mxu0 0
    %2580 = vmatprep.subr.bf16.mxu0 0
    %2581 = vmatpush1.bf16.msra.mxu0 0
    %2582 = vmatprep.subr.bf16.mxu0 0
    %2583 = vmatpush1.bf16.msra.mxu0 0
    %2584 = vmatprep.subr.bf16.mxu0 0
    %2585 = vmatpush1.bf16.msra.mxu0 0
    %2586 = vmatprep.subr.bf16.mxu0 0
    %2587 = vmatpush1.bf16.msra.mxu0 %v2510
    %2588 = vmatprep.subr.bf16.mxu0 0
    %2589 = vmatpush1.bf16.msra.mxu0 %v2509
    %2590 = vmatprep.subr.bf16.mxu0 0
    %2591 = vmatpush2.bf16.msra.mxu0 0
    %2592 = vmatprep.subr.bf16.mxu0 0
    %2593 = vmatpush2.bf16.msra.mxu0 0
    %2594 = vmatprep.subr.bf16.mxu0 0
    %2595 = vmatpush2.bf16.msra.mxu0 0
    %2596 = vmatprep.subr.bf16.mxu0 0
    %2597 = vmatpush2.bf16.msra.mxu0 0
    %2598 = vmatprep.subr.bf16.mxu0 0
    %2599 = vmatpush2.bf16.msra.mxu0 0
    %2600 = vmatprep.subr.bf16.mxu0 0
    %2601 = vmatpush2.bf16.msra.mxu0 0
    %2602 = vmatprep.subr.bf16.mxu0 0
    %2603 = vmatpush2.bf16.msra.mxu0 0
    %2604 = vmatprep.subr.bf16.mxu0 0
    %2605 = vmatpush2.bf16.msra.mxu0 0
    %2606 = vmatprep.mubr.bf16.mxu0 0
    %2607 = vmatmul.mubr.bf16.gmra.mxu0 %v2572
    %v2608 = vpop.f32.mrf.mxu0
    %v2609 = vadd.f32 0.0, %v2608
    %v2610 = vpop.f32.mrf.mxu0
    %v2611 = vpop.f32.mrf.mxu0
    %v2612 = vadd.f32 0.0, %v2611
    %v2613 = vpop.f32.mrf.mxu0
    %2614 = vdwg.mxu0
    %v2615 = vmax.f32 %v2557, %v2609
    %v2616 = vmax.f32 %v2560, %v2612
    %s2617 = scalar_lea.vmem %s9, 16
    %v2618 = vld [vmem:[%s2617] sm:$0xf]
    %v2619 = vld [vmem:[%s2617 + $0x4] sm:$0xf]
    %v2622 = vunpack.c.l.b16 %v2618
    %v2623 = vunpack.c.l.b16 %v2619
    %v2624 = vpack.c.b16 %v2623, %v2622
    %v2626 = vsel %vm2518, %v2624, 0
    %2628 = vmatprep.subr.bf16.mxu0 0
    %2629 = vmatpush1.bf16.msra.mxu0 0
    %2630 = vmatprep.subr.bf16.mxu0 0
    %2631 = vmatpush1.bf16.msra.mxu0 0
    %2632 = vmatprep.subr.bf16.mxu0 0
    %2633 = vmatpush1.bf16.msra.mxu0 0
    %2634 = vmatprep.subr.bf16.mxu0 0
    %2635 = vmatpush1.bf16.msra.mxu0 0
    %2636 = vmatprep.subr.bf16.mxu0 0
    %2637 = vmatpush1.bf16.msra.mxu0 0
    %2638 = vmatprep.subr.bf16.mxu0 0
    %2639 = vmatpush1.bf16.msra.mxu0 0
    %2640 = vmatprep.subr.bf16.mxu0 0
    %2641 = vmatpush1.bf16.msra.mxu0 %v2510
    %2642 = vmatprep.subr.bf16.mxu0 0
    %2643 = vmatpush1.bf16.msra.mxu0 %v2509
    %2644 = vmatprep.subr.bf16.mxu0 0
    %2645 = vmatpush2.bf16.msra.mxu0 0
    %2646 = vmatprep.subr.bf16.mxu0 0
    %2647 = vmatpush2.bf16.msra.mxu0 0
    %2648 = vmatprep.subr.bf16.mxu0 0
    %2649 = vmatpush2.bf16.msra.mxu0 0
    %2650 = vmatprep.subr.bf16.mxu0 0
    %2651 = vmatpush2.bf16.msra.mxu0 0
    %2652 = vmatprep.subr.bf16.mxu0 0
    %2653 = vmatpush2.bf16.msra.mxu0 0
    %2654 = vmatprep.subr.bf16.mxu0 0
    %2655 = vmatpush2.bf16.msra.mxu0 0
    %2656 = vmatprep.subr.bf16.mxu0 0
    %2657 = vmatpush2.bf16.msra.mxu0 0
    %2658 = vmatprep.subr.bf16.mxu0 0
    %2659 = vmatpush2.bf16.msra.mxu0 0
    %2660 = vmatprep.mubr.bf16.mxu0 0
    %2661 = vmatmul.mubr.bf16.gmra.mxu0 %v2626
    %v2662 = vpop.f32.mrf.mxu0
    %v2663 = vadd.f32 0.0, %v2662
    %v2664 = vpop.f32.mrf.mxu0
    %v2665 = vpop.f32.mrf.mxu0
    %v2666 = vadd.f32 0.0, %v2665
    %v2667 = vpop.f32.mrf.mxu0
    %2668 = vdwg.mxu0
    %v2669 = vmax.f32 %v2615, %v2663
    %v2670 = vmax.f32 %v2616, %v2666
    %s2671 = scalar_lea.vmem [#allocation7], 128
    %v2672 = vld [vmem:[%s2671] sm:$0xf]
    %v2673 = vld [vmem:[%s2671 + $0x4] sm:$0xf]
    %v2674 = vld [vmem:[%s2671 + $0x8] sm:$0xf]
    %v2675 = vld [vmem:[%s2671 + $0xc] sm:$0xf]
    %v2676 = vld [vmem:[%s2671 + $0x10] sm:$0xf]
    %v2677 = vld [vmem:[%s2671 + $0x14] sm:$0xf]
    %v2678 = vld [vmem:[%s2671 + $0x18] sm:$0xf]
    %v2679 = vld [vmem:[%s2671 + $0x1c] sm:$0xf]
    %v2680 = vld [vmem:[%s2671 + $0x20] sm:$0xf]
    %v2681 = vld [vmem:[%s2671 + $0x24] sm:$0xf]
    %v2682 = vld [vmem:[%s2671 + $0x28] sm:$0xf]
    %v2683 = vld [vmem:[%s2671 + $0x2c] sm:$0xf]
    %v2684 = vld [vmem:[%s2671 + $0x30] sm:$0xf]
    %v2685 = vld [vmem:[%s2671 + $0x34] sm:$0xf]
    %v2686 = vld [vmem:[%s2671 + $0x38] sm:$0xf]
    %v2687 = vld [vmem:[%s2671 + $0x3c] sm:$0xf]
    %v2688 = vld [vmem:[%s2671 + $0x40] sm:$0xf]
    %v2689 = vld [vmem:[%s2671 + $0x44] sm:$0xf]
    %v2690 = vld [vmem:[%s2671 + $0x48] sm:$0xf]
    %v2691 = vld [vmem:[%s2671 + $0x4c] sm:$0xf]
    %v2692 = vld [vmem:[%s2671 + $0x50] sm:$0xf]
    %v2693 = vld [vmem:[%s2671 + $0x54] sm:$0xf]
    %v2694 = vld [vmem:[%s2671 + $0x58] sm:$0xf]
    %v2695 = vld [vmem:[%s2671 + $0x5c] sm:$0xf]
    %v2696 = vld [vmem:[%s2671 + $0x60] sm:$0xf]
    %v2697 = vld [vmem:[%s2671 + $0x64] sm:$0xf]
    %v2698 = vld [vmem:[%s2671 + $0x68] sm:$0xf]
    %v2699 = vld [vmem:[%s2671 + $0x6c] sm:$0xf]
    %v2700 = vld [vmem:[%s2671 + $0x70] sm:$0xf]
    %v2701 = vld [vmem:[%s2671 + $0x74] sm:$0xf]
    %v2702 = vld [vmem:[%s2671 + $0x78] sm:$0xf]
    %v2703 = vld [vmem:[%s2671 + $0x7c] sm:$0xf]
    %v2736 = vunpack.c.l.b16 %v2672
    %v2737 = vunpack.c.l.b16 %v2673
    %v2738 = vunpack.c.l.b16 %v2674
    %v2739 = vunpack.c.l.b16 %v2675
    %v2740 = vunpack.c.l.b16 %v2676
    %v2741 = vunpack.c.l.b16 %v2677
    %v2742 = vunpack.c.l.b16 %v2678
    %v2743 = vunpack.c.l.b16 %v2679
    %v2744 = vunpack.c.l.b16 %v2680
    %v2745 = vunpack.c.l.b16 %v2681
    %v2746 = vunpack.c.l.b16 %v2682
    %v2747 = vunpack.c.l.b16 %v2683
    %v2748 = vunpack.c.l.b16 %v2684
    %v2749 = vunpack.c.l.b16 %v2685
    %v2750 = vunpack.c.l.b16 %v2686
    %v2751 = vunpack.c.l.b16 %v2687
    %v2752 = vunpack.c.l.b16 %v2688
    %v2753 = vunpack.c.l.b16 %v2689
    %v2754 = vunpack.c.l.b16 %v2690
    %v2755 = vunpack.c.l.b16 %v2691
    %v2756 = vunpack.c.l.b16 %v2692
    %v2757 = vunpack.c.l.b16 %v2693
    %v2758 = vunpack.c.l.b16 %v2694
    %v2759 = vunpack.c.l.b16 %v2695
    %v2760 = vunpack.c.l.b16 %v2696
    %v2761 = vunpack.c.l.b16 %v2697
    %v2762 = vunpack.c.l.b16 %v2698
    %v2763 = vunpack.c.l.b16 %v2699
    %v2764 = vunpack.c.l.b16 %v2700
    %v2765 = vunpack.c.l.b16 %v2701
    %v2766 = vunpack.c.l.b16 %v2702
    %v2767 = vunpack.c.l.b16 %v2703
    %v2768 = vpack.c.b16 %v2737, %v2736
    %v2769 = vpack.c.b16 %v2739, %v2738
    %v2770 = vpack.c.b16 %v2741, %v2740
    %v2771 = vpack.c.b16 %v2743, %v2742
    %v2772 = vpack.c.b16 %v2745, %v2744
    %v2773 = vpack.c.b16 %v2747, %v2746
    %v2774 = vpack.c.b16 %v2749, %v2748
    %v2775 = vpack.c.b16 %v2751, %v2750
    %v2776 = vpack.c.b16 %v2753, %v2752
    %v2777 = vpack.c.b16 %v2755, %v2754
    %v2778 = vpack.c.b16 %v2757, %v2756
    %v2779 = vpack.c.b16 %v2759, %v2758
    %v2780 = vpack.c.b16 %v2761, %v2760
    %v2781 = vpack.c.b16 %v2763, %v2762
    %v2782 = vpack.c.b16 %v2765, %v2764
    %v2783 = vpack.c.b16 %v2767, %v2766
    %2800 = vmatprep.subr.bf16.mxu0 0
    %2801 = vmatpush1.bf16.msra.mxu0 %v2775
    %2802 = vmatprep.subr.bf16.mxu0 0
    %2803 = vmatpush1.bf16.msra.mxu0 %v2774
    %2804 = vmatprep.subr.bf16.mxu0 0
    %2805 = vmatpush1.bf16.msra.mxu0 %v2773
    %2806 = vmatprep.subr.bf16.mxu0 0
    %2807 = vmatpush1.bf16.msra.mxu0 %v2772
    %2808 = vmatprep.subr.bf16.mxu0 0
    %2809 = vmatpush1.bf16.msra.mxu0 %v2771
    %2810 = vmatprep.subr.bf16.mxu0 0
    %2811 = vmatpush1.bf16.msra.mxu0 %v2770
    %2812 = vmatprep.subr.bf16.mxu0 0
    %2813 = vmatpush1.bf16.msra.mxu0 %v2769
    %2814 = vmatprep.subr.bf16.mxu0 0
    %2815 = vmatpush1.bf16.msra.mxu0 %v2768
    %2816 = vmatprep.subr.bf16.mxu0 0
    %2817 = vmatpush2.bf16.msra.mxu0 %v2783
    %2818 = vmatprep.subr.bf16.mxu0 0
    %2819 = vmatpush2.bf16.msra.mxu0 %v2782
    %2820 = vmatprep.subr.bf16.mxu0 0
    %2821 = vmatpush2.bf16.msra.mxu0 %v2781
    %2822 = vmatprep.subr.bf16.mxu0 0
    %2823 = vmatpush2.bf16.msra.mxu0 %v2780
    %2824 = vmatprep.subr.bf16.mxu0 0
    %2825 = vmatpush2.bf16.msra.mxu0 %v2779
    %2826 = vmatprep.subr.bf16.mxu0 0
    %2827 = vmatpush2.bf16.msra.mxu0 %v2778
    %2828 = vmatprep.subr.bf16.mxu0 0
    %2829 = vmatpush2.bf16.msra.mxu0 %v2777
    %2830 = vmatprep.subr.bf16.mxu0 0
    %2831 = vmatpush2.bf16.msra.mxu0 %v2776
    %2832 = vmatprep.mubr.bf16.mxu0 %v2329
    %2833 = vmatmul.mubr.bf16.gmra.mxu0 %v2328
    %v2834 = vpop.f32.mrf.mxu0
    %v2835 = vadd.f32 0.0, %v2834
    %v2836 = vpop.f32.mrf.mxu0
    %v2837 = vpop.f32.mrf.mxu0
    %v2838 = vadd.f32 0.0, %v2837
    %v2839 = vpop.f32.mrf.mxu0
    %2840 = vmatprep.mubr.bf16.mxu0 %v2331
    %2841 = vmatmul.mubr.bf16.gmra.mxu0 %v2330
    %v2842 = vpop.f32.mrf.mxu0
    %v2843 = vadd.f32 0.0, %v2842
    %v2844 = vpop.f32.mrf.mxu0
    %v2845 = vpop.f32.mrf.mxu0
    %v2846 = vadd.f32 0.0, %v2845
    %v2847 = vpop.f32.mrf.mxu0
    %2848 = vdwg.mxu0
    %v2849 = vpack.c.bf16 %v2838, %v2835
    %v2850 = vpack.c.bf16 %v2846, %v2843
    %2851 = vmatprep.subr.bf16.mxu0 0
    %2852 = vmatpush1.bf16.msra.mxu0 0
    %2853 = vmatprep.subr.bf16.mxu0 0
    %2854 = vmatpush1.bf16.msra.mxu0 0
    %2855 = vmatprep.subr.bf16.mxu0 0
    %2856 = vmatpush1.bf16.msra.mxu0 0
    %2857 = vmatprep.subr.bf16.mxu0 0
    %2858 = vmatpush1.bf16.msra.mxu0 0
    %2859 = vmatprep.subr.bf16.mxu0 0
    %2860 = vmatpush1.bf16.msra.mxu0 0
    %2861 = vmatprep.subr.bf16.mxu0 0
    %2862 = vmatpush1.bf16.msra.mxu0 0
    %2863 = vmatprep.subr.bf16.mxu0 0
    %2864 = vmatpush1.bf16.msra.mxu0 %v2850
    %2865 = vmatprep.subr.bf16.mxu0 0
    %2866 = vmatpush1.bf16.msra.mxu0 %v2849
    %2867 = vmatprep.subr.bf16.mxu0 0
    %2868 = vmatpush2.bf16.msra.mxu0 0
    %2869 = vmatprep.subr.bf16.mxu0 0
    %2870 = vmatpush2.bf16.msra.mxu0 0
    %2871 = vmatprep.subr.bf16.mxu0 0
    %2872 = vmatpush2.bf16.msra.mxu0 0
    %2873 = vmatprep.subr.bf16.mxu0 0
    %2874 = vmatpush2.bf16.msra.mxu0 0
    %2875 = vmatprep.subr.bf16.mxu0 0
    %2876 = vmatpush2.bf16.msra.mxu0 0
    %2877 = vmatprep.subr.bf16.mxu0 0
    %2878 = vmatpush2.bf16.msra.mxu0 0
    %2879 = vmatprep.subr.bf16.mxu0 0
    %2880 = vmatpush2.bf16.msra.mxu0 0
    %2881 = vmatprep.subr.bf16.mxu0 0
    %2882 = vmatpush2.bf16.msra.mxu0 0
    %2883 = vmatprep.mubr.bf16.mxu0 0
    %2884 = vmatmul.mubr.bf16.gmra.mxu0 %v2520
    %v2885 = vpop.f32.mrf.mxu0
    %v2886 = vadd.f32 0.0, %v2885
    %v2887 = vpop.f32.mrf.mxu0
    %v2888 = vpop.f32.mrf.mxu0
    %v2889 = vadd.f32 0.0, %v2888
    %v2890 = vpop.f32.mrf.mxu0
    %2891 = vdwg.mxu0
    %v2892 = vmax.f32 %v2669, %v2886
    %v2893 = vmax.f32 %v2670, %v2889
    %2894 = vmatprep.subr.bf16.mxu0 0
    %2895 = vmatpush1.bf16.msra.mxu0 0
    %2896 = vmatprep.subr.bf16.mxu0 0
    %2897 = vmatpush1.bf16.msra.mxu0 0
    %2898 = vmatprep.subr.bf16.mxu0 0
    %2899 = vmatpush1.bf16.msra.mxu0 0
    %2900 = vmatprep.subr.bf16.mxu0 0
    %2901 = vmatpush1.bf16.msra.mxu0 0
    %2902 = vmatprep.subr.bf16.mxu0 0
    %2903 = vmatpush1.bf16.msra.mxu0 0
    %2904 = vmatprep.subr.bf16.mxu0 0
    %2905 = vmatpush1.bf16.msra.mxu0 0
    %2906 = vmatprep.subr.bf16.mxu0 0
    %2907 = vmatpush1.bf16.msra.mxu0 %v2850
    %2908 = vmatprep.subr.bf16.mxu0 0
    %2909 = vmatpush1.bf16.msra.mxu0 %v2849
    %2910 = vmatprep.subr.bf16.mxu0 0
    %2911 = vmatpush2.bf16.msra.mxu0 0
    %2912 = vmatprep.subr.bf16.mxu0 0
    %2913 = vmatpush2.bf16.msra.mxu0 0
    %2914 = vmatprep.subr.bf16.mxu0 0
    %2915 = vmatpush2.bf16.msra.mxu0 0
    %2916 = vmatprep.subr.bf16.mxu0 0
    %2917 = vmatpush2.bf16.msra.mxu0 0
    %2918 = vmatprep.subr.bf16.mxu0 0
    %2919 = vmatpush2.bf16.msra.mxu0 0
    %2920 = vmatprep.subr.bf16.mxu0 0
    %2921 = vmatpush2.bf16.msra.mxu0 0
    %2922 = vmatprep.subr.bf16.mxu0 0
    %2923 = vmatpush2.bf16.msra.mxu0 0
    %2924 = vmatprep.subr.bf16.mxu0 0
    %2925 = vmatpush2.bf16.msra.mxu0 0
    %2926 = vmatprep.mubr.bf16.mxu0 0
    %2927 = vmatmul.mubr.bf16.gmra.mxu0 %v2572
    %v2928 = vpop.f32.mrf.mxu0
    %v2929 = vadd.f32 0.0, %v2928
    %v2930 = vpop.f32.mrf.mxu0
    %v2931 = vpop.f32.mrf.mxu0
    %v2932 = vadd.f32 0.0, %v2931
    %v2933 = vpop.f32.mrf.mxu0
    %2934 = vdwg.mxu0
    %v2935 = vmax.f32 %v2892, %v2929
    %v2936 = vmax.f32 %v2893, %v2932
    %2937 = vmatprep.subr.bf16.mxu0 0
    %2938 = vmatpush1.bf16.msra.mxu0 0
    %2939 = vmatprep.subr.bf16.mxu0 0
    %2940 = vmatpush1.bf16.msra.mxu0 0
    %2941 = vmatprep.subr.bf16.mxu0 0
    %2942 = vmatpush1.bf16.msra.mxu0 0
    %2943 = vmatprep.subr.bf16.mxu0 0
    %2944 = vmatpush1.bf16.msra.mxu0 0
    %2945 = vmatprep.subr.bf16.mxu0 0
    %2946 = vmatpush1.bf16.msra.mxu0 0
    %2947 = vmatprep.subr.bf16.mxu0 0
    %2948 = vmatpush1.bf16.msra.mxu0 0
    %2949 = vmatprep.subr.bf16.mxu0 0
    %2950 = vmatpush1.bf16.msra.mxu0 %v2850
    %2951 = vmatprep.subr.bf16.mxu0 0
    %2952 = vmatpush1.bf16.msra.mxu0 %v2849
    %2953 = vmatprep.subr.bf16.mxu0 0
    %2954 = vmatpush2.bf16.msra.mxu0 0
    %2955 = vmatprep.subr.bf16.mxu0 0
    %2956 = vmatpush2.bf16.msra.mxu0 0
    %2957 = vmatprep.subr.bf16.mxu0 0
    %2958 = vmatpush2.bf16.msra.mxu0 0
    %2959 = vmatprep.subr.bf16.mxu0 0
    %2960 = vmatpush2.bf16.msra.mxu0 0
    %2961 = vmatprep.subr.bf16.mxu0 0
    %2962 = vmatpush2.bf16.msra.mxu0 0
    %2963 = vmatprep.subr.bf16.mxu0 0
    %2964 = vmatpush2.bf16.msra.mxu0 0
    %2965 = vmatprep.subr.bf16.mxu0 0
    %2966 = vmatpush2.bf16.msra.mxu0 0
    %2967 = vmatprep.subr.bf16.mxu0 0
    %2968 = vmatpush2.bf16.msra.mxu0 0
    %2969 = vmatprep.mubr.bf16.mxu0 0
    %2970 = vmatmul.mubr.bf16.gmra.mxu0 %v2626
    %v2971 = vpop.f32.mrf.mxu0
    %v2972 = vadd.f32 0.0, %v2971
    %v2973 = vpop.f32.mrf.mxu0
    %v2974 = vpop.f32.mrf.mxu0
    %v2975 = vadd.f32 0.0, %v2974
    %v2976 = vpop.f32.mrf.mxu0
    %2977 = vdwg.mxu0
    %v2978 = vmax.f32 %v2935, %v2972
    %v2979 = vmax.f32 %v2936, %v2975
    %s2980 = scalar_lea.vmem [#allocation7], 256
    %v2981 = vld [vmem:[%s2980] sm:$0xf]
    %v2982 = vld [vmem:[%s2980 + $0x4] sm:$0xf]
    %v2983 = vld [vmem:[%s2980 + $0x8] sm:$0xf]
    %v2984 = vld [vmem:[%s2980 + $0xc] sm:$0xf]
    %v2985 = vld [vmem:[%s2980 + $0x10] sm:$0xf]
    %v2986 = vld [vmem:[%s2980 + $0x14] sm:$0xf]
    %v2987 = vld [vmem:[%s2980 + $0x18] sm:$0xf]
    %v2988 = vld [vmem:[%s2980 + $0x1c] sm:$0xf]
    %v2989 = vld [vmem:[%s2980 + $0x20] sm:$0xf]
    %v2990 = vld [vmem:[%s2980 + $0x24] sm:$0xf]
    %v2991 = vld [vmem:[%s2980 + $0x28] sm:$0xf]
    %v2992 = vld [vmem:[%s2980 + $0x2c] sm:$0xf]
    %v2993 = vld [vmem:[%s2980 + $0x30] sm:$0xf]
    %v2994 = vld [vmem:[%s2980 + $0x34] sm:$0xf]
    %v2995 = vld [vmem:[%s2980 + $0x38] sm:$0xf]
    %v2996 = vld [vmem:[%s2980 + $0x3c] sm:$0xf]
    %v2997 = vld [vmem:[%s2980 + $0x40] sm:$0xf]
    %v2998 = vld [vmem:[%s2980 + $0x44] sm:$0xf]
    %v2999 = vld [vmem:[%s2980 + $0x48] sm:$0xf]
    %v3000 = vld [vmem:[%s2980 + $0x4c] sm:$0xf]
    %v3001 = vld [vmem:[%s2980 + $0x50] sm:$0xf]
    %v3002 = vld [vmem:[%s2980 + $0x54] sm:$0xf]
    %v3003 = vld [vmem:[%s2980 + $0x58] sm:$0xf]
    %v3004 = vld [vmem:[%s2980 + $0x5c] sm:$0xf]
    %v3005 = vld [vmem:[%s2980 + $0x60] sm:$0xf]
    %v3006 = vld [vmem:[%s2980 + $0x64] sm:$0xf]
    %v3007 = vld [vmem:[%s2980 + $0x68] sm:$0xf]
    %v3008 = vld [vmem:[%s2980 + $0x6c] sm:$0xf]
    %v3009 = vld [vmem:[%s2980 + $0x70] sm:$0xf]
    %v3010 = vld [vmem:[%s2980 + $0x74] sm:$0xf]
    %v3011 = vld [vmem:[%s2980 + $0x78] sm:$0xf]
    %v3012 = vld [vmem:[%s2980 + $0x7c] sm:$0xf]
    %v3045 = vunpack.c.l.b16 %v2981
    %v3046 = vunpack.c.l.b16 %v2982
    %v3047 = vunpack.c.l.b16 %v2983
    %v3048 = vunpack.c.l.b16 %v2984
    %v3049 = vunpack.c.l.b16 %v2985
    %v3050 = vunpack.c.l.b16 %v2986
    %v3051 = vunpack.c.l.b16 %v2987
    %v3052 = vunpack.c.l.b16 %v2988
    %v3053 = vunpack.c.l.b16 %v2989
    %v3054 = vunpack.c.l.b16 %v2990
    %v3055 = vunpack.c.l.b16 %v2991
    %v3056 = vunpack.c.l.b16 %v2992
    %v3057 = vunpack.c.l.b16 %v2993
    %v3058 = vunpack.c.l.b16 %v2994
    %v3059 = vunpack.c.l.b16 %v2995
    %v3060 = vunpack.c.l.b16 %v2996
    %v3061 = vunpack.c.l.b16 %v2997
    %v3062 = vunpack.c.l.b16 %v2998
    %v3063 = vunpack.c.l.b16 %v2999
    %v3064 = vunpack.c.l.b16 %v3000
    %v3065 = vunpack.c.l.b16 %v3001
    %v3066 = vunpack.c.l.b16 %v3002
    %v3067 = vunpack.c.l.b16 %v3003
    %v3068 = vunpack.c.l.b16 %v3004
    %v3069 = vunpack.c.l.b16 %v3005
    %v3070 = vunpack.c.l.b16 %v3006
    %v3071 = vunpack.c.l.b16 %v3007
    %v3072 = vunpack.c.l.b16 %v3008
    %v3073 = vunpack.c.l.b16 %v3009
    %v3074 = vunpack.c.l.b16 %v3010
    %v3075 = vunpack.c.l.b16 %v3011
    %v3076 = vunpack.c.l.b16 %v3012
    %v3077 = vpack.c.b16 %v3046, %v3045
    %v3078 = vpack.c.b16 %v3048, %v3047
    %v3079 = vpack.c.b16 %v3050, %v3049
    %v3080 = vpack.c.b16 %v3052, %v3051
    %v3081 = vpack.c.b16 %v3054, %v3053
    %v3082 = vpack.c.b16 %v3056, %v3055
    %v3083 = vpack.c.b16 %v3058, %v3057
    %v3084 = vpack.c.b16 %v3060, %v3059
    %v3085 = vpack.c.b16 %v3062, %v3061
    %v3086 = vpack.c.b16 %v3064, %v3063
    %v3087 = vpack.c.b16 %v3066, %v3065
    %v3088 = vpack.c.b16 %v3068, %v3067
    %v3089 = vpack.c.b16 %v3070, %v3069
    %v3090 = vpack.c.b16 %v3072, %v3071
    %v3091 = vpack.c.b16 %v3074, %v3073
    %v3092 = vpack.c.b16 %v3076, %v3075
    %3109 = vmatprep.subr.bf16.mxu0 0
    %3110 = vmatpush1.bf16.msra.mxu0 %v3084
    %3111 = vmatprep.subr.bf16.mxu0 0
    %3112 = vmatpush1.bf16.msra.mxu0 %v3083
    %3113 = vmatprep.subr.bf16.mxu0 0
    %3114 = vmatpush1.bf16.msra.mxu0 %v3082
    %3115 = vmatprep.subr.bf16.mxu0 0
    %3116 = vmatpush1.bf16.msra.mxu0 %v3081
    %3117 = vmatprep.subr.bf16.mxu0 0
    %3118 = vmatpush1.bf16.msra.mxu0 %v3080
    %3119 = vmatprep.subr.bf16.mxu0 0
    %3120 = vmatpush1.bf16.msra.mxu0 %v3079
    %3121 = vmatprep.subr.bf16.mxu0 0
    %3122 = vmatpush1.bf16.msra.mxu0 %v3078
    %3123 = vmatprep.subr.bf16.mxu0 0
    %3124 = vmatpush1.bf16.msra.mxu0 %v3077
    %3125 = vmatprep.subr.bf16.mxu0 0
    %3126 = vmatpush2.bf16.msra.mxu0 %v3092
    %3127 = vmatprep.subr.bf16.mxu0 0
    %3128 = vmatpush2.bf16.msra.mxu0 %v3091
    %3129 = vmatprep.subr.bf16.mxu0 0
    %3130 = vmatpush2.bf16.msra.mxu0 %v3090
    %3131 = vmatprep.subr.bf16.mxu0 0
    %3132 = vmatpush2.bf16.msra.mxu0 %v3089
    %3133 = vmatprep.subr.bf16.mxu0 0
    %3134 = vmatpush2.bf16.msra.mxu0 %v3088
    %3135 = vmatprep.subr.bf16.mxu0 0
    %3136 = vmatpush2.bf16.msra.mxu0 %v3087
    %3137 = vmatprep.subr.bf16.mxu0 0
    %3138 = vmatpush2.bf16.msra.mxu0 %v3086
    %3139 = vmatprep.subr.bf16.mxu0 0
    %3140 = vmatpush2.bf16.msra.mxu0 %v3085
    %3141 = vmatprep.mubr.bf16.mxu0 %v2329
    %3142 = vmatmul.mubr.bf16.gmra.mxu0 %v2328
    %v3143 = vpop.f32.mrf.mxu0
    %v3144 = vadd.f32 0.0, %v3143
    %v3145 = vpop.f32.mrf.mxu0
    %v3146 = vpop.f32.mrf.mxu0
    %v3147 = vadd.f32 0.0, %v3146
    %v3148 = vpop.f32.mrf.mxu0
    %3149 = vmatprep.mubr.bf16.mxu0 %v2331
    %3150 = vmatmul.mubr.bf16.gmra.mxu0 %v2330
    %v3151 = vpop.f32.mrf.mxu0
    %v3152 = vadd.f32 0.0, %v3151
    %v3153 = vpop.f32.mrf.mxu0
    %v3154 = vpop.f32.mrf.mxu0
    %v3155 = vadd.f32 0.0, %v3154
    %v3156 = vpop.f32.mrf.mxu0
    %3157 = vdwg.mxu0
    %v3158 = vpack.c.bf16 %v3147, %v3144
    %v3159 = vpack.c.bf16 %v3155, %v3152
    %3160 = vmatprep.subr.bf16.mxu0 0
    %3161 = vmatpush1.bf16.msra.mxu0 0
    %3162 = vmatprep.subr.bf16.mxu0 0
    %3163 = vmatpush1.bf16.msra.mxu0 0
    %3164 = vmatprep.subr.bf16.mxu0 0
    %3165 = vmatpush1.bf16.msra.mxu0 0
    %3166 = vmatprep.subr.bf16.mxu0 0
    %3167 = vmatpush1.bf16.msra.mxu0 0
    %3168 = vmatprep.subr.bf16.mxu0 0
    %3169 = vmatpush1.bf16.msra.mxu0 0
    %3170 = vmatprep.subr.bf16.mxu0 0
    %3171 = vmatpush1.bf16.msra.mxu0 0
    %3172 = vmatprep.subr.bf16.mxu0 0
    %3173 = vmatpush1.bf16.msra.mxu0 %v3159
    %3174 = vmatprep.subr.bf16.mxu0 0
    %3175 = vmatpush1.bf16.msra.mxu0 %v3158
    %3176 = vmatprep.subr.bf16.mxu0 0
    %3177 = vmatpush2.bf16.msra.mxu0 0
    %3178 = vmatprep.subr.bf16.mxu0 0
    %3179 = vmatpush2.bf16.msra.mxu0 0
    %3180 = vmatprep.subr.bf16.mxu0 0
    %3181 = vmatpush2.bf16.msra.mxu0 0
    %3182 = vmatprep.subr.bf16.mxu0 0
    %3183 = vmatpush2.bf16.msra.mxu0 0
    %3184 = vmatprep.subr.bf16.mxu0 0
    %3185 = vmatpush2.bf16.msra.mxu0 0
    %3186 = vmatprep.subr.bf16.mxu0 0
    %3187 = vmatpush2.bf16.msra.mxu0 0
    %3188 = vmatprep.subr.bf16.mxu0 0
    %3189 = vmatpush2.bf16.msra.mxu0 0
    %3190 = vmatprep.subr.bf16.mxu0 0
    %3191 = vmatpush2.bf16.msra.mxu0 0
    %3192 = vmatprep.mubr.bf16.mxu0 0
    %3193 = vmatmul.mubr.bf16.gmra.mxu0 %v2520
    %v3194 = vpop.f32.mrf.mxu0
    %v3195 = vadd.f32 0.0, %v3194
    %v3196 = vpop.f32.mrf.mxu0
    %v3197 = vpop.f32.mrf.mxu0
    %v3198 = vadd.f32 0.0, %v3197
    %v3199 = vpop.f32.mrf.mxu0
    %3200 = vdwg.mxu0
    %v3201 = vmax.f32 %v2978, %v3195
    %v3202 = vmax.f32 %v2979, %v3198
    %3203 = vmatprep.subr.bf16.mxu0 0
    %3204 = vmatpush1.bf16.msra.mxu0 0
    %3205 = vmatprep.subr.bf16.mxu0 0
    %3206 = vmatpush1.bf16.msra.mxu0 0
    %3207 = vmatprep.subr.bf16.mxu0 0
    %3208 = vmatpush1.bf16.msra.mxu0 0
    %3209 = vmatprep.subr.bf16.mxu0 0
    %3210 = vmatpush1.bf16.msra.mxu0 0
    %3211 = vmatprep.subr.bf16.mxu0 0
    %3212 = vmatpush1.bf16.msra.mxu0 0
    %3213 = vmatprep.subr.bf16.mxu0 0
    %3214 = vmatpush1.bf16.msra.mxu0 0
    %3215 = vmatprep.subr.bf16.mxu0 0
    %3216 = vmatpush1.bf16.msra.mxu0 %v3159
    %3217 = vmatprep.subr.bf16.mxu0 0
    %3218 = vmatpush1.bf16.msra.mxu0 %v3158
    %3219 = vmatprep.subr.bf16.mxu0 0
    %3220 = vmatpush2.bf16.msra.mxu0 0
    %3221 = vmatprep.subr.bf16.mxu0 0
    %3222 = vmatpush2.bf16.msra.mxu0 0
    %3223 = vmatprep.subr.bf16.mxu0 0
    %3224 = vmatpush2.bf16.msra.mxu0 0
    %3225 = vmatprep.subr.bf16.mxu0 0
    %3226 = vmatpush2.bf16.msra.mxu0 0
    %3227 = vmatprep.subr.bf16.mxu0 0
    %3228 = vmatpush2.bf16.msra.mxu0 0
    %3229 = vmatprep.subr.bf16.mxu0 0
    %3230 = vmatpush2.bf16.msra.mxu0 0
    %3231 = vmatprep.subr.bf16.mxu0 0
    %3232 = vmatpush2.bf16.msra.mxu0 0
    %3233 = vmatprep.subr.bf16.mxu0 0
    %3234 = vmatpush2.bf16.msra.mxu0 0
    %3235 = vmatprep.mubr.bf16.mxu0 0
    %3236 = vmatmul.mubr.bf16.gmra.mxu0 %v2572
    %v3237 = vpop.f32.mrf.mxu0
    %v3238 = vadd.f32 0.0, %v3237
    %v3239 = vpop.f32.mrf.mxu0
    %v3240 = vpop.f32.mrf.mxu0
    %v3241 = vadd.f32 0.0, %v3240
    %v3242 = vpop.f32.mrf.mxu0
    %3243 = vdwg.mxu0
    %v3244 = vmax.f32 %v3201, %v3238
    %v3245 = vmax.f32 %v3202, %v3241
    %3246 = vmatprep.subr.bf16.mxu0 0
    %3247 = vmatpush1.bf16.msra.mxu0 0
    %3248 = vmatprep.subr.bf16.mxu0 0
    %3249 = vmatpush1.bf16.msra.mxu0 0
    %3250 = vmatprep.subr.bf16.mxu0 0
    %3251 = vmatpush1.bf16.msra.mxu0 0
    %3252 = vmatprep.subr.bf16.mxu0 0
    %3253 = vmatpush1.bf16.msra.mxu0 0
    %3254 = vmatprep.subr.bf16.mxu0 0
    %3255 = vmatpush1.bf16.msra.mxu0 0
    %3256 = vmatprep.subr.bf16.mxu0 0
    %3257 = vmatpush1.bf16.msra.mxu0 0
    %3258 = vmatprep.subr.bf16.mxu0 0
    %3259 = vmatpush1.bf16.msra.mxu0 %v3159
    %3260 = vmatprep.subr.bf16.mxu0 0
    %3261 = vmatpush1.bf16.msra.mxu0 %v3158
    %3262 = vmatprep.subr.bf16.mxu0 0
    %3263 = vmatpush2.bf16.msra.mxu0 0
    %3264 = vmatprep.subr.bf16.mxu0 0
    %3265 = vmatpush2.bf16.msra.mxu0 0
    %3266 = vmatprep.subr.bf16.mxu0 0
    %3267 = vmatpush2.bf16.msra.mxu0 0
    %3268 = vmatprep.subr.bf16.mxu0 0
    %3269 = vmatpush2.bf16.msra.mxu0 0
    %3270 = vmatprep.subr.bf16.mxu0 0
    %3271 = vmatpush2.bf16.msra.mxu0 0
    %3272 = vmatprep.subr.bf16.mxu0 0
    %3273 = vmatpush2.bf16.msra.mxu0 0
    %3274 = vmatprep.subr.bf16.mxu0 0
    %3275 = vmatpush2.bf16.msra.mxu0 0
    %3276 = vmatprep.subr.bf16.mxu0 0
    %3277 = vmatpush2.bf16.msra.mxu0 0
    %3278 = vmatprep.mubr.bf16.mxu0 0
    %3279 = vmatmul.mubr.bf16.gmra.mxu0 %v2626
    %v3280 = vpop.f32.mrf.mxu0
    %v3281 = vadd.f32 0.0, %v3280
    %v3282 = vpop.f32.mrf.mxu0
    %v3283 = vpop.f32.mrf.mxu0
    %v3284 = vadd.f32 0.0, %v3283
    %v3285 = vpop.f32.mrf.mxu0
    %3286 = vdwg.mxu0
    %v3287 = vmax.f32 %v3244, %v3281
    %v3288 = vmax.f32 %v3245, %v3284
    %v3289 = vpack.c.bf16 %v3288, %v3287
    %v3290 = vld [vmem:[#allocation10] sm:$0xf]
    %v3291 = vld [vmem:[#allocation10 + $0x4] sm:$0xf]
    %v3292 = vld [vmem:[#allocation10 + $0x8] sm:$0xf]
    %v3293 = vld [vmem:[#allocation10 + $0xc] sm:$0xf]
    %v3294 = vld [vmem:[#allocation10 + $0x10] sm:$0xf]
    %v3295 = vld [vmem:[#allocation10 + $0x14] sm:$0xf]
    %v3296 = vld [vmem:[#allocation10 + $0x18] sm:$0xf]
    %v3297 = vld [vmem:[#allocation10 + $0x1c] sm:$0xf]
    %v3298 = vld [vmem:[#allocation10 + $0x20] sm:$0xf]
    %v3299 = vld [vmem:[#allocation10 + $0x24] sm:$0xf]
    %v3300 = vld [vmem:[#allocation10 + $0x28] sm:$0xf]
    %v3301 = vld [vmem:[#allocation10 + $0x2c] sm:$0xf]
    %v3302 = vld [vmem:[#allocation10 + $0x30] sm:$0xf]
    %v3303 = vld [vmem:[#allocation10 + $0x34] sm:$0xf]
    %v3304 = vld [vmem:[#allocation10 + $0x38] sm:$0xf]
    %v3305 = vld [vmem:[#allocation10 + $0x3c] sm:$0xf]
    %v3322 = vunpack.c.l.b16 %v3290
    %v3323 = vunpack.c.l.b16 %v3291
    %v3324 = vunpack.c.l.b16 %v3292
    %v3325 = vunpack.c.l.b16 %v3293
    %v3326 = vunpack.c.l.b16 %v3294
    %v3327 = vunpack.c.l.b16 %v3295
    %v3328 = vunpack.c.l.b16 %v3296
    %v3329 = vunpack.c.l.b16 %v3297
    %v3330 = vunpack.c.l.b16 %v3298
    %v3331 = vunpack.c.l.b16 %v3299
    %v3332 = vunpack.c.l.b16 %v3300
    %v3333 = vunpack.c.l.b16 %v3301
    %v3334 = vunpack.c.l.b16 %v3302
    %v3335 = vunpack.c.l.b16 %v3303
    %v3336 = vunpack.c.l.b16 %v3304
    %v3337 = vunpack.c.l.b16 %v3305
    %v3338 = vpack.c.b16 %v3323, %v3322
    %v3339 = vpack.c.b16 %v3325, %v3324
    %v3340 = vpack.c.b16 %v3327, %v3326
    %v3341 = vpack.c.b16 %v3329, %v3328
    %v3342 = vpack.c.b16 %v3331, %v3330
    %v3343 = vpack.c.b16 %v3333, %v3332
    %v3344 = vpack.c.b16 %v3335, %v3334
    %v3345 = vpack.c.b16 %v3337, %v3336
    %3354 = vmatprep.subr.bf16.mxu0 0
    %3355 = vmatpush1.bf16.msra.mxu0 %v3345
    %3356 = vmatprep.subr.bf16.mxu0 0
    %3357 = vmatpush1.bf16.msra.mxu0 %v3344
    %3358 = vmatprep.subr.bf16.mxu0 0
    %3359 = vmatpush1.bf16.msra.mxu0 %v3343
    %3360 = vmatprep.subr.bf16.mxu0 0
    %3361 = vmatpush1.bf16.msra.mxu0 %v3342
    %3362 = vmatprep.subr.bf16.mxu0 0
    %3363 = vmatpush1.bf16.msra.mxu0 %v3341
    %3364 = vmatprep.subr.bf16.mxu0 0
    %3365 = vmatpush1.bf16.msra.mxu0 %v3340
    %3366 = vmatprep.subr.bf16.mxu0 0
    %3367 = vmatpush1.bf16.msra.mxu0 %v3339
    %3368 = vmatprep.subr.bf16.mxu0 0
    %3369 = vmatpush1.bf16.msra.mxu0 %v3338
    %3370 = vmatprep.subr.bf16.mxu0 0
    %3371 = vmatpush2.bf16.msra.mxu0 0
    %3372 = vmatprep.subr.bf16.mxu0 0
    %3373 = vmatpush2.bf16.msra.mxu0 0
    %3374 = vmatprep.subr.bf16.mxu0 0
    %3375 = vmatpush2.bf16.msra.mxu0 0
    %3376 = vmatprep.subr.bf16.mxu0 0
    %3377 = vmatpush2.bf16.msra.mxu0 0
    %3378 = vmatprep.subr.bf16.mxu0 0
    %3379 = vmatpush2.bf16.msra.mxu0 0
    %3380 = vmatprep.subr.bf16.mxu0 0
    %3381 = vmatpush2.bf16.msra.mxu0 0
    %3382 = vmatprep.subr.bf16.mxu0 0
    %3383 = vmatpush2.bf16.msra.mxu0 0
    %3384 = vmatprep.subr.bf16.mxu0 0
    %3385 = vmatpush2.bf16.msra.mxu0 0
    %3386 = vmatprep.mubr.bf16.mxu0 0
    %3387 = vmatmul.mubr.bf16.gmra.mxu0 %v3289
    %v3388 = vpop.f32.mrf.mxu0
    %v3389 = vadd.f32 0.0, %v3388
    %v3390 = vpop.f32.mrf.mxu0
    %v3391 = vpop.f32.mrf.mxu0
    %v3392 = vadd.f32 0.0, %v3391
    %v3393 = vpop.f32.mrf.mxu0
    %3394 = vdwg.mxu0
    %v3395 = vld [vmem:[#allocation8] sm:$0xf]
    %v3396 = vld [vmem:[#allocation8 + $0x4] sm:$0xf]
    %v3397 = vpack.c.bf16 %v3392, %v3389
    %s3398 = scalar_lea.vmem [#allocation10], 64
    %v3399 = vld [vmem:[%s3398] sm:$0xf]
    %v3400 = vld [vmem:[%s3398 + $0x4] sm:$0xf]
    %v3401 = vld [vmem:[%s3398 + $0x8] sm:$0xf]
    %v3402 = vld [vmem:[%s3398 + $0xc] sm:$0xf]
    %v3403 = vld [vmem:[%s3398 + $0x10] sm:$0xf]
    %v3404 = vld [vmem:[%s3398 + $0x14] sm:$0xf]
    %v3405 = vld [vmem:[%s3398 + $0x18] sm:$0xf]
    %v3406 = vld [vmem:[%s3398 + $0x1c] sm:$0xf]
    %v3407 = vld [vmem:[%s3398 + $0x20] sm:$0xf]
    %v3408 = vld [vmem:[%s3398 + $0x24] sm:$0xf]
    %v3409 = vld [vmem:[%s3398 + $0x28] sm:$0xf]
    %v3410 = vld [vmem:[%s3398 + $0x2c] sm:$0xf]
    %v3411 = vld [vmem:[%s3398 + $0x30] sm:$0xf]
    %v3412 = vld [vmem:[%s3398 + $0x34] sm:$0xf]
    %v3413 = vld [vmem:[%s3398 + $0x38] sm:$0xf]
    %v3414 = vld [vmem:[%s3398 + $0x3c] sm:$0xf]
    %v3431 = vunpack.c.l.b16 %v3399
    %v3432 = vunpack.c.l.b16 %v3400
    %v3433 = vunpack.c.l.b16 %v3401
    %v3434 = vunpack.c.l.b16 %v3402
    %v3435 = vunpack.c.l.b16 %v3403
    %v3436 = vunpack.c.l.b16 %v3404
    %v3437 = vunpack.c.l.b16 %v3405
    %v3438 = vunpack.c.l.b16 %v3406
    %v3439 = vunpack.c.l.b16 %v3407
    %v3440 = vunpack.c.l.b16 %v3408
    %v3441 = vunpack.c.l.b16 %v3409
    %v3442 = vunpack.c.l.b16 %v3410
    %v3443 = vunpack.c.l.b16 %v3411
    %v3444 = vunpack.c.l.b16 %v3412
    %v3445 = vunpack.c.l.b16 %v3413
    %v3446 = vunpack.c.l.b16 %v3414
    %v3447 = vpack.c.b16 %v3432, %v3431
    %v3448 = vpack.c.b16 %v3434, %v3433
    %v3449 = vpack.c.b16 %v3436, %v3435
    %v3450 = vpack.c.b16 %v3438, %v3437
    %v3451 = vpack.c.b16 %v3440, %v3439
    %v3452 = vpack.c.b16 %v3442, %v3441
    %v3453 = vpack.c.b16 %v3444, %v3443
    %v3454 = vpack.c.b16 %v3446, %v3445
    %3463 = vmatprep.subr.bf16.mxu0 0
    %3464 = vmatpush1.bf16.msra.mxu0 %v3454
    %3465 = vmatprep.subr.bf16.mxu0 0
    %3466 = vmatpush1.bf16.msra.mxu0 %v3453
    %3467 = vmatprep.subr.bf16.mxu0 0
    %3468 = vmatpush1.bf16.msra.mxu0 %v3452
    %3469 = vmatprep.subr.bf16.mxu0 0
    %3470 = vmatpush1.bf16.msra.mxu0 %v3451
    %3471 = vmatprep.subr.bf16.mxu0 0
    %3472 = vmatpush1.bf16.msra.mxu0 %v3450
    %3473 = vmatprep.subr.bf16.mxu0 0
    %3474 = vmatpush1.bf16.msra.mxu0 %v3449
    %3475 = vmatprep.subr.bf16.mxu0 0
    %3476 = vmatpush1.bf16.msra.mxu0 %v3448
    %3477 = vmatprep.subr.bf16.mxu0 0
    %3478 = vmatpush1.bf16.msra.mxu0 %v3447
    %3479 = vmatprep.subr.bf16.mxu0 0
    %3480 = vmatpush2.bf16.msra.mxu0 0
    %3481 = vmatprep.subr.bf16.mxu0 0
    %3482 = vmatpush2.bf16.msra.mxu0 0
    %3483 = vmatprep.subr.bf16.mxu0 0
    %3484 = vmatpush2.bf16.msra.mxu0 0
    %3485 = vmatprep.subr.bf16.mxu0 0
    %3486 = vmatpush2.bf16.msra.mxu0 0
    %3487 = vmatprep.subr.bf16.mxu0 0
    %3488 = vmatpush2.bf16.msra.mxu0 0
    %3489 = vmatprep.subr.bf16.mxu0 0
    %3490 = vmatpush2.bf16.msra.mxu0 0
    %3491 = vmatprep.subr.bf16.mxu0 0
    %3492 = vmatpush2.bf16.msra.mxu0 0
    %3493 = vmatprep.subr.bf16.mxu0 0
    %3494 = vmatpush2.bf16.msra.mxu0 0
    %3495 = vmatprep.mubr.bf16.mxu0 0
    %3496 = vmatmul.mubr.bf16.gmra.mxu0 %v3289
    %v3497 = vpop.f32.mrf.mxu0
    %v3498 = vadd.f32 0.0, %v3497
    %v3499 = vpop.f32.mrf.mxu0
    %v3500 = vpop.f32.mrf.mxu0
    %v3501 = vadd.f32 0.0, %v3500
    %v3502 = vpop.f32.mrf.mxu0
    %3503 = vdwg.mxu0
    %s3504 = scalar_lea.vmem [#allocation8], 8
    %v3505 = vld [vmem:[%s3504] sm:$0xf]
    %v3506 = vld [vmem:[%s3504 + $0x4] sm:$0xf]
    %v3507 = vpack.c.bf16 %v3501, %v3498
    %v3510 = vunpack.c.l.b16 %v3505
    %v3511 = vunpack.c.l.b16 %v3506
    %v3512 = vpack.c.b16 %v3511, %v3510
    %vm3513 = vcmask 130048
    %v3515 = vsel %vm3513, %v3512, 0
    %3517 = vmatprep.subr.bf16.mxu0 0
    %3518 = vmatpush1.bf16.msra.mxu0 0
    %3519 = vmatprep.subr.bf16.mxu0 0
    %3520 = vmatpush1.bf16.msra.mxu0 0
    %3521 = vmatprep.subr.bf16.mxu0 0
    %3522 = vmatpush1.bf16.msra.mxu0 0
    %3523 = vmatprep.subr.bf16.mxu0 0
    %3524 = vmatpush1.bf16.msra.mxu0 0
    %3525 = vmatprep.subr.bf16.mxu0 0
    %3526 = vmatpush1.bf16.msra.mxu0 0
    %3527 = vmatprep.subr.bf16.mxu0 0
    %3528 = vmatpush1.bf16.msra.mxu0 0
    %3529 = vmatprep.subr.bf16.mxu0 0
    %3530 = vmatpush1.bf16.msra.mxu0 0
    %3531 = vmatprep.subr.bf16.mxu0 0
    %3532 = vmatpush1.bf16.msra.mxu0 %v3507
    %3533 = vmatprep.subr.bf16.mxu0 0
    %3534 = vmatpush2.bf16.msra.mxu0 0
    %3535 = vmatprep.subr.bf16.mxu0 0
    %3536 = vmatpush2.bf16.msra.mxu0 0
    %3537 = vmatprep.subr.bf16.mxu0 0
    %3538 = vmatpush2.bf16.msra.mxu0 0
    %3539 = vmatprep.subr.bf16.mxu0 0
    %3540 = vmatpush2.bf16.msra.mxu0 0
    %3541 = vmatprep.subr.bf16.mxu0 0
    %3542 = vmatpush2.bf16.msra.mxu0 0
    %3543 = vmatprep.subr.bf16.mxu0 0
    %3544 = vmatpush2.bf16.msra.mxu0 0
    %3545 = vmatprep.subr.bf16.mxu0 0
    %3546 = vmatpush2.bf16.msra.mxu0 0
    %3547 = vmatprep.subr.bf16.mxu0 0
    %3548 = vmatpush2.bf16.msra.mxu0 0
    %3549 = vmatprep.mubr.bf16.mxu0 0
    %3550 = vmatmul.mubr.bf16.gmra.mxu0 %v3515
    %v3551 = vpop.f32.mrf.mxu0
    %v3552 = vadd.f32 0.0, %v3551
    %v3553 = vpop.f32.mrf.mxu0
    %v3554 = vpop.f32.mrf.mxu0
    %v3555 = vadd.f32 0.0, %v3554
    %v3556 = vpop.f32.mrf.mxu0
    %3557 = vdwg.mxu0
    %v3560 = vunpack.c.l.b16 %v3395
    %v3561 = vunpack.c.l.b16 %v3396
    %v3562 = vpack.c.b16 %v3561, %v3560
    %v3564 = vsel %vm3513, %v3562, 0
    %3566 = vmatprep.subr.bf16.mxu0 0
    %3567 = vmatpush1.bf16.msra.mxu0 0
    %3568 = vmatprep.subr.bf16.mxu0 0
    %3569 = vmatpush1.bf16.msra.mxu0 0
    %3570 = vmatprep.subr.bf16.mxu0 0
    %3571 = vmatpush1.bf16.msra.mxu0 0
    %3572 = vmatprep.subr.bf16.mxu0 0
    %3573 = vmatpush1.bf16.msra.mxu0 0
    %3574 = vmatprep.subr.bf16.mxu0 0
    %3575 = vmatpush1.bf16.msra.mxu0 0
    %3576 = vmatprep.subr.bf16.mxu0 0
    %3577 = vmatpush1.bf16.msra.mxu0 0
    %3578 = vmatprep.subr.bf16.mxu0 0
    %3579 = vmatpush1.bf16.msra.mxu0 0
    %3580 = vmatprep.subr.bf16.mxu0 0
    %3581 = vmatpush1.bf16.msra.mxu0 %v3397
    %3582 = vmatprep.subr.bf16.mxu0 0
    %3583 = vmatpush2.bf16.msra.mxu0 0
    %3584 = vmatprep.subr.bf16.mxu0 0
    %3585 = vmatpush2.bf16.msra.mxu0 0
    %3586 = vmatprep.subr.bf16.mxu0 0
    %3587 = vmatpush2.bf16.msra.mxu0 0
    %3588 = vmatprep.subr.bf16.mxu0 0
    %3589 = vmatpush2.bf16.msra.mxu0 0
    %3590 = vmatprep.subr.bf16.mxu0 0
    %3591 = vmatpush2.bf16.msra.mxu0 0
    %3592 = vmatprep.subr.bf16.mxu0 0
    %3593 = vmatpush2.bf16.msra.mxu0 0
    %3594 = vmatprep.subr.bf16.mxu0 0
    %3595 = vmatpush2.bf16.msra.mxu0 0
    %3596 = vmatprep.subr.bf16.mxu0 0
    %3597 = vmatpush2.bf16.msra.mxu0 0
    %3598 = vmatprep.mubr.bf16.mxu0 0
    %3599 = vmatmul.mubr.bf16.gmra.mxu0 %v3564
    %v3600 = vpop.f32.mrf.mxu0
    %v3601 = vadd.f32 %v3552, %v3600
    %v3602 = vpop.f32.mrf.mxu0
    %v3603 = vpop.f32.mrf.mxu0
    %v3604 = vadd.f32 %v3555, %v3603
    %v3605 = vpop.f32.mrf.mxu0
    %3606 = vdwg.mxu0
    %s3607 = scalar_lea.vmem [#allocation10], 128
    %v3608 = vld [vmem:[%s3607] sm:$0xf]
    %v3609 = vld [vmem:[%s3607 + $0x4] sm:$0xf]
    %v3610 = vld [vmem:[%s3607 + $0x8] sm:$0xf]
    %v3611 = vld [vmem:[%s3607 + $0xc] sm:$0xf]
    %v3612 = vld [vmem:[%s3607 + $0x10] sm:$0xf]
    %v3613 = vld [vmem:[%s3607 + $0x14] sm:$0xf]
    %v3614 = vld [vmem:[%s3607 + $0x18] sm:$0xf]
    %v3615 = vld [vmem:[%s3607 + $0x1c] sm:$0xf]
    %v3616 = vld [vmem:[%s3607 + $0x20] sm:$0xf]
    %v3617 = vld [vmem:[%s3607 + $0x24] sm:$0xf]
    %v3618 = vld [vmem:[%s3607 + $0x28] sm:$0xf]
    %v3619 = vld [vmem:[%s3607 + $0x2c] sm:$0xf]
    %v3620 = vld [vmem:[%s3607 + $0x30] sm:$0xf]
    %v3621 = vld [vmem:[%s3607 + $0x34] sm:$0xf]
    %v3622 = vld [vmem:[%s3607 + $0x38] sm:$0xf]
    %v3623 = vld [vmem:[%s3607 + $0x3c] sm:$0xf]
    %v3640 = vunpack.c.l.b16 %v3608
    %v3641 = vunpack.c.l.b16 %v3609
    %v3642 = vunpack.c.l.b16 %v3610
    %v3643 = vunpack.c.l.b16 %v3611
    %v3644 = vunpack.c.l.b16 %v3612
    %v3645 = vunpack.c.l.b16 %v3613
    %v3646 = vunpack.c.l.b16 %v3614
    %v3647 = vunpack.c.l.b16 %v3615
    %v3648 = vunpack.c.l.b16 %v3616
    %v3649 = vunpack.c.l.b16 %v3617
    %v3650 = vunpack.c.l.b16 %v3618
    %v3651 = vunpack.c.l.b16 %v3619
    %v3652 = vunpack.c.l.b16 %v3620
    %v3653 = vunpack.c.l.b16 %v3621
    %v3654 = vunpack.c.l.b16 %v3622
    %v3655 = vunpack.c.l.b16 %v3623
    %v3656 = vpack.c.b16 %v3641, %v3640
    %v3657 = vpack.c.b16 %v3643, %v3642
    %v3658 = vpack.c.b16 %v3645, %v3644
    %v3659 = vpack.c.b16 %v3647, %v3646
    %v3660 = vpack.c.b16 %v3649, %v3648
    %v3661 = vpack.c.b16 %v3651, %v3650
    %v3662 = vpack.c.b16 %v3653, %v3652
    %v3663 = vpack.c.b16 %v3655, %v3654
    %3672 = vmatprep.subr.bf16.mxu0 0
    %3673 = vmatpush1.bf16.msra.mxu0 %v3663
    %3674 = vmatprep.subr.bf16.mxu0 0
    %3675 = vmatpush1.bf16.msra.mxu0 %v3662
    %3676 = vmatprep.subr.bf16.mxu0 0
    %3677 = vmatpush1.bf16.msra.mxu0 %v3661
    %3678 = vmatprep.subr.bf16.mxu0 0
    %3679 = vmatpush1.bf16.msra.mxu0 %v3660
    %3680 = vmatprep.subr.bf16.mxu0 0
    %3681 = vmatpush1.bf16.msra.mxu0 %v3659
    %3682 = vmatprep.subr.bf16.mxu0 0
    %3683 = vmatpush1.bf16.msra.mxu0 %v3658
    %3684 = vmatprep.subr.bf16.mxu0 0
    %3685 = vmatpush1.bf16.msra.mxu0 %v3657
    %3686 = vmatprep.subr.bf16.mxu0 0
    %3687 = vmatpush1.bf16.msra.mxu0 %v3656
    %3688 = vmatprep.subr.bf16.mxu0 0
    %3689 = vmatpush2.bf16.msra.mxu0 0
    %3690 = vmatprep.subr.bf16.mxu0 0
    %3691 = vmatpush2.bf16.msra.mxu0 0
    %3692 = vmatprep.subr.bf16.mxu0 0
    %3693 = vmatpush2.bf16.msra.mxu0 0
    %3694 = vmatprep.subr.bf16.mxu0 0
    %3695 = vmatpush2.bf16.msra.mxu0 0
    %3696 = vmatprep.subr.bf16.mxu0 0
    %3697 = vmatpush2.bf16.msra.mxu0 0
    %3698 = vmatprep.subr.bf16.mxu0 0
    %3699 = vmatpush2.bf16.msra.mxu0 0
    %3700 = vmatprep.subr.bf16.mxu0 0
    %3701 = vmatpush2.bf16.msra.mxu0 0
    %3702 = vmatprep.subr.bf16.mxu0 0
    %3703 = vmatpush2.bf16.msra.mxu0 0
    %3704 = vmatprep.mubr.bf16.mxu0 0
    %3705 = vmatmul.mubr.bf16.gmra.mxu0 %v3289
    %v3706 = vpop.f32.mrf.mxu0
    %v3707 = vadd.f32 0.0, %v3706
    %v3708 = vpop.f32.mrf.mxu0
    %v3709 = vpop.f32.mrf.mxu0
    %v3710 = vadd.f32 0.0, %v3709
    %v3711 = vpop.f32.mrf.mxu0
    %3712 = vdwg.mxu0
    %s3713 = scalar_lea.vmem [#allocation8], 16
    %v3714 = vld [vmem:[%s3713] sm:$0xf]
    %v3715 = vld [vmem:[%s3713 + $0x4] sm:$0xf]
    %v3716 = vpack.c.bf16 %v3710, %v3707
    %v3719 = vunpack.c.l.b16 %v3714
    %v3720 = vunpack.c.l.b16 %v3715
    %v3721 = vpack.c.b16 %v3720, %v3719
    %v3723 = vsel %vm3513, %v3721, 0
    %3725 = vmatprep.subr.bf16.mxu0 0
    %3726 = vmatpush1.bf16.msra.mxu0 0
    %3727 = vmatprep.subr.bf16.mxu0 0
    %3728 = vmatpush1.bf16.msra.mxu0 0
    %3729 = vmatprep.subr.bf16.mxu0 0
    %3730 = vmatpush1.bf16.msra.mxu0 0
    %3731 = vmatprep.subr.bf16.mxu0 0
    %3732 = vmatpush1.bf16.msra.mxu0 0
    %3733 = vmatprep.subr.bf16.mxu0 0
    %3734 = vmatpush1.bf16.msra.mxu0 0
    %3735 = vmatprep.subr.bf16.mxu0 0
    %3736 = vmatpush1.bf16.msra.mxu0 0
    %3737 = vmatprep.subr.bf16.mxu0 0
    %3738 = vmatpush1.bf16.msra.mxu0 0
    %3739 = vmatprep.subr.bf16.mxu0 0
    %3740 = vmatpush1.bf16.msra.mxu0 %v3716
    %3741 = vmatprep.subr.bf16.mxu0 0
    %3742 = vmatpush2.bf16.msra.mxu0 0
    %3743 = vmatprep.subr.bf16.mxu0 0
    %3744 = vmatpush2.bf16.msra.mxu0 0
    %3745 = vmatprep.subr.bf16.mxu0 0
    %3746 = vmatpush2.bf16.msra.mxu0 0
    %3747 = vmatprep.subr.bf16.mxu0 0
    %3748 = vmatpush2.bf16.msra.mxu0 0
    %3749 = vmatprep.subr.bf16.mxu0 0
    %3750 = vmatpush2.bf16.msra.mxu0 0
    %3751 = vmatprep.subr.bf16.mxu0 0
    %3752 = vmatpush2.bf16.msra.mxu0 0
    %3753 = vmatprep.subr.bf16.mxu0 0
    %3754 = vmatpush2.bf16.msra.mxu0 0
    %3755 = vmatprep.subr.bf16.mxu0 0
    %3756 = vmatpush2.bf16.msra.mxu0 0
    %3757 = vmatprep.mubr.bf16.mxu0 0
    %3758 = vmatmul.mubr.bf16.gmra.mxu0 %v3723
    %v3759 = vpop.f32.mrf.mxu0
    %v3760 = vadd.f32 0.0, %v3759
    %v3761 = vpop.f32.mrf.mxu0
    %v3762 = vpop.f32.mrf.mxu0
    %v3763 = vadd.f32 0.0, %v3762
    %v3764 = vpop.f32.mrf.mxu0
    %3765 = vdwg.mxu0
    %v3766 = vadd.f32 %v3601, %v3760
    %v3767 = vadd.f32 %v3604, %v3763
    %v3768 = vld [vmem:[%s17] sm:$0x1]
    %v3770 = vlaneseq
    %v3771 = vshrl.u32 %v3770, 7
    %v3772 = vsub.s32 0, %v3771
    %v3773 = vrot.slane %v3768, %v3772
    %v3775 = vadd.f32 %v3766, %v3773
    %v3776 = vadd.f32 %v3767, %v3773
    %v3777 = vmax.f32 %v3775, 0.0
    %v3778 = vmax.f32 %v3776, 0.0
    %v3779 = vpack.c.bf16 %v3778, %v3777
    %v3780 = vld [vmem:[#allocation13] sm:$0xf]
    %v3781 = vld [vmem:[#allocation13 + $0x4] sm:$0xf]
    %v3782 = vld [vmem:[#allocation13 + $0x8] sm:$0xf]
    %v3783 = vld [vmem:[#allocation13 + $0xc] sm:$0xf]
    %v3784 = vld [vmem:[#allocation13 + $0x10] sm:$0xf]
    %v3785 = vld [vmem:[#allocation13 + $0x14] sm:$0xf]
    %v3786 = vld [vmem:[#allocation13 + $0x18] sm:$0xf]
    %v3787 = vld [vmem:[#allocation13 + $0x1c] sm:$0xf]
    %v3788 = vld [vmem:[#allocation13 + $0x20] sm:$0xf]
    %v3789 = vld [vmem:[#allocation13 + $0x24] sm:$0xf]
    %v3790 = vld [vmem:[#allocation13 + $0x28] sm:$0xf]
    %v3791 = vld [vmem:[#allocation13 + $0x2c] sm:$0xf]
    %v3792 = vld [vmem:[#allocation13 + $0x30] sm:$0xf]
    %v3793 = vld [vmem:[#allocation13 + $0x34] sm:$0xf]
    %v3794 = vld [vmem:[#allocation13 + $0x38] sm:$0xf]
    %v3795 = vld [vmem:[#allocation13 + $0x3c] sm:$0xf]
    %v3812 = vunpack.c.l.b16 %v3780
    %v3813 = vunpack.c.l.b16 %v3781
    %v3814 = vunpack.c.l.b16 %v3782
    %v3815 = vunpack.c.l.b16 %v3783
    %v3816 = vunpack.c.l.b16 %v3784
    %v3817 = vunpack.c.l.b16 %v3785
    %v3818 = vunpack.c.l.b16 %v3786
    %v3819 = vunpack.c.l.b16 %v3787
    %v3820 = vunpack.c.l.b16 %v3788
    %v3821 = vunpack.c.l.b16 %v3789
    %v3822 = vunpack.c.l.b16 %v3790
    %v3823 = vunpack.c.l.b16 %v3791
    %v3824 = vunpack.c.l.b16 %v3792
    %v3825 = vunpack.c.l.b16 %v3793
    %v3826 = vunpack.c.l.b16 %v3794
    %v3827 = vunpack.c.l.b16 %v3795
    %v3828 = vpack.c.b16 %v3813, %v3812
    %v3829 = vpack.c.b16 %v3815, %v3814
    %v3830 = vpack.c.b16 %v3817, %v3816
    %v3831 = vpack.c.b16 %v3819, %v3818
    %v3832 = vpack.c.b16 %v3821, %v3820
    %v3833 = vpack.c.b16 %v3823, %v3822
    %v3834 = vpack.c.b16 %v3825, %v3824
    %v3835 = vpack.c.b16 %v3827, %v3826
    %3844 = vmatprep.subr.bf16.mxu0 0
    %3845 = vmatpush1.bf16.msra.mxu0 %v3835
    %3846 = vmatprep.subr.bf16.mxu0 0
    %3847 = vmatpush1.bf16.msra.mxu0 %v3834
    %3848 = vmatprep.subr.bf16.mxu0 0
    %3849 = vmatpush1.bf16.msra.mxu0 %v3833
    %3850 = vmatprep.subr.bf16.mxu0 0
    %3851 = vmatpush1.bf16.msra.mxu0 %v3832
    %3852 = vmatprep.subr.bf16.mxu0 0
    %3853 = vmatpush1.bf16.msra.mxu0 %v3831
    %3854 = vmatprep.subr.bf16.mxu0 0
    %3855 = vmatpush1.bf16.msra.mxu0 %v3830
    %3856 = vmatprep.subr.bf16.mxu0 0
    %3857 = vmatpush1.bf16.msra.mxu0 %v3829
    %3858 = vmatprep.subr.bf16.mxu0 0
    %3859 = vmatpush1.bf16.msra.mxu0 %v3828
    %3860 = vmatprep.subr.bf16.mxu0 0
    %3861 = vmatpush2.bf16.msra.mxu0 0
    %3862 = vmatprep.subr.bf16.mxu0 0
    %3863 = vmatpush2.bf16.msra.mxu0 0
    %3864 = vmatprep.subr.bf16.mxu0 0
    %3865 = vmatpush2.bf16.msra.mxu0 0
    %3866 = vmatprep.subr.bf16.mxu0 0
    %3867 = vmatpush2.bf16.msra.mxu0 0
    %3868 = vmatprep.subr.bf16.mxu0 0
    %3869 = vmatpush2.bf16.msra.mxu0 0
    %3870 = vmatprep.subr.bf16.mxu0 0
    %3871 = vmatpush2.bf16.msra.mxu0 0
    %3872 = vmatprep.subr.bf16.mxu0 0
    %3873 = vmatpush2.bf16.msra.mxu0 0
    %3874 = vmatprep.subr.bf16.mxu0 0
    %3875 = vmatpush2.bf16.msra.mxu0 0
    %3876 = vmatprep.mubr.bf16.mxu0 0
    %3877 = vmatmul.mubr.bf16.gmra.mxu0 %v3779
    %v3878 = vpop.f32.mrf.mxu0
    %v3879 = vadd.f32 0.0, %v3878
    %v3880 = vpop.f32.mrf.mxu0
    %v3881 = vpop.f32.mrf.mxu0
    %v3882 = vadd.f32 0.0, %v3881
    %v3883 = vpop.f32.mrf.mxu0
    %3884 = vdwg.mxu0
    %v3885 = vld [vmem:[#allocation11] sm:$0xf]
    %v3886 = vld [vmem:[#allocation11 + $0x4] sm:$0xf]
    %v3887 = vpack.c.bf16 %v3882, %v3879
    %s3888 = scalar_lea.vmem [#allocation13], 64
    %v3889 = vld [vmem:[%s3888] sm:$0xf]
    %v3890 = vld [vmem:[%s3888 + $0x4] sm:$0xf]
    %v3891 = vld [vmem:[%s3888 + $0x8] sm:$0xf]
    %v3892 = vld [vmem:[%s3888 + $0xc] sm:$0xf]
    %v3893 = vld [vmem:[%s3888 + $0x10] sm:$0xf]
    %v3894 = vld [vmem:[%s3888 + $0x14] sm:$0xf]
    %v3895 = vld [vmem:[%s3888 + $0x18] sm:$0xf]
    %v3896 = vld [vmem:[%s3888 + $0x1c] sm:$0xf]
    %v3897 = vld [vmem:[%s3888 + $0x20] sm:$0xf]
    %v3898 = vld [vmem:[%s3888 + $0x24] sm:$0xf]
    %v3899 = vld [vmem:[%s3888 + $0x28] sm:$0xf]
    %v3900 = vld [vmem:[%s3888 + $0x2c] sm:$0xf]
    %v3901 = vld [vmem:[%s3888 + $0x30] sm:$0xf]
    %v3902 = vld [vmem:[%s3888 + $0x34] sm:$0xf]
    %v3903 = vld [vmem:[%s3888 + $0x38] sm:$0xf]
    %v3904 = vld [vmem:[%s3888 + $0x3c] sm:$0xf]
    %v3921 = vunpack.c.l.b16 %v3889
    %v3922 = vunpack.c.l.b16 %v3890
    %v3923 = vunpack.c.l.b16 %v3891
    %v3924 = vunpack.c.l.b16 %v3892
    %v3925 = vunpack.c.l.b16 %v3893
    %v3926 = vunpack.c.l.b16 %v3894
    %v3927 = vunpack.c.l.b16 %v3895
    %v3928 = vunpack.c.l.b16 %v3896
    %v3929 = vunpack.c.l.b16 %v3897
    %v3930 = vunpack.c.l.b16 %v3898
    %v3931 = vunpack.c.l.b16 %v3899
    %v3932 = vunpack.c.l.b16 %v3900
    %v3933 = vunpack.c.l.b16 %v3901
    %v3934 = vunpack.c.l.b16 %v3902
    %v3935 = vunpack.c.l.b16 %v3903
    %v3936 = vunpack.c.l.b16 %v3904
    %v3937 = vpack.c.b16 %v3922, %v3921
    %v3938 = vpack.c.b16 %v3924, %v3923
    %v3939 = vpack.c.b16 %v3926, %v3925
    %v3940 = vpack.c.b16 %v3928, %v3927
    %v3941 = vpack.c.b16 %v3930, %v3929
    %v3942 = vpack.c.b16 %v3932, %v3931
    %v3943 = vpack.c.b16 %v3934, %v3933
    %v3944 = vpack.c.b16 %v3936, %v3935
    %3953 = vmatprep.subr.bf16.mxu0 0
    %3954 = vmatpush1.bf16.msra.mxu0 %v3944
    %3955 = vmatprep.subr.bf16.mxu0 0
    %3956 = vmatpush1.bf16.msra.mxu0 %v3943
    %3957 = vmatprep.subr.bf16.mxu0 0
    %3958 = vmatpush1.bf16.msra.mxu0 %v3942
    %3959 = vmatprep.subr.bf16.mxu0 0
    %3960 = vmatpush1.bf16.msra.mxu0 %v3941
    %3961 = vmatprep.subr.bf16.mxu0 0
    %3962 = vmatpush1.bf16.msra.mxu0 %v3940
    %3963 = vmatprep.subr.bf16.mxu0 0
    %3964 = vmatpush1.bf16.msra.mxu0 %v3939
    %3965 = vmatprep.subr.bf16.mxu0 0
    %3966 = vmatpush1.bf16.msra.mxu0 %v3938
    %3967 = vmatprep.subr.bf16.mxu0 0
    %3968 = vmatpush1.bf16.msra.mxu0 %v3937
    %3969 = vmatprep.subr.bf16.mxu0 0
    %3970 = vmatpush2.bf16.msra.mxu0 0
    %3971 = vmatprep.subr.bf16.mxu0 0
    %3972 = vmatpush2.bf16.msra.mxu0 0
    %3973 = vmatprep.subr.bf16.mxu0 0
    %3974 = vmatpush2.bf16.msra.mxu0 0
    %3975 = vmatprep.subr.bf16.mxu0 0
    %3976 = vmatpush2.bf16.msra.mxu0 0
    %3977 = vmatprep.subr.bf16.mxu0 0
    %3978 = vmatpush2.bf16.msra.mxu0 0
    %3979 = vmatprep.subr.bf16.mxu0 0
    %3980 = vmatpush2.bf16.msra.mxu0 0
    %3981 = vmatprep.subr.bf16.mxu0 0
    %3982 = vmatpush2.bf16.msra.mxu0 0
    %3983 = vmatprep.subr.bf16.mxu0 0
    %3984 = vmatpush2.bf16.msra.mxu0 0
    %3985 = vmatprep.mubr.bf16.mxu0 0
    %3986 = vmatmul.mubr.bf16.gmra.mxu0 %v3779
    %v3987 = vpop.f32.mrf.mxu0
    %v3988 = vadd.f32 0.0, %v3987
    %v3989 = vpop.f32.mrf.mxu0
    %v3990 = vpop.f32.mrf.mxu0
    %v3991 = vadd.f32 0.0, %v3990
    %v3992 = vpop.f32.mrf.mxu0
    %3993 = vdwg.mxu0
    %s3994 = scalar_lea.vmem [#allocation11], 8
    %v3995 = vld [vmem:[%s3994] sm:$0xf]
    %v3996 = vld [vmem:[%s3994 + $0x4] sm:$0xf]
    %v3997 = vpack.c.bf16 %v3991, %v3988
    %v4000 = vunpack.c.l.b16 %v3995
    %v4001 = vunpack.c.l.b16 %v3996
    %v4002 = vpack.c.b16 %v4001, %v4000
    %v4004 = vsel %vm3513, %v4002, 0
    %4006 = vmatprep.subr.bf16.mxu0 0
    %4007 = vmatpush1.bf16.msra.mxu0 0
    %4008 = vmatprep.subr.bf16.mxu0 0
    %4009 = vmatpush1.bf16.msra.mxu0 0
    %4010 = vmatprep.subr.bf16.mxu0 0
    %4011 = vmatpush1.bf16.msra.mxu0 0
    %4012 = vmatprep.subr.bf16.mxu0 0
    %4013 = vmatpush1.bf16.msra.mxu0 0
    %4014 = vmatprep.subr.bf16.mxu0 0
    %4015 = vmatpush1.bf16.msra.mxu0 0
    %4016 = vmatprep.subr.bf16.mxu0 0
    %4017 = vmatpush1.bf16.msra.mxu0 0
    %4018 = vmatprep.subr.bf16.mxu0 0
    %4019 = vmatpush1.bf16.msra.mxu0 0
    %4020 = vmatprep.subr.bf16.mxu0 0
    %4021 = vmatpush1.bf16.msra.mxu0 %v3997
    %4022 = vmatprep.subr.bf16.mxu0 0
    %4023 = vmatpush2.bf16.msra.mxu0 0
    %4024 = vmatprep.subr.bf16.mxu0 0
    %4025 = vmatpush2.bf16.msra.mxu0 0
    %4026 = vmatprep.subr.bf16.mxu0 0
    %4027 = vmatpush2.bf16.msra.mxu0 0
    %4028 = vmatprep.subr.bf16.mxu0 0
    %4029 = vmatpush2.bf16.msra.mxu0 0
    %4030 = vmatprep.subr.bf16.mxu0 0
    %4031 = vmatpush2.bf16.msra.mxu0 0
    %4032 = vmatprep.subr.bf16.mxu0 0
    %4033 = vmatpush2.bf16.msra.mxu0 0
    %4034 = vmatprep.subr.bf16.mxu0 0
    %4035 = vmatpush2.bf16.msra.mxu0 0
    %4036 = vmatprep.subr.bf16.mxu0 0
    %4037 = vmatpush2.bf16.msra.mxu0 0
    %4038 = vmatprep.mubr.bf16.mxu0 0
    %4039 = vmatmul.mubr.bf16.gmra.mxu0 %v4004
    %v4040 = vpop.f32.mrf.mxu0
    %v4041 = vadd.f32 0.0, %v4040
    %v4042 = vpop.f32.mrf.mxu0
    %v4043 = vpop.f32.mrf.mxu0
    %v4044 = vadd.f32 0.0, %v4043
    %v4045 = vpop.f32.mrf.mxu0
    %4046 = vdwg.mxu0
    %v4049 = vunpack.c.l.b16 %v3885
    %v4050 = vunpack.c.l.b16 %v3886
    %v4051 = vpack.c.b16 %v4050, %v4049
    %v4053 = vsel %vm3513, %v4051, 0
    %4055 = vmatprep.subr.bf16.mxu0 0
    %4056 = vmatpush1.bf16.msra.mxu0 0
    %4057 = vmatprep.subr.bf16.mxu0 0
    %4058 = vmatpush1.bf16.msra.mxu0 0
    %4059 = vmatprep.subr.bf16.mxu0 0
    %4060 = vmatpush1.bf16.msra.mxu0 0
    %4061 = vmatprep.subr.bf16.mxu0 0
    %4062 = vmatpush1.bf16.msra.mxu0 0
    %4063 = vmatprep.subr.bf16.mxu0 0
    %4064 = vmatpush1.bf16.msra.mxu0 0
    %4065 = vmatprep.subr.bf16.mxu0 0
    %4066 = vmatpush1.bf16.msra.mxu0 0
    %4067 = vmatprep.subr.bf16.mxu0 0
    %4068 = vmatpush1.bf16.msra.mxu0 0
    %4069 = vmatprep.subr.bf16.mxu0 0
    %4070 = vmatpush1.bf16.msra.mxu0 %v3887
    %4071 = vmatprep.subr.bf16.mxu0 0
    %4072 = vmatpush2.bf16.msra.mxu0 0
    %4073 = vmatprep.subr.bf16.mxu0 0
    %4074 = vmatpush2.bf16.msra.mxu0 0
    %4075 = vmatprep.subr.bf16.mxu0 0
    %4076 = vmatpush2.bf16.msra.mxu0 0
    %4077 = vmatprep.subr.bf16.mxu0 0
    %4078 = vmatpush2.bf16.msra.mxu0 0
    %4079 = vmatprep.subr.bf16.mxu0 0
    %4080 = vmatpush2.bf16.msra.mxu0 0
    %4081 = vmatprep.subr.bf16.mxu0 0
    %4082 = vmatpush2.bf16.msra.mxu0 0
    %4083 = vmatprep.subr.bf16.mxu0 0
    %4084 = vmatpush2.bf16.msra.mxu0 0
    %4085 = vmatprep.subr.bf16.mxu0 0
    %4086 = vmatpush2.bf16.msra.mxu0 0
    %4087 = vmatprep.mubr.bf16.mxu0 0
    %4088 = vmatmul.mubr.bf16.gmra.mxu0 %v4053
    %v4089 = vpop.f32.mrf.mxu0
    %v4090 = vadd.f32 %v4041, %v4089
    %v4091 = vpop.f32.mrf.mxu0
    %v4092 = vpop.f32.mrf.mxu0
    %v4093 = vadd.f32 %v4044, %v4092
    %v4094 = vpop.f32.mrf.mxu0
    %4095 = vdwg.mxu0
    %s4096 = scalar_lea.vmem [#allocation13], 128
    %v4097 = vld [vmem:[%s4096] sm:$0xf]
    %v4098 = vld [vmem:[%s4096 + $0x4] sm:$0xf]
    %v4099 = vld [vmem:[%s4096 + $0x8] sm:$0xf]
    %v4100 = vld [vmem:[%s4096 + $0xc] sm:$0xf]
    %v4101 = vld [vmem:[%s4096 + $0x10] sm:$0xf]
    %v4102 = vld [vmem:[%s4096 + $0x14] sm:$0xf]
    %v4103 = vld [vmem:[%s4096 + $0x18] sm:$0xf]
    %v4104 = vld [vmem:[%s4096 + $0x1c] sm:$0xf]
    %v4105 = vld [vmem:[%s4096 + $0x20] sm:$0xf]
    %v4106 = vld [vmem:[%s4096 + $0x24] sm:$0xf]
    %v4107 = vld [vmem:[%s4096 + $0x28] sm:$0xf]
    %v4108 = vld [vmem:[%s4096 + $0x2c] sm:$0xf]
    %v4109 = vld [vmem:[%s4096 + $0x30] sm:$0xf]
    %v4110 = vld [vmem:[%s4096 + $0x34] sm:$0xf]
    %v4111 = vld [vmem:[%s4096 + $0x38] sm:$0xf]
    %v4112 = vld [vmem:[%s4096 + $0x3c] sm:$0xf]
    %v4129 = vunpack.c.l.b16 %v4097
    %v4130 = vunpack.c.l.b16 %v4098
    %v4131 = vunpack.c.l.b16 %v4099
    %v4132 = vunpack.c.l.b16 %v4100
    %v4133 = vunpack.c.l.b16 %v4101
    %v4134 = vunpack.c.l.b16 %v4102
    %v4135 = vunpack.c.l.b16 %v4103
    %v4136 = vunpack.c.l.b16 %v4104
    %v4137 = vunpack.c.l.b16 %v4105
    %v4138 = vunpack.c.l.b16 %v4106
    %v4139 = vunpack.c.l.b16 %v4107
    %v4140 = vunpack.c.l.b16 %v4108
    %v4141 = vunpack.c.l.b16 %v4109
    %v4142 = vunpack.c.l.b16 %v4110
    %v4143 = vunpack.c.l.b16 %v4111
    %v4144 = vunpack.c.l.b16 %v4112
    %v4145 = vpack.c.b16 %v4130, %v4129
    %v4146 = vpack.c.b16 %v4132, %v4131
    %v4147 = vpack.c.b16 %v4134, %v4133
    %v4148 = vpack.c.b16 %v4136, %v4135
    %v4149 = vpack.c.b16 %v4138, %v4137
    %v4150 = vpack.c.b16 %v4140, %v4139
    %v4151 = vpack.c.b16 %v4142, %v4141
    %v4152 = vpack.c.b16 %v4144, %v4143
    %4161 = vmatprep.subr.bf16.mxu0 0
    %4162 = vmatpush1.bf16.msra.mxu0 %v4152
    %4163 = vmatprep.subr.bf16.mxu0 0
    %4164 = vmatpush1.bf16.msra.mxu0 %v4151
    %4165 = vmatprep.subr.bf16.mxu0 0
    %4166 = vmatpush1.bf16.msra.mxu0 %v4150
    %4167 = vmatprep.subr.bf16.mxu0 0
    %4168 = vmatpush1.bf16.msra.mxu0 %v4149
    %4169 = vmatprep.subr.bf16.mxu0 0
    %4170 = vmatpush1.bf16.msra.mxu0 %v4148
    %4171 = vmatprep.subr.bf16.mxu0 0
    %4172 = vmatpush1.bf16.msra.mxu0 %v4147
    %4173 = vmatprep.subr.bf16.mxu0 0
    %4174 = vmatpush1.bf16.msra.mxu0 %v4146
    %4175 = vmatprep.subr.bf16.mxu0 0
    %4176 = vmatpush1.bf16.msra.mxu0 %v4145
    %4177 = vmatprep.subr.bf16.mxu0 0
    %4178 = vmatpush2.bf16.msra.mxu0 0
    %4179 = vmatprep.subr.bf16.mxu0 0
    %4180 = vmatpush2.bf16.msra.mxu0 0
    %4181 = vmatprep.subr.bf16.mxu0 0
    %4182 = vmatpush2.bf16.msra.mxu0 0
    %4183 = vmatprep.subr.bf16.mxu0 0
    %4184 = vmatpush2.bf16.msra.mxu0 0
    %4185 = vmatprep.subr.bf16.mxu0 0
    %4186 = vmatpush2.bf16.msra.mxu0 0
    %4187 = vmatprep.subr.bf16.mxu0 0
    %4188 = vmatpush2.bf16.msra.mxu0 0
    %4189 = vmatprep.subr.bf16.mxu0 0
    %4190 = vmatpush2.bf16.msra.mxu0 0
    %4191 = vmatprep.subr.bf16.mxu0 0
    %4192 = vmatpush2.bf16.msra.mxu0 0
    %4193 = vmatprep.mubr.bf16.mxu0 0
    %4194 = vmatmul.mubr.bf16.gmra.mxu0 %v3779
    %v4195 = vpop.f32.mrf.mxu0
    %v4196 = vadd.f32 0.0, %v4195
    %v4197 = vpop.f32.mrf.mxu0
    %v4198 = vpop.f32.mrf.mxu0
    %v4199 = vadd.f32 0.0, %v4198
    %v4200 = vpop.f32.mrf.mxu0
    %4201 = vdwg.mxu0
    %s4202 = scalar_lea.vmem [#allocation11], 16
    %v4203 = vld [vmem:[%s4202] sm:$0xf]
    %v4204 = vld [vmem:[%s4202 + $0x4] sm:$0xf]
    %v4205 = vpack.c.bf16 %v4199, %v4196
    %v4208 = vunpack.c.l.b16 %v4203
    %v4209 = vunpack.c.l.b16 %v4204
    %v4210 = vpack.c.b16 %v4209, %v4208
    %v4212 = vsel %vm3513, %v4210, 0
    %4214 = vmatprep.subr.bf16.mxu0 0
    %4215 = vmatpush1.bf16.msra.mxu0 0
    %4216 = vmatprep.subr.bf16.mxu0 0
    %4217 = vmatpush1.bf16.msra.mxu0 0
    %4218 = vmatprep.subr.bf16.mxu0 0
    %4219 = vmatpush1.bf16.msra.mxu0 0
    %4220 = vmatprep.subr.bf16.mxu0 0
    %4221 = vmatpush1.bf16.msra.mxu0 0
    %4222 = vmatprep.subr.bf16.mxu0 0
    %4223 = vmatpush1.bf16.msra.mxu0 0
    %4224 = vmatprep.subr.bf16.mxu0 0
    %4225 = vmatpush1.bf16.msra.mxu0 0
    %4226 = vmatprep.subr.bf16.mxu0 0
    %4227 = vmatpush1.bf16.msra.mxu0 0
    %4228 = vmatprep.subr.bf16.mxu0 0
    %4229 = vmatpush1.bf16.msra.mxu0 %v4205
    %4230 = vmatprep.subr.bf16.mxu0 0
    %4231 = vmatpush2.bf16.msra.mxu0 0
    %4232 = vmatprep.subr.bf16.mxu0 0
    %4233 = vmatpush2.bf16.msra.mxu0 0
    %4234 = vmatprep.subr.bf16.mxu0 0
    %4235 = vmatpush2.bf16.msra.mxu0 0
    %4236 = vmatprep.subr.bf16.mxu0 0
    %4237 = vmatpush2.bf16.msra.mxu0 0
    %4238 = vmatprep.subr.bf16.mxu0 0
    %4239 = vmatpush2.bf16.msra.mxu0 0
    %4240 = vmatprep.subr.bf16.mxu0 0
    %4241 = vmatpush2.bf16.msra.mxu0 0
    %4242 = vmatprep.subr.bf16.mxu0 0
    %4243 = vmatpush2.bf16.msra.mxu0 0
    %4244 = vmatprep.subr.bf16.mxu0 0
    %4245 = vmatpush2.bf16.msra.mxu0 0
    %4246 = vmatprep.mubr.bf16.mxu0 0
    %4247 = vmatmul.mubr.bf16.gmra.mxu0 %v4212
    %v4248 = vpop.f32.mrf.mxu0
    %v4249 = vadd.f32 0.0, %v4248
    %v4250 = vpop.f32.mrf.mxu0
    %v4251 = vpop.f32.mrf.mxu0
    %v4252 = vadd.f32 0.0, %v4251
    %v4253 = vpop.f32.mrf.mxu0
    %4254 = vdwg.mxu0
    %v4255 = vadd.f32 %v4090, %v4249
    %v4256 = vadd.f32 %v4093, %v4252
    %v4257 = vld [vmem:[#allocation14] sm:$0x1]
    %v4259 = vlaneseq
    %v4260 = vshrl.u32 %v4259, 7
    %v4261 = vsub.s32 0, %v4260
    %v4262 = vrot.slane %v4257, %v4261
    %v4264 = vadd.f32 %v4255, %v4262
    %v4265 = vadd.f32 %v4256, %v4262
    %v4266 = vunpack.c.l.bf16 %v3289
    %v4267 = vunpack.c.h.bf16 %v3289
    %v4268 = vadd.f32 %v4264, %v4266
    %v4269 = vadd.f32 %v4265, %v4267
    %v4270 = vmax.f32 %v4268, 0.0
    %v4271 = vmax.f32 %v4269, 0.0
    %v4272 = vpack.c.bf16 %v4271, %v4270
    %v4273 = vld [vmem:[#allocation16] sm:$0xf]
    %v4274 = vld [vmem:[#allocation16 + $0x4] sm:$0xf]
    %v4275 = vld [vmem:[#allocation16 + $0x8] sm:$0xf]
    %v4276 = vld [vmem:[#allocation16 + $0xc] sm:$0xf]
    %v4277 = vld [vmem:[#allocation16 + $0x10] sm:$0xf]
    %v4278 = vld [vmem:[#allocation16 + $0x14] sm:$0xf]
    %v4279 = vld [vmem:[#allocation16 + $0x18] sm:$0xf]
    %v4280 = vld [vmem:[#allocation16 + $0x1c] sm:$0xf]
    %v4281 = vld [vmem:[#allocation16 + $0x20] sm:$0xf]
    %v4282 = vld [vmem:[#allocation16 + $0x24] sm:$0xf]
    %v4283 = vld [vmem:[#allocation16 + $0x28] sm:$0xf]
    %v4284 = vld [vmem:[#allocation16 + $0x2c] sm:$0xf]
    %v4285 = vld [vmem:[#allocation16 + $0x30] sm:$0xf]
    %v4286 = vld [vmem:[#allocation16 + $0x34] sm:$0xf]
    %v4287 = vld [vmem:[#allocation16 + $0x38] sm:$0xf]
    %v4288 = vld [vmem:[#allocation16 + $0x3c] sm:$0xf]
    %v4305 = vunpack.c.l.b16 %v4273
    %v4306 = vunpack.c.l.b16 %v4274
    %v4307 = vunpack.c.l.b16 %v4275
    %v4308 = vunpack.c.l.b16 %v4276
    %v4309 = vunpack.c.l.b16 %v4277
    %v4310 = vunpack.c.l.b16 %v4278
    %v4311 = vunpack.c.l.b16 %v4279
    %v4312 = vunpack.c.l.b16 %v4280
    %v4313 = vunpack.c.l.b16 %v4281
    %v4314 = vunpack.c.l.b16 %v4282
    %v4315 = vunpack.c.l.b16 %v4283
    %v4316 = vunpack.c.l.b16 %v4284
    %v4317 = vunpack.c.l.b16 %v4285
    %v4318 = vunpack.c.l.b16 %v4286
    %v4319 = vunpack.c.l.b16 %v4287
    %v4320 = vunpack.c.l.b16 %v4288
    %v4321 = vpack.c.b16 %v4306, %v4305
    %v4322 = vpack.c.b16 %v4308, %v4307
    %v4323 = vpack.c.b16 %v4310, %v4309
    %v4324 = vpack.c.b16 %v4312, %v4311
    %v4325 = vpack.c.b16 %v4314, %v4313
    %v4326 = vpack.c.b16 %v4316, %v4315
    %v4327 = vpack.c.b16 %v4318, %v4317
    %v4328 = vpack.c.b16 %v4320, %v4319
    %4337 = vmatprep.subr.bf16.mxu0 0
    %4338 = vmatpush1.bf16.msra.mxu0 %v4328
    %4339 = vmatprep.subr.bf16.mxu0 0
    %4340 = vmatpush1.bf16.msra.mxu0 %v4327
    %4341 = vmatprep.subr.bf16.mxu0 0
    %4342 = vmatpush1.bf16.msra.mxu0 %v4326
    %4343 = vmatprep.subr.bf16.mxu0 0
    %4344 = vmatpush1.bf16.msra.mxu0 %v4325
    %4345 = vmatprep.subr.bf16.mxu0 0
    %4346 = vmatpush1.bf16.msra.mxu0 %v4324
    %4347 = vmatprep.subr.bf16.mxu0 0
    %4348 = vmatpush1.bf16.msra.mxu0 %v4323
    %4349 = vmatprep.subr.bf16.mxu0 0
    %4350 = vmatpush1.bf16.msra.mxu0 %v4322
    %4351 = vmatprep.subr.bf16.mxu0 0
    %4352 = vmatpush1.bf16.msra.mxu0 %v4321
    %4353 = vmatprep.subr.bf16.mxu0 0
    %4354 = vmatpush2.bf16.msra.mxu0 0
    %4355 = vmatprep.subr.bf16.mxu0 0
    %4356 = vmatpush2.bf16.msra.mxu0 0
    %4357 = vmatprep.subr.bf16.mxu0 0
    %4358 = vmatpush2.bf16.msra.mxu0 0
    %4359 = vmatprep.subr.bf16.mxu0 0
    %4360 = vmatpush2.bf16.msra.mxu0 0
    %4361 = vmatprep.subr.bf16.mxu0 0
    %4362 = vmatpush2.bf16.msra.mxu0 0
    %4363 = vmatprep.subr.bf16.mxu0 0
    %4364 = vmatpush2.bf16.msra.mxu0 0
    %4365 = vmatprep.subr.bf16.mxu0 0
    %4366 = vmatpush2.bf16.msra.mxu0 0
    %4367 = vmatprep.subr.bf16.mxu0 0
    %4368 = vmatpush2.bf16.msra.mxu0 0
    %4369 = vmatprep.mubr.bf16.mxu0 0
    %4370 = vmatmul.mubr.bf16.gmra.mxu0 %v4272
    %v4371 = vpop.f32.mrf.mxu0
    %v4372 = vadd.f32 0.0, %v4371
    %v4373 = vpop.f32.mrf.mxu0
    %v4374 = vpop.f32.mrf.mxu0
    %v4375 = vadd.f32 0.0, %v4374
    %v4376 = vpop.f32.mrf.mxu0
    %4377 = vdwg.mxu0
    %v4378 = vld [vmem:[%s25] sm:$0xf]
    %v4379 = vpack.c.bf16 %v4375, %v4372
    %s4380 = scalar_lea.vmem [#allocation16], 64
    %v4381 = vld [vmem:[%s4380] sm:$0xf]
    %v4382 = vld [vmem:[%s4380 + $0x4] sm:$0xf]
    %v4383 = vld [vmem:[%s4380 + $0x8] sm:$0xf]
    %v4384 = vld [vmem:[%s4380 + $0xc] sm:$0xf]
    %v4385 = vld [vmem:[%s4380 + $0x10] sm:$0xf]
    %v4386 = vld [vmem:[%s4380 + $0x14] sm:$0xf]
    %v4387 = vld [vmem:[%s4380 + $0x18] sm:$0xf]
    %v4388 = vld [vmem:[%s4380 + $0x1c] sm:$0xf]
    %v4389 = vld [vmem:[%s4380 + $0x20] sm:$0xf]
    %v4390 = vld [vmem:[%s4380 + $0x24] sm:$0xf]
    %v4391 = vld [vmem:[%s4380 + $0x28] sm:$0xf]
    %v4392 = vld [vmem:[%s4380 + $0x2c] sm:$0xf]
    %v4393 = vld [vmem:[%s4380 + $0x30] sm:$0xf]
    %v4394 = vld [vmem:[%s4380 + $0x34] sm:$0xf]
    %v4395 = vld [vmem:[%s4380 + $0x38] sm:$0xf]
    %v4396 = vld [vmem:[%s4380 + $0x3c] sm:$0xf]
    %v4413 = vunpack.c.l.b16 %v4381
    %v4414 = vunpack.c.l.b16 %v4382
    %v4415 = vunpack.c.l.b16 %v4383
    %v4416 = vunpack.c.l.b16 %v4384
    %v4417 = vunpack.c.l.b16 %v4385
    %v4418 = vunpack.c.l.b16 %v4386
    %v4419 = vunpack.c.l.b16 %v4387
    %v4420 = vunpack.c.l.b16 %v4388
    %v4421 = vunpack.c.l.b16 %v4389
    %v4422 = vunpack.c.l.b16 %v4390
    %v4423 = vunpack.c.l.b16 %v4391
    %v4424 = vunpack.c.l.b16 %v4392
    %v4425 = vunpack.c.l.b16 %v4393
    %v4426 = vunpack.c.l.b16 %v4394
    %v4427 = vunpack.c.l.b16 %v4395
    %v4428 = vunpack.c.l.b16 %v4396
    %v4429 = vpack.c.b16 %v4414, %v4413
    %v4430 = vpack.c.b16 %v4416, %v4415
    %v4431 = vpack.c.b16 %v4418, %v4417
    %v4432 = vpack.c.b16 %v4420, %v4419
    %v4433 = vpack.c.b16 %v4422, %v4421
    %v4434 = vpack.c.b16 %v4424, %v4423
    %v4435 = vpack.c.b16 %v4426, %v4425
    %v4436 = vpack.c.b16 %v4428, %v4427
    %4445 = vmatprep.subr.bf16.mxu0 0
    %4446 = vmatpush1.bf16.msra.mxu0 %v4436
    %4447 = vmatprep.subr.bf16.mxu0 0
    %4448 = vmatpush1.bf16.msra.mxu0 %v4435
    %4449 = vmatprep.subr.bf16.mxu0 0
    %4450 = vmatpush1.bf16.msra.mxu0 %v4434
    %4451 = vmatprep.subr.bf16.mxu0 0
    %4452 = vmatpush1.bf16.msra.mxu0 %v4433
    %4453 = vmatprep.subr.bf16.mxu0 0
    %4454 = vmatpush1.bf16.msra.mxu0 %v4432
    %4455 = vmatprep.subr.bf16.mxu0 0
    %4456 = vmatpush1.bf16.msra.mxu0 %v4431
    %4457 = vmatprep.subr.bf16.mxu0 0
    %4458 = vmatpush1.bf16.msra.mxu0 %v4430
    %4459 = vmatprep.subr.bf16.mxu0 0
    %4460 = vmatpush1.bf16.msra.mxu0 %v4429
    %4461 = vmatprep.subr.bf16.mxu0 0
    %4462 = vmatpush2.bf16.msra.mxu0 0
    %4463 = vmatprep.subr.bf16.mxu0 0
    %4464 = vmatpush2.bf16.msra.mxu0 0
    %4465 = vmatprep.subr.bf16.mxu0 0
    %4466 = vmatpush2.bf16.msra.mxu0 0
    %4467 = vmatprep.subr.bf16.mxu0 0
    %4468 = vmatpush2.bf16.msra.mxu0 0
    %4469 = vmatprep.subr.bf16.mxu0 0
    %4470 = vmatpush2.bf16.msra.mxu0 0
    %4471 = vmatprep.subr.bf16.mxu0 0
    %4472 = vmatpush2.bf16.msra.mxu0 0
    %4473 = vmatprep.subr.bf16.mxu0 0
    %4474 = vmatpush2.bf16.msra.mxu0 0
    %4475 = vmatprep.subr.bf16.mxu0 0
    %4476 = vmatpush2.bf16.msra.mxu0 0
    %4477 = vmatprep.mubr.bf16.mxu0 0
    %4478 = vmatmul.mubr.bf16.gmra.mxu0 %v4272
    %v4479 = vpop.f32.mrf.mxu0
    %v4480 = vadd.f32 0.0, %v4479
    %v4481 = vpop.f32.mrf.mxu0
    %v4482 = vpop.f32.mrf.mxu0
    %v4483 = vadd.f32 0.0, %v4482
    %v4484 = vpop.f32.mrf.mxu0
    %4485 = vdwg.mxu0
    %s4486 = scalar_lea.vmem %s25, 4
    %v4487 = vld [vmem:[%s4486] sm:$0xf]
    %v4488 = vpack.c.bf16 %v4483, %v4480
    %v4490 = vsel %vm3513, %v4487, 0
    %4492 = vmatprep.subr.bf16.mxu0 0
    %4493 = vmatpush1.bf16.msra.mxu0 0
    %4494 = vmatprep.subr.bf16.mxu0 0
    %4495 = vmatpush1.bf16.msra.mxu0 0
    %4496 = vmatprep.subr.bf16.mxu0 0
    %4497 = vmatpush1.bf16.msra.mxu0 0
    %4498 = vmatprep.subr.bf16.mxu0 0
    %4499 = vmatpush1.bf16.msra.mxu0 0
    %4500 = vmatprep.subr.bf16.mxu0 0
    %4501 = vmatpush1.bf16.msra.mxu0 0
    %4502 = vmatprep.subr.bf16.mxu0 0
    %4503 = vmatpush1.bf16.msra.mxu0 0
    %4504 = vmatprep.subr.bf16.mxu0 0
    %4505 = vmatpush1.bf16.msra.mxu0 0
    %4506 = vmatprep.subr.bf16.mxu0 0
    %4507 = vmatpush1.bf16.msra.mxu0 %v4488
    %4508 = vmatprep.subr.bf16.mxu0 0
    %4509 = vmatpush2.bf16.msra.mxu0 0
    %4510 = vmatprep.subr.bf16.mxu0 0
    %4511 = vmatpush2.bf16.msra.mxu0 0
    %4512 = vmatprep.subr.bf16.mxu0 0
    %4513 = vmatpush2.bf16.msra.mxu0 0
    %4514 = vmatprep.subr.bf16.mxu0 0
    %4515 = vmatpush2.bf16.msra.mxu0 0
    %4516 = vmatprep.subr.bf16.mxu0 0
    %4517 = vmatpush2.bf16.msra.mxu0 0
    %4518 = vmatprep.subr.bf16.mxu0 0
    %4519 = vmatpush2.bf16.msra.mxu0 0
    %4520 = vmatprep.subr.bf16.mxu0 0
    %4521 = vmatpush2.bf16.msra.mxu0 0
    %4522 = vmatprep.subr.bf16.mxu0 0
    %4523 = vmatpush2.bf16.msra.mxu0 0
    %4524 = vmatprep.mubr.bf16.mxu0 0
    %4525 = vmatmul.mubr.bf16.gmra.mxu0 %v4490
    %v4526 = vpop.f32.mrf.mxu0
    %v4527 = vadd.f32 0.0, %v4526
    %v4528 = vpop.f32.mrf.mxu0
    %v4529 = vpop.f32.mrf.mxu0
    %v4530 = vpop.f32.mrf.mxu0
    %4531 = vdwg.mxu0
    %v4533 = vsel %vm3513, %v4378, 0
    %4535 = vmatprep.subr.bf16.mxu0 0
    %4536 = vmatpush1.bf16.msra.mxu0 0
    %4537 = vmatprep.subr.bf16.mxu0 0
    %4538 = vmatpush1.bf16.msra.mxu0 0
    %4539 = vmatprep.subr.bf16.mxu0 0
    %4540 = vmatpush1.bf16.msra.mxu0 0
    %4541 = vmatprep.subr.bf16.mxu0 0
    %4542 = vmatpush1.bf16.msra.mxu0 0
    %4543 = vmatprep.subr.bf16.mxu0 0
    %4544 = vmatpush1.bf16.msra.mxu0 0
    %4545 = vmatprep.subr.bf16.mxu0 0
    %4546 = vmatpush1.bf16.msra.mxu0 0
    %4547 = vmatprep.subr.bf16.mxu0 0
    %4548 = vmatpush1.bf16.msra.mxu0 0
    %4549 = vmatprep.subr.bf16.mxu0 0
    %4550 = vmatpush1.bf16.msra.mxu0 %v4379
    %4551 = vmatprep.subr.bf16.mxu0 0
    %4552 = vmatpush2.bf16.msra.mxu0 0
    %4553 = vmatprep.subr.bf16.mxu0 0
    %4554 = vmatpush2.bf16.msra.mxu0 0
    %4555 = vmatprep.subr.bf16.mxu0 0
    %4556 = vmatpush2.bf16.msra.mxu0 0
    %4557 = vmatprep.subr.bf16.mxu0 0
    %4558 = vmatpush2.bf16.msra.mxu0 0
    %4559 = vmatprep.subr.bf16.mxu0 0
    %4560 = vmatpush2.bf16.msra.mxu0 0
    %4561 = vmatprep.subr.bf16.mxu0 0
    %4562 = vmatpush2.bf16.msra.mxu0 0
    %4563 = vmatprep.subr.bf16.mxu0 0
    %4564 = vmatpush2.bf16.msra.mxu0 0
    %4565 = vmatprep.subr.bf16.mxu0 0
    %4566 = vmatpush2.bf16.msra.mxu0 0
    %4567 = vmatprep.mubr.bf16.mxu0 0
    %4568 = vmatmul.mubr.bf16.gmra.mxu0 %v4533
    %v4569 = vpop.f32.mrf.mxu0
    %v4570 = vadd.f32 %v4527, %v4569
    %v4571 = vpop.f32.mrf.mxu0
    %v4572 = vpop.f32.mrf.mxu0
    %v4573 = vpop.f32.mrf.mxu0
    %4574 = vdwg.mxu0
    %s4575 = scalar_lea.vmem [#allocation16], 128
    %v4576 = vld [vmem:[%s4575] sm:$0xf]
    %v4577 = vld [vmem:[%s4575 + $0x4] sm:$0xf]
    %v4578 = vld [vmem:[%s4575 + $0x8] sm:$0xf]
    %v4579 = vld [vmem:[%s4575 + $0xc] sm:$0xf]
    %v4580 = vld [vmem:[%s4575 + $0x10] sm:$0xf]
    %v4581 = vld [vmem:[%s4575 + $0x14] sm:$0xf]
    %v4582 = vld [vmem:[%s4575 + $0x18] sm:$0xf]
    %v4583 = vld [vmem:[%s4575 + $0x1c] sm:$0xf]
    %v4584 = vld [vmem:[%s4575 + $0x20] sm:$0xf]
    %v4585 = vld [vmem:[%s4575 + $0x24] sm:$0xf]
    %v4586 = vld [vmem:[%s4575 + $0x28] sm:$0xf]
    %v4587 = vld [vmem:[%s4575 + $0x2c] sm:$0xf]
    %v4588 = vld [vmem:[%s4575 + $0x30] sm:$0xf]
    %v4589 = vld [vmem:[%s4575 + $0x34] sm:$0xf]
    %v4590 = vld [vmem:[%s4575 + $0x38] sm:$0xf]
    %v4591 = vld [vmem:[%s4575 + $0x3c] sm:$0xf]
    %v4608 = vunpack.c.l.b16 %v4576
    %v4609 = vunpack.c.l.b16 %v4577
    %v4610 = vunpack.c.l.b16 %v4578
    %v4611 = vunpack.c.l.b16 %v4579
    %v4612 = vunpack.c.l.b16 %v4580
    %v4613 = vunpack.c.l.b16 %v4581
    %v4614 = vunpack.c.l.b16 %v4582
    %v4615 = vunpack.c.l.b16 %v4583
    %v4616 = vunpack.c.l.b16 %v4584
    %v4617 = vunpack.c.l.b16 %v4585
    %v4618 = vunpack.c.l.b16 %v4586
    %v4619 = vunpack.c.l.b16 %v4587
    %v4620 = vunpack.c.l.b16 %v4588
    %v4621 = vunpack.c.l.b16 %v4589
    %v4622 = vunpack.c.l.b16 %v4590
    %v4623 = vunpack.c.l.b16 %v4591
    %v4624 = vpack.c.b16 %v4609, %v4608
    %v4625 = vpack.c.b16 %v4611, %v4610
    %v4626 = vpack.c.b16 %v4613, %v4612
    %v4627 = vpack.c.b16 %v4615, %v4614
    %v4628 = vpack.c.b16 %v4617, %v4616
    %v4629 = vpack.c.b16 %v4619, %v4618
    %v4630 = vpack.c.b16 %v4621, %v4620
    %v4631 = vpack.c.b16 %v4623, %v4622
    %4640 = vmatprep.subr.bf16.mxu0 0
    %4641 = vmatpush1.bf16.msra.mxu0 %v4631
    %4642 = vmatprep.subr.bf16.mxu0 0
    %4643 = vmatpush1.bf16.msra.mxu0 %v4630
    %4644 = vmatprep.subr.bf16.mxu0 0
    %4645 = vmatpush1.bf16.msra.mxu0 %v4629
    %4646 = vmatprep.subr.bf16.mxu0 0
    %4647 = vmatpush1.bf16.msra.mxu0 %v4628
    %4648 = vmatprep.subr.bf16.mxu0 0
    %4649 = vmatpush1.bf16.msra.mxu0 %v4627
    %4650 = vmatprep.subr.bf16.mxu0 0
    %4651 = vmatpush1.bf16.msra.mxu0 %v4626
    %4652 = vmatprep.subr.bf16.mxu0 0
    %4653 = vmatpush1.bf16.msra.mxu0 %v4625
    %4654 = vmatprep.subr.bf16.mxu0 0
    %4655 = vmatpush1.bf16.msra.mxu0 %v4624
    %4656 = vmatprep.subr.bf16.mxu0 0
    %4657 = vmatpush2.bf16.msra.mxu0 0
    %4658 = vmatprep.subr.bf16.mxu0 0
    %4659 = vmatpush2.bf16.msra.mxu0 0
    %4660 = vmatprep.subr.bf16.mxu0 0
    %4661 = vmatpush2.bf16.msra.mxu0 0
    %4662 = vmatprep.subr.bf16.mxu0 0
    %4663 = vmatpush2.bf16.msra.mxu0 0
    %4664 = vmatprep.subr.bf16.mxu0 0
    %4665 = vmatpush2.bf16.msra.mxu0 0
    %4666 = vmatprep.subr.bf16.mxu0 0
    %4667 = vmatpush2.bf16.msra.mxu0 0
    %4668 = vmatprep.subr.bf16.mxu0 0
    %4669 = vmatpush2.bf16.msra.mxu0 0
    %4670 = vmatprep.subr.bf16.mxu0 0
    %4671 = vmatpush2.bf16.msra.mxu0 0
    %4672 = vmatprep.mubr.bf16.mxu0 0
    %4673 = vmatmul.mubr.bf16.gmra.mxu0 %v4272
    %v4674 = vpop.f32.mrf.mxu0
    %v4675 = vadd.f32 0.0, %v4674
    %v4676 = vpop.f32.mrf.mxu0
    %v4677 = vpop.f32.mrf.mxu0
    %v4678 = vadd.f32 0.0, %v4677
    %v4679 = vpop.f32.mrf.mxu0
    %4680 = vdwg.mxu0
    %s4681 = scalar_lea.vmem %s25, 8
    %v4682 = vld [vmem:[%s4681] sm:$0xf]
    %v4683 = vpack.c.bf16 %v4678, %v4675
    %v4685 = vsel %vm3513, %v4682, 0
    %4687 = vmatprep.subr.bf16.mxu0 0
    %4688 = vmatpush1.bf16.msra.mxu0 0
    %4689 = vmatprep.subr.bf16.mxu0 0
    %4690 = vmatpush1.bf16.msra.mxu0 0
    %4691 = vmatprep.subr.bf16.mxu0 0
    %4692 = vmatpush1.bf16.msra.mxu0 0
    %4693 = vmatprep.subr.bf16.mxu0 0
    %4694 = vmatpush1.bf16.msra.mxu0 0
    %4695 = vmatprep.subr.bf16.mxu0 0
    %4696 = vmatpush1.bf16.msra.mxu0 0
    %4697 = vmatprep.subr.bf16.mxu0 0
    %4698 = vmatpush1.bf16.msra.mxu0 0
    %4699 = vmatprep.subr.bf16.mxu0 0
    %4700 = vmatpush1.bf16.msra.mxu0 0
    %4701 = vmatprep.subr.bf16.mxu0 0
    %4702 = vmatpush1.bf16.msra.mxu0 %v4683
    %4703 = vmatprep.subr.bf16.mxu0 0
    %4704 = vmatpush2.bf16.msra.mxu0 0
    %4705 = vmatprep.subr.bf16.mxu0 0
    %4706 = vmatpush2.bf16.msra.mxu0 0
    %4707 = vmatprep.subr.bf16.mxu0 0
    %4708 = vmatpush2.bf16.msra.mxu0 0
    %4709 = vmatprep.subr.bf16.mxu0 0
    %4710 = vmatpush2.bf16.msra.mxu0 0
    %4711 = vmatprep.subr.bf16.mxu0 0
    %4712 = vmatpush2.bf16.msra.mxu0 0
    %4713 = vmatprep.subr.bf16.mxu0 0
    %4714 = vmatpush2.bf16.msra.mxu0 0
    %4715 = vmatprep.subr.bf16.mxu0 0
    %4716 = vmatpush2.bf16.msra.mxu0 0
    %4717 = vmatprep.subr.bf16.mxu0 0
    %4718 = vmatpush2.bf16.msra.mxu0 0
    %4719 = vmatprep.mubr.bf16.mxu0 0
    %4720 = vmatmul.mubr.bf16.gmra.mxu0 %v4685
    %v4721 = vpop.f32.mrf.mxu0
    %v4722 = vadd.f32 0.0, %v4721
    %v4723 = vpop.f32.mrf.mxu0
    %v4724 = vpop.f32.mrf.mxu0
    %v4725 = vpop.f32.mrf.mxu0
    %4726 = vdwg.mxu0
    %v4727 = vadd.f32 %v4570, %v4722
    %v4728 = vld [vmem:[#allocation17] sm:$0x1]
    %v4730 = vlaneseq
    %v4731 = vshrl.u32 %v4730, 7
    %v4732 = vsub.s32 0, %v4731
    %v4733 = vrot.slane %v4728, %v4732
    %v4735 = vadd.f32 %v4727, %v4733
    %v4736 = vmax.f32 %v4735, 0.0
    %v4737 = vpack.c.bf16 %v4736, %v4736
    %v4738 = vld [vmem:[#allocation19] sm:$0xf]
    %v4739 = vld [vmem:[#allocation19 + $0x4] sm:$0xf]
    %v4740 = vld [vmem:[#allocation19 + $0x8] sm:$0xf]
    %v4741 = vld [vmem:[#allocation19 + $0xc] sm:$0xf]
    %v4742 = vld [vmem:[#allocation19 + $0x10] sm:$0xf]
    %v4743 = vld [vmem:[#allocation19 + $0x14] sm:$0xf]
    %v4744 = vld [vmem:[#allocation19 + $0x18] sm:$0xf]
    %v4745 = vld [vmem:[#allocation19 + $0x1c] sm:$0xf]
    %v4746 = vld [vmem:[#allocation19 + $0x20] sm:$0xf]
    %v4747 = vld [vmem:[#allocation19 + $0x24] sm:$0xf]
    %v4748 = vld [vmem:[#allocation19 + $0x28] sm:$0xf]
    %v4749 = vld [vmem:[#allocation19 + $0x2c] sm:$0xf]
    %v4750 = vld [vmem:[#allocation19 + $0x30] sm:$0xf]
    %v4751 = vld [vmem:[#allocation19 + $0x34] sm:$0xf]
    %v4752 = vld [vmem:[#allocation19 + $0x38] sm:$0xf]
    %v4753 = vld [vmem:[#allocation19 + $0x3c] sm:$0xf]
    %v4770 = vunpack.c.l.b16 %v4738
    %v4771 = vunpack.c.l.b16 %v4739
    %v4772 = vunpack.c.l.b16 %v4740
    %v4773 = vunpack.c.l.b16 %v4741
    %v4774 = vunpack.c.l.b16 %v4742
    %v4775 = vunpack.c.l.b16 %v4743
    %v4776 = vunpack.c.l.b16 %v4744
    %v4777 = vunpack.c.l.b16 %v4745
    %v4778 = vunpack.c.l.b16 %v4746
    %v4779 = vunpack.c.l.b16 %v4747
    %v4780 = vunpack.c.l.b16 %v4748
    %v4781 = vunpack.c.l.b16 %v4749
    %v4782 = vunpack.c.l.b16 %v4750
    %v4783 = vunpack.c.l.b16 %v4751
    %v4784 = vunpack.c.l.b16 %v4752
    %v4785 = vunpack.c.l.b16 %v4753
    %v4786 = vpack.c.b16 %v4771, %v4770
    %v4787 = vpack.c.b16 %v4773, %v4772
    %v4788 = vpack.c.b16 %v4775, %v4774
    %v4789 = vpack.c.b16 %v4777, %v4776
    %v4790 = vpack.c.b16 %v4779, %v4778
    %v4791 = vpack.c.b16 %v4781, %v4780
    %v4792 = vpack.c.b16 %v4783, %v4782
    %v4793 = vpack.c.b16 %v4785, %v4784
    %4802 = vmatprep.subr.bf16.mxu0 0
    %4803 = vmatpush1.bf16.msra.mxu0 %v4793
    %4804 = vmatprep.subr.bf16.mxu0 0
    %4805 = vmatpush1.bf16.msra.mxu0 %v4792
    %4806 = vmatprep.subr.bf16.mxu0 0
    %4807 = vmatpush1.bf16.msra.mxu0 %v4791
    %4808 = vmatprep.subr.bf16.mxu0 0
    %4809 = vmatpush1.bf16.msra.mxu0 %v4790
    %4810 = vmatprep.subr.bf16.mxu0 0
    %4811 = vmatpush1.bf16.msra.mxu0 %v4789
    %4812 = vmatprep.subr.bf16.mxu0 0
    %4813 = vmatpush1.bf16.msra.mxu0 %v4788
    %4814 = vmatprep.subr.bf16.mxu0 0
    %4815 = vmatpush1.bf16.msra.mxu0 %v4787
    %4816 = vmatprep.subr.bf16.mxu0 0
    %4817 = vmatpush1.bf16.msra.mxu0 %v4786
    %4818 = vmatprep.subr.bf16.mxu0 0
    %4819 = vmatpush2.bf16.msra.mxu0 0
    %4820 = vmatprep.subr.bf16.mxu0 0
    %4821 = vmatpush2.bf16.msra.mxu0 0
    %4822 = vmatprep.subr.bf16.mxu0 0
    %4823 = vmatpush2.bf16.msra.mxu0 0
    %4824 = vmatprep.subr.bf16.mxu0 0
    %4825 = vmatpush2.bf16.msra.mxu0 0
    %4826 = vmatprep.subr.bf16.mxu0 0
    %4827 = vmatpush2.bf16.msra.mxu0 0
    %4828 = vmatprep.subr.bf16.mxu0 0
    %4829 = vmatpush2.bf16.msra.mxu0 0
    %4830 = vmatprep.subr.bf16.mxu0 0
    %4831 = vmatpush2.bf16.msra.mxu0 0
    %4832 = vmatprep.subr.bf16.mxu0 0
    %4833 = vmatpush2.bf16.msra.mxu0 0
    %4834 = vmatprep.mubr.bf16.mxu0 0
    %4835 = vmatmul.mubr.bf16.gmra.mxu0 %v4272
    %v4836 = vpop.f32.mrf.mxu0
    %v4837 = vadd.f32 0.0, %v4836
    %v4838 = vpop.f32.mrf.mxu0
    %v4839 = vpop.f32.mrf.mxu0
    %v4840 = vadd.f32 0.0, %v4839
    %v4841 = vpop.f32.mrf.mxu0
    %4842 = vdwg.mxu0
    %v4843 = vld [vmem:[%s31] sm:$0xf]
    %v4844 = vpack.c.bf16 %v4840, %v4837
    %v4845 = vld [vmem:[#allocation20] sm:$0x1]
    %v4847 = vlaneseq
    %v4848 = vshrl.u32 %v4847, 7
    %v4849 = vsub.s32 0, %v4848
    %v4850 = vrot.slane %v4845, %v4849
    %v4853 = vsel %vm3513, %v4843, 0
    %4855 = vmatprep.subr.bf16.mxu0 0
    %4856 = vmatpush1.bf16.msra.mxu0 0
    %4857 = vmatprep.subr.bf16.mxu0 0
    %4858 = vmatpush1.bf16.msra.mxu0 0
    %4859 = vmatprep.subr.bf16.mxu0 0
    %4860 = vmatpush1.bf16.msra.mxu0 0
    %4861 = vmatprep.subr.bf16.mxu0 0
    %4862 = vmatpush1.bf16.msra.mxu0 0
    %4863 = vmatprep.subr.bf16.mxu0 0
    %4864 = vmatpush1.bf16.msra.mxu0 0
    %4865 = vmatprep.subr.bf16.mxu0 0
    %4866 = vmatpush1.bf16.msra.mxu0 0
    %4867 = vmatprep.subr.bf16.mxu0 0
    %4868 = vmatpush1.bf16.msra.mxu0 0
    %4869 = vmatprep.subr.bf16.mxu0 0
    %4870 = vmatpush1.bf16.msra.mxu0 %v4844
    %4871 = vmatprep.subr.bf16.mxu0 0
    %4872 = vmatpush2.bf16.msra.mxu0 0
    %4873 = vmatprep.subr.bf16.mxu0 0
    %4874 = vmatpush2.bf16.msra.mxu0 0
    %4875 = vmatprep.subr.bf16.mxu0 0
    %4876 = vmatpush2.bf16.msra.mxu0 0
    %4877 = vmatprep.subr.bf16.mxu0 0
    %4878 = vmatpush2.bf16.msra.mxu0 0
    %4879 = vmatprep.subr.bf16.mxu0 0
    %4880 = vmatpush2.bf16.msra.mxu0 0
    %4881 = vmatprep.subr.bf16.mxu0 0
    %4882 = vmatpush2.bf16.msra.mxu0 0
    %4883 = vmatprep.subr.bf16.mxu0 0
    %4884 = vmatpush2.bf16.msra.mxu0 0
    %4885 = vmatprep.subr.bf16.mxu0 0
    %4886 = vmatpush2.bf16.msra.mxu0 0
    %4887 = vmatprep.mubr.bf16.mxu0 0
    %4888 = vmatmul.mubr.bf16.gmra.mxu0 %v4853
    %v4889 = vpop.f32.mrf.mxu0
    %v4890 = vadd.f32 %v4850, %v4889
    %v4891 = vpop.f32.mrf.mxu0
    %v4892 = vpop.f32.mrf.mxu0
    %v4893 = vpop.f32.mrf.mxu0
    %4894 = vdwg.mxu0
    %v4895 = vpack.c.bf16 %v4890, %v4890
    %v4896 = vld [vmem:[#allocation23] sm:$0xf]
    %v4897 = vld [vmem:[#allocation23 + $0x4] sm:$0xf]
    %v4898 = vld [vmem:[#allocation23 + $0x8] sm:$0xf]
    %v4899 = vld [vmem:[#allocation23 + $0xc] sm:$0xf]
    %v4900 = vld [vmem:[#allocation23 + $0x10] sm:$0xf]
    %v4901 = vld [vmem:[#allocation23 + $0x14] sm:$0xf]
    %v4902 = vld [vmem:[#allocation23 + $0x18] sm:$0xf]
    %v4903 = vld [vmem:[#allocation23 + $0x1c] sm:$0xf]
    %v4904 = vld [vmem:[#allocation23 + $0x20] sm:$0xf]
    %v4905 = vld [vmem:[#allocation23 + $0x24] sm:$0xf]
    %v4906 = vld [vmem:[#allocation23 + $0x28] sm:$0xf]
    %v4907 = vld [vmem:[#allocation23 + $0x2c] sm:$0xf]
    %v4908 = vld [vmem:[#allocation23 + $0x30] sm:$0xf]
    %v4909 = vld [vmem:[#allocation23 + $0x34] sm:$0xf]
    %v4910 = vld [vmem:[#allocation23 + $0x38] sm:$0xf]
    %v4911 = vld [vmem:[#allocation23 + $0x3c] sm:$0xf]
    %v4928 = vunpack.c.l.b16 %v4896
    %v4929 = vunpack.c.l.b16 %v4897
    %v4930 = vunpack.c.l.b16 %v4898
    %v4931 = vunpack.c.l.b16 %v4899
    %v4932 = vunpack.c.l.b16 %v4900
    %v4933 = vunpack.c.l.b16 %v4901
    %v4934 = vunpack.c.l.b16 %v4902
    %v4935 = vunpack.c.l.b16 %v4903
    %v4936 = vunpack.c.l.b16 %v4904
    %v4937 = vunpack.c.l.b16 %v4905
    %v4938 = vunpack.c.l.b16 %v4906
    %v4939 = vunpack.c.l.b16 %v4907
    %v4940 = vunpack.c.l.b16 %v4908
    %v4941 = vunpack.c.l.b16 %v4909
    %v4942 = vunpack.c.l.b16 %v4910
    %v4943 = vunpack.c.l.b16 %v4911
    %v4944 = vpack.c.b16 %v4929, %v4928
    %v4945 = vpack.c.b16 %v4931, %v4930
    %v4946 = vpack.c.b16 %v4933, %v4932
    %v4947 = vpack.c.b16 %v4935, %v4934
    %v4948 = vpack.c.b16 %v4937, %v4936
    %v4949 = vpack.c.b16 %v4939, %v4938
    %v4950 = vpack.c.b16 %v4941, %v4940
    %v4951 = vpack.c.b16 %v4943, %v4942
    %4960 = vmatprep.subr.bf16.mxu0 0
    %4961 = vmatpush1.bf16.msra.mxu0 %v4951
    %4962 = vmatprep.subr.bf16.mxu0 0
    %4963 = vmatpush1.bf16.msra.mxu0 %v4950
    %4964 = vmatprep.subr.bf16.mxu0 0
    %4965 = vmatpush1.bf16.msra.mxu0 %v4949
    %4966 = vmatprep.subr.bf16.mxu0 0
    %4967 = vmatpush1.bf16.msra.mxu0 %v4948
    %4968 = vmatprep.subr.bf16.mxu0 0
    %4969 = vmatpush1.bf16.msra.mxu0 %v4947
    %4970 = vmatprep.subr.bf16.mxu0 0
    %4971 = vmatpush1.bf16.msra.mxu0 %v4946
    %4972 = vmatprep.subr.bf16.mxu0 0
    %4973 = vmatpush1.bf16.msra.mxu0 %v4945
    %4974 = vmatprep.subr.bf16.mxu0 0
    %4975 = vmatpush1.bf16.msra.mxu0 %v4944
    %4976 = vmatprep.subr.bf16.mxu0 0
    %4977 = vmatpush2.bf16.msra.mxu0 0
    %4978 = vmatprep.subr.bf16.mxu0 0
    %4979 = vmatpush2.bf16.msra.mxu0 0
    %4980 = vmatprep.subr.bf16.mxu0 0
    %4981 = vmatpush2.bf16.msra.mxu0 0
    %4982 = vmatprep.subr.bf16.mxu0 0
    %4983 = vmatpush2.bf16.msra.mxu0 0
    %4984 = vmatprep.subr.bf16.mxu0 0
    %4985 = vmatpush2.bf16.msra.mxu0 0
    %4986 = vmatprep.subr.bf16.mxu0 0
    %4987 = vmatpush2.bf16.msra.mxu0 0
    %4988 = vmatprep.subr.bf16.mxu0 0
    %4989 = vmatpush2.bf16.msra.mxu0 0
    %4990 = vmatprep.subr.bf16.mxu0 0
    %4991 = vmatpush2.bf16.msra.mxu0 0
    %4992 = vmatprep.mubr.bf16.mxu0 0
    %4993 = vmatmul.mubr.bf16.gmra.mxu0 %v4737
    %v4994 = vpop.f32.mrf.mxu0
    %v4995 = vadd.f32 0.0, %v4994
    %v4996 = vpop.f32.mrf.mxu0
    %v4997 = vpop.f32.mrf.mxu0
    %v4998 = vpop.f32.mrf.mxu0
    %4999 = vdwg.mxu0
    %v5000 = vld [vmem:[#allocation22] sm:$0xf]
    %v5001 = vpack.c.bf16 %v4995, %v4995
    %s5002 = scalar_lea.vmem [#allocation23], 64
    %v5003 = vld [vmem:[%s5002] sm:$0xf]
    %v5004 = vld [vmem:[%s5002 + $0x4] sm:$0xf]
    %v5005 = vld [vmem:[%s5002 + $0x8] sm:$0xf]
    %v5006 = vld [vmem:[%s5002 + $0xc] sm:$0xf]
    %v5007 = vld [vmem:[%s5002 + $0x10] sm:$0xf]
    %v5008 = vld [vmem:[%s5002 + $0x14] sm:$0xf]
    %v5009 = vld [vmem:[%s5002 + $0x18] sm:$0xf]
    %v5010 = vld [vmem:[%s5002 + $0x1c] sm:$0xf]
    %v5011 = vld [vmem:[%s5002 + $0x20] sm:$0xf]
    %v5012 = vld [vmem:[%s5002 + $0x24] sm:$0xf]
    %v5013 = vld [vmem:[%s5002 + $0x28] sm:$0xf]
    %v5014 = vld [vmem:[%s5002 + $0x2c] sm:$0xf]
    %v5015 = vld [vmem:[%s5002 + $0x30] sm:$0xf]
    %v5016 = vld [vmem:[%s5002 + $0x34] sm:$0xf]
    %v5017 = vld [vmem:[%s5002 + $0x38] sm:$0xf]
    %v5018 = vld [vmem:[%s5002 + $0x3c] sm:$0xf]
    %v5035 = vunpack.c.l.b16 %v5003
    %v5036 = vunpack.c.l.b16 %v5004
    %v5037 = vunpack.c.l.b16 %v5005
    %v5038 = vunpack.c.l.b16 %v5006
    %v5039 = vunpack.c.l.b16 %v5007
    %v5040 = vunpack.c.l.b16 %v5008
    %v5041 = vunpack.c.l.b16 %v5009
    %v5042 = vunpack.c.l.b16 %v5010
    %v5043 = vunpack.c.l.b16 %v5011
    %v5044 = vunpack.c.l.b16 %v5012
    %v5045 = vunpack.c.l.b16 %v5013
    %v5046 = vunpack.c.l.b16 %v5014
    %v5047 = vunpack.c.l.b16 %v5015
    %v5048 = vunpack.c.l.b16 %v5016
    %v5049 = vunpack.c.l.b16 %v5017
    %v5050 = vunpack.c.l.b16 %v5018
    %v5051 = vpack.c.b16 %v5036, %v5035
    %v5052 = vpack.c.b16 %v5038, %v5037
    %v5053 = vpack.c.b16 %v5040, %v5039
    %v5054 = vpack.c.b16 %v5042, %v5041
    %v5055 = vpack.c.b16 %v5044, %v5043
    %v5056 = vpack.c.b16 %v5046, %v5045
    %v5057 = vpack.c.b16 %v5048, %v5047
    %v5058 = vpack.c.b16 %v5050, %v5049
    %5067 = vmatprep.subr.bf16.mxu0 0
    %5068 = vmatpush1.bf16.msra.mxu0 %v5058
    %5069 = vmatprep.subr.bf16.mxu0 0
    %5070 = vmatpush1.bf16.msra.mxu0 %v5057
    %5071 = vmatprep.subr.bf16.mxu0 0
    %5072 = vmatpush1.bf16.msra.mxu0 %v5056
    %5073 = vmatprep.subr.bf16.mxu0 0
    %5074 = vmatpush1.bf16.msra.mxu0 %v5055
    %5075 = vmatprep.subr.bf16.mxu0 0
    %5076 = vmatpush1.bf16.msra.mxu0 %v5054
    %5077 = vmatprep.subr.bf16.mxu0 0
    %5078 = vmatpush1.bf16.msra.mxu0 %v5053
    %5079 = vmatprep.subr.bf16.mxu0 0
    %5080 = vmatpush1.bf16.msra.mxu0 %v5052
    %5081 = vmatprep.subr.bf16.mxu0 0
    %5082 = vmatpush1.bf16.msra.mxu0 %v5051
    %5083 = vmatprep.subr.bf16.mxu0 0
    %5084 = vmatpush2.bf16.msra.mxu0 0
    %5085 = vmatprep.subr.bf16.mxu0 0
    %5086 = vmatpush2.bf16.msra.mxu0 0
    %5087 = vmatprep.subr.bf16.mxu0 0
    %5088 = vmatpush2.bf16.msra.mxu0 0
    %5089 = vmatprep.subr.bf16.mxu0 0
    %5090 = vmatpush2.bf16.msra.mxu0 0
    %5091 = vmatprep.subr.bf16.mxu0 0
    %5092 = vmatpush2.bf16.msra.mxu0 0
    %5093 = vmatprep.subr.bf16.mxu0 0
    %5094 = vmatpush2.bf16.msra.mxu0 0
    %5095 = vmatprep.subr.bf16.mxu0 0
    %5096 = vmatpush2.bf16.msra.mxu0 0
    %5097 = vmatprep.subr.bf16.mxu0 0
    %5098 = vmatpush2.bf16.msra.mxu0 0
    %5099 = vmatprep.mubr.bf16.mxu0 0
    %5100 = vmatmul.mubr.bf16.gmra.mxu0 %v4737
    %v5101 = vpop.f32.mrf.mxu0
    %v5102 = vadd.f32 0.0, %v5101
    %v5103 = vpop.f32.mrf.mxu0
    %v5104 = vpop.f32.mrf.mxu0
    %v5105 = vpop.f32.mrf.mxu0
    %5106 = vdwg.mxu0
    %s5107 = scalar_lea.vmem [#allocation22], 4
    %v5108 = vld [vmem:[%s5107] sm:$0xf]
    %v5109 = vpack.c.bf16 %v5102, %v5102
    %vm5110 = vcmask 64512
    %v5112 = vsel %vm5110, %v5108, 0
    %vm5114 = vcmask 1043456
    %v5116 = vsel %vm5114, %v5109, 0
    %5118 = vmatprep.subr.bf16.mxu0 0
    %5119 = vmatpush1.bf16.msra.mxu0 0
    %5120 = vmatprep.subr.bf16.mxu0 0
    %5121 = vmatpush1.bf16.msra.mxu0 0
    %5122 = vmatprep.subr.bf16.mxu0 0
    %5123 = vmatpush1.bf16.msra.mxu0 0
    %5124 = vmatprep.subr.bf16.mxu0 0
    %5125 = vmatpush1.bf16.msra.mxu0 0
    %5126 = vmatprep.subr.bf16.mxu0 0
    %5127 = vmatpush1.bf16.msra.mxu0 0
    %5128 = vmatprep.subr.bf16.mxu0 0
    %5129 = vmatpush1.bf16.msra.mxu0 0
    %5130 = vmatprep.subr.bf16.mxu0 0
    %5131 = vmatpush1.bf16.msra.mxu0 0
    %5132 = vmatprep.subr.bf16.mxu0 0
    %5133 = vmatpush1.bf16.msra.mxu0 %v5116
    %5134 = vmatprep.subr.bf16.mxu0 0
    %5135 = vmatpush2.bf16.msra.mxu0 0
    %5136 = vmatprep.subr.bf16.mxu0 0
    %5137 = vmatpush2.bf16.msra.mxu0 0
    %5138 = vmatprep.subr.bf16.mxu0 0
    %5139 = vmatpush2.bf16.msra.mxu0 0
    %5140 = vmatprep.subr.bf16.mxu0 0
    %5141 = vmatpush2.bf16.msra.mxu0 0
    %5142 = vmatprep.subr.bf16.mxu0 0
    %5143 = vmatpush2.bf16.msra.mxu0 0
    %5144 = vmatprep.subr.bf16.mxu0 0
    %5145 = vmatpush2.bf16.msra.mxu0 0
    %5146 = vmatprep.subr.bf16.mxu0 0
    %5147 = vmatpush2.bf16.msra.mxu0 0
    %5148 = vmatprep.subr.bf16.mxu0 0
    %5149 = vmatpush2.bf16.msra.mxu0 0
    %5150 = vmatprep.mubr.bf16.mxu0 0
    %5151 = vmatmul.mubr.bf16.gmra.mxu0 %v5112
    %v5152 = vpop.f32.mrf.mxu0
    %v5153 = vadd.f32 0.0, %v5152
    %v5154 = vpop.f32.mrf.mxu0
    %v5155 = vpop.f32.mrf.mxu0
    %v5156 = vpop.f32.mrf.mxu0
    %5157 = vdwg.mxu0
    %v5159 = vsel %vm5110, %v5000, 0
    %v5162 = vsel %vm5114, %v5001, 0
    %5164 = vmatprep.subr.bf16.mxu0 0
    %5165 = vmatpush1.bf16.msra.mxu0 0
    %5166 = vmatprep.subr.bf16.mxu0 0
    %5167 = vmatpush1.bf16.msra.mxu0 0
    %5168 = vmatprep.subr.bf16.mxu0 0
    %5169 = vmatpush1.bf16.msra.mxu0 0
    %5170 = vmatprep.subr.bf16.mxu0 0
    %5171 = vmatpush1.bf16.msra.mxu0 0
    %5172 = vmatprep.subr.bf16.mxu0 0
    %5173 = vmatpush1.bf16.msra.mxu0 0
    %5174 = vmatprep.subr.bf16.mxu0 0
    %5175 = vmatpush1.bf16.msra.mxu0 0
    %5176 = vmatprep.subr.bf16.mxu0 0
    %5177 = vmatpush1.bf16.msra.mxu0 0
    %5178 = vmatprep.subr.bf16.mxu0 0
    %5179 = vmatpush1.bf16.msra.mxu0 %v5162
    %5180 = vmatprep.subr.bf16.mxu0 0
    %5181 = vmatpush2.bf16.msra.mxu0 0
    %5182 = vmatprep.subr.bf16.mxu0 0
    %5183 = vmatpush2.bf16.msra.mxu0 0
    %5184 = vmatprep.subr.bf16.mxu0 0
    %5185 = vmatpush2.bf16.msra.mxu0 0
    %5186 = vmatprep.subr.bf16.mxu0 0
    %5187 = vmatpush2.bf16.msra.mxu0 0
    %5188 = vmatprep.subr.bf16.mxu0 0
    %5189 = vmatpush2.bf16.msra.mxu0 0
    %5190 = vmatprep.subr.bf16.mxu0 0
    %5191 = vmatpush2.bf16.msra.mxu0 0
    %5192 = vmatprep.subr.bf16.mxu0 0
    %5193 = vmatpush2.bf16.msra.mxu0 0
    %5194 = vmatprep.subr.bf16.mxu0 0
    %5195 = vmatpush2.bf16.msra.mxu0 0
    %5196 = vmatprep.mubr.bf16.mxu0 0
    %5197 = vmatmul.mubr.bf16.gmra.mxu0 %v5159
    %v5198 = vpop.f32.mrf.mxu0
    %v5199 = vadd.f32 %v5153, %v5198
    %v5200 = vpop.f32.mrf.mxu0
    %v5201 = vpop.f32.mrf.mxu0
    %v5202 = vpop.f32.mrf.mxu0
    %5203 = vdwg.mxu0
    %s5204 = scalar_lea.vmem [#allocation23], 128
    %v5205 = vld [vmem:[%s5204] sm:$0xf]
    %v5206 = vld [vmem:[%s5204 + $0x4] sm:$0xf]
    %v5207 = vld [vmem:[%s5204 + $0x8] sm:$0xf]
    %v5208 = vld [vmem:[%s5204 + $0xc] sm:$0xf]
    %v5209 = vld [vmem:[%s5204 + $0x10] sm:$0xf]
    %v5210 = vld [vmem:[%s5204 + $0x14] sm:$0xf]
    %v5211 = vld [vmem:[%s5204 + $0x18] sm:$0xf]
    %v5212 = vld [vmem:[%s5204 + $0x1c] sm:$0xf]
    %v5213 = vld [vmem:[%s5204 + $0x20] sm:$0xf]
    %v5214 = vld [vmem:[%s5204 + $0x24] sm:$0xf]
    %v5215 = vld [vmem:[%s5204 + $0x28] sm:$0xf]
    %v5216 = vld [vmem:[%s5204 + $0x2c] sm:$0xf]
    %v5217 = vld [vmem:[%s5204 + $0x30] sm:$0xf]
    %v5218 = vld [vmem:[%s5204 + $0x34] sm:$0xf]
    %v5219 = vld [vmem:[%s5204 + $0x38] sm:$0xf]
    %v5220 = vld [vmem:[%s5204 + $0x3c] sm:$0xf]
    %v5237 = vunpack.c.l.b16 %v5205
    %v5238 = vunpack.c.l.b16 %v5206
    %v5239 = vunpack.c.l.b16 %v5207
    %v5240 = vunpack.c.l.b16 %v5208
    %v5241 = vunpack.c.l.b16 %v5209
    %v5242 = vunpack.c.l.b16 %v5210
    %v5243 = vunpack.c.l.b16 %v5211
    %v5244 = vunpack.c.l.b16 %v5212
    %v5245 = vunpack.c.l.b16 %v5213
    %v5246 = vunpack.c.l.b16 %v5214
    %v5247 = vunpack.c.l.b16 %v5215
    %v5248 = vunpack.c.l.b16 %v5216
    %v5249 = vunpack.c.l.b16 %v5217
    %v5250 = vunpack.c.l.b16 %v5218
    %v5251 = vunpack.c.l.b16 %v5219
    %v5252 = vunpack.c.l.b16 %v5220
    %v5253 = vpack.c.b16 %v5238, %v5237
    %v5254 = vpack.c.b16 %v5240, %v5239
    %v5255 = vpack.c.b16 %v5242, %v5241
    %v5256 = vpack.c.b16 %v5244, %v5243
    %v5257 = vpack.c.b16 %v5246, %v5245
    %v5258 = vpack.c.b16 %v5248, %v5247
    %v5259 = vpack.c.b16 %v5250, %v5249
    %v5260 = vpack.c.b16 %v5252, %v5251
    %5269 = vmatprep.subr.bf16.mxu0 0
    %5270 = vmatpush1.bf16.msra.mxu0 %v5260
    %5271 = vmatprep.subr.bf16.mxu0 0
    %5272 = vmatpush1.bf16.msra.mxu0 %v5259
    %5273 = vmatprep.subr.bf16.mxu0 0
    %5274 = vmatpush1.bf16.msra.mxu0 %v5258
    %5275 = vmatprep.subr.bf16.mxu0 0
    %5276 = vmatpush1.bf16.msra.mxu0 %v5257
    %5277 = vmatprep.subr.bf16.mxu0 0
    %5278 = vmatpush1.bf16.msra.mxu0 %v5256
    %5279 = vmatprep.subr.bf16.mxu0 0
    %5280 = vmatpush1.bf16.msra.mxu0 %v5255
    %5281 = vmatprep.subr.bf16.mxu0 0
    %5282 = vmatpush1.bf16.msra.mxu0 %v5254
    %5283 = vmatprep.subr.bf16.mxu0 0
    %5284 = vmatpush1.bf16.msra.mxu0 %v5253
    %5285 = vmatprep.subr.bf16.mxu0 0
    %5286 = vmatpush2.bf16.msra.mxu0 0
    %5287 = vmatprep.subr.bf16.mxu0 0
    %5288 = vmatpush2.bf16.msra.mxu0 0
    %5289 = vmatprep.subr.bf16.mxu0 0
    %5290 = vmatpush2.bf16.msra.mxu0 0
    %5291 = vmatprep.subr.bf16.mxu0 0
    %5292 = vmatpush2.bf16.msra.mxu0 0
    %5293 = vmatprep.subr.bf16.mxu0 0
    %5294 = vmatpush2.bf16.msra.mxu0 0
    %5295 = vmatprep.subr.bf16.mxu0 0
    %5296 = vmatpush2.bf16.msra.mxu0 0
    %5297 = vmatprep.subr.bf16.mxu0 0
    %5298 = vmatpush2.bf16.msra.mxu0 0
    %5299 = vmatprep.subr.bf16.mxu0 0
    %5300 = vmatpush2.bf16.msra.mxu0 0
    %5301 = vmatprep.mubr.bf16.mxu0 0
    %5302 = vmatmul.mubr.bf16.gmra.mxu0 %v4737
    %v5303 = vpop.f32.mrf.mxu0
    %v5304 = vadd.f32 0.0, %v5303
    %v5305 = vpop.f32.mrf.mxu0
    %v5306 = vpop.f32.mrf.mxu0
    %v5307 = vpop.f32.mrf.mxu0
    %5308 = vdwg.mxu0
    %s5309 = scalar_lea.vmem [#allocation22], 8
    %v5310 = vld [vmem:[%s5309] sm:$0xf]
    %v5311 = vpack.c.bf16 %v5304, %v5304
    %v5313 = vsel %vm5110, %v5310, 0
    %v5316 = vsel %vm5114, %v5311, 0
    %5318 = vmatprep.subr.bf16.mxu0 0
    %5319 = vmatpush1.bf16.msra.mxu0 0
    %5320 = vmatprep.subr.bf16.mxu0 0
    %5321 = vmatpush1.bf16.msra.mxu0 0
    %5322 = vmatprep.subr.bf16.mxu0 0
    %5323 = vmatpush1.bf16.msra.mxu0 0
    %5324 = vmatprep.subr.bf16.mxu0 0
    %5325 = vmatpush1.bf16.msra.mxu0 0
    %5326 = vmatprep.subr.bf16.mxu0 0
    %5327 = vmatpush1.bf16.msra.mxu0 0
    %5328 = vmatprep.subr.bf16.mxu0 0
    %5329 = vmatpush1.bf16.msra.mxu0 0
    %5330 = vmatprep.subr.bf16.mxu0 0
    %5331 = vmatpush1.bf16.msra.mxu0 0
    %5332 = vmatprep.subr.bf16.mxu0 0
    %5333 = vmatpush1.bf16.msra.mxu0 %v5316
    %5334 = vmatprep.subr.bf16.mxu0 0
    %5335 = vmatpush2.bf16.msra.mxu0 0
    %5336 = vmatprep.subr.bf16.mxu0 0
    %5337 = vmatpush2.bf16.msra.mxu0 0
    %5338 = vmatprep.subr.bf16.mxu0 0
    %5339 = vmatpush2.bf16.msra.mxu0 0
    %5340 = vmatprep.subr.bf16.mxu0 0
    %5341 = vmatpush2.bf16.msra.mxu0 0
    %5342 = vmatprep.subr.bf16.mxu0 0
    %5343 = vmatpush2.bf16.msra.mxu0 0
    %5344 = vmatprep.subr.bf16.mxu0 0
    %5345 = vmatpush2.bf16.msra.mxu0 0
    %5346 = vmatprep.subr.bf16.mxu0 0
    %5347 = vmatpush2.bf16.msra.mxu0 0
    %5348 = vmatprep.subr.bf16.mxu0 0
    %5349 = vmatpush2.bf16.msra.mxu0 0
    %5350 = vmatprep.mubr.bf16.mxu0 0
    %5351 = vmatmul.mubr.bf16.gmra.mxu0 %v5313
    %v5352 = vpop.f32.mrf.mxu0
    %v5353 = vadd.f32 0.0, %v5352
    %v5354 = vpop.f32.mrf.mxu0
    %v5355 = vpop.f32.mrf.mxu0
    %v5356 = vpop.f32.mrf.mxu0
    %5357 = vdwg.mxu0
    %v5358 = vadd.f32 %v5199, %v5353
    %v5359 = vld [vmem:[#allocation25] sm:$0x1]
    %v5361 = vlaneseq
    %v5362 = vshrl.u32 %v5361, 7
    %v5363 = vsub.s32 0, %v5362
    %v5364 = vrot.slane %v5359, %v5363
    %v5366 = vadd.f32 %v5358, %v5364
    %v5367 = vunpack.c.l.bf16 %v4895
    %v5368 = vadd.f32 %v5366, %v5367
    %v5369 = vmax.f32 %v5368, 0.0
    %v5370 = vpack.c.bf16 %v5369, %v5369
    %v5371 = vld [vmem:[#allocation28] sm:$0xf]
    %v5372 = vld [vmem:[#allocation28 + $0x4] sm:$0xf]
    %v5373 = vld [vmem:[#allocation28 + $0x8] sm:$0xf]
    %v5374 = vld [vmem:[#allocation28 + $0xc] sm:$0xf]
    %v5375 = vld [vmem:[#allocation28 + $0x10] sm:$0xf]
    %v5376 = vld [vmem:[#allocation28 + $0x14] sm:$0xf]
    %v5377 = vld [vmem:[#allocation28 + $0x18] sm:$0xf]
    %v5378 = vld [vmem:[#allocation28 + $0x1c] sm:$0xf]
    %v5379 = vld [vmem:[#allocation28 + $0x20] sm:$0xf]
    %v5380 = vld [vmem:[#allocation28 + $0x24] sm:$0xf]
    %v5381 = vld [vmem:[#allocation28 + $0x28] sm:$0xf]
    %v5382 = vld [vmem:[#allocation28 + $0x2c] sm:$0xf]
    %v5383 = vld [vmem:[#allocation28 + $0x30] sm:$0xf]
    %v5384 = vld [vmem:[#allocation28 + $0x34] sm:$0xf]
    %v5385 = vld [vmem:[#allocation28 + $0x38] sm:$0xf]
    %v5386 = vld [vmem:[#allocation28 + $0x3c] sm:$0xf]
    %v5403 = vunpack.c.l.b16 %v5371
    %v5404 = vunpack.c.l.b16 %v5372
    %v5405 = vunpack.c.l.b16 %v5373
    %v5406 = vunpack.c.l.b16 %v5374
    %v5407 = vunpack.c.l.b16 %v5375
    %v5408 = vunpack.c.l.b16 %v5376
    %v5409 = vunpack.c.l.b16 %v5377
    %v5410 = vunpack.c.l.b16 %v5378
    %v5411 = vunpack.c.l.b16 %v5379
    %v5412 = vunpack.c.l.b16 %v5380
    %v5413 = vunpack.c.l.b16 %v5381
    %v5414 = vunpack.c.l.b16 %v5382
    %v5415 = vunpack.c.l.b16 %v5383
    %v5416 = vunpack.c.l.b16 %v5384
    %v5417 = vunpack.c.l.b16 %v5385
    %v5418 = vunpack.c.l.b16 %v5386
    %v5419 = vpack.c.b16 %v5404, %v5403
    %v5420 = vpack.c.b16 %v5406, %v5405
    %v5421 = vpack.c.b16 %v5408, %v5407
    %v5422 = vpack.c.b16 %v5410, %v5409
    %v5423 = vpack.c.b16 %v5412, %v5411
    %v5424 = vpack.c.b16 %v5414, %v5413
    %v5425 = vpack.c.b16 %v5416, %v5415
    %v5426 = vpack.c.b16 %v5418, %v5417
    %5435 = vmatprep.subr.bf16.mxu0 0
    %5436 = vmatpush1.bf16.msra.mxu0 %v5426
    %5437 = vmatprep.subr.bf16.mxu0 0
    %5438 = vmatpush1.bf16.msra.mxu0 %v5425
    %5439 = vmatprep.subr.bf16.mxu0 0
    %5440 = vmatpush1.bf16.msra.mxu0 %v5424
    %5441 = vmatprep.subr.bf16.mxu0 0
    %5442 = vmatpush1.bf16.msra.mxu0 %v5423
    %5443 = vmatprep.subr.bf16.mxu0 0
    %5444 = vmatpush1.bf16.msra.mxu0 %v5422
    %5445 = vmatprep.subr.bf16.mxu0 0
    %5446 = vmatpush1.bf16.msra.mxu0 %v5421
    %5447 = vmatprep.subr.bf16.mxu0 0
    %5448 = vmatpush1.bf16.msra.mxu0 %v5420
    %5449 = vmatprep.subr.bf16.mxu0 0
    %5450 = vmatpush1.bf16.msra.mxu0 %v5419
    %5451 = vmatprep.subr.bf16.mxu0 0
    %5452 = vmatpush2.bf16.msra.mxu0 0
    %5453 = vmatprep.subr.bf16.mxu0 0
    %5454 = vmatpush2.bf16.msra.mxu0 0
    %5455 = vmatprep.subr.bf16.mxu0 0
    %5456 = vmatpush2.bf16.msra.mxu0 0
    %5457 = vmatprep.subr.bf16.mxu0 0
    %5458 = vmatpush2.bf16.msra.mxu0 0
    %5459 = vmatprep.subr.bf16.mxu0 0
    %5460 = vmatpush2.bf16.msra.mxu0 0
    %5461 = vmatprep.subr.bf16.mxu0 0
    %5462 = vmatpush2.bf16.msra.mxu0 0
    %5463 = vmatprep.subr.bf16.mxu0 0
    %5464 = vmatpush2.bf16.msra.mxu0 0
    %5465 = vmatprep.subr.bf16.mxu0 0
    %5466 = vmatpush2.bf16.msra.mxu0 0
    %5467 = vmatprep.mubr.bf16.mxu0 0
    %5468 = vmatmul.mubr.bf16.gmra.mxu0 %v5370
    %v5469 = vpop.f32.mrf.mxu0
    %v5470 = vadd.f32 0.0, %v5469
    %v5471 = vpop.f32.mrf.mxu0
    %v5472 = vpop.f32.mrf.mxu0
    %v5473 = vpop.f32.mrf.mxu0
    %5474 = vdwg.mxu0
    %v5475 = vld [vmem:[#allocation26] sm:$0x3]
    %v5476 = vpack.c.bf16 %v5470, %v5470
    %s5477 = scalar_lea.vmem [#allocation28], 64
    %v5478 = vld [vmem:[%s5477] sm:$0xf]
    %v5479 = vld [vmem:[%s5477 + $0x4] sm:$0xf]
    %v5480 = vld [vmem:[%s5477 + $0x8] sm:$0xf]
    %v5481 = vld [vmem:[%s5477 + $0xc] sm:$0xf]
    %v5482 = vld [vmem:[%s5477 + $0x10] sm:$0xf]
    %v5483 = vld [vmem:[%s5477 + $0x14] sm:$0xf]
    %v5484 = vld [vmem:[%s5477 + $0x18] sm:$0xf]
    %v5485 = vld [vmem:[%s5477 + $0x1c] sm:$0xf]
    %v5486 = vld [vmem:[%s5477 + $0x20] sm:$0xf]
    %v5487 = vld [vmem:[%s5477 + $0x24] sm:$0xf]
    %v5488 = vld [vmem:[%s5477 + $0x28] sm:$0xf]
    %v5489 = vld [vmem:[%s5477 + $0x2c] sm:$0xf]
    %v5490 = vld [vmem:[%s5477 + $0x30] sm:$0xf]
    %v5491 = vld [vmem:[%s5477 + $0x34] sm:$0xf]
    %v5492 = vld [vmem:[%s5477 + $0x38] sm:$0xf]
    %v5493 = vld [vmem:[%s5477 + $0x3c] sm:$0xf]
    %v5510 = vunpack.c.l.b16 %v5478
    %v5511 = vunpack.c.l.b16 %v5479
    %v5512 = vunpack.c.l.b16 %v5480
    %v5513 = vunpack.c.l.b16 %v5481
    %v5514 = vunpack.c.l.b16 %v5482
    %v5515 = vunpack.c.l.b16 %v5483
    %v5516 = vunpack.c.l.b16 %v5484
    %v5517 = vunpack.c.l.b16 %v5485
    %v5518 = vunpack.c.l.b16 %v5486
    %v5519 = vunpack.c.l.b16 %v5487
    %v5520 = vunpack.c.l.b16 %v5488
    %v5521 = vunpack.c.l.b16 %v5489
    %v5522 = vunpack.c.l.b16 %v5490
    %v5523 = vunpack.c.l.b16 %v5491
    %v5524 = vunpack.c.l.b16 %v5492
    %v5525 = vunpack.c.l.b16 %v5493
    %v5526 = vpack.c.b16 %v5511, %v5510
    %v5527 = vpack.c.b16 %v5513, %v5512
    %v5528 = vpack.c.b16 %v5515, %v5514
    %v5529 = vpack.c.b16 %v5517, %v5516
    %v5530 = vpack.c.b16 %v5519, %v5518
    %v5531 = vpack.c.b16 %v5521, %v5520
    %v5532 = vpack.c.b16 %v5523, %v5522
    %v5533 = vpack.c.b16 %v5525, %v5524
    %5542 = vmatprep.subr.bf16.mxu0 0
    %5543 = vmatpush1.bf16.msra.mxu0 %v5533
    %5544 = vmatprep.subr.bf16.mxu0 0
    %5545 = vmatpush1.bf16.msra.mxu0 %v5532
    %5546 = vmatprep.subr.bf16.mxu0 0
    %5547 = vmatpush1.bf16.msra.mxu0 %v5531
    %5548 = vmatprep.subr.bf16.mxu0 0
    %5549 = vmatpush1.bf16.msra.mxu0 %v5530
    %5550 = vmatprep.subr.bf16.mxu0 0
    %5551 = vmatpush1.bf16.msra.mxu0 %v5529
    %5552 = vmatprep.subr.bf16.mxu0 0
    %5553 = vmatpush1.bf16.msra.mxu0 %v5528
    %5554 = vmatprep.subr.bf16.mxu0 0
    %5555 = vmatpush1.bf16.msra.mxu0 %v5527
    %5556 = vmatprep.subr.bf16.mxu0 0
    %5557 = vmatpush1.bf16.msra.mxu0 %v5526
    %5558 = vmatprep.subr.bf16.mxu0 0
    %5559 = vmatpush2.bf16.msra.mxu0 0
    %5560 = vmatprep.subr.bf16.mxu0 0
    %5561 = vmatpush2.bf16.msra.mxu0 0
    %5562 = vmatprep.subr.bf16.mxu0 0
    %5563 = vmatpush2.bf16.msra.mxu0 0
    %5564 = vmatprep.subr.bf16.mxu0 0
    %5565 = vmatpush2.bf16.msra.mxu0 0
    %5566 = vmatprep.subr.bf16.mxu0 0
    %5567 = vmatpush2.bf16.msra.mxu0 0
    %5568 = vmatprep.subr.bf16.mxu0 0
    %5569 = vmatpush2.bf16.msra.mxu0 0
    %5570 = vmatprep.subr.bf16.mxu0 0
    %5571 = vmatpush2.bf16.msra.mxu0 0
    %5572 = vmatprep.subr.bf16.mxu0 0
    %5573 = vmatpush2.bf16.msra.mxu0 0
    %5574 = vmatprep.mubr.bf16.mxu0 0
    %5575 = vmatmul.mubr.bf16.gmra.mxu0 %v5370
    %v5576 = vpop.f32.mrf.mxu0
    %v5577 = vadd.f32 0.0, %v5576
    %v5578 = vpop.f32.mrf.mxu0
    %v5579 = vpop.f32.mrf.mxu0
    %v5580 = vpop.f32.mrf.mxu0
    %5581 = vdwg.mxu0
    %s5582 = scalar_lea.vmem [#allocation26], 2
    %v5583 = vld [vmem:[%s5582] sm:$0x3]
    %v5584 = vpack.c.bf16 %v5577, %v5577
    %v5586 = vsel %vm5110, %v5583, 0
    %v5589 = vsel %vm5114, %v5584, 0
    %5591 = vmatprep.subr.bf16.mxu0 0
    %5592 = vmatpush1.bf16.msra.mxu0 0
    %5593 = vmatprep.subr.bf16.mxu0 0
    %5594 = vmatpush1.bf16.msra.mxu0 0
    %5595 = vmatprep.subr.bf16.mxu0 0
    %5596 = vmatpush1.bf16.msra.mxu0 0
    %5597 = vmatprep.subr.bf16.mxu0 0
    %5598 = vmatpush1.bf16.msra.mxu0 0
    %5599 = vmatprep.subr.bf16.mxu0 0
    %5600 = vmatpush1.bf16.msra.mxu0 0
    %5601 = vmatprep.subr.bf16.mxu0 0
    %5602 = vmatpush1.bf16.msra.mxu0 0
    %5603 = vmatprep.subr.bf16.mxu0 0
    %5604 = vmatpush1.bf16.msra.mxu0 0
    %5605 = vmatprep.subr.bf16.mxu0 0
    %5606 = vmatpush1.bf16.msra.mxu0 %v5589
    %5607 = vmatprep.subr.bf16.mxu0 0
    %5608 = vmatpush2.bf16.msra.mxu0 0
    %5609 = vmatprep.subr.bf16.mxu0 0
    %5610 = vmatpush2.bf16.msra.mxu0 0
    %5611 = vmatprep.subr.bf16.mxu0 0
    %5612 = vmatpush2.bf16.msra.mxu0 0
    %5613 = vmatprep.subr.bf16.mxu0 0
    %5614 = vmatpush2.bf16.msra.mxu0 0
    %5615 = vmatprep.subr.bf16.mxu0 0
    %5616 = vmatpush2.bf16.msra.mxu0 0
    %5617 = vmatprep.subr.bf16.mxu0 0
    %5618 = vmatpush2.bf16.msra.mxu0 0
    %5619 = vmatprep.subr.bf16.mxu0 0
    %5620 = vmatpush2.bf16.msra.mxu0 0
    %5621 = vmatprep.subr.bf16.mxu0 0
    %5622 = vmatpush2.bf16.msra.mxu0 0
    %5623 = vmatprep.mubr.bf16.mxu0 0
    %5624 = vmatmul.mubr.bf16.gmra.mxu0 %v5586
    %v5625 = vpop.f32.mrf.mxu0
    %v5626 = vadd.f32 0.0, %v5625
    %v5627 = vpop.f32.mrf.mxu0
    %v5628 = vpop.f32.mrf.mxu0
    %v5629 = vpop.f32.mrf.mxu0
    %5630 = vdwg.mxu0
    %v5632 = vsel %vm5110, %v5475, 0
    %v5635 = vsel %vm5114, %v5476, 0
    %5637 = vmatprep.subr.bf16.mxu0 0
    %5638 = vmatpush1.bf16.msra.mxu0 0
    %5639 = vmatprep.subr.bf16.mxu0 0
    %5640 = vmatpush1.bf16.msra.mxu0 0
    %5641 = vmatprep.subr.bf16.mxu0 0
    %5642 = vmatpush1.bf16.msra.mxu0 0
    %5643 = vmatprep.subr.bf16.mxu0 0
    %5644 = vmatpush1.bf16.msra.mxu0 0
    %5645 = vmatprep.subr.bf16.mxu0 0
    %5646 = vmatpush1.bf16.msra.mxu0 0
    %5647 = vmatprep.subr.bf16.mxu0 0
    %5648 = vmatpush1.bf16.msra.mxu0 0
    %5649 = vmatprep.subr.bf16.mxu0 0
    %5650 = vmatpush1.bf16.msra.mxu0 0
    %5651 = vmatprep.subr.bf16.mxu0 0
    %5652 = vmatpush1.bf16.msra.mxu0 %v5635
    %5653 = vmatprep.subr.bf16.mxu0 0
    %5654 = vmatpush2.bf16.msra.mxu0 0
    %5655 = vmatprep.subr.bf16.mxu0 0
    %5656 = vmatpush2.bf16.msra.mxu0 0
    %5657 = vmatprep.subr.bf16.mxu0 0
    %5658 = vmatpush2.bf16.msra.mxu0 0
    %5659 = vmatprep.subr.bf16.mxu0 0
    %5660 = vmatpush2.bf16.msra.mxu0 0
    %5661 = vmatprep.subr.bf16.mxu0 0
    %5662 = vmatpush2.bf16.msra.mxu0 0
    %5663 = vmatprep.subr.bf16.mxu0 0
    %5664 = vmatpush2.bf16.msra.mxu0 0
    %5665 = vmatprep.subr.bf16.mxu0 0
    %5666 = vmatpush2.bf16.msra.mxu0 0
    %5667 = vmatprep.subr.bf16.mxu0 0
    %5668 = vmatpush2.bf16.msra.mxu0 0
    %5669 = vmatprep.mubr.bf16.mxu0 0
    %5670 = vmatmul.mubr.bf16.gmra.mxu0 %v5632
    %v5671 = vpop.f32.mrf.mxu0
    %v5672 = vadd.f32 %v5626, %v5671
    %v5673 = vpop.f32.mrf.mxu0
    %v5674 = vpop.f32.mrf.mxu0
    %v5675 = vpop.f32.mrf.mxu0
    %5676 = vdwg.mxu0
    %s5677 = scalar_lea.vmem [#allocation28], 128
    %v5678 = vld [vmem:[%s5677] sm:$0xf]
    %v5679 = vld [vmem:[%s5677 + $0x4] sm:$0xf]
    %v5680 = vld [vmem:[%s5677 + $0x8] sm:$0xf]
    %v5681 = vld [vmem:[%s5677 + $0xc] sm:$0xf]
    %v5682 = vld [vmem:[%s5677 + $0x10] sm:$0xf]
    %v5683 = vld [vmem:[%s5677 + $0x14] sm:$0xf]
    %v5684 = vld [vmem:[%s5677 + $0x18] sm:$0xf]
    %v5685 = vld [vmem:[%s5677 + $0x1c] sm:$0xf]
    %v5686 = vld [vmem:[%s5677 + $0x20] sm:$0xf]
    %v5687 = vld [vmem:[%s5677 + $0x24] sm:$0xf]
    %v5688 = vld [vmem:[%s5677 + $0x28] sm:$0xf]
    %v5689 = vld [vmem:[%s5677 + $0x2c] sm:$0xf]
    %v5690 = vld [vmem:[%s5677 + $0x30] sm:$0xf]
    %v5691 = vld [vmem:[%s5677 + $0x34] sm:$0xf]
    %v5692 = vld [vmem:[%s5677 + $0x38] sm:$0xf]
    %v5693 = vld [vmem:[%s5677 + $0x3c] sm:$0xf]
    %v5710 = vunpack.c.l.b16 %v5678
    %v5711 = vunpack.c.l.b16 %v5679
    %v5712 = vunpack.c.l.b16 %v5680
    %v5713 = vunpack.c.l.b16 %v5681
    %v5714 = vunpack.c.l.b16 %v5682
    %v5715 = vunpack.c.l.b16 %v5683
    %v5716 = vunpack.c.l.b16 %v5684
    %v5717 = vunpack.c.l.b16 %v5685
    %v5718 = vunpack.c.l.b16 %v5686
    %v5719 = vunpack.c.l.b16 %v5687
    %v5720 = vunpack.c.l.b16 %v5688
    %v5721 = vunpack.c.l.b16 %v5689
    %v5722 = vunpack.c.l.b16 %v5690
    %v5723 = vunpack.c.l.b16 %v5691
    %v5724 = vunpack.c.l.b16 %v5692
    %v5725 = vunpack.c.l.b16 %v5693
    %v5726 = vpack.c.b16 %v5711, %v5710
    %v5727 = vpack.c.b16 %v5713, %v5712
    %v5728 = vpack.c.b16 %v5715, %v5714
    %v5729 = vpack.c.b16 %v5717, %v5716
    %v5730 = vpack.c.b16 %v5719, %v5718
    %v5731 = vpack.c.b16 %v5721, %v5720
    %v5732 = vpack.c.b16 %v5723, %v5722
    %v5733 = vpack.c.b16 %v5725, %v5724
    %5742 = vmatprep.subr.bf16.mxu0 0
    %5743 = vmatpush1.bf16.msra.mxu0 %v5733
    %5744 = vmatprep.subr.bf16.mxu0 0
    %5745 = vmatpush1.bf16.msra.mxu0 %v5732
    %5746 = vmatprep.subr.bf16.mxu0 0
    %5747 = vmatpush1.bf16.msra.mxu0 %v5731
    %5748 = vmatprep.subr.bf16.mxu0 0
    %5749 = vmatpush1.bf16.msra.mxu0 %v5730
    %5750 = vmatprep.subr.bf16.mxu0 0
    %5751 = vmatpush1.bf16.msra.mxu0 %v5729
    %5752 = vmatprep.subr.bf16.mxu0 0
    %5753 = vmatpush1.bf16.msra.mxu0 %v5728
    %5754 = vmatprep.subr.bf16.mxu0 0
    %5755 = vmatpush1.bf16.msra.mxu0 %v5727
    %5756 = vmatprep.subr.bf16.mxu0 0
    %5757 = vmatpush1.bf16.msra.mxu0 %v5726
    %5758 = vmatprep.subr.bf16.mxu0 0
    %5759 = vmatpush2.bf16.msra.mxu0 0
    %5760 = vmatprep.subr.bf16.mxu0 0
    %5761 = vmatpush2.bf16.msra.mxu0 0
    %5762 = vmatprep.subr.bf16.mxu0 0
    %5763 = vmatpush2.bf16.msra.mxu0 0
    %5764 = vmatprep.subr.bf16.mxu0 0
    %5765 = vmatpush2.bf16.msra.mxu0 0
    %5766 = vmatprep.subr.bf16.mxu0 0
    %5767 = vmatpush2.bf16.msra.mxu0 0
    %5768 = vmatprep.subr.bf16.mxu0 0
    %5769 = vmatpush2.bf16.msra.mxu0 0
    %5770 = vmatprep.subr.bf16.mxu0 0
    %5771 = vmatpush2.bf16.msra.mxu0 0
    %5772 = vmatprep.subr.bf16.mxu0 0
    %5773 = vmatpush2.bf16.msra.mxu0 0
    %5774 = vmatprep.mubr.bf16.mxu0 0
    %5775 = vmatmul.mubr.bf16.gmra.mxu0 %v5370
    %v5776 = vpop.f32.mrf.mxu0
    %v5777 = vadd.f32 0.0, %v5776
    %v5778 = vpop.f32.mrf.mxu0
    %v5779 = vpop.f32.mrf.mxu0
    %v5780 = vpop.f32.mrf.mxu0
    %5781 = vdwg.mxu0
    %s5782 = scalar_lea.vmem [#allocation26], 4
    %v5783 = vld [vmem:[%s5782] sm:$0x3]
    %v5784 = vpack.c.bf16 %v5777, %v5777
    %v5786 = vsel %vm5110, %v5783, 0
    %v5789 = vsel %vm5114, %v5784, 0
    %5791 = vmatprep.subr.bf16.mxu0 0
    %5792 = vmatpush1.bf16.msra.mxu0 0
    %5793 = vmatprep.subr.bf16.mxu0 0
    %5794 = vmatpush1.bf16.msra.mxu0 0
    %5795 = vmatprep.subr.bf16.mxu0 0
    %5796 = vmatpush1.bf16.msra.mxu0 0
    %5797 = vmatprep.subr.bf16.mxu0 0
    %5798 = vmatpush1.bf16.msra.mxu0 0
    %5799 = vmatprep.subr.bf16.mxu0 0
    %5800 = vmatpush1.bf16.msra.mxu0 0
    %5801 = vmatprep.subr.bf16.mxu0 0
    %5802 = vmatpush1.bf16.msra.mxu0 0
    %5803 = vmatprep.subr.bf16.mxu0 0
    %5804 = vmatpush1.bf16.msra.mxu0 0
    %5805 = vmatprep.subr.bf16.mxu0 0
    %5806 = vmatpush1.bf16.msra.mxu0 %v5789
    %5807 = vmatprep.subr.bf16.mxu0 0
    %5808 = vmatpush2.bf16.msra.mxu0 0
    %5809 = vmatprep.subr.bf16.mxu0 0
    %5810 = vmatpush2.bf16.msra.mxu0 0
    %5811 = vmatprep.subr.bf16.mxu0 0
    %5812 = vmatpush2.bf16.msra.mxu0 0
    %5813 = vmatprep.subr.bf16.mxu0 0
    %5814 = vmatpush2.bf16.msra.mxu0 0
    %5815 = vmatprep.subr.bf16.mxu0 0
    %5816 = vmatpush2.bf16.msra.mxu0 0
    %5817 = vmatprep.subr.bf16.mxu0 0
    %5818 = vmatpush2.bf16.msra.mxu0 0
    %5819 = vmatprep.subr.bf16.mxu0 0
    %5820 = vmatpush2.bf16.msra.mxu0 0
    %5821 = vmatprep.subr.bf16.mxu0 0
    %5822 = vmatpush2.bf16.msra.mxu0 0
    %5823 = vmatprep.mubr.bf16.mxu0 0
    %5824 = vmatmul.mubr.bf16.gmra.mxu0 %v5786
    %v5825 = vpop.f32.mrf.mxu0
    %v5826 = vadd.f32 0.0, %v5825
    %v5827 = vpop.f32.mrf.mxu0
    %v5828 = vpop.f32.mrf.mxu0
    %v5829 = vpop.f32.mrf.mxu0
    %5830 = vdwg.mxu0
    %v5831 = vadd.f32 %v5672, %v5826
    %v5832 = vld [vmem:[#allocation29] sm:$0x1]
    %v5834 = vlaneseq
    %v5835 = vshrl.u32 %v5834, 7
    %v5836 = vsub.s32 0, %v5835
    %v5837 = vrot.slane %v5832, %v5836
    %v5839 = vadd.f32 %v5831, %v5837
    %v5840 = vmax.f32 %v5839, 0.0
    %v5841 = vpack.c.bf16 %v5840, %v5840
    %v5842 = vld [vmem:[#allocation32] sm:$0xf]
    %v5843 = vld [vmem:[#allocation32 + $0x4] sm:$0xf]
    %v5844 = vld [vmem:[#allocation32 + $0x8] sm:$0xf]
    %v5845 = vld [vmem:[#allocation32 + $0xc] sm:$0xf]
    %v5846 = vld [vmem:[#allocation32 + $0x10] sm:$0xf]
    %v5847 = vld [vmem:[#allocation32 + $0x14] sm:$0xf]
    %v5848 = vld [vmem:[#allocation32 + $0x18] sm:$0xf]
    %v5849 = vld [vmem:[#allocation32 + $0x1c] sm:$0xf]
    %v5850 = vld [vmem:[#allocation32 + $0x20] sm:$0xf]
    %v5851 = vld [vmem:[#allocation32 + $0x24] sm:$0xf]
    %v5852 = vld [vmem:[#allocation32 + $0x28] sm:$0xf]
    %v5853 = vld [vmem:[#allocation32 + $0x2c] sm:$0xf]
    %v5854 = vld [vmem:[#allocation32 + $0x30] sm:$0xf]
    %v5855 = vld [vmem:[#allocation32 + $0x34] sm:$0xf]
    %v5856 = vld [vmem:[#allocation32 + $0x38] sm:$0xf]
    %v5857 = vld [vmem:[#allocation32 + $0x3c] sm:$0xf]
    %v5874 = vunpack.c.l.b16 %v5842
    %v5875 = vunpack.c.l.b16 %v5843
    %v5876 = vunpack.c.l.b16 %v5844
    %v5877 = vunpack.c.l.b16 %v5845
    %v5878 = vunpack.c.l.b16 %v5846
    %v5879 = vunpack.c.l.b16 %v5847
    %v5880 = vunpack.c.l.b16 %v5848
    %v5881 = vunpack.c.l.b16 %v5849
    %v5882 = vunpack.c.l.b16 %v5850
    %v5883 = vunpack.c.l.b16 %v5851
    %v5884 = vunpack.c.l.b16 %v5852
    %v5885 = vunpack.c.l.b16 %v5853
    %v5886 = vunpack.c.l.b16 %v5854
    %v5887 = vunpack.c.l.b16 %v5855
    %v5888 = vunpack.c.l.b16 %v5856
    %v5889 = vunpack.c.l.b16 %v5857
    %v5890 = vpack.c.b16 %v5875, %v5874
    %v5891 = vpack.c.b16 %v5877, %v5876
    %v5892 = vpack.c.b16 %v5879, %v5878
    %v5893 = vpack.c.b16 %v5881, %v5880
    %v5894 = vpack.c.b16 %v5883, %v5882
    %v5895 = vpack.c.b16 %v5885, %v5884
    %v5896 = vpack.c.b16 %v5887, %v5886
    %v5897 = vpack.c.b16 %v5889, %v5888
    %5906 = vmatprep.subr.bf16.mxu0 0
    %5907 = vmatpush1.bf16.msra.mxu0 %v5897
    %5908 = vmatprep.subr.bf16.mxu0 0
    %5909 = vmatpush1.bf16.msra.mxu0 %v5896
    %5910 = vmatprep.subr.bf16.mxu0 0
    %5911 = vmatpush1.bf16.msra.mxu0 %v5895
    %5912 = vmatprep.subr.bf16.mxu0 0
    %5913 = vmatpush1.bf16.msra.mxu0 %v5894
    %5914 = vmatprep.subr.bf16.mxu0 0
    %5915 = vmatpush1.bf16.msra.mxu0 %v5893
    %5916 = vmatprep.subr.bf16.mxu0 0
    %5917 = vmatpush1.bf16.msra.mxu0 %v5892
    %5918 = vmatprep.subr.bf16.mxu0 0
    %5919 = vmatpush1.bf16.msra.mxu0 %v5891
    %5920 = vmatprep.subr.bf16.mxu0 0
    %5921 = vmatpush1.bf16.msra.mxu0 %v5890
    %5922 = vmatprep.subr.bf16.mxu0 0
    %5923 = vmatpush2.bf16.msra.mxu0 0
    %5924 = vmatprep.subr.bf16.mxu0 0
    %5925 = vmatpush2.bf16.msra.mxu0 0
    %5926 = vmatprep.subr.bf16.mxu0 0
    %5927 = vmatpush2.bf16.msra.mxu0 0
    %5928 = vmatprep.subr.bf16.mxu0 0
    %5929 = vmatpush2.bf16.msra.mxu0 0
    %5930 = vmatprep.subr.bf16.mxu0 0
    %5931 = vmatpush2.bf16.msra.mxu0 0
    %5932 = vmatprep.subr.bf16.mxu0 0
    %5933 = vmatpush2.bf16.msra.mxu0 0
    %5934 = vmatprep.subr.bf16.mxu0 0
    %5935 = vmatpush2.bf16.msra.mxu0 0
    %5936 = vmatprep.subr.bf16.mxu0 0
    %5937 = vmatpush2.bf16.msra.mxu0 0
    %5938 = vmatprep.mubr.bf16.mxu0 0
    %5939 = vmatmul.mubr.bf16.gmra.mxu0 %v5370
    %v5940 = vpop.f32.mrf.mxu0
    %v5941 = vadd.f32 0.0, %v5940
    %v5942 = vpop.f32.mrf.mxu0
    %v5943 = vpop.f32.mrf.mxu0
    %v5944 = vpop.f32.mrf.mxu0
    %5945 = vdwg.mxu0
    %v5946 = vld [vmem:[#allocation31] sm:$0x3]
    %v5947 = vpack.c.bf16 %v5941, %v5941
    %v5948 = vld [vmem:[#allocation34] sm:$0x1]
    %v5950 = vlaneseq
    %v5951 = vshrl.u32 %v5950, 7
    %v5952 = vsub.s32 0, %v5951
    %v5953 = vrot.slane %v5948, %v5952
    %v5956 = vsel %vm5110, %v5946, 0
    %v5959 = vsel %vm5114, %v5947, 0
    %5961 = vmatprep.subr.bf16.mxu0 0
    %5962 = vmatpush1.bf16.msra.mxu0 0
    %5963 = vmatprep.subr.bf16.mxu0 0
    %5964 = vmatpush1.bf16.msra.mxu0 0
    %5965 = vmatprep.subr.bf16.mxu0 0
    %5966 = vmatpush1.bf16.msra.mxu0 0
    %5967 = vmatprep.subr.bf16.mxu0 0
    %5968 = vmatpush1.bf16.msra.mxu0 0
    %5969 = vmatprep.subr.bf16.mxu0 0
    %5970 = vmatpush1.bf16.msra.mxu0 0
    %5971 = vmatprep.subr.bf16.mxu0 0
    %5972 = vmatpush1.bf16.msra.mxu0 0
    %5973 = vmatprep.subr.bf16.mxu0 0
    %5974 = vmatpush1.bf16.msra.mxu0 0
    %5975 = vmatprep.subr.bf16.mxu0 0
    %5976 = vmatpush1.bf16.msra.mxu0 %v5959
    %5977 = vmatprep.subr.bf16.mxu0 0
    %5978 = vmatpush2.bf16.msra.mxu0 0
    %5979 = vmatprep.subr.bf16.mxu0 0
    %5980 = vmatpush2.bf16.msra.mxu0 0
    %5981 = vmatprep.subr.bf16.mxu0 0
    %5982 = vmatpush2.bf16.msra.mxu0 0
    %5983 = vmatprep.subr.bf16.mxu0 0
    %5984 = vmatpush2.bf16.msra.mxu0 0
    %5985 = vmatprep.subr.bf16.mxu0 0
    %5986 = vmatpush2.bf16.msra.mxu0 0
    %5987 = vmatprep.subr.bf16.mxu0 0
    %5988 = vmatpush2.bf16.msra.mxu0 0
    %5989 = vmatprep.subr.bf16.mxu0 0
    %5990 = vmatpush2.bf16.msra.mxu0 0
    %5991 = vmatprep.subr.bf16.mxu0 0
    %5992 = vmatpush2.bf16.msra.mxu0 0
    %5993 = vmatprep.mubr.bf16.mxu0 0
    %5994 = vmatmul.mubr.bf16.gmra.mxu0 %v5956
    %v5995 = vpop.f32.mrf.mxu0
    %v5996 = vadd.f32 %v5953, %v5995
    %v5997 = vpop.f32.mrf.mxu0
    %v5998 = vpop.f32.mrf.mxu0
    %v5999 = vpop.f32.mrf.mxu0
    %6000 = vdwg.mxu0
    %v6001 = vpack.c.bf16 %v5996, %v5996
    %v6002 = vld [vmem:[#allocation37] sm:$0xf]
    %v6003 = vld [vmem:[#allocation37 + $0x4] sm:$0xf]
    %v6004 = vld [vmem:[#allocation37 + $0x8] sm:$0xf]
    %v6005 = vld [vmem:[#allocation37 + $0xc] sm:$0xf]
    %v6006 = vld [vmem:[#allocation37 + $0x10] sm:$0xf]
    %v6007 = vld [vmem:[#allocation37 + $0x14] sm:$0xf]
    %v6008 = vld [vmem:[#allocation37 + $0x18] sm:$0xf]
    %v6009 = vld [vmem:[#allocation37 + $0x1c] sm:$0xf]
    %v6010 = vld [vmem:[#allocation37 + $0x20] sm:$0xf]
    %v6011 = vld [vmem:[#allocation37 + $0x24] sm:$0xf]
    %v6012 = vld [vmem:[#allocation37 + $0x28] sm:$0xf]
    %v6013 = vld [vmem:[#allocation37 + $0x2c] sm:$0xf]
    %v6014 = vld [vmem:[#allocation37 + $0x30] sm:$0xf]
    %v6015 = vld [vmem:[#allocation37 + $0x34] sm:$0xf]
    %v6016 = vld [vmem:[#allocation37 + $0x38] sm:$0xf]
    %v6017 = vld [vmem:[#allocation37 + $0x3c] sm:$0xf]
    %v6034 = vunpack.c.l.b16 %v6002
    %v6035 = vunpack.c.l.b16 %v6003
    %v6036 = vunpack.c.l.b16 %v6004
    %v6037 = vunpack.c.l.b16 %v6005
    %v6038 = vunpack.c.l.b16 %v6006
    %v6039 = vunpack.c.l.b16 %v6007
    %v6040 = vunpack.c.l.b16 %v6008
    %v6041 = vunpack.c.l.b16 %v6009
    %v6042 = vunpack.c.l.b16 %v6010
    %v6043 = vunpack.c.l.b16 %v6011
    %v6044 = vunpack.c.l.b16 %v6012
    %v6045 = vunpack.c.l.b16 %v6013
    %v6046 = vunpack.c.l.b16 %v6014
    %v6047 = vunpack.c.l.b16 %v6015
    %v6048 = vunpack.c.l.b16 %v6016
    %v6049 = vunpack.c.l.b16 %v6017
    %v6050 = vpack.c.b16 %v6035, %v6034
    %v6051 = vpack.c.b16 %v6037, %v6036
    %v6052 = vpack.c.b16 %v6039, %v6038
    %v6053 = vpack.c.b16 %v6041, %v6040
    %v6054 = vpack.c.b16 %v6043, %v6042
    %v6055 = vpack.c.b16 %v6045, %v6044
    %v6056 = vpack.c.b16 %v6047, %v6046
    %v6057 = vpack.c.b16 %v6049, %v6048
    %6066 = vmatprep.subr.bf16.mxu0 0
    %6067 = vmatpush1.bf16.msra.mxu0 %v6057
    %6068 = vmatprep.subr.bf16.mxu0 0
    %6069 = vmatpush1.bf16.msra.mxu0 %v6056
    %6070 = vmatprep.subr.bf16.mxu0 0
    %6071 = vmatpush1.bf16.msra.mxu0 %v6055
    %6072 = vmatprep.subr.bf16.mxu0 0
    %6073 = vmatpush1.bf16.msra.mxu0 %v6054
    %6074 = vmatprep.subr.bf16.mxu0 0
    %6075 = vmatpush1.bf16.msra.mxu0 %v6053
    %6076 = vmatprep.subr.bf16.mxu0 0
    %6077 = vmatpush1.bf16.msra.mxu0 %v6052
    %6078 = vmatprep.subr.bf16.mxu0 0
    %6079 = vmatpush1.bf16.msra.mxu0 %v6051
    %6080 = vmatprep.subr.bf16.mxu0 0
    %6081 = vmatpush1.bf16.msra.mxu0 %v6050
    %6082 = vmatprep.subr.bf16.mxu0 0
    %6083 = vmatpush2.bf16.msra.mxu0 0
    %6084 = vmatprep.subr.bf16.mxu0 0
    %6085 = vmatpush2.bf16.msra.mxu0 0
    %6086 = vmatprep.subr.bf16.mxu0 0
    %6087 = vmatpush2.bf16.msra.mxu0 0
    %6088 = vmatprep.subr.bf16.mxu0 0
    %6089 = vmatpush2.bf16.msra.mxu0 0
    %6090 = vmatprep.subr.bf16.mxu0 0
    %6091 = vmatpush2.bf16.msra.mxu0 0
    %6092 = vmatprep.subr.bf16.mxu0 0
    %6093 = vmatpush2.bf16.msra.mxu0 0
    %6094 = vmatprep.subr.bf16.mxu0 0
    %6095 = vmatpush2.bf16.msra.mxu0 0
    %6096 = vmatprep.subr.bf16.mxu0 0
    %6097 = vmatpush2.bf16.msra.mxu0 0
    %6098 = vmatprep.mubr.bf16.mxu0 0
    %6099 = vmatmul.mubr.bf16.gmra.mxu0 %v5841
    %v6100 = vpop.f32.mrf.mxu0
    %v6101 = vadd.f32 0.0, %v6100
    %v6102 = vpop.f32.mrf.mxu0
    %v6103 = vpop.f32.mrf.mxu0
    %v6104 = vpop.f32.mrf.mxu0
    %6105 = vdwg.mxu0
    %v6106 = vld [vmem:[#allocation35] sm:$0x3]
    %v6107 = vpack.c.bf16 %v6101, %v6101
    %s6108 = scalar_lea.vmem [#allocation37], 64
    %v6109 = vld [vmem:[%s6108] sm:$0xf]
    %v6110 = vld [vmem:[%s6108 + $0x4] sm:$0xf]
    %v6111 = vld [vmem:[%s6108 + $0x8] sm:$0xf]
    %v6112 = vld [vmem:[%s6108 + $0xc] sm:$0xf]
    %v6113 = vld [vmem:[%s6108 + $0x10] sm:$0xf]
    %v6114 = vld [vmem:[%s6108 + $0x14] sm:$0xf]
    %v6115 = vld [vmem:[%s6108 + $0x18] sm:$0xf]
    %v6116 = vld [vmem:[%s6108 + $0x1c] sm:$0xf]
    %v6117 = vld [vmem:[%s6108 + $0x20] sm:$0xf]
    %v6118 = vld [vmem:[%s6108 + $0x24] sm:$0xf]
    %v6119 = vld [vmem:[%s6108 + $0x28] sm:$0xf]
    %v6120 = vld [vmem:[%s6108 + $0x2c] sm:$0xf]
    %v6121 = vld [vmem:[%s6108 + $0x30] sm:$0xf]
    %v6122 = vld [vmem:[%s6108 + $0x34] sm:$0xf]
    %v6123 = vld [vmem:[%s6108 + $0x38] sm:$0xf]
    %v6124 = vld [vmem:[%s6108 + $0x3c] sm:$0xf]
    %v6141 = vunpack.c.l.b16 %v6109
    %v6142 = vunpack.c.l.b16 %v6110
    %v6143 = vunpack.c.l.b16 %v6111
    %v6144 = vunpack.c.l.b16 %v6112
    %v6145 = vunpack.c.l.b16 %v6113
    %v6146 = vunpack.c.l.b16 %v6114
    %v6147 = vunpack.c.l.b16 %v6115
    %v6148 = vunpack.c.l.b16 %v6116
    %v6149 = vunpack.c.l.b16 %v6117
    %v6150 = vunpack.c.l.b16 %v6118
    %v6151 = vunpack.c.l.b16 %v6119
    %v6152 = vunpack.c.l.b16 %v6120
    %v6153 = vunpack.c.l.b16 %v6121
    %v6154 = vunpack.c.l.b16 %v6122
    %v6155 = vunpack.c.l.b16 %v6123
    %v6156 = vunpack.c.l.b16 %v6124
    %v6157 = vpack.c.b16 %v6142, %v6141
    %v6158 = vpack.c.b16 %v6144, %v6143
    %v6159 = vpack.c.b16 %v6146, %v6145
    %v6160 = vpack.c.b16 %v6148, %v6147
    %v6161 = vpack.c.b16 %v6150, %v6149
    %v6162 = vpack.c.b16 %v6152, %v6151
    %v6163 = vpack.c.b16 %v6154, %v6153
    %v6164 = vpack.c.b16 %v6156, %v6155
    %6173 = vmatprep.subr.bf16.mxu0 0
    %6174 = vmatpush1.bf16.msra.mxu0 %v6164
    %6175 = vmatprep.subr.bf16.mxu0 0
    %6176 = vmatpush1.bf16.msra.mxu0 %v6163
    %6177 = vmatprep.subr.bf16.mxu0 0
    %6178 = vmatpush1.bf16.msra.mxu0 %v6162
    %6179 = vmatprep.subr.bf16.mxu0 0
    %6180 = vmatpush1.bf16.msra.mxu0 %v6161
    %6181 = vmatprep.subr.bf16.mxu0 0
    %6182 = vmatpush1.bf16.msra.mxu0 %v6160
    %6183 = vmatprep.subr.bf16.mxu0 0
    %6184 = vmatpush1.bf16.msra.mxu0 %v6159
    %6185 = vmatprep.subr.bf16.mxu0 0
    %6186 = vmatpush1.bf16.msra.mxu0 %v6158
    %6187 = vmatprep.subr.bf16.mxu0 0
    %6188 = vmatpush1.bf16.msra.mxu0 %v6157
    %6189 = vmatprep.subr.bf16.mxu0 0
    %6190 = vmatpush2.bf16.msra.mxu0 0
    %6191 = vmatprep.subr.bf16.mxu0 0
    %6192 = vmatpush2.bf16.msra.mxu0 0
    %6193 = vmatprep.subr.bf16.mxu0 0
    %6194 = vmatpush2.bf16.msra.mxu0 0
    %6195 = vmatprep.subr.bf16.mxu0 0
    %6196 = vmatpush2.bf16.msra.mxu0 0
    %6197 = vmatprep.subr.bf16.mxu0 0
    %6198 = vmatpush2.bf16.msra.mxu0 0
    %6199 = vmatprep.subr.bf16.mxu0 0
    %6200 = vmatpush2.bf16.msra.mxu0 0
    %6201 = vmatprep.subr.bf16.mxu0 0
    %6202 = vmatpush2.bf16.msra.mxu0 0
    %6203 = vmatprep.subr.bf16.mxu0 0
    %6204 = vmatpush2.bf16.msra.mxu0 0
    %6205 = vmatprep.mubr.bf16.mxu0 0
    %6206 = vmatmul.mubr.bf16.gmra.mxu0 %v5841
    %v6207 = vpop.f32.mrf.mxu0
    %v6208 = vadd.f32 0.0, %v6207
    %v6209 = vpop.f32.mrf.mxu0
    %v6210 = vpop.f32.mrf.mxu0
    %v6211 = vpop.f32.mrf.mxu0
    %6212 = vdwg.mxu0
    %s6213 = scalar_lea.vmem [#allocation35], 2
    %v6214 = vld [vmem:[%s6213] sm:$0x3]
    %v6215 = vpack.c.bf16 %v6208, %v6208
    %vm6216 = vcmask 31744
    %v6218 = vsel %vm6216, %v6214, 0
    %vm6220 = vcmask 1041408
    %v6222 = vsel %vm6220, %v6215, 0
    %6224 = vmatprep.subr.bf16.mxu0 0
    %6225 = vmatpush1.bf16.msra.mxu0 0
    %6226 = vmatprep.subr.bf16.mxu0 0
    %6227 = vmatpush1.bf16.msra.mxu0 0
    %6228 = vmatprep.subr.bf16.mxu0 0
    %6229 = vmatpush1.bf16.msra.mxu0 0
    %6230 = vmatprep.subr.bf16.mxu0 0
    %6231 = vmatpush1.bf16.msra.mxu0 0
    %6232 = vmatprep.subr.bf16.mxu0 0
    %6233 = vmatpush1.bf16.msra.mxu0 0
    %6234 = vmatprep.subr.bf16.mxu0 0
    %6235 = vmatpush1.bf16.msra.mxu0 0
    %6236 = vmatprep.subr.bf16.mxu0 0
    %6237 = vmatpush1.bf16.msra.mxu0 0
    %6238 = vmatprep.subr.bf16.mxu0 0
    %6239 = vmatpush1.bf16.msra.mxu0 %v6222
    %6240 = vmatprep.subr.bf16.mxu0 0
    %6241 = vmatpush2.bf16.msra.mxu0 0
    %6242 = vmatprep.subr.bf16.mxu0 0
    %6243 = vmatpush2.bf16.msra.mxu0 0
    %6244 = vmatprep.subr.bf16.mxu0 0
    %6245 = vmatpush2.bf16.msra.mxu0 0
    %6246 = vmatprep.subr.bf16.mxu0 0
    %6247 = vmatpush2.bf16.msra.mxu0 0
    %6248 = vmatprep.subr.bf16.mxu0 0
    %6249 = vmatpush2.bf16.msra.mxu0 0
    %6250 = vmatprep.subr.bf16.mxu0 0
    %6251 = vmatpush2.bf16.msra.mxu0 0
    %6252 = vmatprep.subr.bf16.mxu0 0
    %6253 = vmatpush2.bf16.msra.mxu0 0
    %6254 = vmatprep.subr.bf16.mxu0 0
    %6255 = vmatpush2.bf16.msra.mxu0 0
    %6256 = vmatprep.mubr.bf16.mxu0 0
    %6257 = vmatmul.mubr.bf16.gmra.mxu0 %v6218
    %v6258 = vpop.f32.mrf.mxu0
    %v6259 = vadd.f32 0.0, %v6258
    %v6260 = vpop.f32.mrf.mxu0
    %v6261 = vpop.f32.mrf.mxu0
    %v6262 = vpop.f32.mrf.mxu0
    %6263 = vdwg.mxu0
    %v6265 = vsel %vm6216, %v6106, 0
    %v6268 = vsel %vm6220, %v6107, 0
    %6270 = vmatprep.subr.bf16.mxu0 0
    %6271 = vmatpush1.bf16.msra.mxu0 0
    %6272 = vmatprep.subr.bf16.mxu0 0
    %6273 = vmatpush1.bf16.msra.mxu0 0
    %6274 = vmatprep.subr.bf16.mxu0 0
    %6275 = vmatpush1.bf16.msra.mxu0 0
    %6276 = vmatprep.subr.bf16.mxu0 0
    %6277 = vmatpush1.bf16.msra.mxu0 0
    %6278 = vmatprep.subr.bf16.mxu0 0
    %6279 = vmatpush1.bf16.msra.mxu0 0
    %6280 = vmatprep.subr.bf16.mxu0 0
    %6281 = vmatpush1.bf16.msra.mxu0 0
    %6282 = vmatprep.subr.bf16.mxu0 0
    %6283 = vmatpush1.bf16.msra.mxu0 0
    %6284 = vmatprep.subr.bf16.mxu0 0
    %6285 = vmatpush1.bf16.msra.mxu0 %v6268
    %6286 = vmatprep.subr.bf16.mxu0 0
    %6287 = vmatpush2.bf16.msra.mxu0 0
    %6288 = vmatprep.subr.bf16.mxu0 0
    %6289 = vmatpush2.bf16.msra.mxu0 0
    %6290 = vmatprep.subr.bf16.mxu0 0
    %6291 = vmatpush2.bf16.msra.mxu0 0
    %6292 = vmatprep.subr.bf16.mxu0 0
    %6293 = vmatpush2.bf16.msra.mxu0 0
    %6294 = vmatprep.subr.bf16.mxu0 0
    %6295 = vmatpush2.bf16.msra.mxu0 0
    %6296 = vmatprep.subr.bf16.mxu0 0
    %6297 = vmatpush2.bf16.msra.mxu0 0
    %6298 = vmatprep.subr.bf16.mxu0 0
    %6299 = vmatpush2.bf16.msra.mxu0 0
    %6300 = vmatprep.subr.bf16.mxu0 0
    %6301 = vmatpush2.bf16.msra.mxu0 0
    %6302 = vmatprep.mubr.bf16.mxu0 0
    %6303 = vmatmul.mubr.bf16.gmra.mxu0 %v6265
    %v6304 = vpop.f32.mrf.mxu0
    %v6305 = vadd.f32 %v6259, %v6304
    %v6306 = vpop.f32.mrf.mxu0
    %v6307 = vpop.f32.mrf.mxu0
    %v6308 = vpop.f32.mrf.mxu0
    %6309 = vdwg.mxu0
    %s6310 = scalar_lea.vmem [#allocation37], 128
    %v6311 = vld [vmem:[%s6310] sm:$0xf]
    %v6312 = vld [vmem:[%s6310 + $0x4] sm:$0xf]
    %v6313 = vld [vmem:[%s6310 + $0x8] sm:$0xf]
    %v6314 = vld [vmem:[%s6310 + $0xc] sm:$0xf]
    %v6315 = vld [vmem:[%s6310 + $0x10] sm:$0xf]
    %v6316 = vld [vmem:[%s6310 + $0x14] sm:$0xf]
    %v6317 = vld [vmem:[%s6310 + $0x18] sm:$0xf]
    %v6318 = vld [vmem:[%s6310 + $0x1c] sm:$0xf]
    %v6319 = vld [vmem:[%s6310 + $0x20] sm:$0xf]
    %v6320 = vld [vmem:[%s6310 + $0x24] sm:$0xf]
    %v6321 = vld [vmem:[%s6310 + $0x28] sm:$0xf]
    %v6322 = vld [vmem:[%s6310 + $0x2c] sm:$0xf]
    %v6323 = vld [vmem:[%s6310 + $0x30] sm:$0xf]
    %v6324 = vld [vmem:[%s6310 + $0x34] sm:$0xf]
    %v6325 = vld [vmem:[%s6310 + $0x38] sm:$0xf]
    %v6326 = vld [vmem:[%s6310 + $0x3c] sm:$0xf]
    %v6343 = vunpack.c.l.b16 %v6311
    %v6344 = vunpack.c.l.b16 %v6312
    %v6345 = vunpack.c.l.b16 %v6313
    %v6346 = vunpack.c.l.b16 %v6314
    %v6347 = vunpack.c.l.b16 %v6315
    %v6348 = vunpack.c.l.b16 %v6316
    %v6349 = vunpack.c.l.b16 %v6317
    %v6350 = vunpack.c.l.b16 %v6318
    %v6351 = vunpack.c.l.b16 %v6319
    %v6352 = vunpack.c.l.b16 %v6320
    %v6353 = vunpack.c.l.b16 %v6321
    %v6354 = vunpack.c.l.b16 %v6322
    %v6355 = vunpack.c.l.b16 %v6323
    %v6356 = vunpack.c.l.b16 %v6324
    %v6357 = vunpack.c.l.b16 %v6325
    %v6358 = vunpack.c.l.b16 %v6326
    %v6359 = vpack.c.b16 %v6344, %v6343
    %v6360 = vpack.c.b16 %v6346, %v6345
    %v6361 = vpack.c.b16 %v6348, %v6347
    %v6362 = vpack.c.b16 %v6350, %v6349
    %v6363 = vpack.c.b16 %v6352, %v6351
    %v6364 = vpack.c.b16 %v6354, %v6353
    %v6365 = vpack.c.b16 %v6356, %v6355
    %v6366 = vpack.c.b16 %v6358, %v6357
    %6375 = vmatprep.subr.bf16.mxu0 0
    %6376 = vmatpush1.bf16.msra.mxu0 %v6366
    %6377 = vmatprep.subr.bf16.mxu0 0
    %6378 = vmatpush1.bf16.msra.mxu0 %v6365
    %6379 = vmatprep.subr.bf16.mxu0 0
    %6380 = vmatpush1.bf16.msra.mxu0 %v6364
    %6381 = vmatprep.subr.bf16.mxu0 0
    %6382 = vmatpush1.bf16.msra.mxu0 %v6363
    %6383 = vmatprep.subr.bf16.mxu0 0
    %6384 = vmatpush1.bf16.msra.mxu0 %v6362
    %6385 = vmatprep.subr.bf16.mxu0 0
    %6386 = vmatpush1.bf16.msra.mxu0 %v6361
    %6387 = vmatprep.subr.bf16.mxu0 0
    %6388 = vmatpush1.bf16.msra.mxu0 %v6360
    %6389 = vmatprep.subr.bf16.mxu0 0
    %6390 = vmatpush1.bf16.msra.mxu0 %v6359
    %6391 = vmatprep.subr.bf16.mxu0 0
    %6392 = vmatpush2.bf16.msra.mxu0 0
    %6393 = vmatprep.subr.bf16.mxu0 0
    %6394 = vmatpush2.bf16.msra.mxu0 0
    %6395 = vmatprep.subr.bf16.mxu0 0
    %6396 = vmatpush2.bf16.msra.mxu0 0
    %6397 = vmatprep.subr.bf16.mxu0 0
    %6398 = vmatpush2.bf16.msra.mxu0 0
    %6399 = vmatprep.subr.bf16.mxu0 0
    %6400 = vmatpush2.bf16.msra.mxu0 0
    %6401 = vmatprep.subr.bf16.mxu0 0
    %6402 = vmatpush2.bf16.msra.mxu0 0
    %6403 = vmatprep.subr.bf16.mxu0 0
    %6404 = vmatpush2.bf16.msra.mxu0 0
    %6405 = vmatprep.subr.bf16.mxu0 0
    %6406 = vmatpush2.bf16.msra.mxu0 0
    %6407 = vmatprep.mubr.bf16.mxu0 0
    %6408 = vmatmul.mubr.bf16.gmra.mxu0 %v5841
    %v6409 = vpop.f32.mrf.mxu0
    %v6410 = vadd.f32 0.0, %v6409
    %v6411 = vpop.f32.mrf.mxu0
    %v6412 = vpop.f32.mrf.mxu0
    %v6413 = vpop.f32.mrf.mxu0
    %6414 = vdwg.mxu0
    %s6415 = scalar_lea.vmem [#allocation35], 4
    %v6416 = vld [vmem:[%s6415] sm:$0x3]
    %v6417 = vpack.c.bf16 %v6410, %v6410
    %v6419 = vsel %vm6216, %v6416, 0
    %v6422 = vsel %vm6220, %v6417, 0
    %6424 = vmatprep.subr.bf16.mxu0 0
    %6425 = vmatpush1.bf16.msra.mxu0 0
    %6426 = vmatprep.subr.bf16.mxu0 0
    %6427 = vmatpush1.bf16.msra.mxu0 0
    %6428 = vmatprep.subr.bf16.mxu0 0
    %6429 = vmatpush1.bf16.msra.mxu0 0
    %6430 = vmatprep.subr.bf16.mxu0 0
    %6431 = vmatpush1.bf16.msra.mxu0 0
    %6432 = vmatprep.subr.bf16.mxu0 0
    %6433 = vmatpush1.bf16.msra.mxu0 0
    %6434 = vmatprep.subr.bf16.mxu0 0
    %6435 = vmatpush1.bf16.msra.mxu0 0
    %6436 = vmatprep.subr.bf16.mxu0 0
    %6437 = vmatpush1.bf16.msra.mxu0 0
    %6438 = vmatprep.subr.bf16.mxu0 0
    %6439 = vmatpush1.bf16.msra.mxu0 %v6422
    %6440 = vmatprep.subr.bf16.mxu0 0
    %6441 = vmatpush2.bf16.msra.mxu0 0
    %6442 = vmatprep.subr.bf16.mxu0 0
    %6443 = vmatpush2.bf16.msra.mxu0 0
    %6444 = vmatprep.subr.bf16.mxu0 0
    %6445 = vmatpush2.bf16.msra.mxu0 0
    %6446 = vmatprep.subr.bf16.mxu0 0
    %6447 = vmatpush2.bf16.msra.mxu0 0
    %6448 = vmatprep.subr.bf16.mxu0 0
    %6449 = vmatpush2.bf16.msra.mxu0 0
    %6450 = vmatprep.subr.bf16.mxu0 0
    %6451 = vmatpush2.bf16.msra.mxu0 0
    %6452 = vmatprep.subr.bf16.mxu0 0
    %6453 = vmatpush2.bf16.msra.mxu0 0
    %6454 = vmatprep.subr.bf16.mxu0 0
    %6455 = vmatpush2.bf16.msra.mxu0 0
    %6456 = vmatprep.mubr.bf16.mxu0 0
    %6457 = vmatmul.mubr.bf16.gmra.mxu0 %v6419
    %v6458 = vpop.f32.mrf.mxu0
    %v6459 = vadd.f32 0.0, %v6458
    %v6460 = vpop.f32.mrf.mxu0
    %v6461 = vpop.f32.mrf.mxu0
    %v6462 = vpop.f32.mrf.mxu0
    %6463 = vdwg.mxu0
    %v6464 = vadd.f32 %v6305, %v6459
    %v6465 = vld [vmem:[#allocation38] sm:$0x1]
    %v6467 = vlaneseq
    %v6468 = vshrl.u32 %v6467, 7
    %v6469 = vsub.s32 0, %v6468
    %v6470 = vrot.slane %v6465, %v6469
    %v6472 = vadd.f32 %v6464, %v6470
    %v6473 = vunpack.c.l.bf16 %v6001
    %v6474 = vadd.f32 %v6472, %v6473
    %v6475 = vmax.f32 %v6474, 0.0
    %v6476 = vpack.c.bf16 %v6475, %v6475
    %v6477 = vld [vmem:[%s63] sm:$0xf]
    %v6478 = vld [vmem:[%s63 + $0x4] sm:$0xf]
    %v6479 = vld [vmem:[%s63 + $0x8] sm:$0xf]
    %v6480 = vld [vmem:[%s63 + $0xc] sm:$0xf]
    %v6481 = vld [vmem:[%s63 + $0x10] sm:$0xf]
    %v6482 = vld [vmem:[%s63 + $0x14] sm:$0xf]
    %v6483 = vld [vmem:[%s63 + $0x18] sm:$0xf]
    %v6484 = vld [vmem:[%s63 + $0x1c] sm:$0xf]
    %v6485 = vld [vmem:[%s63 + $0x20] sm:$0xf]
    %v6486 = vld [vmem:[%s63 + $0x24] sm:$0xf]
    %v6487 = vld [vmem:[%s63 + $0x28] sm:$0xf]
    %v6488 = vld [vmem:[%s63 + $0x2c] sm:$0xf]
    %v6489 = vld [vmem:[%s63 + $0x30] sm:$0xf]
    %v6490 = vld [vmem:[%s63 + $0x34] sm:$0xf]
    %v6491 = vld [vmem:[%s63 + $0x38] sm:$0xf]
    %v6492 = vld [vmem:[%s63 + $0x3c] sm:$0xf]
    %v6509 = vunpack.c.l.b16 %v6477
    %v6510 = vunpack.c.l.b16 %v6478
    %v6511 = vunpack.c.l.b16 %v6479
    %v6512 = vunpack.c.l.b16 %v6480
    %v6513 = vunpack.c.l.b16 %v6481
    %v6514 = vunpack.c.l.b16 %v6482
    %v6515 = vunpack.c.l.b16 %v6483
    %v6516 = vunpack.c.l.b16 %v6484
    %v6517 = vunpack.c.l.b16 %v6485
    %v6518 = vunpack.c.l.b16 %v6486
    %v6519 = vunpack.c.l.b16 %v6487
    %v6520 = vunpack.c.l.b16 %v6488
    %v6521 = vunpack.c.l.b16 %v6489
    %v6522 = vunpack.c.l.b16 %v6490
    %v6523 = vunpack.c.l.b16 %v6491
    %v6524 = vunpack.c.l.b16 %v6492
    %v6525 = vpack.c.b16 %v6510, %v6509
    %v6526 = vpack.c.b16 %v6512, %v6511
    %v6527 = vpack.c.b16 %v6514, %v6513
    %v6528 = vpack.c.b16 %v6516, %v6515
    %v6529 = vpack.c.b16 %v6518, %v6517
    %v6530 = vpack.c.b16 %v6520, %v6519
    %v6531 = vpack.c.b16 %v6522, %v6521
    %v6532 = vpack.c.b16 %v6524, %v6523
    %6541 = vmatprep.subr.bf16.mxu0 0
    %6542 = vmatpush1.bf16.msra.mxu0 %v6532
    %6543 = vmatprep.subr.bf16.mxu0 0
    %6544 = vmatpush1.bf16.msra.mxu0 %v6531
    %6545 = vmatprep.subr.bf16.mxu0 0
    %6546 = vmatpush1.bf16.msra.mxu0 %v6530
    %6547 = vmatprep.subr.bf16.mxu0 0
    %6548 = vmatpush1.bf16.msra.mxu0 %v6529
    %6549 = vmatprep.subr.bf16.mxu0 0
    %6550 = vmatpush1.bf16.msra.mxu0 %v6528
    %6551 = vmatprep.subr.bf16.mxu0 0
    %6552 = vmatpush1.bf16.msra.mxu0 %v6527
    %6553 = vmatprep.subr.bf16.mxu0 0
    %6554 = vmatpush1.bf16.msra.mxu0 %v6526
    %6555 = vmatprep.subr.bf16.mxu0 0
    %6556 = vmatpush1.bf16.msra.mxu0 %v6525
    %6557 = vmatprep.subr.bf16.mxu0 0
    %6558 = vmatpush2.bf16.msra.mxu0 0
    %6559 = vmatprep.subr.bf16.mxu0 0
    %6560 = vmatpush2.bf16.msra.mxu0 0
    %6561 = vmatprep.subr.bf16.mxu0 0
    %6562 = vmatpush2.bf16.msra.mxu0 0
    %6563 = vmatprep.subr.bf16.mxu0 0
    %6564 = vmatpush2.bf16.msra.mxu0 0
    %6565 = vmatprep.subr.bf16.mxu0 0
    %6566 = vmatpush2.bf16.msra.mxu0 0
    %6567 = vmatprep.subr.bf16.mxu0 0
    %6568 = vmatpush2.bf16.msra.mxu0 0
    %6569 = vmatprep.subr.bf16.mxu0 0
    %6570 = vmatpush2.bf16.msra.mxu0 0
    %6571 = vmatprep.subr.bf16.mxu0 0
    %6572 = vmatpush2.bf16.msra.mxu0 0
    %6573 = vmatprep.mubr.bf16.mxu0 0
    %6574 = vmatmul.mubr.bf16.gmra.mxu0 %v6476
    %v6575 = vpop.f32.mrf.mxu0
    %v6576 = vadd.f32 0.0, %v6575
    %v6577 = vpop.f32.mrf.mxu0
    %v6578 = vpop.f32.mrf.mxu0
    %v6579 = vpop.f32.mrf.mxu0
    %6580 = vdwg.mxu0
    %v6581 = vld [vmem:[#allocation40] sm:$0x1]
    %v6582 = vpack.c.bf16 %v6576, %v6576
    %s6583 = scalar_lea.vmem %s63, 64
    %v6584 = vld [vmem:[%s6583] sm:$0xf]
    %v6585 = vld [vmem:[%s6583 + $0x4] sm:$0xf]
    %v6586 = vld [vmem:[%s6583 + $0x8] sm:$0xf]
    %v6587 = vld [vmem:[%s6583 + $0xc] sm:$0xf]
    %v6588 = vld [vmem:[%s6583 + $0x10] sm:$0xf]
    %v6589 = vld [vmem:[%s6583 + $0x14] sm:$0xf]
    %v6590 = vld [vmem:[%s6583 + $0x18] sm:$0xf]
    %v6591 = vld [vmem:[%s6583 + $0x1c] sm:$0xf]
    %v6592 = vld [vmem:[%s6583 + $0x20] sm:$0xf]
    %v6593 = vld [vmem:[%s6583 + $0x24] sm:$0xf]
    %v6594 = vld [vmem:[%s6583 + $0x28] sm:$0xf]
    %v6595 = vld [vmem:[%s6583 + $0x2c] sm:$0xf]
    %v6596 = vld [vmem:[%s6583 + $0x30] sm:$0xf]
    %v6597 = vld [vmem:[%s6583 + $0x34] sm:$0xf]
    %v6598 = vld [vmem:[%s6583 + $0x38] sm:$0xf]
    %v6599 = vld [vmem:[%s6583 + $0x3c] sm:$0xf]
    %v6616 = vunpack.c.l.b16 %v6584
    %v6617 = vunpack.c.l.b16 %v6585
    %v6618 = vunpack.c.l.b16 %v6586
    %v6619 = vunpack.c.l.b16 %v6587
    %v6620 = vunpack.c.l.b16 %v6588
    %v6621 = vunpack.c.l.b16 %v6589
    %v6622 = vunpack.c.l.b16 %v6590
    %v6623 = vunpack.c.l.b16 %v6591
    %v6624 = vunpack.c.l.b16 %v6592
    %v6625 = vunpack.c.l.b16 %v6593
    %v6626 = vunpack.c.l.b16 %v6594
    %v6627 = vunpack.c.l.b16 %v6595
    %v6628 = vunpack.c.l.b16 %v6596
    %v6629 = vunpack.c.l.b16 %v6597
    %v6630 = vunpack.c.l.b16 %v6598
    %v6631 = vunpack.c.l.b16 %v6599
    %v6632 = vpack.c.b16 %v6617, %v6616
    %v6633 = vpack.c.b16 %v6619, %v6618
    %v6634 = vpack.c.b16 %v6621, %v6620
    %v6635 = vpack.c.b16 %v6623, %v6622
    %v6636 = vpack.c.b16 %v6625, %v6624
    %v6637 = vpack.c.b16 %v6627, %v6626
    %v6638 = vpack.c.b16 %v6629, %v6628
    %v6639 = vpack.c.b16 %v6631, %v6630
    %6648 = vmatprep.subr.bf16.mxu0 0
    %6649 = vmatpush1.bf16.msra.mxu0 %v6639
    %6650 = vmatprep.subr.bf16.mxu0 0
    %6651 = vmatpush1.bf16.msra.mxu0 %v6638
    %6652 = vmatprep.subr.bf16.mxu0 0
    %6653 = vmatpush1.bf16.msra.mxu0 %v6637
    %6654 = vmatprep.subr.bf16.mxu0 0
    %6655 = vmatpush1.bf16.msra.mxu0 %v6636
    %6656 = vmatprep.subr.bf16.mxu0 0
    %6657 = vmatpush1.bf16.msra.mxu0 %v6635
    %6658 = vmatprep.subr.bf16.mxu0 0
    %6659 = vmatpush1.bf16.msra.mxu0 %v6634
    %6660 = vmatprep.subr.bf16.mxu0 0
    %6661 = vmatpush1.bf16.msra.mxu0 %v6633
    %6662 = vmatprep.subr.bf16.mxu0 0
    %6663 = vmatpush1.bf16.msra.mxu0 %v6632
    %6664 = vmatprep.subr.bf16.mxu0 0
    %6665 = vmatpush2.bf16.msra.mxu0 0
    %6666 = vmatprep.subr.bf16.mxu0 0
    %6667 = vmatpush2.bf16.msra.mxu0 0
    %6668 = vmatprep.subr.bf16.mxu0 0
    %6669 = vmatpush2.bf16.msra.mxu0 0
    %6670 = vmatprep.subr.bf16.mxu0 0
    %6671 = vmatpush2.bf16.msra.mxu0 0
    %6672 = vmatprep.subr.bf16.mxu0 0
    %6673 = vmatpush2.bf16.msra.mxu0 0
    %6674 = vmatprep.subr.bf16.mxu0 0
    %6675 = vmatpush2.bf16.msra.mxu0 0
    %6676 = vmatprep.subr.bf16.mxu0 0
    %6677 = vmatpush2.bf16.msra.mxu0 0
    %6678 = vmatprep.subr.bf16.mxu0 0
    %6679 = vmatpush2.bf16.msra.mxu0 0
    %6680 = vmatprep.mubr.bf16.mxu0 0
    %6681 = vmatmul.mubr.bf16.gmra.mxu0 %v6476
    %v6682 = vpop.f32.mrf.mxu0
    %v6683 = vadd.f32 0.0, %v6682
    %v6684 = vpop.f32.mrf.mxu0
    %v6685 = vpop.f32.mrf.mxu0
    %v6686 = vpop.f32.mrf.mxu0
    %6687 = vdwg.mxu0
    %s6688 = scalar_lea.vmem [#allocation40], 1
    %v6689 = vld [vmem:[%s6688] sm:$0x1]
    %v6690 = vpack.c.bf16 %v6683, %v6683
    %v6692 = vsel %vm6216, %v6689, 0
    %v6695 = vsel %vm6220, %v6690, 0
    %6697 = vmatprep.subr.bf16.mxu0 0
    %6698 = vmatpush1.bf16.msra.mxu0 0
    %6699 = vmatprep.subr.bf16.mxu0 0
    %6700 = vmatpush1.bf16.msra.mxu0 0
    %6701 = vmatprep.subr.bf16.mxu0 0
    %6702 = vmatpush1.bf16.msra.mxu0 0
    %6703 = vmatprep.subr.bf16.mxu0 0
    %6704 = vmatpush1.bf16.msra.mxu0 0
    %6705 = vmatprep.subr.bf16.mxu0 0
    %6706 = vmatpush1.bf16.msra.mxu0 0
    %6707 = vmatprep.subr.bf16.mxu0 0
    %6708 = vmatpush1.bf16.msra.mxu0 0
    %6709 = vmatprep.subr.bf16.mxu0 0
    %6710 = vmatpush1.bf16.msra.mxu0 0
    %6711 = vmatprep.subr.bf16.mxu0 0
    %6712 = vmatpush1.bf16.msra.mxu0 %v6695
    %6713 = vmatprep.subr.bf16.mxu0 0
    %6714 = vmatpush2.bf16.msra.mxu0 0
    %6715 = vmatprep.subr.bf16.mxu0 0
    %6716 = vmatpush2.bf16.msra.mxu0 0
    %6717 = vmatprep.subr.bf16.mxu0 0
    %6718 = vmatpush2.bf16.msra.mxu0 0
    %6719 = vmatprep.subr.bf16.mxu0 0
    %6720 = vmatpush2.bf16.msra.mxu0 0
    %6721 = vmatprep.subr.bf16.mxu0 0
    %6722 = vmatpush2.bf16.msra.mxu0 0
    %6723 = vmatprep.subr.bf16.mxu0 0
    %6724 = vmatpush2.bf16.msra.mxu0 0
    %6725 = vmatprep.subr.bf16.mxu0 0
    %6726 = vmatpush2.bf16.msra.mxu0 0
    %6727 = vmatprep.subr.bf16.mxu0 0
    %6728 = vmatpush2.bf16.msra.mxu0 0
    %6729 = vmatprep.mubr.bf16.mxu0 0
    %6730 = vmatmul.mubr.bf16.gmra.mxu0 %v6692
    %v6731 = vpop.f32.mrf.mxu0
    %v6732 = vadd.f32 0.0, %v6731
    %v6733 = vpop.f32.mrf.mxu0
    %v6734 = vpop.f32.mrf.mxu0
    %v6735 = vpop.f32.mrf.mxu0
    %6736 = vdwg.mxu0
    %v6738 = vsel %vm6216, %v6581, 0
    %v6741 = vsel %vm6220, %v6582, 0
    %6743 = vmatprep.subr.bf16.mxu0 0
    %6744 = vmatpush1.bf16.msra.mxu0 0
    %6745 = vmatprep.subr.bf16.mxu0 0
    %6746 = vmatpush1.bf16.msra.mxu0 0
    %6747 = vmatprep.subr.bf16.mxu0 0
    %6748 = vmatpush1.bf16.msra.mxu0 0
    %6749 = vmatprep.subr.bf16.mxu0 0
    %6750 = vmatpush1.bf16.msra.mxu0 0
    %6751 = vmatprep.subr.bf16.mxu0 0
    %6752 = vmatpush1.bf16.msra.mxu0 0
    %6753 = vmatprep.subr.bf16.mxu0 0
    %6754 = vmatpush1.bf16.msra.mxu0 0
    %6755 = vmatprep.subr.bf16.mxu0 0
    %6756 = vmatpush1.bf16.msra.mxu0 0
    %6757 = vmatprep.subr.bf16.mxu0 0
    %6758 = vmatpush1.bf16.msra.mxu0 %v6741
    %6759 = vmatprep.subr.bf16.mxu0 0
    %6760 = vmatpush2.bf16.msra.mxu0 0
    %6761 = vmatprep.subr.bf16.mxu0 0
    %6762 = vmatpush2.bf16.msra.mxu0 0
    %6763 = vmatprep.subr.bf16.mxu0 0
    %6764 = vmatpush2.bf16.msra.mxu0 0
    %6765 = vmatprep.subr.bf16.mxu0 0
    %6766 = vmatpush2.bf16.msra.mxu0 0
    %6767 = vmatprep.subr.bf16.mxu0 0
    %6768 = vmatpush2.bf16.msra.mxu0 0
    %6769 = vmatprep.subr.bf16.mxu0 0
    %6770 = vmatpush2.bf16.msra.mxu0 0
    %6771 = vmatprep.subr.bf16.mxu0 0
    %6772 = vmatpush2.bf16.msra.mxu0 0
    %6773 = vmatprep.subr.bf16.mxu0 0
    %6774 = vmatpush2.bf16.msra.mxu0 0
    %6775 = vmatprep.mubr.bf16.mxu0 0
    %6776 = vmatmul.mubr.bf16.gmra.mxu0 %v6738
    %v6777 = vpop.f32.mrf.mxu0
    %v6778 = vadd.f32 %v6732, %v6777
    %v6779 = vpop.f32.mrf.mxu0
    %v6780 = vpop.f32.mrf.mxu0
    %v6781 = vpop.f32.mrf.mxu0
    %6782 = vdwg.mxu0
    %v6783 = vld [vmem:[#allocation41] sm:$0x1]
    %v6785 = vlaneseq
    %v6786 = vshrl.u32 %v6785, 7
    %v6787 = vsub.s32 0, %v6786
    %v6788 = vrot.slane %v6783, %v6787
    %v6790 = vadd.f32 %v6778, %v6788
    %v6791 = vmax.f32 %v6790, 0.0
    %v6792 = vpack.c.bf16 %v6791, %v6791
    %v6793 = vld [vmem:[#allocation44] sm:$0xf]
    %v6794 = vld [vmem:[#allocation44 + $0x4] sm:$0xf]
    %v6795 = vld [vmem:[#allocation44 + $0x8] sm:$0xf]
    %v6796 = vld [vmem:[#allocation44 + $0xc] sm:$0xf]
    %v6797 = vld [vmem:[#allocation44 + $0x10] sm:$0xf]
    %v6798 = vld [vmem:[#allocation44 + $0x14] sm:$0xf]
    %v6799 = vld [vmem:[#allocation44 + $0x18] sm:$0xf]
    %v6800 = vld [vmem:[#allocation44 + $0x1c] sm:$0xf]
    %v6801 = vld [vmem:[#allocation44 + $0x20] sm:$0xf]
    %v6802 = vld [vmem:[#allocation44 + $0x24] sm:$0xf]
    %v6803 = vld [vmem:[#allocation44 + $0x28] sm:$0xf]
    %v6804 = vld [vmem:[#allocation44 + $0x2c] sm:$0xf]
    %v6805 = vld [vmem:[#allocation44 + $0x30] sm:$0xf]
    %v6806 = vld [vmem:[#allocation44 + $0x34] sm:$0xf]
    %v6807 = vld [vmem:[#allocation44 + $0x38] sm:$0xf]
    %v6808 = vld [vmem:[#allocation44 + $0x3c] sm:$0xf]
    %v6825 = vunpack.c.l.b16 %v6793
    %v6826 = vunpack.c.l.b16 %v6794
    %v6827 = vunpack.c.l.b16 %v6795
    %v6828 = vunpack.c.l.b16 %v6796
    %v6829 = vunpack.c.l.b16 %v6797
    %v6830 = vunpack.c.l.b16 %v6798
    %v6831 = vunpack.c.l.b16 %v6799
    %v6832 = vunpack.c.l.b16 %v6800
    %v6833 = vunpack.c.l.b16 %v6801
    %v6834 = vunpack.c.l.b16 %v6802
    %v6835 = vunpack.c.l.b16 %v6803
    %v6836 = vunpack.c.l.b16 %v6804
    %v6837 = vunpack.c.l.b16 %v6805
    %v6838 = vunpack.c.l.b16 %v6806
    %v6839 = vunpack.c.l.b16 %v6807
    %v6840 = vunpack.c.l.b16 %v6808
    %v6841 = vpack.c.b16 %v6826, %v6825
    %v6842 = vpack.c.b16 %v6828, %v6827
    %v6843 = vpack.c.b16 %v6830, %v6829
    %v6844 = vpack.c.b16 %v6832, %v6831
    %v6845 = vpack.c.b16 %v6834, %v6833
    %v6846 = vpack.c.b16 %v6836, %v6835
    %v6847 = vpack.c.b16 %v6838, %v6837
    %v6848 = vpack.c.b16 %v6840, %v6839
    %6857 = vmatprep.subr.bf16.mxu0 0
    %6858 = vmatpush1.bf16.msra.mxu0 %v6848
    %6859 = vmatprep.subr.bf16.mxu0 0
    %6860 = vmatpush1.bf16.msra.mxu0 %v6847
    %6861 = vmatprep.subr.bf16.mxu0 0
    %6862 = vmatpush1.bf16.msra.mxu0 %v6846
    %6863 = vmatprep.subr.bf16.mxu0 0
    %6864 = vmatpush1.bf16.msra.mxu0 %v6845
    %6865 = vmatprep.subr.bf16.mxu0 0
    %6866 = vmatpush1.bf16.msra.mxu0 %v6844
    %6867 = vmatprep.subr.bf16.mxu0 0
    %6868 = vmatpush1.bf16.msra.mxu0 %v6843
    %6869 = vmatprep.subr.bf16.mxu0 0
    %6870 = vmatpush1.bf16.msra.mxu0 %v6842
    %6871 = vmatprep.subr.bf16.mxu0 0
    %6872 = vmatpush1.bf16.msra.mxu0 %v6841
    %6873 = vmatprep.subr.bf16.mxu0 0
    %6874 = vmatpush2.bf16.msra.mxu0 0
    %6875 = vmatprep.subr.bf16.mxu0 0
    %6876 = vmatpush2.bf16.msra.mxu0 0
    %6877 = vmatprep.subr.bf16.mxu0 0
    %6878 = vmatpush2.bf16.msra.mxu0 0
    %6879 = vmatprep.subr.bf16.mxu0 0
    %6880 = vmatpush2.bf16.msra.mxu0 0
    %6881 = vmatprep.subr.bf16.mxu0 0
    %6882 = vmatpush2.bf16.msra.mxu0 0
    %6883 = vmatprep.subr.bf16.mxu0 0
    %6884 = vmatpush2.bf16.msra.mxu0 0
    %6885 = vmatprep.subr.bf16.mxu0 0
    %6886 = vmatpush2.bf16.msra.mxu0 0
    %6887 = vmatprep.subr.bf16.mxu0 0
    %6888 = vmatpush2.bf16.msra.mxu0 0
    %6889 = vmatprep.mubr.bf16.mxu0 0
    %6890 = vmatmul.mubr.bf16.gmra.mxu0 %v6476
    %v6891 = vpop.f32.mrf.mxu0
    %v6892 = vadd.f32 0.0, %v6891
    %v6893 = vpop.f32.mrf.mxu0
    %v6894 = vpop.f32.mrf.mxu0
    %v6895 = vpop.f32.mrf.mxu0
    %6896 = vdwg.mxu0
    %v6897 = vld [vmem:[#allocation43] sm:$0x1]
    %v6898 = vpack.c.bf16 %v6892, %v6892
    %v6899 = vld [vmem:[#allocation46] sm:$0x1]
    %v6901 = vlaneseq
    %v6902 = vshrl.u32 %v6901, 7
    %v6903 = vsub.s32 0, %v6902
    %v6904 = vrot.slane %v6899, %v6903
    %v6907 = vsel %vm6216, %v6897, 0
    %v6910 = vsel %vm6220, %v6898, 0
    %6912 = vmatprep.subr.bf16.mxu0 0
    %6913 = vmatpush1.bf16.msra.mxu0 0
    %6914 = vmatprep.subr.bf16.mxu0 0
    %6915 = vmatpush1.bf16.msra.mxu0 0
    %6916 = vmatprep.subr.bf16.mxu0 0
    %6917 = vmatpush1.bf16.msra.mxu0 0
    %6918 = vmatprep.subr.bf16.mxu0 0
    %6919 = vmatpush1.bf16.msra.mxu0 0
    %6920 = vmatprep.subr.bf16.mxu0 0
    %6921 = vmatpush1.bf16.msra.mxu0 0
    %6922 = vmatprep.subr.bf16.mxu0 0
    %6923 = vmatpush1.bf16.msra.mxu0 0
    %6924 = vmatprep.subr.bf16.mxu0 0
    %6925 = vmatpush1.bf16.msra.mxu0 0
    %6926 = vmatprep.subr.bf16.mxu0 0
    %6927 = vmatpush1.bf16.msra.mxu0 %v6910
    %6928 = vmatprep.subr.bf16.mxu0 0
    %6929 = vmatpush2.bf16.msra.mxu0 0
    %6930 = vmatprep.subr.bf16.mxu0 0
    %6931 = vmatpush2.bf16.msra.mxu0 0
    %6932 = vmatprep.subr.bf16.mxu0 0
    %6933 = vmatpush2.bf16.msra.mxu0 0
    %6934 = vmatprep.subr.bf16.mxu0 0
    %6935 = vmatpush2.bf16.msra.mxu0 0
    %6936 = vmatprep.subr.bf16.mxu0 0
    %6937 = vmatpush2.bf16.msra.mxu0 0
    %6938 = vmatprep.subr.bf16.mxu0 0
    %6939 = vmatpush2.bf16.msra.mxu0 0
    %6940 = vmatprep.subr.bf16.mxu0 0
    %6941 = vmatpush2.bf16.msra.mxu0 0
    %6942 = vmatprep.subr.bf16.mxu0 0
    %6943 = vmatpush2.bf16.msra.mxu0 0
    %6944 = vmatprep.mubr.bf16.mxu0 0
    %6945 = vmatmul.mubr.bf16.gmra.mxu0 %v6907
    %v6946 = vpop.f32.mrf.mxu0
    %v6947 = vadd.f32 %v6904, %v6946
    %v6948 = vpop.f32.mrf.mxu0
    %v6949 = vpop.f32.mrf.mxu0
    %v6950 = vpop.f32.mrf.mxu0
    %6951 = vdwg.mxu0
    %v6952 = vpack.c.bf16 %v6947, %v6947
    %v6953 = vld [vmem:[#allocation49] sm:$0xf]
    %v6954 = vld [vmem:[#allocation49 + $0x4] sm:$0xf]
    %v6955 = vld [vmem:[#allocation49 + $0x8] sm:$0xf]
    %v6956 = vld [vmem:[#allocation49 + $0xc] sm:$0xf]
    %v6957 = vld [vmem:[#allocation49 + $0x10] sm:$0xf]
    %v6958 = vld [vmem:[#allocation49 + $0x14] sm:$0xf]
    %v6959 = vld [vmem:[#allocation49 + $0x18] sm:$0xf]
    %v6960 = vld [vmem:[#allocation49 + $0x1c] sm:$0xf]
    %v6961 = vld [vmem:[#allocation49 + $0x20] sm:$0xf]
    %v6962 = vld [vmem:[#allocation49 + $0x24] sm:$0xf]
    %v6963 = vld [vmem:[#allocation49 + $0x28] sm:$0xf]
    %v6964 = vld [vmem:[#allocation49 + $0x2c] sm:$0xf]
    %v6965 = vld [vmem:[#allocation49 + $0x30] sm:$0xf]
    %v6966 = vld [vmem:[#allocation49 + $0x34] sm:$0xf]
    %v6967 = vld [vmem:[#allocation49 + $0x38] sm:$0xf]
    %v6968 = vld [vmem:[#allocation49 + $0x3c] sm:$0xf]
    %v6985 = vunpack.c.l.b16 %v6953
    %v6986 = vunpack.c.l.b16 %v6954
    %v6987 = vunpack.c.l.b16 %v6955
    %v6988 = vunpack.c.l.b16 %v6956
    %v6989 = vunpack.c.l.b16 %v6957
    %v6990 = vunpack.c.l.b16 %v6958
    %v6991 = vunpack.c.l.b16 %v6959
    %v6992 = vunpack.c.l.b16 %v6960
    %v6993 = vunpack.c.l.b16 %v6961
    %v6994 = vunpack.c.l.b16 %v6962
    %v6995 = vunpack.c.l.b16 %v6963
    %v6996 = vunpack.c.l.b16 %v6964
    %v6997 = vunpack.c.l.b16 %v6965
    %v6998 = vunpack.c.l.b16 %v6966
    %v6999 = vunpack.c.l.b16 %v6967
    %v7000 = vunpack.c.l.b16 %v6968
    %v7001 = vpack.c.b16 %v6986, %v6985
    %v7002 = vpack.c.b16 %v6988, %v6987
    %v7003 = vpack.c.b16 %v6990, %v6989
    %v7004 = vpack.c.b16 %v6992, %v6991
    %v7005 = vpack.c.b16 %v6994, %v6993
    %v7006 = vpack.c.b16 %v6996, %v6995
    %v7007 = vpack.c.b16 %v6998, %v6997
    %v7008 = vpack.c.b16 %v7000, %v6999
    %7017 = vmatprep.subr.bf16.mxu0 0
    %7018 = vmatpush1.bf16.msra.mxu0 %v7008
    %7019 = vmatprep.subr.bf16.mxu0 0
    %7020 = vmatpush1.bf16.msra.mxu0 %v7007
    %7021 = vmatprep.subr.bf16.mxu0 0
    %7022 = vmatpush1.bf16.msra.mxu0 %v7006
    %7023 = vmatprep.subr.bf16.mxu0 0
    %7024 = vmatpush1.bf16.msra.mxu0 %v7005
    %7025 = vmatprep.subr.bf16.mxu0 0
    %7026 = vmatpush1.bf16.msra.mxu0 %v7004
    %7027 = vmatprep.subr.bf16.mxu0 0
    %7028 = vmatpush1.bf16.msra.mxu0 %v7003
    %7029 = vmatprep.subr.bf16.mxu0 0
    %7030 = vmatpush1.bf16.msra.mxu0 %v7002
    %7031 = vmatprep.subr.bf16.mxu0 0
    %7032 = vmatpush1.bf16.msra.mxu0 %v7001
    %7033 = vmatprep.subr.bf16.mxu0 0
    %7034 = vmatpush2.bf16.msra.mxu0 0
    %7035 = vmatprep.subr.bf16.mxu0 0
    %7036 = vmatpush2.bf16.msra.mxu0 0
    %7037 = vmatprep.subr.bf16.mxu0 0
    %7038 = vmatpush2.bf16.msra.mxu0 0
    %7039 = vmatprep.subr.bf16.mxu0 0
    %7040 = vmatpush2.bf16.msra.mxu0 0
    %7041 = vmatprep.subr.bf16.mxu0 0
    %7042 = vmatpush2.bf16.msra.mxu0 0
    %7043 = vmatprep.subr.bf16.mxu0 0
    %7044 = vmatpush2.bf16.msra.mxu0 0
    %7045 = vmatprep.subr.bf16.mxu0 0
    %7046 = vmatpush2.bf16.msra.mxu0 0
    %7047 = vmatprep.subr.bf16.mxu0 0
    %7048 = vmatpush2.bf16.msra.mxu0 0
    %7049 = vmatprep.mubr.bf16.mxu0 0
    %7050 = vmatmul.mubr.bf16.gmra.mxu0 %v6792
    %v7051 = vpop.f32.mrf.mxu0
    %v7052 = vadd.f32 0.0, %v7051
    %v7053 = vpop.f32.mrf.mxu0
    %v7054 = vpop.f32.mrf.mxu0
    %v7055 = vpop.f32.mrf.mxu0
    %7056 = vdwg.mxu0
    %v7057 = vld [vmem:[#allocation47] sm:$0x1]
    %v7058 = vpack.c.bf16 %v7052, %v7052
    %v7059 = vld [vmem:[#allocation50] sm:$0x1]
    %v7061 = vlaneseq
    %v7062 = vshrl.u32 %v7061, 7
    %v7063 = vsub.s32 0, %v7062
    %v7064 = vrot.slane %v7059, %v7063
    %vm7066 = vcmask 15360
    %v7068 = vsel %vm7066, %v7057, 0
    %vm7070 = vcmask 1040384
    %v7072 = vsel %vm7070, %v7058, 0
    %7074 = vmatprep.subr.bf16.mxu0 0
    %7075 = vmatpush1.bf16.msra.mxu0 0
    %7076 = vmatprep.subr.bf16.mxu0 0
    %7077 = vmatpush1.bf16.msra.mxu0 0
    %7078 = vmatprep.subr.bf16.mxu0 0
    %7079 = vmatpush1.bf16.msra.mxu0 0
    %7080 = vmatprep.subr.bf16.mxu0 0
    %7081 = vmatpush1.bf16.msra.mxu0 0
    %7082 = vmatprep.subr.bf16.mxu0 0
    %7083 = vmatpush1.bf16.msra.mxu0 0
    %7084 = vmatprep.subr.bf16.mxu0 0
    %7085 = vmatpush1.bf16.msra.mxu0 0
    %7086 = vmatprep.subr.bf16.mxu0 0
    %7087 = vmatpush1.bf16.msra.mxu0 0
    %7088 = vmatprep.subr.bf16.mxu0 0
    %7089 = vmatpush1.bf16.msra.mxu0 %v7072
    %7090 = vmatprep.subr.bf16.mxu0 0
    %7091 = vmatpush2.bf16.msra.mxu0 0
    %7092 = vmatprep.subr.bf16.mxu0 0
    %7093 = vmatpush2.bf16.msra.mxu0 0
    %7094 = vmatprep.subr.bf16.mxu0 0
    %7095 = vmatpush2.bf16.msra.mxu0 0
    %7096 = vmatprep.subr.bf16.mxu0 0
    %7097 = vmatpush2.bf16.msra.mxu0 0
    %7098 = vmatprep.subr.bf16.mxu0 0
    %7099 = vmatpush2.bf16.msra.mxu0 0
    %7100 = vmatprep.subr.bf16.mxu0 0
    %7101 = vmatpush2.bf16.msra.mxu0 0
    %7102 = vmatprep.subr.bf16.mxu0 0
    %7103 = vmatpush2.bf16.msra.mxu0 0
    %7104 = vmatprep.subr.bf16.mxu0 0
    %7105 = vmatpush2.bf16.msra.mxu0 0
    %7106 = vmatprep.mubr.bf16.mxu0 0
    %7107 = vmatmul.mubr.bf16.gmra.mxu0 %v7068
    %v7108 = vpop.f32.mrf.mxu0
    %v7109 = vadd.f32 %v7064, %v7108
    %v7110 = vpop.f32.mrf.mxu0
    %v7111 = vpop.f32.mrf.mxu0
    %v7112 = vpop.f32.mrf.mxu0
    %7113 = vdwg.mxu0
    %v7114 = vunpack.c.l.bf16 %v6952
    %v7115 = vadd.f32 %v7109, %v7114
    %v7116 = vmax.f32 %v7115, 0.0
    %v7117 = vpack.c.bf16 %v7116, %v7116
    %v7118 = vld [vmem:[#allocation53] sm:$0xf]
    %v7119 = vld [vmem:[#allocation53 + $0x4] sm:$0xf]
    %v7120 = vld [vmem:[#allocation53 + $0x8] sm:$0xf]
    %v7121 = vld [vmem:[#allocation53 + $0xc] sm:$0xf]
    %v7122 = vld [vmem:[#allocation53 + $0x10] sm:$0xf]
    %v7123 = vld [vmem:[#allocation53 + $0x14] sm:$0xf]
    %v7124 = vld [vmem:[#allocation53 + $0x18] sm:$0xf]
    %v7125 = vld [vmem:[#allocation53 + $0x1c] sm:$0xf]
    %v7126 = vld [vmem:[#allocation53 + $0x20] sm:$0xf]
    %v7127 = vld [vmem:[#allocation53 + $0x24] sm:$0xf]
    %v7128 = vld [vmem:[#allocation53 + $0x28] sm:$0xf]
    %v7129 = vld [vmem:[#allocation53 + $0x2c] sm:$0xf]
    %v7130 = vld [vmem:[#allocation53 + $0x30] sm:$0xf]
    %v7131 = vld [vmem:[#allocation53 + $0x34] sm:$0xf]
    %v7132 = vld [vmem:[#allocation53 + $0x38] sm:$0xf]
    %v7133 = vld [vmem:[#allocation53 + $0x3c] sm:$0xf]
    %v7150 = vunpack.c.l.b16 %v7118
    %v7151 = vunpack.c.l.b16 %v7119
    %v7152 = vunpack.c.l.b16 %v7120
    %v7153 = vunpack.c.l.b16 %v7121
    %v7154 = vunpack.c.l.b16 %v7122
    %v7155 = vunpack.c.l.b16 %v7123
    %v7156 = vunpack.c.l.b16 %v7124
    %v7157 = vunpack.c.l.b16 %v7125
    %v7158 = vunpack.c.l.b16 %v7126
    %v7159 = vunpack.c.l.b16 %v7127
    %v7160 = vunpack.c.l.b16 %v7128
    %v7161 = vunpack.c.l.b16 %v7129
    %v7162 = vunpack.c.l.b16 %v7130
    %v7163 = vunpack.c.l.b16 %v7131
    %v7164 = vunpack.c.l.b16 %v7132
    %v7165 = vunpack.c.l.b16 %v7133
    %v7166 = vpack.c.b16 %v7151, %v7150
    %v7167 = vpack.c.b16 %v7153, %v7152
    %v7168 = vpack.c.b16 %v7155, %v7154
    %v7169 = vpack.c.b16 %v7157, %v7156
    %v7170 = vpack.c.b16 %v7159, %v7158
    %v7171 = vpack.c.b16 %v7161, %v7160
    %v7172 = vpack.c.b16 %v7163, %v7162
    %v7173 = vpack.c.b16 %v7165, %v7164
    %7182 = vmatprep.subr.bf16.mxu0 0
    %7183 = vmatpush1.bf16.msra.mxu0 %v7173
    %7184 = vmatprep.subr.bf16.mxu0 0
    %7185 = vmatpush1.bf16.msra.mxu0 %v7172
    %7186 = vmatprep.subr.bf16.mxu0 0
    %7187 = vmatpush1.bf16.msra.mxu0 %v7171
    %7188 = vmatprep.subr.bf16.mxu0 0
    %7189 = vmatpush1.bf16.msra.mxu0 %v7170
    %7190 = vmatprep.subr.bf16.mxu0 0
    %7191 = vmatpush1.bf16.msra.mxu0 %v7169
    %7192 = vmatprep.subr.bf16.mxu0 0
    %7193 = vmatpush1.bf16.msra.mxu0 %v7168
    %7194 = vmatprep.subr.bf16.mxu0 0
    %7195 = vmatpush1.bf16.msra.mxu0 %v7167
    %7196 = vmatprep.subr.bf16.mxu0 0
    %7197 = vmatpush1.bf16.msra.mxu0 %v7166
    %7198 = vmatprep.subr.bf16.mxu0 0
    %7199 = vmatpush2.bf16.msra.mxu0 0
    %7200 = vmatprep.subr.bf16.mxu0 0
    %7201 = vmatpush2.bf16.msra.mxu0 0
    %7202 = vmatprep.subr.bf16.mxu0 0
    %7203 = vmatpush2.bf16.msra.mxu0 0
    %7204 = vmatprep.subr.bf16.mxu0 0
    %7205 = vmatpush2.bf16.msra.mxu0 0
    %7206 = vmatprep.subr.bf16.mxu0 0
    %7207 = vmatpush2.bf16.msra.mxu0 0
    %7208 = vmatprep.subr.bf16.mxu0 0
    %7209 = vmatpush2.bf16.msra.mxu0 0
    %7210 = vmatprep.subr.bf16.mxu0 0
    %7211 = vmatpush2.bf16.msra.mxu0 0
    %7212 = vmatprep.subr.bf16.mxu0 0
    %7213 = vmatpush2.bf16.msra.mxu0 0
    %7214 = vmatprep.mubr.bf16.mxu0 0
    %7215 = vmatmul.mubr.bf16.gmra.mxu0 %v7117
    %v7216 = vpop.f32.mrf.mxu0
    %v7217 = vadd.f32 0.0, %v7216
    %v7218 = vpop.f32.mrf.mxu0
    %v7219 = vpop.f32.mrf.mxu0
    %v7220 = vpop.f32.mrf.mxu0
    %7221 = vdwg.mxu0
    %v7222 = vld [vmem:[#allocation52] sm:$0x1]
    %v7223 = vpack.c.bf16 %v7217, %v7217
    %v7225 = vsel %vm7066, %v7222, 0
    %v7228 = vsel %vm7070, %v7223, 0
    %7230 = vmatprep.subr.bf16.mxu0 0
    %7231 = vmatpush1.bf16.msra.mxu0 0
    %7232 = vmatprep.subr.bf16.mxu0 0
    %7233 = vmatpush1.bf16.msra.mxu0 0
    %7234 = vmatprep.subr.bf16.mxu0 0
    %7235 = vmatpush1.bf16.msra.mxu0 0
    %7236 = vmatprep.subr.bf16.mxu0 0
    %7237 = vmatpush1.bf16.msra.mxu0 0
    %7238 = vmatprep.subr.bf16.mxu0 0
    %7239 = vmatpush1.bf16.msra.mxu0 0
    %7240 = vmatprep.subr.bf16.mxu0 0
    %7241 = vmatpush1.bf16.msra.mxu0 0
    %7242 = vmatprep.subr.bf16.mxu0 0
    %7243 = vmatpush1.bf16.msra.mxu0 0
    %7244 = vmatprep.subr.bf16.mxu0 0
    %7245 = vmatpush1.bf16.msra.mxu0 %v7228
    %7246 = vmatprep.subr.bf16.mxu0 0
    %7247 = vmatpush2.bf16.msra.mxu0 0
    %7248 = vmatprep.subr.bf16.mxu0 0
    %7249 = vmatpush2.bf16.msra.mxu0 0
    %7250 = vmatprep.subr.bf16.mxu0 0
    %7251 = vmatpush2.bf16.msra.mxu0 0
    %7252 = vmatprep.subr.bf16.mxu0 0
    %7253 = vmatpush2.bf16.msra.mxu0 0
    %7254 = vmatprep.subr.bf16.mxu0 0
    %7255 = vmatpush2.bf16.msra.mxu0 0
    %7256 = vmatprep.subr.bf16.mxu0 0
    %7257 = vmatpush2.bf16.msra.mxu0 0
    %7258 = vmatprep.subr.bf16.mxu0 0
    %7259 = vmatpush2.bf16.msra.mxu0 0
    %7260 = vmatprep.subr.bf16.mxu0 0
    %7261 = vmatpush2.bf16.msra.mxu0 0
    %7262 = vmatprep.mubr.bf16.mxu0 0
    %7263 = vmatmul.mubr.bf16.gmra.mxu0 %v7225
    %v7264 = vpop.f32.mrf.mxu0
    %v7265 = vadd.f32 0.0, %v7264
    %v7266 = vpop.f32.mrf.mxu0
    %v7267 = vpop.f32.mrf.mxu0
    %v7268 = vpop.f32.mrf.mxu0
    %7269 = vdwg.mxu0
    %7270 = vst [vmem:[#allocation56] sm:$0x3] %v7265
    %v7271 = vpack.c.bf16 %v7265, %v7265
    %v7272 = vld [vmem:[%s83] sm:$0xf]
    %v7273 = vld [vmem:[%s83 + $0x4] sm:$0xf]
    %v7274 = vld [vmem:[%s83 + $0x8] sm:$0xf]
    %v7275 = vld [vmem:[%s83 + $0xc] sm:$0xf]
    %v7276 = vld [vmem:[%s83 + $0x10] sm:$0xf]
    %v7277 = vld [vmem:[%s83 + $0x14] sm:$0xf]
    %v7278 = vld [vmem:[%s83 + $0x18] sm:$0xf]
    %v7279 = vld [vmem:[%s83 + $0x1c] sm:$0xf]
    %v7280 = vld [vmem:[%s83 + $0x20] sm:$0xf]
    %v7281 = vld [vmem:[%s83 + $0x24] sm:$0xf]
    %v7282 = vld [vmem:[%s83 + $0x28] sm:$0xf]
    %v7283 = vld [vmem:[%s83 + $0x2c] sm:$0xf]
    %v7284 = vld [vmem:[%s83 + $0x30] sm:$0xf]
    %v7285 = vld [vmem:[%s83 + $0x34] sm:$0xf]
    %v7286 = vld [vmem:[%s83 + $0x38] sm:$0xf]
    %v7287 = vld [vmem:[%s83 + $0x3c] sm:$0xf]
    %v7288 = vld [vmem:[#allocation55] sm:$0x1]
    %v7290 = vlaneseq
    %v7291 = vshrl.u32 %v7290, 7
    %v7292 = vsub.s32 0, %v7291
    %v7293 = vrot.slane %v7288, %v7292
    %v7311 = vunpack.c.l.b16 %v7272
    %v7312 = vunpack.c.l.b16 %v7273
    %v7313 = vunpack.c.l.b16 %v7274
    %v7314 = vunpack.c.l.b16 %v7275
    %v7315 = vunpack.c.l.b16 %v7276
    %v7316 = vunpack.c.l.b16 %v7277
    %v7317 = vunpack.c.l.b16 %v7278
    %v7318 = vunpack.c.l.b16 %v7279
    %v7319 = vunpack.c.l.b16 %v7280
    %v7320 = vunpack.c.l.b16 %v7281
    %v7321 = vunpack.c.l.b16 %v7282
    %v7322 = vunpack.c.l.b16 %v7283
    %v7323 = vunpack.c.l.b16 %v7284
    %v7324 = vunpack.c.l.b16 %v7285
    %v7325 = vunpack.c.l.b16 %v7286
    %v7326 = vunpack.c.l.b16 %v7287
    %v7327 = vpack.c.b16 %v7312, %v7311
    %v7328 = vpack.c.b16 %v7314, %v7313
    %v7329 = vpack.c.b16 %v7316, %v7315
    %v7330 = vpack.c.b16 %v7318, %v7317
    %v7331 = vpack.c.b16 %v7320, %v7319
    %v7332 = vpack.c.b16 %v7322, %v7321
    %v7333 = vpack.c.b16 %v7324, %v7323
    %v7334 = vpack.c.b16 %v7326, %v7325
    %7343 = vmatprep.subr.bf16.mxu0 0
    %7344 = vmatpush1.bf16.msra.mxu0 %v7334
    %7345 = vmatprep.subr.bf16.mxu0 0
    %7346 = vmatpush1.bf16.msra.mxu0 %v7333
    %7347 = vmatprep.subr.bf16.mxu0 0
    %7348 = vmatpush1.bf16.msra.mxu0 %v7332
    %7349 = vmatprep.subr.bf16.mxu0 0
    %7350 = vmatpush1.bf16.msra.mxu0 %v7331
    %7351 = vmatprep.subr.bf16.mxu0 0
    %7352 = vmatpush1.bf16.msra.mxu0 %v7330
    %7353 = vmatprep.subr.bf16.mxu0 0
    %7354 = vmatpush1.bf16.msra.mxu0 %v7329
    %7355 = vmatprep.subr.bf16.mxu0 0
    %7356 = vmatpush1.bf16.msra.mxu0 %v7328
    %7357 = vmatprep.subr.bf16.mxu0 0
    %7358 = vmatpush1.bf16.msra.mxu0 %v7327
    %7359 = vmatprep.subr.bf16.mxu0 0
    %7360 = vmatpush2.bf16.msra.mxu0 0
    %7361 = vmatprep.subr.bf16.mxu0 0
    %7362 = vmatpush2.bf16.msra.mxu0 0
    %7363 = vmatprep.subr.bf16.mxu0 0
    %7364 = vmatpush2.bf16.msra.mxu0 0
    %7365 = vmatprep.subr.bf16.mxu0 0
    %7366 = vmatpush2.bf16.msra.mxu0 0
    %7367 = vmatprep.subr.bf16.mxu0 0
    %7368 = vmatpush2.bf16.msra.mxu0 0
    %7369 = vmatprep.subr.bf16.mxu0 0
    %7370 = vmatpush2.bf16.msra.mxu0 0
    %7371 = vmatprep.subr.bf16.mxu0 0
    %7372 = vmatpush2.bf16.msra.mxu0 0
    %7373 = vmatprep.subr.bf16.mxu0 0
    %7374 = vmatpush2.bf16.msra.mxu0 0
    %7375 = vmatprep.mubr.bf16.mxu0 0
    %7376 = vmatmul.mubr.bf16.gmra.mxu0 %v7271
    %v7377 = vpop.f32.mrf.mxu0
    %v7378 = vadd.f32 %v7293, %v7377
    %v7379 = vpop.f32.mrf.mxu0
    %v7380 = vpop.f32.mrf.mxu0
    %v7381 = vpop.f32.mrf.mxu0
    %7382 = vdwg.mxu0
    %vm7383 = vcmask 156672
    %7384 = vst.msk [vmem:[%s87] sm:$0x3] %vm7383, %v7378
    // Predicated region
    $region314: #{forward.1} parent=1 // pred_check
      _
    $region315: #{forward.1} parent=1 // pred_check_branch
      %7386 = sbr.rel (0) target = $region317
    $region316: #{forward.1} parent=1 // pred_region
      _
    $region317: #{forward.1} parent=1 // pred_fallthru
      _
    // Predicated region
    $region318: #{forward.1} parent=1 // pred_check
      _
    $region319: #{forward.1} parent=1 // pred_check_branch
      %7388 = sbr.rel (0) target = $region321
    $region320: #{forward.1} parent=1 // pred_region
      %s7390 = ssub.s32 32, 32
      %7391 = vsyncadd [#allocation4], %s7390
      %s7393 = sshll.u32 [#allocation56], 4
      %s7394 = int_to_ptr.vmem [resolvable:$true] %s7393
      %7396 = dma.vmem_to_hbm [thread:$0]  %s7394, 32, %s89, [#allocation4]
    $region321: #{forward.1} parent=1 // pred_fallthru
      _
    // Predicated region
    $region322: #{forward.1} parent=1 // pred_check
      _
    $region323: #{forward.1} parent=1 // pred_check_branch
      %7398 = sbr.rel (0) target = $region325
    $region324: #{forward.1} parent=1 // pred_region
      _
    $region325: #{forward.1} parent=1 // pred_fallthru
      _
    // Predicated region
    $region326: #{forward.1} parent=1 // pred_check
      _
    $region327: #{forward.1} parent=1 // pred_check_branch
      %7400 = sbr.rel (0) target = $region329
    $region328: #{forward.1} parent=1 // pred_region
      %7401 = dma.done [#allocation4], 32
    $region329: #{forward.1} parent=1 // pred_fallthru
      _
    %7402 = vsyncpa [#allocation3], 1
    %7403 = vsyncpa [#allocation6], 1
    %7404 = vsyncpa [#allocation9], 1
    %7405 = vsyncpa [#allocation12], 1
    %7406 = vsyncpa [#allocation15], 1
    %7407 = vsyncpa [#allocation18], 1
    %7408 = vsyncpa [#allocation21], 1
    %7409 = vsyncpa [#allocation24], 1
    %7410 = vsyncpa [#allocation27], 1
    %7411 = vsyncpa [#allocation30], 1
    %7412 = vsyncpa [#allocation33], 1
    %7413 = vsyncpa [#allocation36], 1
    %7414 = vsyncpa [#allocation39], 1
    %7415 = vsyncpa [#allocation42], 1
    %7416 = vsyncpa [#allocation45], 1
    %7417 = vsyncpa [#allocation48], 1
    %7418 = vsyncpa [#allocation51], 1
    %7419 = vsyncpa [#allocation54], 1
    %7420 = vsyncpa [#allocation4], 1

</llo_original>
